<compile_context>
chip_gen: v7x
topology: tpu7x:2x2x1
jax: 0.10.0
libtpu: 0.0.40
codegen_flags: <defaults>
</compile_context>

<pallas_src>
import functools

import jax
import jax.numpy as jnp
from jax.experimental import pallas as pl
from jax.experimental.pallas import tpu as pltpu


_LANE = 128          # vreg lane width
_SUBLANE = 8

_HW_CACHE = None


def _round_up(x, m):
    return ((x + m - 1) // m) * m


def _cdiv(a, b):
    return -(-a // b)


def _hw():
    """Per-generation tiling / VMEM configuration (cached)."""
    global _HW_CACHE
    if _HW_CACHE is not None:
        return _HW_CACHE
    vmem_cap = 64 * 1024 * 1024
    kind = ""
    try:
        vmem_cap = int(pltpu.get_tpu_info().vmem_capacity_bytes)
    except Exception:
        pass
    try:
        kind = jax.devices()[0].device_kind.lower()
    except Exception:
        pass
    multi_core = ("v7" in kind) or ("tpu7" in kind)
    if vmem_cap >= 100 * 1024 * 1024 and not multi_core:
        # v5e / v6e: 128 MiB VMEM, single TensorCore -> big tiles, no forced split.
        _HW_CACHE = dict(tm_target=1024, step_budget=32 << 20,
                         vmem_limit=96 << 20, multi_core=False)
    else:
        # v7x (64 MiB / TC, 2 TCs) or unknown hardware: conservative working
        # set, keep >= 2 grid steps so both TensorCores get work.
        _HW_CACHE = dict(tm_target=512, step_budget=12 << 20,
                         vmem_limit=40 << 20, multi_core=multi_core)
    return _HW_CACHE


# ----------------------------------------------------------------------------
# Fused Pallas kernel:
#   out[:, q] = act( W_fused @ im2col(x_flat)[:, q] + b )
# computed as ONE MXU contraction with K = Cin*kh*kw per lane-dense block.
# ----------------------------------------------------------------------------
def _conv_flat_kernel(x_ref, h_ref, w_ref, b_ref, o_ref, col_ref, *,
                      taps, cin, k_used, act, act_split, lane_chunk):
    """One lane-dense output block.

    x_ref:   (Cin, tm)      bf16  current lane-aligned block of the flat image
    h_ref:   (Cin, halo)    bf16  next `halo` flat positions (tap lookahead)
    w_ref:   (Cout_p, K_p)  bf16  fused tap-major weight matrix (resident)
    b_ref:   (Cout_p, 1)    f32   resident bias
    o_ref:   (Cout_p, tm)         lane-dense output block
    col_ref: (K_p, tm)      bf16  im2col slab scratch
    """
    tm = x_ref.shape[1]

    # -- fused im2col: each tap's statically shifted window goes straight
    #    into its sublane-aligned row group of the slab (single VMEM copy) --
    for t, d in enumerate(taps):
        r0 = t * cin
        if d == 0:
            col_ref[r0:r0 + cin, :] = x_ref[...]
        else:
            col_ref[r0:r0 + cin, :tm - d] = x_ref[:, d:]
            col_ref[r0:r0 + cin, tm - d:] = h_ref[:, :d]
    k_p = col_ref.shape[0]
    if k_p > k_used:
        # Only 1x1 convs with Cin % 8 != 0 reach here; zero the pad rows every
        # step (scratch is per-core and uninitialised -> shard-safe this way).
        col_ref[k_used:, :] = jnp.zeros((k_p - k_used, tm), col_ref.dtype)

    w = w_ref[...]
    bias = b_ref[...]

    # -- single K-fused MXU contraction, lane-chunked to bound vreg pressure --
    for c0 in range(0, tm, lane_chunk):
        csz = min(lane_chunk, tm - c0)
        acc = jnp.dot(w, col_ref[:, c0:c0 + csz],
                      preferred_element_type=jnp.float32)
        acc = acc + bias                       # (Cout_p, 1) broadcasts on lanes
        if act == "relu":
            acc = jnp.maximum(acc, 0.0)
        elif act == "sigmoid":
            acc = jax.nn.sigmoid(acc)
        elif act == "offmask":
            # rows >= act_split are the modulation mask -> sigmoid (EUP slot),
            # rows < act_split are raw offsets (identity).
            rows = jax.lax.broadcasted_iota(jnp.int32, acc.shape, 0)
            acc = jnp.where(rows >= act_split, jax.nn.sigmoid(acc), acc)
        o_ref[:, c0:c0 + csz] = acc.astype(o_ref.dtype)


def _choose_tile(n_pos, halo, bytes_per_pos, hw):
    """Lane tile tm (multiple of `halo`, itself a multiple of 128) + #blocks."""
    l128 = _round_up(max(n_pos, 1), _LANE)
    tm = _round_up(max(hw["tm_target"], halo), halo)
    tm = min(tm, _round_up(l128, halo))          # do not exceed what is needed
    while tm > halo and tm * bytes_per_pos > hw["step_budget"]:
        tm -= halo
    nblk = _cdiv(l128, tm)
    if hw["multi_core"] and nblk == 1 and l128 > halo:
        tm2 = _round_up(_cdiv(l128, 2), halo)    # feed both v7x TensorCores
        if tm2 < tm:
            tm = tm2
            nblk = _cdiv(l128, tm)
    return tm, nblk


def conv_valid(x_img, w, b, window, act="none", act_split=0,
               out_dtype=jnp.float32):
    """Fused-im2col 'valid' conv on a pre-padded image.

    x_img:  (Cin, N, Hi, Wi) pre-padded image (channel-first).
    w:      (Cout, Cin, kh, kw);  b: (Cout,)
    window: (r0, c0, Hout, Wout) slice of the (Hi, Wi) output grid to return.
    Returns (Cout, N, Hout, Wout) in out_dtype.
    """
    Cin0, N, Hi, Wi = x_img.shape
    Cout, Cin_w, kh, kw = w.shape
    assert Cin_w == Cin0
    r0, c0, Hout, Wout = window
    assert r0 + Hout - 1 <= Hi - kh and c0 + Wout - 1 <= Wi - kw

    kk = kh * kw
    # Pad channels so every tap's row group in the im2col slab is sublane
    # aligned and K is automatically a multiple of 8 (multi-tap convs only).
    Cin = _round_up(Cin0, _SUBLANE) if kk > 1 else Cin0
    if Cin != Cin0:
        x_img = jnp.pad(x_img, ((0, Cin - Cin0), (0, 0), (0, 0), (0, 0)))
        w = jnp.pad(w, ((0, 0), (0, Cin - Cin0), (0, 0), (0, 0)))

    taps = tuple(dy * Wi + dx for dy in range(kh) for dx in range(kw))
    halo = _round_up(max(taps[-1], 1), _LANE)

    K = Cin * kk
    K_p = _round_up(K, _SUBLANE)
    Cout_p = _round_up(Cout, _SUBLANE)
    out_isz = jnp.dtype(out_dtype).itemsize

    hw = _hw()
    # per-position working set: double-buffered input + col slab + 2x output
    bytes_per_pos = 4 * Cin + 2 * K_p + 2 * out_isz * Cout_p
    n_pos = N * Hi * Wi
    tm, nblk = _choose_tile(n_pos, halo, bytes_per_pos, hw)
    l_grid = tm * nblk
    l_pad = l_grid + halo

    x_flat = x_img.reshape(Cin, n_pos).astype(jnp.bfloat16)    # bf16 MXU operand
    x_flat = jnp.pad(x_flat, ((0, 0), (0, l_pad - n_pos)))

    # fused tap-major weight: (Cout, kh, kw, Cin) -> (Cout_p, K_p), bf16
    wt = jnp.transpose(w, (0, 2, 3, 1)).reshape(Cout, K)
    wt = jnp.pad(wt, ((0, Cout_p - Cout), (0, K_p - K))).astype(jnp.bfloat16)
    bias = jnp.pad(b.astype(jnp.float32), (0, Cout_p - Cout)).reshape(Cout_p, 1)

    ratio = tm // halo                     # halo BlockSpec indexes in `halo` units

    # lane chunk so the live f32 accumulator stays <= ~24 vregs
    lane_chunk = max(_LANE, ((96 * 1024) // (4 * Cout_p)) // _LANE * _LANE)
    lane_chunk = min(lane_chunk, tm)

    cost = pl.CostEstimate(
        flops=int(2 * Cout_p * K_p * l_grid),
        transcendentals=int(Cout_p * l_grid) if act in ("sigmoid", "offmask") else 0,
        bytes_accessed=int(Cin * l_grid * 2 + Cin * halo * nblk * 2
                           + wt.size * 2 + bias.size * 4
                           + Cout_p * l_grid * out_isz))

    out = pl.pallas_call(
        functools.partial(_conv_flat_kernel, taps=taps, cin=Cin, k_used=K,
                          act=act, act_split=act_split, lane_chunk=lane_chunk),
        out_shape=jax.ShapeDtypeStruct((Cout_p, l_grid), out_dtype),
        grid=(nblk,),
        in_specs=[
            pl.BlockSpec((Cin, tm), lambda j: (0, j)),
            pl.BlockSpec((Cin, halo), lambda j: (0, (j + 1) * ratio)),
            pl.BlockSpec((Cout_p, K_p), lambda j: (0, 0)),
            pl.BlockSpec((Cout_p, 1), lambda j: (0, 0)),
        ],
        out_specs=pl.BlockSpec((Cout_p, tm), lambda j: (0, j)),
        scratch_shapes=[pltpu.VMEM((K_p, tm), jnp.bfloat16)],
        compiler_params=pltpu.CompilerParams(
            dimension_semantics=("parallel",),
            vmem_limit_bytes=hw["vmem_limit"]),
        cost_estimate=cost,
    )(x_flat, x_flat, wt, bias)

    out = out[:Cout, :n_pos].reshape(Cout, N, Hi, Wi)
    return out[:, :, r0:r0 + Hout, c0:c0 + Wout]


# ----------------------------------------------------------------------------
# Layer wrappers (all channel-first: activations are (C, N, H, W)).
# ----------------------------------------------------------------------------
def conv_same(x, w, b, stride=1, act="relu", act_split=0, out_dtype=jnp.bfloat16):
    """PyTorch 'same' Conv2d (odd kernel), stride 1 or 2."""
    Cin, N, H, W = x.shape
    Cout, _, kh, kw = w.shape
    ph, pw = kh // 2, kw // 2

    if stride == 1:
        xp = jnp.pad(x, ((0, 0), (0, 0), (ph, ph), (pw, pw)))
        return conv_valid(xp, w, b, (0, 0, H, W), act=act, act_split=act_split,
                          out_dtype=out_dtype)

    assert stride == 2
    Ho = (H + 2 * ph - kh) // 2 + 1
    Wo = (W + 2 * pw - kw) // 2 + 1
    Hp, Wp = H + 2 * ph, W + 2 * pw
    # TODO(synk): fold the 2x2 phase extraction into the conv input indexing
    # (strided window DMA) instead of an XLA re-layout pass.
    xp = jnp.pad(x, ((0, 0), (0, 0), (ph, ph + Hp % 2), (pw, pw + Wp % 2)))
    phases = [xp[:, :, py::2, px::2] for py in (0, 1) for px in (0, 1)]
    xph = jnp.concatenate(phases, axis=0)                  # (4*Cin, N, Hq, Wq)
    kh2, kw2 = (kh + 1) // 2, (kw + 1) // 2
    wq = jnp.zeros((Cout, 4 * Cin, kh2, kw2), w.dtype)
    for pi, (py, px) in enumerate(((0, 0), (0, 1), (1, 0), (1, 1))):
        for dy in range(kh2):
            for dx in range(kw2):
                ky, kx = 2 * dy + py, 2 * dx + px
                if ky < kh and kx < kw:
                    wq = wq.at[:, pi * Cin:(pi + 1) * Cin, dy, dx].set(w[:, :, ky, kx])
    return conv_valid(xph, wq, b, (0, 0, Ho, Wo), act=act, act_split=act_split,
                      out_dtype=out_dtype)


def conv_transpose_4x4_s2(x, w, b, act="relu", out_dtype=jnp.bfloat16):
    """PyTorch ConvTranspose2d(k=4, stride=2, padding=1) via sub-pixel phases.

    x: (Cin, N, H, W);  w: (Cin, Cout, 4, 4) (PyTorch layout);  b: (Cout,)
    Output (Cout, N, 2H, 2W).  No zero-inserted dilated input is built.
    """
    Cin, N, H, W = x.shape
    Cout = w.shape[1]
    xp = jnp.pad(x, ((0, 0), (0, 0), (1, 1), (1, 1)))      # (Cin, N, H+2, W+2)

    # phase (ry, rx) -> out[2m+ry, 2n+rx]; 2x2 kernel K[dy,dx] = w[3-ry-2dy, 3-rx-2dx]
    ks = []
    for ry in (0, 1):
        for rx in (0, 1):
            sub = w[:, :, 3 - ry::-2, 3 - rx::-2]          # (Cin, Cout, 2, 2)
            ks.append(jnp.transpose(sub, (1, 0, 2, 3)))    # (Cout, Cin, 2, 2)
    w_all = jnp.concatenate(ks, axis=0)                    # (4*Cout, Cin, 2, 2)
    b_all = jnp.tile(b, 4)

    yfull = conv_valid(xp, w_all, b_all, (0, 0, H + 1, W + 1),
                       act=act, out_dtype=out_dtype)       # (4*Cout, N, H+1, W+1)
    ph = yfull.reshape(2, 2, Cout, N, H + 1, W + 1)
    phs = jnp.stack([
        ph[0, 0, :, :, 0:H, 0:W],
        ph[0, 1, :, :, 0:H, 1:1 + W],
        ph[1, 0, :, :, 1:1 + H, 0:W],
        ph[1, 1, :, :, 1:1 + H, 1:1 + W],
    ], axis=0).reshape(2, 2, Cout, N, H, W)
    # TODO(synk): keep activations phase-major into the next conv to avoid this
    # depth-to-space re-layout pass in XLA.
    return jnp.transpose(phs, (2, 3, 4, 0, 5, 1)).reshape(Cout, N, 2 * H, 2 * W)


def modulated_deform_conv(x_cf, off, msk, w, b, k=3, pad=1):
    """DCNv2 with deformable_groups == Cin (one group per input channel).

    x_cf: (C, N, H, W) f32 original input (channel-first).
    off:  (C*2*k*k, N, H, W) per group ordered (kernel_idx, (dy, dx)) — mmcv
          ModulatedDeformConv channel layout (verify against the reference).
    msk:  (C*k*k, N, H, W)  (already sigmoided).
    w:    (Cout, C, k, k);  b: (Cout,)
    Returns (Cout, N, H, W) f32 with STDF_org's trailing ReLU fused in.
    """
    C, N, H, W = x_cf.shape
    kk = k * k
    off = off.reshape(C, kk, 2, N, H, W)
    msk = msk.reshape(C, kk, N, H, W)

    ky = (jnp.arange(kk, dtype=jnp.float32) // k) - pad
    kx = (jnp.arange(kk, dtype=jnp.float32) % k) - pad
    hh = jnp.arange(H, dtype=jnp.float32)
    ww = jnp.arange(W, dtype=jnp.float32)
    y = off[:, :, 0] + ky[None, :, None, None, None] + hh[None, None, None, :, None]
    xc = off[:, :, 1] + kx[None, :, None, None, None] + ww[None, None, None, None, :]

    y0 = jnp.floor(y)
    x0 = jnp.floor(xc)
    wy1, wx1 = y - y0, xc - x0
    wy0, wx0 = 1.0 - wy1, 1.0 - wx1

    x_rows = x_cf.astype(jnp.float32).reshape(C, N * H * W)
    n_base = (jnp.arange(N, dtype=jnp.int32) * (H * W))[None, None, :, None, None]

    # TODO(synk): move the data-dependent bilinear gather + 1x1 reduction into
    # one Pallas kernel (VMEM-resident rows, in-kernel gather) so `vals` never
    # touches HBM; for now it is one fused XLA gather per corner.
    def corner(yq, xq, wgt):
        valid = (yq >= 0.0) & (yq <= H - 1.0) & (xq >= 0.0) & (xq <= W - 1.0)
        yi = jnp.clip(yq, 0.0, H - 1.0).astype(jnp.int32)
        xi = jnp.clip(xq, 0.0, W - 1.0).astype(jnp.int32)
        idx = (n_base + yi * W + xi).reshape(C, kk * N * H * W)
        g = jnp.take_along_axis(x_rows, idx, axis=1).reshape(C, kk, N, H, W)
        return g * jnp.where(valid, wgt, 0.0)

    # modulation mask folded into the bilinear corner weights; the sum is cast
    # to bf16 so only one bf16 copy of the C*k*k-channel tensor hits HBM.
    vals = (corner(y0, x0, wy0 * wx0 * msk)
            + corner(y0, x0 + 1.0, wy0 * wx1 * msk)
            + corner(y0 + 1.0, x0, wy1 * wx0 * msk)
            + corner(y0 + 1.0, x0 + 1.0, wy1 * wx1 * msk))

    a = vals.astype(jnp.bfloat16).reshape(C * kk, N, H, W)
    wm = w.reshape(w.shape[0], C * kk)[:, :, None, None]   # 1x1-conv weights
    return conv_valid(a, wm, b, (0, 0, H, W), act="relu", out_dtype=jnp.float32)


# ----------------------------------------------------------------------------
# STDF_org parameters + forward
# ----------------------------------------------------------------------------
def init_params(key, in_nc, out_nc, nf, nb, base_ks=3, deform_ks=3):
    params = {}

    def nxt():
        nonlocal key
        key, sub = jax.random.split(key)
        return sub

    def conv_w(cout, cin, k):
        return jax.random.normal(nxt(), (cout, cin, k, k), jnp.float32) * 0.05

    params["in_conv_w"] = conv_w(nf, in_nc, base_ks)
    params["in_conv_b"] = jnp.zeros((nf,), jnp.float32)
    for i in range(1, nb):
        params[f"dn_conv{i}_w"] = conv_w(nf, nf, base_ks)
        params[f"dn_conv{i}_b"] = jnp.zeros((nf,), jnp.float32)
        params[f"up_conv{i}_0_w"] = conv_w(nf, 2 * nf, base_ks)
        params[f"up_conv{i}_0_b"] = jnp.zeros((nf,), jnp.float32)
        # ConvTranspose2d weight layout: (Cin, Cout, 4, 4)
        params[f"up_conv{i}_1_w"] = jax.random.normal(nxt(), (nf, nf, 4, 4), jnp.float32) * 0.05
        params[f"up_conv{i}_1_b"] = jnp.zeros((nf,), jnp.float32)
    params["tr_conv0_w"] = conv_w(nf, nf, base_ks)
    params["tr_conv0_b"] = jnp.zeros((nf,), jnp.float32)
    params["tr_conv1_w"] = jax.random.normal(nxt(), (nf, nf, 4, 4), jnp.float32) * 0.05
    params["tr_conv1_b"] = jnp.zeros((nf,), jnp.float32)
    n_om = in_nc * 3 * deform_ks * deform_ks
    params["offset_mask_w"] = conv_w(n_om, nf, base_ks)
    params["offset_mask_b"] = jnp.zeros((n_om,), jnp.float32)
    params["dcn_w"] = conv_w(out_nc, in_nc, deform_ks)
    params["dcn_b"] = jnp.zeros((out_nc,), jnp.float32)
    return params


def stdf_forward(params, inputs, *, in_nc, nb, deform_ks=3):
    n_off_msk = deform_ks * deform_ks
    x_cf = jnp.transpose(inputs, (1, 0, 2, 3))             # (C, N, H, W)

    out_lst = [conv_same(x_cf, params["in_conv_w"], params["in_conv_b"],
                         stride=1, act="relu", out_dtype=jnp.bfloat16)]
    for i in range(1, nb):
        out_lst.append(conv_same(out_lst[i - 1],
                                 params[f"dn_conv{i}_w"], params[f"dn_conv{i}_b"],
                                 stride=2, act="relu", out_dtype=jnp.bfloat16))

    out = conv_same(out_lst[-1], params["tr_conv0_w"], params["tr_conv0_b"],
                    stride=2, act="relu", out_dtype=jnp.bfloat16)
    out = conv_transpose_4x4_s2(out, params["tr_conv1_w"], params["tr_conv1_b"],
                                act="relu", out_dtype=jnp.bfloat16)

    for i in range(nb - 1, 0, -1):
        cat = jnp.concatenate([out, out_lst[i]], axis=0)    # channel axis = 0
        out = conv_same(cat, params[f"up_conv{i}_0_w"], params[f"up_conv{i}_0_b"],
                        stride=1, act="relu", out_dtype=jnp.bfloat16)
        out = conv_transpose_4x4_s2(out, params[f"up_conv{i}_1_w"],
                                    params[f"up_conv{i}_1_b"],
                                    act="relu", out_dtype=jnp.bfloat16)

    # offset/mask conv in f32 (sampling-coordinate precision); the mask sigmoid
    # is fused into the kernel epilogue on the tail channels.
    split = in_nc * 2 * n_off_msk
    off_msk = conv_same(out, params["offset_mask_w"], params["offset_mask_b"],
                        stride=1, act="offmask", act_split=split,
                        out_dtype=jnp.float32)
    off = off_msk[:split]
    msk = off_msk[split:]                                   # already sigmoided

    fused_feat = modulated_deform_conv(x_cf, off, msk,
                                       params["dcn_w"], params["dcn_b"],
                                       k=deform_ks, pad=deform_ks // 2)
    return jnp.transpose(fused_feat, (1, 0, 2, 3))          # back to NCHW, f32


# ----------------------------------------------------------------------------
if __name__ == "__main__":
    in_nc, out_nc, nf, nb, deform_ks = 4, 4, 8, 2, 3
    N, H, W = 2, 16, 16

    key = jax.random.PRNGKey(0)
    pkey, xkey = jax.random.split(key)
    params = init_params(pkey, in_nc, out_nc, nf, nb, base_ks=3, deform_ks=deform_ks)
    x = jax.random.normal(xkey, (N, in_nc, H, W), jnp.float32)

    fwd = jax.jit(functools.partial(stdf_forward, in_nc=in_nc, nb=nb,
                                    deform_ks=deform_ks))
    out = jax.block_until_ready(fwd(params, x))

    assert out.shape == (N, out_nc, H, W), out.shape
    assert out.dtype == jnp.float32
    assert bool(jnp.all(jnp.isfinite(out)))
    print("KERNEL_OK")
</pallas_src>

<mosaic_0001>
module attributes {stable_mosaic.version = 11 : i64} {
  func.func @_conv_flat_kernel(%arg0: i32, %arg1: memref<8x512xbf16, #tpu.memory_space<vmem>>, %arg2: memref<8x128xbf16, #tpu.memory_space<vmem>>, %arg3: memref<8x72xbf16, #tpu.memory_space<vmem>>, %arg4: memref<8x1xf32, #tpu.memory_space<vmem>>, %arg5: memref<8x512xbf16, #tpu.memory_space<vmem>>, %arg6: memref<72x512xbf16, #tpu.memory_space<vmem>>) attributes {dimension_semantics = [#tpu.dimension_semantics<parallel>], iteration_bounds = array<i64: 2>, scalar_prefetch = 0 : i64, scratch_operands = 1 : i64, tpu.core_type = #tpu.core_type<tc>, window_params = [{transform_indices = @transform_0, window_bounds = array<i64: 8, 512>}, {transform_indices = @transform_1, window_bounds = array<i64: 8, 128>}, {pipeline_mode = #tpu.pipeline_mode<synchronous>, transform_indices = @transform_2, window_bounds = array<i64: 8, 72>}, {pipeline_mode = #tpu.pipeline_mode<synchronous>, transform_indices = @transform_3, window_bounds = array<i64: 8, 1>}, {transform_indices = @transform_4, window_bounds = array<i64: 8, 512>}]} {
    %c0 = arith.constant 0 : index
    %c0_0 = arith.constant 0 : index
    %0 = vector.load %arg1[%c0, %c0_0] : memref<8x512xbf16, #tpu.memory_space<vmem>>, vector<8x512xbf16>
    %c0_1 = arith.constant 0 : index
    %c0_2 = arith.constant 0 : index
    %1 = vector.load %arg6[%c0_1, %c0_2] : memref<72x512xbf16, #tpu.memory_space<vmem>>, vector<8x512xbf16>
    tpu.vector_store %arg6[%c0_1, %c0_2], %0 {strides = array<i32>} : memref<72x512xbf16, #tpu.memory_space<vmem>>, vector<8x512xbf16>,
    %c0_3 = arith.constant 0 : index
    %c1 = arith.constant 1 : index
    %2 = vector.load %arg1[%c0_3, %c1] : memref<8x512xbf16, #tpu.memory_space<vmem>>, vector<8x511xbf16>
    %c8 = arith.constant 8 : index
    %c0_4 = arith.constant 0 : index
    %3 = vector.load %arg6[%c8, %c0_4] : memref<72x512xbf16, #tpu.memory_space<vmem>>, vector<8x511xbf16>
    tpu.vector_store %arg6[%c8, %c0_4], %2 {strides = array<i32>} : memref<72x512xbf16, #tpu.memory_space<vmem>>, vector<8x511xbf16>,
    %c0_5 = arith.constant 0 : index
    %c0_6 = arith.constant 0 : index
    %4 = vector.load %arg2[%c0_5, %c0_6] : memref<8x128xbf16, #tpu.memory_space<vmem>>, vector<8x1xbf16>
    %c8_7 = arith.constant 8 : index
    %c511 = arith.constant 511 : index
    %5 = vector.load %arg6[%c8_7, %c511] : memref<72x512xbf16, #tpu.memory_space<vmem>>, vector<8x1xbf16>
    tpu.vector_store %arg6[%c8_7, %c511], %4 {strides = array<i32>} : memref<72x512xbf16, #tpu.memory_space<vmem>>, vector<8x1xbf16>,
    %c0_8 = arith.constant 0 : index
    %c2 = arith.constant 2 : index
    %6 = vector.load %arg1[%c0_8, %c2] : memref<8x512xbf16, #tpu.memory_space<vmem>>, vector<8x510xbf16>
    %c16 = arith.constant 16 : index
    %c0_9 = arith.constant 0 : index
    %7 = vector.load %arg6[%c16, %c0_9] : memref<72x512xbf16, #tpu.memory_space<vmem>>, vector<8x510xbf16>
    tpu.vector_store %arg6[%c16, %c0_9], %6 {strides = array<i32>} : memref<72x512xbf16, #tpu.memory_space<vmem>>, vector<8x510xbf16>,
    %c0_10 = arith.constant 0 : index
    %c0_11 = arith.constant 0 : index
    %8 = vector.load %arg2[%c0_10, %c0_11] : memref<8x128xbf16, #tpu.memory_space<vmem>>, vector<8x2xbf16>
    %c16_12 = arith.constant 16 : index
    %c510 = arith.constant 510 : index
    %9 = vector.load %arg6[%c16_12, %c510] : memref<72x512xbf16, #tpu.memory_space<vmem>>, vector<8x2xbf16>
    tpu.vector_store %arg6[%c16_12, %c510], %8 {strides = array<i32>} : memref<72x512xbf16, #tpu.memory_space<vmem>>, vector<8x2xbf16>,
    %c0_13 = arith.constant 0 : index
    %c18 = arith.constant 18 : index
    %10 = vector.load %arg1[%c0_13, %c18] : memref<8x512xbf16, #tpu.memory_space<vmem>>, vector<8x494xbf16>
    %c24 = arith.constant 24 : index
    %c0_14 = arith.constant 0 : index
    %11 = vector.load %arg6[%c24, %c0_14] : memref<72x512xbf16, #tpu.memory_space<vmem>>, vector<8x494xbf16>
    tpu.vector_store %arg6[%c24, %c0_14], %10 {strides = array<i32>} : memref<72x512xbf16, #tpu.memory_space<vmem>>, vector<8x494xbf16>,
    %c0_15 = arith.constant 0 : index
    %c0_16 = arith.constant 0 : index
    %12 = vector.load %arg2[%c0_15, %c0_16] : memref<8x128xbf16, #tpu.memory_space<vmem>>, vector<8x18xbf16>
    %c24_17 = arith.constant 24 : index
    %c494 = arith.constant 494 : index
    %13 = vector.load %arg6[%c24_17, %c494] : memref<72x512xbf16, #tpu.memory_space<vmem>>, vector<8x18xbf16>
    tpu.vector_store %arg6[%c24_17, %c494], %12 {strides = array<i32>} : memref<72x512xbf16, #tpu.memory_space<vmem>>, vector<8x18xbf16>,
    %c0_18 = arith.constant 0 : index
    %c19 = arith.constant 19 : index
    %14 = vector.load %arg1[%c0_18, %c19] : memref<8x512xbf16, #tpu.memory_space<vmem>>, vector<8x493xbf16>
    %c32 = arith.constant 32 : index
    %c0_19 = arith.constant 0 : index
    %15 = vector.load %arg6[%c32, %c0_19] : memref<72x512xbf16, #tpu.memory_space<vmem>>, vector<8x493xbf16>
    tpu.vector_store %arg6[%c32, %c0_19], %14 {strides = array<i32>} : memref<72x512xbf16, #tpu.memory_space<vmem>>, vector<8x493xbf16>,
    %c0_20 = arith.constant 0 : index
    %c0_21 = arith.constant 0 : index
    %16 = vector.load %arg2[%c0_20, %c0_21] : memref<8x128xbf16, #tpu.memory_space<vmem>>, vector<8x19xbf16>
    %c32_22 = arith.constant 32 : index
    %c493 = arith.constant 493 : index
    %17 = vector.load %arg6[%c32_22, %c493] : memref<72x512xbf16, #tpu.memory_space<vmem>>, vector<8x19xbf16>
    tpu.vector_store %arg6[%c32_22, %c493], %16 {strides = array<i32>} : memref<72x512xbf16, #tpu.memory_space<vmem>>, vector<8x19xbf16>,
    %c0_23 = arith.constant 0 : index
    %c20 = arith.constant 20 : index
    %18 = vector.load %arg1[%c0_23, %c20] : memref<8x512xbf16, #tpu.memory_space<vmem>>, vector<8x492xbf16>
    %c40 = arith.constant 40 : index
    %c0_24 = arith.constant 0 : index
    %19 = vector.load %arg6[%c40, %c0_24] : memref<72x512xbf16, #tpu.memory_space<vmem>>, vector<8x492xbf16>
    tpu.vector_store %arg6[%c40, %c0_24], %18 {strides = array<i32>} : memref<72x512xbf16, #tpu.memory_space<vmem>>, vector<8x492xbf16>,
    %c0_25 = arith.constant 0 : index
    %c0_26 = arith.constant 0 : index
    %20 = vector.load %arg2[%c0_25, %c0_26] : memref<8x128xbf16, #tpu.memory_space<vmem>>, vector<8x20xbf16>
    %c40_27 = arith.constant 40 : index
    %c492 = arith.constant 492 : index
    %21 = vector.load %arg6[%c40_27, %c492] : memref<72x512xbf16, #tpu.memory_space<vmem>>, vector<8x20xbf16>
    tpu.vector_store %arg6[%c40_27, %c492], %20 {strides = array<i32>} : memref<72x512xbf16, #tpu.memory_space<vmem>>, vector<8x20xbf16>,
    %c0_28 = arith.constant 0 : index
    %c36 = arith.constant 36 : index
    %22 = vector.load %arg1[%c0_28, %c36] : memref<8x512xbf16, #tpu.memory_space<vmem>>, vector<8x476xbf16>
    %c48 = arith.constant 48 : index
    %c0_29 = arith.constant 0 : index
    %23 = vector.load %arg6[%c48, %c0_29] : memref<72x512xbf16, #tpu.memory_space<vmem>>, vector<8x476xbf16>
    tpu.vector_store %arg6[%c48, %c0_29], %22 {strides = array<i32>} : memref<72x512xbf16, #tpu.memory_space<vmem>>, vector<8x476xbf16>,
    %c0_30 = arith.constant 0 : index
    %c0_31 = arith.constant 0 : index
    %24 = vector.load %arg2[%c0_30, %c0_31] : memref<8x128xbf16, #tpu.memory_space<vmem>>, vector<8x36xbf16>
    %c48_32 = arith.constant 48 : index
    %c476 = arith.constant 476 : index
    %25 = vector.load %arg6[%c48_32, %c476] : memref<72x512xbf16, #tpu.memory_space<vmem>>, vector<8x36xbf16>
    tpu.vector_store %arg6[%c48_32, %c476], %24 {strides = array<i32>} : memref<72x512xbf16, #tpu.memory_space<vmem>>, vector<8x36xbf16>,
    %c0_33 = arith.constant 0 : index
    %c37 = arith.constant 37 : index
    %26 = vector.load %arg1[%c0_33, %c37] : memref<8x512xbf16, #tpu.memory_space<vmem>>, vector<8x475xbf16>
    %c56 = arith.constant 56 : index
    %c0_34 = arith.constant 0 : index
    %27 = vector.load %arg6[%c56, %c0_34] : memref<72x512xbf16, #tpu.memory_space<vmem>>, vector<8x475xbf16>
    tpu.vector_store %arg6[%c56, %c0_34], %26 {strides = array<i32>} : memref<72x512xbf16, #tpu.memory_space<vmem>>, vector<8x475xbf16>,
    %c0_35 = arith.constant 0 : index
    %c0_36 = arith.constant 0 : index
    %28 = vector.load %arg2[%c0_35, %c0_36] : memref<8x128xbf16, #tpu.memory_space<vmem>>, vector<8x37xbf16>
    %c56_37 = arith.constant 56 : index
    %c475 = arith.constant 475 : index
    %29 = vector.load %arg6[%c56_37, %c475] : memref<72x512xbf16, #tpu.memory_space<vmem>>, vector<8x37xbf16>
    tpu.vector_store %arg6[%c56_37, %c475], %28 {strides = array<i32>} : memref<72x512xbf16, #tpu.memory_space<vmem>>, vector<8x37xbf16>,
    %c0_38 = arith.constant 0 : index
    %c38 = arith.constant 38 : index
    %30 = vector.load %arg1[%c0_38, %c38] : memref<8x512xbf16, #tpu.memory_space<vmem>>, vector<8x474xbf16>
    %c64 = arith.constant 64 : index
    %c0_39 = arith.constant 0 : index
    %31 = vector.load %arg6[%c64, %c0_39] : memref<72x512xbf16, #tpu.memory_space<vmem>>, vector<8x474xbf16>
    tpu.vector_store %arg6[%c64, %c0_39], %30 {strides = array<i32>} : memref<72x512xbf16, #tpu.memory_space<vmem>>, vector<8x474xbf16>,
    %c0_40 = arith.constant 0 : index
    %c0_41 = arith.constant 0 : index
    %32 = vector.load %arg2[%c0_40, %c0_41] : memref<8x128xbf16, #tpu.memory_space<vmem>>, vector<8x38xbf16>
    %c64_42 = arith.constant 64 : index
    %c474 = arith.constant 474 : index
    %33 = vector.load %arg6[%c64_42, %c474] : memref<72x512xbf16, #tpu.memory_space<vmem>>, vector<8x38xbf16>
    tpu.vector_store %arg6[%c64_42, %c474], %32 {strides = array<i32>} : memref<72x512xbf16, #tpu.memory_space<vmem>>, vector<8x38xbf16>,
    %c0_43 = arith.constant 0 : index
    %c0_44 = arith.constant 0 : index
    %34 = vector.load %arg3[%c0_43, %c0_44] : memref<8x72xbf16, #tpu.memory_space<vmem>>, vector<8x72xbf16>
    %c0_45 = arith.constant 0 : index
    %c0_46 = arith.constant 0 : index
    %35 = vector.load %arg4[%c0_45, %c0_46] : memref<8x1xf32, #tpu.memory_space<vmem>>, vector<8x1xf32>
    %c0_47 = arith.constant 0 : index
    %c0_48 = arith.constant 0 : index
    %36 = vector.load %arg6[%c0_47, %c0_48] : memref<72x512xbf16, #tpu.memory_space<vmem>>, vector<72x512xbf16>
    %cst = arith.constant dense<0.000000e+00> : vector<8x512xf32>
    %37 = tpu.matmul %34, %36, %cst {dimension_numbers = #tpu.dot_dimension_numbers<[1], [0], [0], [1], [0, 0, 1, 1], [], []>} : vector<8x72xbf16>, vector<72x512xbf16>, vector<8x512xf32> -> vector<8x512xf32>
    %38 = vector.broadcast %35 : vector<8x1xf32> to vector<8x512xf32>
    %39 = arith.addf %37, %38 : vector<8x512xf32>
    %cst_49 = arith.constant 0.000000e+00 : f32
    %40 = vector.broadcast %cst_49 : f32 to vector<8x512xf32>
    %41 = arith.maximumf %39, %40 : vector<8x512xf32>
    %42 = arith.truncf %41 : vector<8x512xf32> to vector<8x512xbf16>
    %c0_50 = arith.constant 0 : index
    %c0_51 = arith.constant 0 : index
    %43 = vector.load %arg5[%c0_50, %c0_51] : memref<8x512xbf16, #tpu.memory_space<vmem>>, vector<8x512xbf16>
    tpu.vector_store %arg5[%c0_50, %c0_51], %42 {strides = array<i32>} : memref<8x512xbf16, #tpu.memory_space<vmem>>, vector<8x512xbf16>,
    return
  }
  func.func @transform_0(%arg0: i32) -> (i32, i32) {
    %c0_i32 = arith.constant 0 : i32
    %c0_i32_0 = arith.constant 0 : i32
    return %c0_i32, %arg0 : i32, i32
  }
  func.func @transform_1(%arg0: i32) -> (i32, i32) {
    %c1_i32 = arith.constant 1 : i32
    %0 = arith.addi %arg0, %c1_i32 : i32
    %c4_i32 = arith.constant 4 : i32
    %1 = arith.muli %0, %c4_i32 : i32
    %c0_i32 = arith.constant 0 : i32
    %c0_i32_0 = arith.constant 0 : i32
    return %c0_i32, %1 : i32, i32
  }
  func.func @transform_2(%arg0: i32) -> (i32, i32) {
    %c0_i32 = arith.constant 0 : i32
    %c0_i32_0 = arith.constant 0 : i32
    %c0_i32_1 = arith.constant 0 : i32
    return %c0_i32, %c0_i32_0 : i32, i32
  }
  func.func @transform_3(%arg0: i32) -> (i32, i32) {
    %c0_i32 = arith.constant 0 : i32
    %c0_i32_0 = arith.constant 0 : i32
    %c0_i32_1 = arith.constant 0 : i32
    return %c0_i32, %c0_i32_0 : i32, i32
  }
  func.func @transform_4(%arg0: i32) -> (i32, i32) {
    %c0_i32 = arith.constant 0 : i32
    %c0_i32_0 = arith.constant 0 : i32
    return %c0_i32, %arg0 : i32, i32
  }
}

module attributes {stable_mosaic.version = 11 : i64} {
  func.func @_conv_flat_kernel(%arg0: i32, %arg1: memref<32x256xbf16, #tpu.memory_space<vmem>>, %arg2: memref<32x128xbf16, #tpu.memory_space<vmem>>, %arg3: memref<8x128xbf16, #tpu.memory_space<vmem>>, %arg4: memref<8x1xf32, #tpu.memory_space<vmem>>, %arg5: memref<8x256xbf16, #tpu.memory_space<vmem>>, %arg6: memref<128x256xbf16, #tpu.memory_space<vmem>>) attributes {dimension_semantics = [#tpu.dimension_semantics<parallel>], iteration_bounds = array<i64: 1>, scalar_prefetch = 0 : i64, scratch_operands = 1 : i64, tpu.core_type = #tpu.core_type<tc>, window_params = [{transform_indices = @transform_0, window_bounds = array<i64: 32, 256>}, {transform_indices = @transform_1, window_bounds = array<i64: 32, 128>}, {pipeline_mode = #tpu.pipeline_mode<synchronous>, transform_indices = @transform_2, window_bounds = array<i64: 8, 128>}, {pipeline_mode = #tpu.pipeline_mode<synchronous>, transform_indices = @transform_3, window_bounds = array<i64: 8, 1>}, {transform_indices = @transform_4, window_bounds = array<i64: 8, 256>}]} {
    %c0 = arith.constant 0 : index
    %c0_0 = arith.constant 0 : index
    %0 = vector.load %arg1[%c0, %c0_0] : memref<32x256xbf16, #tpu.memory_space<vmem>>, vector<32x256xbf16>
    %c0_1 = arith.constant 0 : index
    %c0_2 = arith.constant 0 : index
    %1 = vector.load %arg6[%c0_1, %c0_2] : memref<128x256xbf16, #tpu.memory_space<vmem>>, vector<32x256xbf16>
    tpu.vector_store %arg6[%c0_1, %c0_2], %0 {strides = array<i32>} : memref<128x256xbf16, #tpu.memory_space<vmem>>, vector<32x256xbf16>,
    %c0_3 = arith.constant 0 : index
    %c1 = arith.constant 1 : index
    %2 = vector.load %arg1[%c0_3, %c1] : memref<32x256xbf16, #tpu.memory_space<vmem>>, vector<32x255xbf16>
    %c32 = arith.constant 32 : index
    %c0_4 = arith.constant 0 : index
    %3 = vector.load %arg6[%c32, %c0_4] : memref<128x256xbf16, #tpu.memory_space<vmem>>, vector<32x255xbf16>
    tpu.vector_store %arg6[%c32, %c0_4], %2 {strides = array<i32>} : memref<128x256xbf16, #tpu.memory_space<vmem>>, vector<32x255xbf16>,
    %c0_5 = arith.constant 0 : index
    %c0_6 = arith.constant 0 : index
    %4 = vector.load %arg2[%c0_5, %c0_6] : memref<32x128xbf16, #tpu.memory_space<vmem>>, vector<32x1xbf16>
    %c32_7 = arith.constant 32 : index
    %c255 = arith.constant 255 : index
    %5 = vector.load %arg6[%c32_7, %c255] : memref<128x256xbf16, #tpu.memory_space<vmem>>, vector<32x1xbf16>
    tpu.vector_store %arg6[%c32_7, %c255], %4 {strides = array<i32>} : memref<128x256xbf16, #tpu.memory_space<vmem>>, vector<32x1xbf16>,
    %c0_8 = arith.constant 0 : index
    %c9 = arith.constant 9 : index
    %6 = vector.load %arg1[%c0_8, %c9] : memref<32x256xbf16, #tpu.memory_space<vmem>>, vector<32x247xbf16>
    %c64 = arith.constant 64 : index
    %c0_9 = arith.constant 0 : index
    %7 = vector.load %arg6[%c64, %c0_9] : memref<128x256xbf16, #tpu.memory_space<vmem>>, vector<32x247xbf16>
    tpu.vector_store %arg6[%c64, %c0_9], %6 {strides = array<i32>} : memref<128x256xbf16, #tpu.memory_space<vmem>>, vector<32x247xbf16>,
    %c0_10 = arith.constant 0 : index
    %c0_11 = arith.constant 0 : index
    %8 = vector.load %arg2[%c0_10, %c0_11] : memref<32x128xbf16, #tpu.memory_space<vmem>>, vector<32x9xbf16>
    %c64_12 = arith.constant 64 : index
    %c247 = arith.constant 247 : index
    %9 = vector.load %arg6[%c64_12, %c247] : memref<128x256xbf16, #tpu.memory_space<vmem>>, vector<32x9xbf16>
    tpu.vector_store %arg6[%c64_12, %c247], %8 {strides = array<i32>} : memref<128x256xbf16, #tpu.memory_space<vmem>>, vector<32x9xbf16>,
    %c0_13 = arith.constant 0 : index
    %c10 = arith.constant 10 : index
    %10 = vector.load %arg1[%c0_13, %c10] : memref<32x256xbf16, #tpu.memory_space<vmem>>, vector<32x246xbf16>
    %c96 = arith.constant 96 : index
    %c0_14 = arith.constant 0 : index
    %11 = vector.load %arg6[%c96, %c0_14] : memref<128x256xbf16, #tpu.memory_space<vmem>>, vector<32x246xbf16>
    tpu.vector_store %arg6[%c96, %c0_14], %10 {strides = array<i32>} : memref<128x256xbf16, #tpu.memory_space<vmem>>, vector<32x246xbf16>,
    %c0_15 = arith.constant 0 : index
    %c0_16 = arith.constant 0 : index
    %12 = vector.load %arg2[%c0_15, %c0_16] : memref<32x128xbf16, #tpu.memory_space<vmem>>, vector<32x10xbf16>
    %c96_17 = arith.constant 96 : index
    %c246 = arith.constant 246 : index
    %13 = vector.load %arg6[%c96_17, %c246] : memref<128x256xbf16, #tpu.memory_space<vmem>>, vector<32x10xbf16>
    tpu.vector_store %arg6[%c96_17, %c246], %12 {strides = array<i32>} : memref<128x256xbf16, #tpu.memory_space<vmem>>, vector<32x10xbf16>,
    %c0_18 = arith.constant 0 : index
    %c0_19 = arith.constant 0 : index
    %14 = vector.load %arg3[%c0_18, %c0_19] : memref<8x128xbf16, #tpu.memory_space<vmem>>, vector<8x128xbf16>
    %c0_20 = arith.constant 0 : index
    %c0_21 = arith.constant 0 : index
    %15 = vector.load %arg4[%c0_20, %c0_21] : memref<8x1xf32, #tpu.memory_space<vmem>>, vector<8x1xf32>
    %c0_22 = arith.constant 0 : index
    %c0_23 = arith.constant 0 : index
    %16 = vector.load %arg6[%c0_22, %c0_23] : memref<128x256xbf16, #tpu.memory_space<vmem>>, vector<128x256xbf16>
    %cst = arith.constant dense<0.000000e+00> : vector<8x256xf32>
    %17 = tpu.matmul %14, %16, %cst {dimension_numbers = #tpu.dot_dimension_numbers<[1], [0], [0], [1], [0, 0, 1, 1], [], []>} : vector<8x128xbf16>, vector<128x256xbf16>, vector<8x256xf32> -> vector<8x256xf32>
    %18 = vector.broadcast %15 : vector<8x1xf32> to vector<8x256xf32>
    %19 = arith.addf %17, %18 : vector<8x256xf32>
    %cst_24 = arith.constant 0.000000e+00 : f32
    %20 = vector.broadcast %cst_24 : f32 to vector<8x256xf32>
    %21 = arith.maximumf %19, %20 : vector<8x256xf32>
    %22 = arith.truncf %21 : vector<8x256xf32> to vector<8x256xbf16>
    %c0_25 = arith.constant 0 : index
    %c0_26 = arith.constant 0 : index
    %23 = vector.load %arg5[%c0_25, %c0_26] : memref<8x256xbf16, #tpu.memory_space<vmem>>, vector<8x256xbf16>
    tpu.vector_store %arg5[%c0_25, %c0_26], %22 {strides = array<i32>} : memref<8x256xbf16, #tpu.memory_space<vmem>>, vector<8x256xbf16>,
    return
  }
  func.func @transform_0(%arg0: i32) -> (i32, i32) {
    %c0_i32 = arith.constant 0 : i32
    %c0_i32_0 = arith.constant 0 : i32
    return %c0_i32, %arg0 : i32, i32
  }
  func.func @transform_1(%arg0: i32) -> (i32, i32) {
    %c1_i32 = arith.constant 1 : i32
    %0 = arith.addi %arg0, %c1_i32 : i32
    %c2_i32 = arith.constant 2 : i32
    %1 = arith.muli %0, %c2_i32 : i32
    %c0_i32 = arith.constant 0 : i32
    %c0_i32_0 = arith.constant 0 : i32
    return %c0_i32, %1 : i32, i32
  }
  func.func @transform_2(%arg0: i32) -> (i32, i32) {
    %c0_i32 = arith.constant 0 : i32
    %c0_i32_0 = arith.constant 0 : i32
    %c0_i32_1 = arith.constant 0 : i32
    return %c0_i32, %c0_i32_0 : i32, i32
  }
  func.func @transform_3(%arg0: i32) -> (i32, i32) {
    %c0_i32 = arith.constant 0 : i32
    %c0_i32_0 = arith.constant 0 : i32
    %c0_i32_1 = arith.constant 0 : i32
    return %c0_i32, %c0_i32_0 : i32, i32
  }
  func.func @transform_4(%arg0: i32) -> (i32, i32) {
    %c0_i32 = arith.constant 0 : i32
    %c0_i32_0 = arith.constant 0 : i32
    return %c0_i32, %arg0 : i32, i32
  }
}

module attributes {stable_mosaic.version = 11 : i64} {
  func.func @_conv_flat_kernel(%arg0: i32, %arg1: memref<32x128xbf16, #tpu.memory_space<vmem>>, %arg2: memref<32x128xbf16, #tpu.memory_space<vmem>>, %arg3: memref<8x128xbf16, #tpu.memory_space<vmem>>, %arg4: memref<8x1xf32, #tpu.memory_space<vmem>>, %arg5: memref<8x128xbf16, #tpu.memory_space<vmem>>, %arg6: memref<128x128xbf16, #tpu.memory_space<vmem>>) attributes {dimension_semantics = [#tpu.dimension_semantics<parallel>], iteration_bounds = array<i64: 1>, scalar_prefetch = 0 : i64, scratch_operands = 1 : i64, tpu.core_type = #tpu.core_type<tc>, window_params = [{transform_indices = @transform_0, window_bounds = array<i64: 32, 128>}, {transform_indices = @transform_1, window_bounds = array<i64: 32, 128>}, {pipeline_mode = #tpu.pipeline_mode<synchronous>, transform_indices = @transform_2, window_bounds = array<i64: 8, 128>}, {pipeline_mode = #tpu.pipeline_mode<synchronous>, transform_indices = @transform_3, window_bounds = array<i64: 8, 1>}, {transform_indices = @transform_4, window_bounds = array<i64: 8, 128>}]} {
    %c0 = arith.constant 0 : index
    %c0_0 = arith.constant 0 : index
    %0 = vector.load %arg1[%c0, %c0_0] : memref<32x128xbf16, #tpu.memory_space<vmem>>, vector<32x128xbf16>
    %c0_1 = arith.constant 0 : index
    %c0_2 = arith.constant 0 : index
    %1 = vector.load %arg6[%c0_1, %c0_2] : memref<128x128xbf16, #tpu.memory_space<vmem>>, vector<32x128xbf16>
    tpu.vector_store %arg6[%c0_1, %c0_2], %0 {strides = array<i32>} : memref<128x128xbf16, #tpu.memory_space<vmem>>, vector<32x128xbf16>,
    %c0_3 = arith.constant 0 : index
    %c1 = arith.constant 1 : index
    %2 = vector.load %arg1[%c0_3, %c1] : memref<32x128xbf16, #tpu.memory_space<vmem>>, vector<32x127xbf16>
    %c32 = arith.constant 32 : index
    %c0_4 = arith.constant 0 : index
    %3 = vector.load %arg6[%c32, %c0_4] : memref<128x128xbf16, #tpu.memory_space<vmem>>, vector<32x127xbf16>
    tpu.vector_store %arg6[%c32, %c0_4], %2 {strides = array<i32>} : memref<128x128xbf16, #tpu.memory_space<vmem>>, vector<32x127xbf16>,
    %c0_5 = arith.constant 0 : index
    %c0_6 = arith.constant 0 : index
    %4 = vector.load %arg2[%c0_5, %c0_6] : memref<32x128xbf16, #tpu.memory_space<vmem>>, vector<32x1xbf16>
    %c32_7 = arith.constant 32 : index
    %c127 = arith.constant 127 : index
    %5 = vector.load %arg6[%c32_7, %c127] : memref<128x128xbf16, #tpu.memory_space<vmem>>, vector<32x1xbf16>
    tpu.vector_store %arg6[%c32_7, %c127], %4 {strides = array<i32>} : memref<128x128xbf16, #tpu.memory_space<vmem>>, vector<32x1xbf16>,
    %c0_8 = arith.constant 0 : index
    %c5 = arith.constant 5 : index
    %6 = vector.load %arg1[%c0_8, %c5] : memref<32x128xbf16, #tpu.memory_space<vmem>>, vector<32x123xbf16>
    %c64 = arith.constant 64 : index
    %c0_9 = arith.constant 0 : index
    %7 = vector.load %arg6[%c64, %c0_9] : memref<128x128xbf16, #tpu.memory_space<vmem>>, vector<32x123xbf16>
    tpu.vector_store %arg6[%c64, %c0_9], %6 {strides = array<i32>} : memref<128x128xbf16, #tpu.memory_space<vmem>>, vector<32x123xbf16>,
    %c0_10 = arith.constant 0 : index
    %c0_11 = arith.constant 0 : index
    %8 = vector.load %arg2[%c0_10, %c0_11] : memref<32x128xbf16, #tpu.memory_space<vmem>>, vector<32x5xbf16>
    %c64_12 = arith.constant 64 : index
    %c123 = arith.constant 123 : index
    %9 = vector.load %arg6[%c64_12, %c123] : memref<128x128xbf16, #tpu.memory_space<vmem>>, vector<32x5xbf16>
    tpu.vector_store %arg6[%c64_12, %c123], %8 {strides = array<i32>} : memref<128x128xbf16, #tpu.memory_space<vmem>>, vector<32x5xbf16>,
    %c0_13 = arith.constant 0 : index
    %c6 = arith.constant 6 : index
    %10 = vector.load %arg1[%c0_13, %c6] : memref<32x128xbf16, #tpu.memory_space<vmem>>, vector<32x122xbf16>
    %c96 = arith.constant 96 : index
    %c0_14 = arith.constant 0 : index
    %11 = vector.load %arg6[%c96, %c0_14] : memref<128x128xbf16, #tpu.memory_space<vmem>>, vector<32x122xbf16>
    tpu.vector_store %arg6[%c96, %c0_14], %10 {strides = array<i32>} : memref<128x128xbf16, #tpu.memory_space<vmem>>, vector<32x122xbf16>,
    %c0_15 = arith.constant 0 : index
    %c0_16 = arith.constant 0 : index
    %12 = vector.load %arg2[%c0_15, %c0_16] : memref<32x128xbf16, #tpu.memory_space<vmem>>, vector<32x6xbf16>
    %c96_17 = arith.constant 96 : index
    %c122 = arith.constant 122 : index
    %13 = vector.load %arg6[%c96_17, %c122] : memref<128x128xbf16, #tpu.memory_space<vmem>>, vector<32x6xbf16>
    tpu.vector_store %arg6[%c96_17, %c122], %12 {strides = array<i32>} : memref<128x128xbf16, #tpu.memory_space<vmem>>, vector<32x6xbf16>,
    %c0_18 = arith.constant 0 : index
    %c0_19 = arith.constant 0 : index
    %14 = vector.load %arg3[%c0_18, %c0_19] : memref<8x128xbf16, #tpu.memory_space<vmem>>, vector<8x128xbf16>
    %c0_20 = arith.constant 0 : index
    %c0_21 = arith.constant 0 : index
    %15 = vector.load %arg4[%c0_20, %c0_21] : memref<8x1xf32, #tpu.memory_space<vmem>>, vector<8x1xf32>
    %c0_22 = arith.constant 0 : index
    %c0_23 = arith.constant 0 : index
    %16 = vector.load %arg6[%c0_22, %c0_23] : memref<128x128xbf16, #tpu.memory_space<vmem>>, vector<128x128xbf16>
    %cst = arith.constant dense<0.000000e+00> : vector<8x128xf32>
    %17 = tpu.matmul %14, %16, %cst {dimension_numbers = #tpu.dot_dimension_numbers<[1], [0], [0], [1], [0, 0, 1, 1], [], []>} : vector<8x128xbf16>, vector<128x128xbf16>, vector<8x128xf32> -> vector<8x128xf32>
    %18 = vector.broadcast %15 : vector<8x1xf32> to vector<8x128xf32>
    %19 = arith.addf %17, %18 : vector<8x128xf32>
    %cst_24 = arith.constant 0.000000e+00 : f32
    %20 = vector.broadcast %cst_24 : f32 to vector<8x128xf32>
    %21 = arith.maximumf %19, %20 : vector<8x128xf32>
    %22 = arith.truncf %21 : vector<8x128xf32> to vector<8x128xbf16>
    %c0_25 = arith.constant 0 : index
    %c0_26 = arith.constant 0 : index
    %23 = vector.load %arg5[%c0_25, %c0_26] : memref<8x128xbf16, #tpu.memory_space<vmem>>, vector<8x128xbf16>
    tpu.vector_store %arg5[%c0_25, %c0_26], %22 {strides = array<i32>} : memref<8x128xbf16, #tpu.memory_space<vmem>>, vector<8x128xbf16>,
    return
  }
  func.func @transform_0(%arg0: i32) -> (i32, i32) {
    %c0_i32 = arith.constant 0 : i32
    %c0_i32_0 = arith.constant 0 : i32
    return %c0_i32, %arg0 : i32, i32
  }
  func.func @transform_1(%arg0: i32) -> (i32, i32) {
    %c1_i32 = arith.constant 1 : i32
    %0 = arith.addi %arg0, %c1_i32 : i32
    %c1_i32_0 = arith.constant 1 : i32
    %1 = arith.muli %0, %c1_i32_0 : i32
    %c0_i32 = arith.constant 0 : i32
    %c0_i32_1 = arith.constant 0 : i32
    return %c0_i32, %1 : i32, i32
  }
  func.func @transform_2(%arg0: i32) -> (i32, i32) {
    %c0_i32 = arith.constant 0 : i32
    %c0_i32_0 = arith.constant 0 : i32
    %c0_i32_1 = arith.constant 0 : i32
    return %c0_i32, %c0_i32_0 : i32, i32
  }
  func.func @transform_3(%arg0: i32) -> (i32, i32) {
    %c0_i32 = arith.constant 0 : i32
    %c0_i32_0 = arith.constant 0 : i32
    %c0_i32_1 = arith.constant 0 : i32
    return %c0_i32, %c0_i32_0 : i32, i32
  }
  func.func @transform_4(%arg0: i32) -> (i32, i32) {
    %c0_i32 = arith.constant 0 : i32
    %c0_i32_0 = arith.constant 0 : i32
    return %c0_i32, %arg0 : i32, i32
  }
}

module attributes {stable_mosaic.version = 11 : i64} {
  func.func @_conv_flat_kernel(%arg0: i32, %arg1: memref<8x128xbf16, #tpu.memory_space<vmem>>, %arg2: memref<8x128xbf16, #tpu.memory_space<vmem>>, %arg3: memref<32x32xbf16, #tpu.memory_space<vmem>>, %arg4: memref<32x1xf32, #tpu.memory_space<vmem>>, %arg5: memref<32x128xbf16, #tpu.memory_space<vmem>>, %arg6: memref<32x128xbf16, #tpu.memory_space<vmem>>) attributes {dimension_semantics = [#tpu.dimension_semantics<parallel>], iteration_bounds = array<i64: 1>, scalar_prefetch = 0 : i64, scratch_operands = 1 : i64, tpu.core_type = #tpu.core_type<tc>, window_params = [{transform_indices = @transform_0, window_bounds = array<i64: 8, 128>}, {transform_indices = @transform_1, window_bounds = array<i64: 8, 128>}, {pipeline_mode = #tpu.pipeline_mode<synchronous>, transform_indices = @transform_2, window_bounds = array<i64: 32, 32>}, {pipeline_mode = #tpu.pipeline_mode<synchronous>, transform_indices = @transform_3, window_bounds = array<i64: 32, 1>}, {transform_indices = @transform_4, window_bounds = array<i64: 32, 128>}]} {
    %c0 = arith.constant 0 : index
    %c0_0 = arith.constant 0 : index
    %0 = vector.load %arg1[%c0, %c0_0] : memref<8x128xbf16, #tpu.memory_space<vmem>>, vector<8x128xbf16>
    %c0_1 = arith.constant 0 : index
    %c0_2 = arith.constant 0 : index
    %1 = vector.load %arg6[%c0_1, %c0_2] : memref<32x128xbf16, #tpu.memory_space<vmem>>, vector<8x128xbf16>
    tpu.vector_store %arg6[%c0_1, %c0_2], %0 {strides = array<i32>} : memref<32x128xbf16, #tpu.memory_space<vmem>>, vector<8x128xbf16>,
    %c0_3 = arith.constant 0 : index
    %c1 = arith.constant 1 : index
    %2 = vector.load %arg1[%c0_3, %c1] : memref<8x128xbf16, #tpu.memory_space<vmem>>, vector<8x127xbf16>
    %c8 = arith.constant 8 : index
    %c0_4 = arith.constant 0 : index
    %3 = vector.load %arg6[%c8, %c0_4] : memref<32x128xbf16, #tpu.memory_space<vmem>>, vector<8x127xbf16>
    tpu.vector_store %arg6[%c8, %c0_4], %2 {strides = array<i32>} : memref<32x128xbf16, #tpu.memory_space<vmem>>, vector<8x127xbf16>,
    %c0_5 = arith.constant 0 : index
    %c0_6 = arith.constant 0 : index
    %4 = vector.load %arg2[%c0_5, %c0_6] : memref<8x128xbf16, #tpu.memory_space<vmem>>, vector<8x1xbf16>
    %c8_7 = arith.constant 8 : index
    %c127 = arith.constant 127 : index
    %5 = vector.load %arg6[%c8_7, %c127] : memref<32x128xbf16, #tpu.memory_space<vmem>>, vector<8x1xbf16>
    tpu.vector_store %arg6[%c8_7, %c127], %4 {strides = array<i32>} : memref<32x128xbf16, #tpu.memory_space<vmem>>, vector<8x1xbf16>,
    %c0_8 = arith.constant 0 : index
    %c6 = arith.constant 6 : index
    %6 = vector.load %arg1[%c0_8, %c6] : memref<8x128xbf16, #tpu.memory_space<vmem>>, vector<8x122xbf16>
    %c16 = arith.constant 16 : index
    %c0_9 = arith.constant 0 : index
    %7 = vector.load %arg6[%c16, %c0_9] : memref<32x128xbf16, #tpu.memory_space<vmem>>, vector<8x122xbf16>
    tpu.vector_store %arg6[%c16, %c0_9], %6 {strides = array<i32>} : memref<32x128xbf16, #tpu.memory_space<vmem>>, vector<8x122xbf16>,
    %c0_10 = arith.constant 0 : index
    %c0_11 = arith.constant 0 : index
    %8 = vector.load %arg2[%c0_10, %c0_11] : memref<8x128xbf16, #tpu.memory_space<vmem>>, vector<8x6xbf16>
    %c16_12 = arith.constant 16 : index
    %c122 = arith.constant 122 : index
    %9 = vector.load %arg6[%c16_12, %c122] : memref<32x128xbf16, #tpu.memory_space<vmem>>, vector<8x6xbf16>
    tpu.vector_store %arg6[%c16_12, %c122], %8 {strides = array<i32>} : memref<32x128xbf16, #tpu.memory_space<vmem>>, vector<8x6xbf16>,
    %c0_13 = arith.constant 0 : index
    %c7 = arith.constant 7 : index
    %10 = vector.load %arg1[%c0_13, %c7] : memref<8x128xbf16, #tpu.memory_space<vmem>>, vector<8x121xbf16>
    %c24 = arith.constant 24 : index
    %c0_14 = arith.constant 0 : index
    %11 = vector.load %arg6[%c24, %c0_14] : memref<32x128xbf16, #tpu.memory_space<vmem>>, vector<8x121xbf16>
    tpu.vector_store %arg6[%c24, %c0_14], %10 {strides = array<i32>} : memref<32x128xbf16, #tpu.memory_space<vmem>>, vector<8x121xbf16>,
    %c0_15 = arith.constant 0 : index
    %c0_16 = arith.constant 0 : index
    %12 = vector.load %arg2[%c0_15, %c0_16] : memref<8x128xbf16, #tpu.memory_space<vmem>>, vector<8x7xbf16>
    %c24_17 = arith.constant 24 : index
    %c121 = arith.constant 121 : index
    %13 = vector.load %arg6[%c24_17, %c121] : memref<32x128xbf16, #tpu.memory_space<vmem>>, vector<8x7xbf16>
    tpu.vector_store %arg6[%c24_17, %c121], %12 {strides = array<i32>} : memref<32x128xbf16, #tpu.memory_space<vmem>>, vector<8x7xbf16>,
    %c0_18 = arith.constant 0 : index
    %c0_19 = arith.constant 0 : index
    %14 = vector.load %arg3[%c0_18, %c0_19] : memref<32x32xbf16, #tpu.memory_space<vmem>>, vector<32x32xbf16>
    %c0_20 = arith.constant 0 : index
    %c0_21 = arith.constant 0 : index
    %15 = vector.load %arg4[%c0_20, %c0_21] : memref<32x1xf32, #tpu.memory_space<vmem>>, vector<32x1xf32>
    %c0_22 = arith.constant 0 : index
    %c0_23 = arith.constant 0 : index
    %16 = vector.load %arg6[%c0_22, %c0_23] : memref<32x128xbf16, #tpu.memory_space<vmem>>, vector<32x128xbf16>
    %cst = arith.constant dense<0.000000e+00> : vector<32x128xf32>
    %17 = tpu.matmul %14, %16, %cst {dimension_numbers = #tpu.dot_dimension_numbers<[1], [0], [0], [1], [0, 0, 1, 1], [], []>} : vector<32x32xbf16>, vector<32x128xbf16>, vector<32x128xf32> -> vector<32x128xf32>
    %18 = vector.broadcast %15 : vector<32x1xf32> to vector<32x128xf32>
    %19 = arith.addf %17, %18 : vector<32x128xf32>
    %cst_24 = arith.constant 0.000000e+00 : f32
    %20 = vector.broadcast %cst_24 : f32 to vector<32x128xf32>
    %21 = arith.maximumf %19, %20 : vector<32x128xf32>
    %22 = arith.truncf %21 : vector<32x128xf32> to vector<32x128xbf16>
    %c0_25 = arith.constant 0 : index
    %c0_26 = arith.constant 0 : index
    %23 = vector.load %arg5[%c0_25, %c0_26] : memref<32x128xbf16, #tpu.memory_space<vmem>>, vector<32x128xbf16>
    tpu.vector_store %arg5[%c0_25, %c0_26], %22 {strides = array<i32>} : memref<32x128xbf16, #tpu.memory_space<vmem>>, vector<32x128xbf16>,
    return
  }
  func.func @transform_0(%arg0: i32) -> (i32, i32) {
    %c0_i32 = arith.constant 0 : i32
    %c0_i32_0 = arith.constant 0 : i32
    return %c0_i32, %arg0 : i32, i32
  }
  func.func @transform_1(%arg0: i32) -> (i32, i32) {
    %c1_i32 = arith.constant 1 : i32
    %0 = arith.addi %arg0, %c1_i32 : i32
    %c1_i32_0 = arith.constant 1 : i32
    %1 = arith.muli %0, %c1_i32_0 : i32
    %c0_i32 = arith.constant 0 : i32
    %c0_i32_1 = arith.constant 0 : i32
    return %c0_i32, %1 : i32, i32
  }
  func.func @transform_2(%arg0: i32) -> (i32, i32) {
    %c0_i32 = arith.constant 0 : i32
    %c0_i32_0 = arith.constant 0 : i32
    %c0_i32_1 = arith.constant 0 : i32
    return %c0_i32, %c0_i32_0 : i32, i32
  }
  func.func @transform_3(%arg0: i32) -> (i32, i32) {
    %c0_i32 = arith.constant 0 : i32
    %c0_i32_0 = arith.constant 0 : i32
    %c0_i32_1 = arith.constant 0 : i32
    return %c0_i32, %c0_i32_0 : i32, i32
  }
  func.func @transform_4(%arg0: i32) -> (i32, i32) {
    %c0_i32 = arith.constant 0 : i32
    %c0_i32_0 = arith.constant 0 : i32
    return %c0_i32, %arg0 : i32, i32
  }
}

module attributes {stable_mosaic.version = 11 : i64} {
  func.func @_conv_flat_kernel(%arg0: i32, %arg1: memref<16x256xbf16, #tpu.memory_space<vmem>>, %arg2: memref<16x128xbf16, #tpu.memory_space<vmem>>, %arg3: memref<8x144xbf16, #tpu.memory_space<vmem>>, %arg4: memref<8x1xf32, #tpu.memory_space<vmem>>, %arg5: memref<8x256xbf16, #tpu.memory_space<vmem>>, %arg6: memref<144x256xbf16, #tpu.memory_space<vmem>>) attributes {dimension_semantics = [#tpu.dimension_semantics<parallel>], iteration_bounds = array<i64: 1>, scalar_prefetch = 0 : i64, scratch_operands = 1 : i64, tpu.core_type = #tpu.core_type<tc>, window_params = [{transform_indices = @transform_0, window_bounds = array<i64: 16, 256>}, {transform_indices = @transform_1, window_bounds = array<i64: 16, 128>}, {pipeline_mode = #tpu.pipeline_mode<synchronous>, transform_indices = @transform_2, window_bounds = array<i64: 8, 144>}, {pipeline_mode = #tpu.pipeline_mode<synchronous>, transform_indices = @transform_3, window_bounds = array<i64: 8, 1>}, {transform_indices = @transform_4, window_bounds = array<i64: 8, 256>}]} {
    %c0 = arith.constant 0 : index
    %c0_0 = arith.constant 0 : index
    %0 = vector.load %arg1[%c0, %c0_0] : memref<16x256xbf16, #tpu.memory_space<vmem>>, vector<16x256xbf16>
    %c0_1 = arith.constant 0 : index
    %c0_2 = arith.constant 0 : index
    %1 = vector.load %arg6[%c0_1, %c0_2] : memref<144x256xbf16, #tpu.memory_space<vmem>>, vector<16x256xbf16>
    tpu.vector_store %arg6[%c0_1, %c0_2], %0 {strides = array<i32>} : memref<144x256xbf16, #tpu.memory_space<vmem>>, vector<16x256xbf16>,
    %c0_3 = arith.constant 0 : index
    %c1 = arith.constant 1 : index
    %2 = vector.load %arg1[%c0_3, %c1] : memref<16x256xbf16, #tpu.memory_space<vmem>>, vector<16x255xbf16>
    %c16 = arith.constant 16 : index
    %c0_4 = arith.constant 0 : index
    %3 = vector.load %arg6[%c16, %c0_4] : memref<144x256xbf16, #tpu.memory_space<vmem>>, vector<16x255xbf16>
    tpu.vector_store %arg6[%c16, %c0_4], %2 {strides = array<i32>} : memref<144x256xbf16, #tpu.memory_space<vmem>>, vector<16x255xbf16>,
    %c0_5 = arith.constant 0 : index
    %c0_6 = arith.constant 0 : index
    %4 = vector.load %arg2[%c0_5, %c0_6] : memref<16x128xbf16, #tpu.memory_space<vmem>>, vector<16x1xbf16>
    %c16_7 = arith.constant 16 : index
    %c255 = arith.constant 255 : index
    %5 = vector.load %arg6[%c16_7, %c255] : memref<144x256xbf16, #tpu.memory_space<vmem>>, vector<16x1xbf16>
    tpu.vector_store %arg6[%c16_7, %c255], %4 {strides = array<i32>} : memref<144x256xbf16, #tpu.memory_space<vmem>>, vector<16x1xbf16>,
    %c0_8 = arith.constant 0 : index
    %c2 = arith.constant 2 : index
    %6 = vector.load %arg1[%c0_8, %c2] : memref<16x256xbf16, #tpu.memory_space<vmem>>, vector<16x254xbf16>
    %c32 = arith.constant 32 : index
    %c0_9 = arith.constant 0 : index
    %7 = vector.load %arg6[%c32, %c0_9] : memref<144x256xbf16, #tpu.memory_space<vmem>>, vector<16x254xbf16>
    tpu.vector_store %arg6[%c32, %c0_9], %6 {strides = array<i32>} : memref<144x256xbf16, #tpu.memory_space<vmem>>, vector<16x254xbf16>,
    %c0_10 = arith.constant 0 : index
    %c0_11 = arith.constant 0 : index
    %8 = vector.load %arg2[%c0_10, %c0_11] : memref<16x128xbf16, #tpu.memory_space<vmem>>, vector<16x2xbf16>
    %c32_12 = arith.constant 32 : index
    %c254 = arith.constant 254 : index
    %9 = vector.load %arg6[%c32_12, %c254] : memref<144x256xbf16, #tpu.memory_space<vmem>>, vector<16x2xbf16>
    tpu.vector_store %arg6[%c32_12, %c254], %8 {strides = array<i32>} : memref<144x256xbf16, #tpu.memory_space<vmem>>, vector<16x2xbf16>,
    %c0_13 = arith.constant 0 : index
    %c10 = arith.constant 10 : index
    %10 = vector.load %arg1[%c0_13, %c10] : memref<16x256xbf16, #tpu.memory_space<vmem>>, vector<16x246xbf16>
    %c48 = arith.constant 48 : index
    %c0_14 = arith.constant 0 : index
    %11 = vector.load %arg6[%c48, %c0_14] : memref<144x256xbf16, #tpu.memory_space<vmem>>, vector<16x246xbf16>
    tpu.vector_store %arg6[%c48, %c0_14], %10 {strides = array<i32>} : memref<144x256xbf16, #tpu.memory_space<vmem>>, vector<16x246xbf16>,
    %c0_15 = arith.constant 0 : index
    %c0_16 = arith.constant 0 : index
    %12 = vector.load %arg2[%c0_15, %c0_16] : memref<16x128xbf16, #tpu.memory_space<vmem>>, vector<16x10xbf16>
    %c48_17 = arith.constant 48 : index
    %c246 = arith.constant 246 : index
    %13 = vector.load %arg6[%c48_17, %c246] : memref<144x256xbf16, #tpu.memory_space<vmem>>, vector<16x10xbf16>
    tpu.vector_store %arg6[%c48_17, %c246], %12 {strides = array<i32>} : memref<144x256xbf16, #tpu.memory_space<vmem>>, vector<16x10xbf16>,
    %c0_18 = arith.constant 0 : index
    %c11 = arith.constant 11 : index
    %14 = vector.load %arg1[%c0_18, %c11] : memref<16x256xbf16, #tpu.memory_space<vmem>>, vector<16x245xbf16>
    %c64 = arith.constant 64 : index
    %c0_19 = arith.constant 0 : index
    %15 = vector.load %arg6[%c64, %c0_19] : memref<144x256xbf16, #tpu.memory_space<vmem>>, vector<16x245xbf16>
    tpu.vector_store %arg6[%c64, %c0_19], %14 {strides = array<i32>} : memref<144x256xbf16, #tpu.memory_space<vmem>>, vector<16x245xbf16>,
    %c0_20 = arith.constant 0 : index
    %c0_21 = arith.constant 0 : index
    %16 = vector.load %arg2[%c0_20, %c0_21] : memref<16x128xbf16, #tpu.memory_space<vmem>>, vector<16x11xbf16>
    %c64_22 = arith.constant 64 : index
    %c245 = arith.constant 245 : index
    %17 = vector.load %arg6[%c64_22, %c245] : memref<144x256xbf16, #tpu.memory_space<vmem>>, vector<16x11xbf16>
    tpu.vector_store %arg6[%c64_22, %c245], %16 {strides = array<i32>} : memref<144x256xbf16, #tpu.memory_space<vmem>>, vector<16x11xbf16>,
    %c0_23 = arith.constant 0 : index
    %c12 = arith.constant 12 : index
    %18 = vector.load %arg1[%c0_23, %c12] : memref<16x256xbf16, #tpu.memory_space<vmem>>, vector<16x244xbf16>
    %c80 = arith.constant 80 : index
    %c0_24 = arith.constant 0 : index
    %19 = vector.load %arg6[%c80, %c0_24] : memref<144x256xbf16, #tpu.memory_space<vmem>>, vector<16x244xbf16>
    tpu.vector_store %arg6[%c80, %c0_24], %18 {strides = array<i32>} : memref<144x256xbf16, #tpu.memory_space<vmem>>, vector<16x244xbf16>,
    %c0_25 = arith.constant 0 : index
    %c0_26 = arith.constant 0 : index
    %20 = vector.load %arg2[%c0_25, %c0_26] : memref<16x128xbf16, #tpu.memory_space<vmem>>, vector<16x12xbf16>
    %c80_27 = arith.constant 80 : index
    %c244 = arith.constant 244 : index
    %21 = vector.load %arg6[%c80_27, %c244] : memref<144x256xbf16, #tpu.memory_space<vmem>>, vector<16x12xbf16>
    tpu.vector_store %arg6[%c80_27, %c244], %20 {strides = array<i32>} : memref<144x256xbf16, #tpu.memory_space<vmem>>, vector<16x12xbf16>,
    %c0_28 = arith.constant 0 : index
    %c20 = arith.constant 20 : index
    %22 = vector.load %arg1[%c0_28, %c20] : memref<16x256xbf16, #tpu.memory_space<vmem>>, vector<16x236xbf16>
    %c96 = arith.constant 96 : index
    %c0_29 = arith.constant 0 : index
    %23 = vector.load %arg6[%c96, %c0_29] : memref<144x256xbf16, #tpu.memory_space<vmem>>, vector<16x236xbf16>
    tpu.vector_store %arg6[%c96, %c0_29], %22 {strides = array<i32>} : memref<144x256xbf16, #tpu.memory_space<vmem>>, vector<16x236xbf16>,
    %c0_30 = arith.constant 0 : index
    %c0_31 = arith.constant 0 : index
    %24 = vector.load %arg2[%c0_30, %c0_31] : memref<16x128xbf16, #tpu.memory_space<vmem>>, vector<16x20xbf16>
    %c96_32 = arith.constant 96 : index
    %c236 = arith.constant 236 : index
    %25 = vector.load %arg6[%c96_32, %c236] : memref<144x256xbf16, #tpu.memory_space<vmem>>, vector<16x20xbf16>
    tpu.vector_store %arg6[%c96_32, %c236], %24 {strides = array<i32>} : memref<144x256xbf16, #tpu.memory_space<vmem>>, vector<16x20xbf16>,
    %c0_33 = arith.constant 0 : index
    %c21 = arith.constant 21 : index
    %26 = vector.load %arg1[%c0_33, %c21] : memref<16x256xbf16, #tpu.memory_space<vmem>>, vector<16x235xbf16>
    %c112 = arith.constant 112 : index
    %c0_34 = arith.constant 0 : index
    %27 = vector.load %arg6[%c112, %c0_34] : memref<144x256xbf16, #tpu.memory_space<vmem>>, vector<16x235xbf16>
    tpu.vector_store %arg6[%c112, %c0_34], %26 {strides = array<i32>} : memref<144x256xbf16, #tpu.memory_space<vmem>>, vector<16x235xbf16>,
    %c0_35 = arith.constant 0 : index
    %c0_36 = arith.constant 0 : index
    %28 = vector.load %arg2[%c0_35, %c0_36] : memref<16x128xbf16, #tpu.memory_space<vmem>>, vector<16x21xbf16>
    %c112_37 = arith.constant 112 : index
    %c235 = arith.constant 235 : index
    %29 = vector.load %arg6[%c112_37, %c235] : memref<144x256xbf16, #tpu.memory_space<vmem>>, vector<16x21xbf16>
    tpu.vector_store %arg6[%c112_37, %c235], %28 {strides = array<i32>} : memref<144x256xbf16, #tpu.memory_space<vmem>>, vector<16x21xbf16>,
    %c0_38 = arith.constant 0 : index
    %c22 = arith.constant 22 : index
    %30 = vector.load %arg1[%c0_38, %c22] : memref<16x256xbf16, #tpu.memory_space<vmem>>, vector<16x234xbf16>
    %c128 = arith.constant 128 : index
    %c0_39 = arith.constant 0 : index
    %31 = vector.load %arg6[%c128, %c0_39] : memref<144x256xbf16, #tpu.memory_space<vmem>>, vector<16x234xbf16>
    tpu.vector_store %arg6[%c128, %c0_39], %30 {strides = array<i32>} : memref<144x256xbf16, #tpu.memory_space<vmem>>, vector<16x234xbf16>,
    %c0_40 = arith.constant 0 : index
    %c0_41 = arith.constant 0 : index
    %32 = vector.load %arg2[%c0_40, %c0_41] : memref<16x128xbf16, #tpu.memory_space<vmem>>, vector<16x22xbf16>
    %c128_42 = arith.constant 128 : index
    %c234 = arith.constant 234 : index
    %33 = vector.load %arg6[%c128_42, %c234] : memref<144x256xbf16, #tpu.memory_space<vmem>>, vector<16x22xbf16>
    tpu.vector_store %arg6[%c128_42, %c234], %32 {strides = array<i32>} : memref<144x256xbf16, #tpu.memory_space<vmem>>, vector<16x22xbf16>,
    %c0_43 = arith.constant 0 : index
    %c0_44 = arith.constant 0 : index
    %34 = vector.load %arg3[%c0_43, %c0_44] : memref<8x144xbf16, #tpu.memory_space<vmem>>, vector<8x144xbf16>
    %c0_45 = arith.constant 0 : index
    %c0_46 = arith.constant 0 : index
    %35 = vector.load %arg4[%c0_45, %c0_46] : memref<8x1xf32, #tpu.memory_space<vmem>>, vector<8x1xf32>
    %c0_47 = arith.constant 0 : index
    %c0_48 = arith.constant 0 : index
    %36 = vector.load %arg6[%c0_47, %c0_48] : memref<144x256xbf16, #tpu.memory_space<vmem>>, vector<144x256xbf16>
    %cst = arith.constant dense<0.000000e+00> : vector<8x256xf32>
    %37 = tpu.matmul %34, %36, %cst {dimension_numbers = #tpu.dot_dimension_numbers<[1], [0], [0], [1], [0, 0, 1, 1], [], []>} : vector<8x144xbf16>, vector<144x256xbf16>, vector<8x256xf32> -> vector<8x256xf32>
    %38 = vector.broadcast %35 : vector<8x1xf32> to vector<8x256xf32>
    %39 = arith.addf %37, %38 : vector<8x256xf32>
    %cst_49 = arith.constant 0.000000e+00 : f32
    %40 = vector.broadcast %cst_49 : f32 to vector<8x256xf32>
    %41 = arith.maximumf %39, %40 : vector<8x256xf32>
    %42 = arith.truncf %41 : vector<8x256xf32> to vector<8x256xbf16>
    %c0_50 = arith.constant 0 : index
    %c0_51 = arith.constant 0 : index
    %43 = vector.load %arg5[%c0_50, %c0_51] : memref<8x256xbf16, #tpu.memory_space<vmem>>, vector<8x256xbf16>
    tpu.vector_store %arg5[%c0_50, %c0_51], %42 {strides = array<i32>} : memref<8x256xbf16, #tpu.memory_space<vmem>>, vector<8x256xbf16>,
    return
  }
  func.func @transform_0(%arg0: i32) -> (i32, i32) {
    %c0_i32 = arith.constant 0 : i32
    %c0_i32_0 = arith.constant 0 : i32
    return %c0_i32, %arg0 : i32, i32
  }
  func.func @transform_1(%arg0: i32) -> (i32, i32) {
    %c1_i32 = arith.constant 1 : i32
    %0 = arith.addi %arg0, %c1_i32 : i32
    %c2_i32 = arith.constant 2 : i32
    %1 = arith.muli %0, %c2_i32 : i32
    %c0_i32 = arith.constant 0 : i32
    %c0_i32_0 = arith.constant 0 : i32
    return %c0_i32, %1 : i32, i32
  }
  func.func @transform_2(%arg0: i32) -> (i32, i32) {
    %c0_i32 = arith.constant 0 : i32
    %c0_i32_0 = arith.constant 0 : i32
    %c0_i32_1 = arith.constant 0 : i32
    return %c0_i32, %c0_i32_0 : i32, i32
  }
  func.func @transform_3(%arg0: i32) -> (i32, i32) {
    %c0_i32 = arith.constant 0 : i32
    %c0_i32_0 = arith.constant 0 : i32
    %c0_i32_1 = arith.constant 0 : i32
    return %c0_i32, %c0_i32_0 : i32, i32
  }
  func.func @transform_4(%arg0: i32) -> (i32, i32) {
    %c0_i32 = arith.constant 0 : i32
    %c0_i32_0 = arith.constant 0 : i32
    return %c0_i32, %arg0 : i32, i32
  }
}

module attributes {stable_mosaic.version = 11 : i64} {
  func.func @_conv_flat_kernel(%arg0: i32, %arg1: memref<8x256xbf16, #tpu.memory_space<vmem>>, %arg2: memref<8x128xbf16, #tpu.memory_space<vmem>>, %arg3: memref<32x32xbf16, #tpu.memory_space<vmem>>, %arg4: memref<32x1xf32, #tpu.memory_space<vmem>>, %arg5: memref<32x256xbf16, #tpu.memory_space<vmem>>, %arg6: memref<32x256xbf16, #tpu.memory_space<vmem>>) attributes {dimension_semantics = [#tpu.dimension_semantics<parallel>], iteration_bounds = array<i64: 1>, scalar_prefetch = 0 : i64, scratch_operands = 1 : i64, tpu.core_type = #tpu.core_type<tc>, window_params = [{transform_indices = @transform_0, window_bounds = array<i64: 8, 256>}, {transform_indices = @transform_1, window_bounds = array<i64: 8, 128>}, {pipeline_mode = #tpu.pipeline_mode<synchronous>, transform_indices = @transform_2, window_bounds = array<i64: 32, 32>}, {pipeline_mode = #tpu.pipeline_mode<synchronous>, transform_indices = @transform_3, window_bounds = array<i64: 32, 1>}, {transform_indices = @transform_4, window_bounds = array<i64: 32, 256>}]} {
    %c0 = arith.constant 0 : index
    %c0_0 = arith.constant 0 : index
    %0 = vector.load %arg1[%c0, %c0_0] : memref<8x256xbf16, #tpu.memory_space<vmem>>, vector<8x256xbf16>
    %c0_1 = arith.constant 0 : index
    %c0_2 = arith.constant 0 : index
    %1 = vector.load %arg6[%c0_1, %c0_2] : memref<32x256xbf16, #tpu.memory_space<vmem>>, vector<8x256xbf16>
    tpu.vector_store %arg6[%c0_1, %c0_2], %0 {strides = array<i32>} : memref<32x256xbf16, #tpu.memory_space<vmem>>, vector<8x256xbf16>,
    %c0_3 = arith.constant 0 : index
    %c1 = arith.constant 1 : index
    %2 = vector.load %arg1[%c0_3, %c1] : memref<8x256xbf16, #tpu.memory_space<vmem>>, vector<8x255xbf16>
    %c8 = arith.constant 8 : index
    %c0_4 = arith.constant 0 : index
    %3 = vector.load %arg6[%c8, %c0_4] : memref<32x256xbf16, #tpu.memory_space<vmem>>, vector<8x255xbf16>
    tpu.vector_store %arg6[%c8, %c0_4], %2 {strides = array<i32>} : memref<32x256xbf16, #tpu.memory_space<vmem>>, vector<8x255xbf16>,
    %c0_5 = arith.constant 0 : index
    %c0_6 = arith.constant 0 : index
    %4 = vector.load %arg2[%c0_5, %c0_6] : memref<8x128xbf16, #tpu.memory_space<vmem>>, vector<8x1xbf16>
    %c8_7 = arith.constant 8 : index
    %c255 = arith.constant 255 : index
    %5 = vector.load %arg6[%c8_7, %c255] : memref<32x256xbf16, #tpu.memory_space<vmem>>, vector<8x1xbf16>
    tpu.vector_store %arg6[%c8_7, %c255], %4 {strides = array<i32>} : memref<32x256xbf16, #tpu.memory_space<vmem>>, vector<8x1xbf16>,
    %c0_8 = arith.constant 0 : index
    %c10 = arith.constant 10 : index
    %6 = vector.load %arg1[%c0_8, %c10] : memref<8x256xbf16, #tpu.memory_space<vmem>>, vector<8x246xbf16>
    %c16 = arith.constant 16 : index
    %c0_9 = arith.constant 0 : index
    %7 = vector.load %arg6[%c16, %c0_9] : memref<32x256xbf16, #tpu.memory_space<vmem>>, vector<8x246xbf16>
    tpu.vector_store %arg6[%c16, %c0_9], %6 {strides = array<i32>} : memref<32x256xbf16, #tpu.memory_space<vmem>>, vector<8x246xbf16>,
    %c0_10 = arith.constant 0 : index
    %c0_11 = arith.constant 0 : index
    %8 = vector.load %arg2[%c0_10, %c0_11] : memref<8x128xbf16, #tpu.memory_space<vmem>>, vector<8x10xbf16>
    %c16_12 = arith.constant 16 : index
    %c246 = arith.constant 246 : index
    %9 = vector.load %arg6[%c16_12, %c246] : memref<32x256xbf16, #tpu.memory_space<vmem>>, vector<8x10xbf16>
    tpu.vector_store %arg6[%c16_12, %c246], %8 {strides = array<i32>} : memref<32x256xbf16, #tpu.memory_space<vmem>>, vector<8x10xbf16>,
    %c0_13 = arith.constant 0 : index
    %c11 = arith.constant 11 : index
    %10 = vector.load %arg1[%c0_13, %c11] : memref<8x256xbf16, #tpu.memory_space<vmem>>, vector<8x245xbf16>
    %c24 = arith.constant 24 : index
    %c0_14 = arith.constant 0 : index
    %11 = vector.load %arg6[%c24, %c0_14] : memref<32x256xbf16, #tpu.memory_space<vmem>>, vector<8x245xbf16>
    tpu.vector_store %arg6[%c24, %c0_14], %10 {strides = array<i32>} : memref<32x256xbf16, #tpu.memory_space<vmem>>, vector<8x245xbf16>,
    %c0_15 = arith.constant 0 : index
    %c0_16 = arith.constant 0 : index
    %12 = vector.load %arg2[%c0_15, %c0_16] : memref<8x128xbf16, #tpu.memory_space<vmem>>, vector<8x11xbf16>
    %c24_17 = arith.constant 24 : index
    %c245 = arith.constant 245 : index
    %13 = vector.load %arg6[%c24_17, %c245] : memref<32x256xbf16, #tpu.memory_space<vmem>>, vector<8x11xbf16>
    tpu.vector_store %arg6[%c24_17, %c245], %12 {strides = array<i32>} : memref<32x256xbf16, #tpu.memory_space<vmem>>, vector<8x11xbf16>,
    %c0_18 = arith.constant 0 : index
    %c0_19 = arith.constant 0 : index
    %14 = vector.load %arg3[%c0_18, %c0_19] : memref<32x32xbf16, #tpu.memory_space<vmem>>, vector<32x32xbf16>
    %c0_20 = arith.constant 0 : index
    %c0_21 = arith.constant 0 : index
    %15 = vector.load %arg4[%c0_20, %c0_21] : memref<32x1xf32, #tpu.memory_space<vmem>>, vector<32x1xf32>
    %c0_22 = arith.constant 0 : index
    %c0_23 = arith.constant 0 : index
    %16 = vector.load %arg6[%c0_22, %c0_23] : memref<32x256xbf16, #tpu.memory_space<vmem>>, vector<32x256xbf16>
    %cst = arith.constant dense<0.000000e+00> : vector<32x256xf32>
    %17 = tpu.matmul %14, %16, %cst {dimension_numbers = #tpu.dot_dimension_numbers<[1], [0], [0], [1], [0, 0, 1, 1], [], []>} : vector<32x32xbf16>, vector<32x256xbf16>, vector<32x256xf32> -> vector<32x256xf32>
    %18 = vector.broadcast %15 : vector<32x1xf32> to vector<32x256xf32>
    %19 = arith.addf %17, %18 : vector<32x256xf32>
    %cst_24 = arith.constant 0.000000e+00 : f32
    %20 = vector.broadcast %cst_24 : f32 to vector<32x256xf32>
    %21 = arith.maximumf %19, %20 : vector<32x256xf32>
    %22 = arith.truncf %21 : vector<32x256xf32> to vector<32x256xbf16>
    %c0_25 = arith.constant 0 : index
    %c0_26 = arith.constant 0 : index
    %23 = vector.load %arg5[%c0_25, %c0_26] : memref<32x256xbf16, #tpu.memory_space<vmem>>, vector<32x256xbf16>
    tpu.vector_store %arg5[%c0_25, %c0_26], %22 {strides = array<i32>} : memref<32x256xbf16, #tpu.memory_space<vmem>>, vector<32x256xbf16>,
    return
  }
  func.func @transform_0(%arg0: i32) -> (i32, i32) {
    %c0_i32 = arith.constant 0 : i32
    %c0_i32_0 = arith.constant 0 : i32
    return %c0_i32, %arg0 : i32, i32
  }
  func.func @transform_1(%arg0: i32) -> (i32, i32) {
    %c1_i32 = arith.constant 1 : i32
    %0 = arith.addi %arg0, %c1_i32 : i32
    %c2_i32 = arith.constant 2 : i32
    %1 = arith.muli %0, %c2_i32 : i32
    %c0_i32 = arith.constant 0 : i32
    %c0_i32_0 = arith.constant 0 : i32
    return %c0_i32, %1 : i32, i32
  }
  func.func @transform_2(%arg0: i32) -> (i32, i32) {
    %c0_i32 = arith.constant 0 : i32
    %c0_i32_0 = arith.constant 0 : i32
    %c0_i32_1 = arith.constant 0 : i32
    return %c0_i32, %c0_i32_0 : i32, i32
  }
  func.func @transform_3(%arg0: i32) -> (i32, i32) {
    %c0_i32 = arith.constant 0 : i32
    %c0_i32_0 = arith.constant 0 : i32
    %c0_i32_1 = arith.constant 0 : i32
    return %c0_i32, %c0_i32_0 : i32, i32
  }
  func.func @transform_4(%arg0: i32) -> (i32, i32) {
    %c0_i32 = arith.constant 0 : i32
    %c0_i32_0 = arith.constant 0 : i32
    return %c0_i32, %arg0 : i32, i32
  }
}

module attributes {stable_mosaic.version = 11 : i64} {
  func.func @_conv_flat_kernel(%arg0: i32, %arg1: memref<8x512xbf16, #tpu.memory_space<vmem>>, %arg2: memref<8x128xbf16, #tpu.memory_space<vmem>>, %arg3: memref<112x72xbf16, #tpu.memory_space<vmem>>, %arg4: memref<112x1xf32, #tpu.memory_space<vmem>>, %arg5: memref<112x512xf32, #tpu.memory_space<vmem>>, %arg6: memref<72x512xbf16, #tpu.memory_space<vmem>>) attributes {dimension_semantics = [#tpu.dimension_semantics<parallel>], iteration_bounds = array<i64: 2>, scalar_prefetch = 0 : i64, scratch_operands = 1 : i64, tpu.core_type = #tpu.core_type<tc>, window_params = [{transform_indices = @transform_0, window_bounds = array<i64: 8, 512>}, {transform_indices = @transform_1, window_bounds = array<i64: 8, 128>}, {pipeline_mode = #tpu.pipeline_mode<synchronous>, transform_indices = @transform_2, window_bounds = array<i64: 112, 72>}, {pipeline_mode = #tpu.pipeline_mode<synchronous>, transform_indices = @transform_3, window_bounds = array<i64: 112, 1>}, {transform_indices = @transform_4, window_bounds = array<i64: 112, 512>}]} {
    %c0 = arith.constant 0 : index
    %c0_0 = arith.constant 0 : index
    %0 = vector.load %arg1[%c0, %c0_0] : memref<8x512xbf16, #tpu.memory_space<vmem>>, vector<8x512xbf16>
    %c0_1 = arith.constant 0 : index
    %c0_2 = arith.constant 0 : index
    %1 = vector.load %arg6[%c0_1, %c0_2] : memref<72x512xbf16, #tpu.memory_space<vmem>>, vector<8x512xbf16>
    tpu.vector_store %arg6[%c0_1, %c0_2], %0 {strides = array<i32>} : memref<72x512xbf16, #tpu.memory_space<vmem>>, vector<8x512xbf16>,
    %c0_3 = arith.constant 0 : index
    %c1 = arith.constant 1 : index
    %2 = vector.load %arg1[%c0_3, %c1] : memref<8x512xbf16, #tpu.memory_space<vmem>>, vector<8x511xbf16>
    %c8 = arith.constant 8 : index
    %c0_4 = arith.constant 0 : index
    %3 = vector.load %arg6[%c8, %c0_4] : memref<72x512xbf16, #tpu.memory_space<vmem>>, vector<8x511xbf16>
    tpu.vector_store %arg6[%c8, %c0_4], %2 {strides = array<i32>} : memref<72x512xbf16, #tpu.memory_space<vmem>>, vector<8x511xbf16>,
    %c0_5 = arith.constant 0 : index
    %c0_6 = arith.constant 0 : index
    %4 = vector.load %arg2[%c0_5, %c0_6] : memref<8x128xbf16, #tpu.memory_space<vmem>>, vector<8x1xbf16>
    %c8_7 = arith.constant 8 : index
    %c511 = arith.constant 511 : index
    %5 = vector.load %arg6[%c8_7, %c511] : memref<72x512xbf16, #tpu.memory_space<vmem>>, vector<8x1xbf16>
    tpu.vector_store %arg6[%c8_7, %c511], %4 {strides = array<i32>} : memref<72x512xbf16, #tpu.memory_space<vmem>>, vector<8x1xbf16>,
    %c0_8 = arith.constant 0 : index
    %c2 = arith.constant 2 : index
    %6 = vector.load %arg1[%c0_8, %c2] : memref<8x512xbf16, #tpu.memory_space<vmem>>, vector<8x510xbf16>
    %c16 = arith.constant 16 : index
    %c0_9 = arith.constant 0 : index
    %7 = vector.load %arg6[%c16, %c0_9] : memref<72x512xbf16, #tpu.memory_space<vmem>>, vector<8x510xbf16>
    tpu.vector_store %arg6[%c16, %c0_9], %6 {strides = array<i32>} : memref<72x512xbf16, #tpu.memory_space<vmem>>, vector<8x510xbf16>,
    %c0_10 = arith.constant 0 : index
    %c0_11 = arith.constant 0 : index
    %8 = vector.load %arg2[%c0_10, %c0_11] : memref<8x128xbf16, #tpu.memory_space<vmem>>, vector<8x2xbf16>
    %c16_12 = arith.constant 16 : index
    %c510 = arith.constant 510 : index
    %9 = vector.load %arg6[%c16_12, %c510] : memref<72x512xbf16, #tpu.memory_space<vmem>>, vector<8x2xbf16>
    tpu.vector_store %arg6[%c16_12, %c510], %8 {strides = array<i32>} : memref<72x512xbf16, #tpu.memory_space<vmem>>, vector<8x2xbf16>,
    %c0_13 = arith.constant 0 : index
    %c18 = arith.constant 18 : index
    %10 = vector.load %arg1[%c0_13, %c18] : memref<8x512xbf16, #tpu.memory_space<vmem>>, vector<8x494xbf16>
    %c24 = arith.constant 24 : index
    %c0_14 = arith.constant 0 : index
    %11 = vector.load %arg6[%c24, %c0_14] : memref<72x512xbf16, #tpu.memory_space<vmem>>, vector<8x494xbf16>
    tpu.vector_store %arg6[%c24, %c0_14], %10 {strides = array<i32>} : memref<72x512xbf16, #tpu.memory_space<vmem>>, vector<8x494xbf16>,
    %c0_15 = arith.constant 0 : index
    %c0_16 = arith.constant 0 : index
    %12 = vector.load %arg2[%c0_15, %c0_16] : memref<8x128xbf16, #tpu.memory_space<vmem>>, vector<8x18xbf16>
    %c24_17 = arith.constant 24 : index
    %c494 = arith.constant 494 : index
    %13 = vector.load %arg6[%c24_17, %c494] : memref<72x512xbf16, #tpu.memory_space<vmem>>, vector<8x18xbf16>
    tpu.vector_store %arg6[%c24_17, %c494], %12 {strides = array<i32>} : memref<72x512xbf16, #tpu.memory_space<vmem>>, vector<8x18xbf16>,
    %c0_18 = arith.constant 0 : index
    %c19 = arith.constant 19 : index
    %14 = vector.load %arg1[%c0_18, %c19] : memref<8x512xbf16, #tpu.memory_space<vmem>>, vector<8x493xbf16>
    %c32 = arith.constant 32 : index
    %c0_19 = arith.constant 0 : index
    %15 = vector.load %arg6[%c32, %c0_19] : memref<72x512xbf16, #tpu.memory_space<vmem>>, vector<8x493xbf16>
    tpu.vector_store %arg6[%c32, %c0_19], %14 {strides = array<i32>} : memref<72x512xbf16, #tpu.memory_space<vmem>>, vector<8x493xbf16>,
    %c0_20 = arith.constant 0 : index
    %c0_21 = arith.constant 0 : index
    %16 = vector.load %arg2[%c0_20, %c0_21] : memref<8x128xbf16, #tpu.memory_space<vmem>>, vector<8x19xbf16>
    %c32_22 = arith.constant 32 : index
    %c493 = arith.constant 493 : index
    %17 = vector.load %arg6[%c32_22, %c493] : memref<72x512xbf16, #tpu.memory_space<vmem>>, vector<8x19xbf16>
    tpu.vector_store %arg6[%c32_22, %c493], %16 {strides = array<i32>} : memref<72x512xbf16, #tpu.memory_space<vmem>>, vector<8x19xbf16>,
    %c0_23 = arith.constant 0 : index
    %c20 = arith.constant 20 : index
    %18 = vector.load %arg1[%c0_23, %c20] : memref<8x512xbf16, #tpu.memory_space<vmem>>, vector<8x492xbf16>
    %c40 = arith.constant 40 : index
    %c0_24 = arith.constant 0 : index
    %19 = vector.load %arg6[%c40, %c0_24] : memref<72x512xbf16, #tpu.memory_space<vmem>>, vector<8x492xbf16>
    tpu.vector_store %arg6[%c40, %c0_24], %18 {strides = array<i32>} : memref<72x512xbf16, #tpu.memory_space<vmem>>, vector<8x492xbf16>,
    %c0_25 = arith.constant 0 : index
    %c0_26 = arith.constant 0 : index
    %20 = vector.load %arg2[%c0_25, %c0_26] : memref<8x128xbf16, #tpu.memory_space<vmem>>, vector<8x20xbf16>
    %c40_27 = arith.constant 40 : index
    %c492 = arith.constant 492 : index
    %21 = vector.load %arg6[%c40_27, %c492] : memref<72x512xbf16, #tpu.memory_space<vmem>>, vector<8x20xbf16>
    tpu.vector_store %arg6[%c40_27, %c492], %20 {strides = array<i32>} : memref<72x512xbf16, #tpu.memory_space<vmem>>, vector<8x20xbf16>,
    %c0_28 = arith.constant 0 : index
    %c36 = arith.constant 36 : index
    %22 = vector.load %arg1[%c0_28, %c36] : memref<8x512xbf16, #tpu.memory_space<vmem>>, vector<8x476xbf16>
    %c48 = arith.constant 48 : index
    %c0_29 = arith.constant 0 : index
    %23 = vector.load %arg6[%c48, %c0_29] : memref<72x512xbf16, #tpu.memory_space<vmem>>, vector<8x476xbf16>
    tpu.vector_store %arg6[%c48, %c0_29], %22 {strides = array<i32>} : memref<72x512xbf16, #tpu.memory_space<vmem>>, vector<8x476xbf16>,
    %c0_30 = arith.constant 0 : index
    %c0_31 = arith.constant 0 : index
    %24 = vector.load %arg2[%c0_30, %c0_31] : memref<8x128xbf16, #tpu.memory_space<vmem>>, vector<8x36xbf16>
    %c48_32 = arith.constant 48 : index
    %c476 = arith.constant 476 : index
    %25 = vector.load %arg6[%c48_32, %c476] : memref<72x512xbf16, #tpu.memory_space<vmem>>, vector<8x36xbf16>
    tpu.vector_store %arg6[%c48_32, %c476], %24 {strides = array<i32>} : memref<72x512xbf16, #tpu.memory_space<vmem>>, vector<8x36xbf16>,
    %c0_33 = arith.constant 0 : index
    %c37 = arith.constant 37 : index
    %26 = vector.load %arg1[%c0_33, %c37] : memref<8x512xbf16, #tpu.memory_space<vmem>>, vector<8x475xbf16>
    %c56 = arith.constant 56 : index
    %c0_34 = arith.constant 0 : index
    %27 = vector.load %arg6[%c56, %c0_34] : memref<72x512xbf16, #tpu.memory_space<vmem>>, vector<8x475xbf16>
    tpu.vector_store %arg6[%c56, %c0_34], %26 {strides = array<i32>} : memref<72x512xbf16, #tpu.memory_space<vmem>>, vector<8x475xbf16>,
    %c0_35 = arith.constant 0 : index
    %c0_36 = arith.constant 0 : index
    %28 = vector.load %arg2[%c0_35, %c0_36] : memref<8x128xbf16, #tpu.memory_space<vmem>>, vector<8x37xbf16>
    %c56_37 = arith.constant 56 : index
    %c475 = arith.constant 475 : index
    %29 = vector.load %arg6[%c56_37, %c475] : memref<72x512xbf16, #tpu.memory_space<vmem>>, vector<8x37xbf16>
    tpu.vector_store %arg6[%c56_37, %c475], %28 {strides = array<i32>} : memref<72x512xbf16, #tpu.memory_space<vmem>>, vector<8x37xbf16>,
    %c0_38 = arith.constant 0 : index
    %c38 = arith.constant 38 : index
    %30 = vector.load %arg1[%c0_38, %c38] : memref<8x512xbf16, #tpu.memory_space<vmem>>, vector<8x474xbf16>
    %c64 = arith.constant 64 : index
    %c0_39 = arith.constant 0 : index
    %31 = vector.load %arg6[%c64, %c0_39] : memref<72x512xbf16, #tpu.memory_space<vmem>>, vector<8x474xbf16>
    tpu.vector_store %arg6[%c64, %c0_39], %30 {strides = array<i32>} : memref<72x512xbf16, #tpu.memory_space<vmem>>, vector<8x474xbf16>,
    %c0_40 = arith.constant 0 : index
    %c0_41 = arith.constant 0 : index
    %32 = vector.load %arg2[%c0_40, %c0_41] : memref<8x128xbf16, #tpu.memory_space<vmem>>, vector<8x38xbf16>
    %c64_42 = arith.constant 64 : index
    %c474 = arith.constant 474 : index
    %33 = vector.load %arg6[%c64_42, %c474] : memref<72x512xbf16, #tpu.memory_space<vmem>>, vector<8x38xbf16>
    tpu.vector_store %arg6[%c64_42, %c474], %32 {strides = array<i32>} : memref<72x512xbf16, #tpu.memory_space<vmem>>, vector<8x38xbf16>,
    %c0_43 = arith.constant 0 : index
    %c0_44 = arith.constant 0 : index
    %34 = vector.load %arg3[%c0_43, %c0_44] : memref<112x72xbf16, #tpu.memory_space<vmem>>, vector<112x72xbf16>
    %c0_45 = arith.constant 0 : index
    %c0_46 = arith.constant 0 : index
    %35 = vector.load %arg4[%c0_45, %c0_46] : memref<112x1xf32, #tpu.memory_space<vmem>>, vector<112x1xf32>
    %c0_47 = arith.constant 0 : index
    %c0_48 = arith.constant 0 : index
    %36 = vector.load %arg6[%c0_47, %c0_48] : memref<72x512xbf16, #tpu.memory_space<vmem>>, vector<72x128xbf16>
    %cst = arith.constant dense<0.000000e+00> : vector<112x128xf32>
    %37 = tpu.matmul %34, %36, %cst {dimension_numbers = #tpu.dot_dimension_numbers<[1], [0], [0], [1], [0, 0, 1, 1], [], []>} : vector<112x72xbf16>, vector<72x128xbf16>, vector<112x128xf32> -> vector<112x128xf32>
    %38 = vector.broadcast %35 : vector<112x1xf32> to vector<112x128xf32>
    %39 = arith.addf %37, %38 : vector<112x128xf32>
    %40 = tpu.iota {dimensions = array<i32: 0>} : vector<112x128xi32>
    %c72_i32 = arith.constant 72 : i32
    %41 = vector.broadcast %c72_i32 : i32 to vector<112x128xi32>
    %42 = arith.cmpi sge, %40, %41 : vector<112x128xi32>
    %43 = arith.negf %39 : vector<112x128xf32>
    %44 = math.exp %43 : vector<112x128xf32>
    %cst_49 = arith.constant 1.000000e+00 : f32
    %45 = vector.broadcast %cst_49 : f32 to vector<112x128xf32>
    %46 = arith.addf %45, %44 : vector<112x128xf32>
    %47 = arith.divf %45, %46 : vector<112x128xf32>
    %48 = arith.select %42, %47, %39 : vector<112x128xi1>, vector<112x128xf32>
    %c0_50 = arith.constant 0 : index
    %c0_51 = arith.constant 0 : index
    %49 = vector.load %arg5[%c0_50, %c0_51] : memref<112x512xf32, #tpu.memory_space<vmem>>, vector<112x128xf32>
    tpu.vector_store %arg5[%c0_50, %c0_51], %48 {strides = array<i32>} : memref<112x512xf32, #tpu.memory_space<vmem>>, vector<112x128xf32>,
    %c0_52 = arith.constant 0 : index
    %c128 = arith.constant 128 : index
    %50 = vector.load %arg6[%c0_52, %c128] : memref<72x512xbf16, #tpu.memory_space<vmem>>, vector<72x128xbf16>
    %cst_53 = arith.constant dense<0.000000e+00> : vector<112x128xf32>
    %51 = tpu.matmul %34, %50, %cst_53 {dimension_numbers = #tpu.dot_dimension_numbers<[1], [0], [0], [1], [0, 0, 1, 1], [], []>} : vector<112x72xbf16>, vector<72x128xbf16>, vector<112x128xf32> -> vector<112x128xf32>
    %52 = vector.broadcast %35 : vector<112x1xf32> to vector<112x128xf32>
    %53 = arith.addf %51, %52 : vector<112x128xf32>
    %54 = tpu.iota {dimensions = array<i32: 0>} : vector<112x128xi32>
    %c72_i32_54 = arith.constant 72 : i32
    %55 = vector.broadcast %c72_i32_54 : i32 to vector<112x128xi32>
    %56 = arith.cmpi sge, %54, %55 : vector<112x128xi32>
    %57 = arith.negf %53 : vector<112x128xf32>
    %58 = math.exp %57 : vector<112x128xf32>
    %cst_55 = arith.constant 1.000000e+00 : f32
    %59 = vector.broadcast %cst_55 : f32 to vector<112x128xf32>
    %60 = arith.addf %59, %58 : vector<112x128xf32>
    %61 = arith.divf %59, %60 : vector<112x128xf32>
    %62 = arith.select %56, %61, %53 : vector<112x128xi1>, vector<112x128xf32>
    %c0_56 = arith.constant 0 : index
    %c128_57 = arith.constant 128 : index
    %63 = vector.load %arg5[%c0_56, %c128_57] : memref<112x512xf32, #tpu.memory_space<vmem>>, vector<112x128xf32>
    tpu.vector_store %arg5[%c0_56, %c128_57], %62 {strides = array<i32>} : memref<112x512xf32, #tpu.memory_space<vmem>>, vector<112x128xf32>,
    %c0_58 = arith.constant 0 : index
    %c256 = arith.constant 256 : index
    %64 = vector.load %arg6[%c0_58, %c256] : memref<72x512xbf16, #tpu.memory_space<vmem>>, vector<72x128xbf16>
    %cst_59 = arith.constant dense<0.000000e+00> : vector<112x128xf32>
    %65 = tpu.matmul %34, %64, %cst_59 {dimension_numbers = #tpu.dot_dimension_numbers<[1], [0], [0], [1], [0, 0, 1, 1], [], []>} : vector<112x72xbf16>, vector<72x128xbf16>, vector<112x128xf32> -> vector<112x128xf32>
    %66 = vector.broadcast %35 : vector<112x1xf32> to vector<112x128xf32>
    %67 = arith.addf %65, %66 : vector<112x128xf32>
    %68 = tpu.iota {dimensions = array<i32: 0>} : vector<112x128xi32>
    %c72_i32_60 = arith.constant 72 : i32
    %69 = vector.broadcast %c72_i32_60 : i32 to vector<112x128xi32>
    %70 = arith.cmpi sge, %68, %69 : vector<112x128xi32>
    %71 = arith.negf %67 : vector<112x128xf32>
    %72 = math.exp %71 : vector<112x128xf32>
    %cst_61 = arith.constant 1.000000e+00 : f32
    %73 = vector.broadcast %cst_61 : f32 to vector<112x128xf32>
    %74 = arith.addf %73, %72 : vector<112x128xf32>
    %75 = arith.divf %73, %74 : vector<112x128xf32>
    %76 = arith.select %70, %75, %67 : vector<112x128xi1>, vector<112x128xf32>
    %c0_62 = arith.constant 0 : index
    %c256_63 = arith.constant 256 : index
    %77 = vector.load %arg5[%c0_62, %c256_63] : memref<112x512xf32, #tpu.memory_space<vmem>>, vector<112x128xf32>
    tpu.vector_store %arg5[%c0_62, %c256_63], %76 {strides = array<i32>} : memref<112x512xf32, #tpu.memory_space<vmem>>, vector<112x128xf32>,
    %c0_64 = arith.constant 0 : index
    %c384 = arith.constant 384 : index
    %78 = vector.load %arg6[%c0_64, %c384] : memref<72x512xbf16, #tpu.memory_space<vmem>>, vector<72x128xbf16>
    %cst_65 = arith.constant dense<0.000000e+00> : vector<112x128xf32>
    %79 = tpu.matmul %34, %78, %cst_65 {dimension_numbers = #tpu.dot_dimension_numbers<[1], [0], [0], [1], [0, 0, 1, 1], [], []>} : vector<112x72xbf16>, vector<72x128xbf16>, vector<112x128xf32> -> vector<112x128xf32>
    %80 = vector.broadcast %35 : vector<112x1xf32> to vector<112x128xf32>
    %81 = arith.addf %79, %80 : vector<112x128xf32>
    %82 = tpu.iota {dimensions = array<i32: 0>} : vector<112x128xi32>
    %c72_i32_66 = arith.constant 72 : i32
    %83 = vector.broadcast %c72_i32_66 : i32 to vector<112x128xi32>
    %84 = arith.cmpi sge, %82, %83 : vector<112x128xi32>
    %85 = arith.negf %81 : vector<112x128xf32>
    %86 = math.exp %85 : vector<112x128xf32>
    %cst_67 = arith.constant 1.000000e+00 : f32
    %87 = vector.broadcast %cst_67 : f32 to vector<112x128xf32>
    %88 = arith.addf %87, %86 : vector<112x128xf32>
    %89 = arith.divf %87, %88 : vector<112x128xf32>
    %90 = arith.select %84, %89, %81 : vector<112x128xi1>, vector<112x128xf32>
    %c0_68 = arith.constant 0 : index
    %c384_69 = arith.constant 384 : index
    %91 = vector.load %arg5[%c0_68, %c384_69] : memref<112x512xf32, #tpu.memory_space<vmem>>, vector<112x128xf32>
    tpu.vector_store %arg5[%c0_68, %c384_69], %90 {strides = array<i32>} : memref<112x512xf32, #tpu.memory_space<vmem>>, vector<112x128xf32>,
    return
  }
  func.func @transform_0(%arg0: i32) -> (i32, i32) {
    %c0_i32 = arith.constant 0 : i32
    %c0_i32_0 = arith.constant 0 : i32
    return %c0_i32, %arg0 : i32, i32
  }
  func.func @transform_1(%arg0: i32) -> (i32, i32) {
    %c1_i32 = arith.constant 1 : i32
    %0 = arith.addi %arg0, %c1_i32 : i32
    %c4_i32 = arith.constant 4 : i32
    %1 = arith.muli %0, %c4_i32 : i32
    %c0_i32 = arith.constant 0 : i32
    %c0_i32_0 = arith.constant 0 : i32
    return %c0_i32, %1 : i32, i32
  }
  func.func @transform_2(%arg0: i32) -> (i32, i32) {
    %c0_i32 = arith.constant 0 : i32
    %c0_i32_0 = arith.constant 0 : i32
    %c0_i32_1 = arith.constant 0 : i32
    return %c0_i32, %c0_i32_0 : i32, i32
  }
  func.func @transform_3(%arg0: i32) -> (i32, i32) {
    %c0_i32 = arith.constant 0 : i32
    %c0_i32_0 = arith.constant 0 : i32
    %c0_i32_1 = arith.constant 0 : i32
    return %c0_i32, %c0_i32_0 : i32, i32
  }
  func.func @transform_4(%arg0: i32) -> (i32, i32) {
    %c0_i32 = arith.constant 0 : i32
    %c0_i32_0 = arith.constant 0 : i32
    return %c0_i32, %arg0 : i32, i32
  }
}

module attributes {stable_mosaic.version = 11 : i64} {
  func.func @_conv_flat_kernel(%arg0: i32, %arg1: memref<36x512xbf16, #tpu.memory_space<vmem>>, %arg2: memref<36x128xbf16, #tpu.memory_space<vmem>>, %arg3: memref<8x40xbf16, #tpu.memory_space<vmem>>, %arg4: memref<8x1xf32, #tpu.memory_space<vmem>>, %arg5: memref<8x512xf32, #tpu.memory_space<vmem>>, %arg6: memref<40x512xbf16, #tpu.memory_space<vmem>>) attributes {dimension_semantics = [#tpu.dimension_semantics<parallel>], iteration_bounds = array<i64: 1>, scalar_prefetch = 0 : i64, scratch_operands = 1 : i64, tpu.core_type = #tpu.core_type<tc>, window_params = [{transform_indices = @transform_0, window_bounds = array<i64: 36, 512>}, {transform_indices = @transform_1, window_bounds = array<i64: 36, 128>}, {pipeline_mode = #tpu.pipeline_mode<synchronous>, transform_indices = @transform_2, window_bounds = array<i64: 8, 40>}, {pipeline_mode = #tpu.pipeline_mode<synchronous>, transform_indices = @transform_3, window_bounds = array<i64: 8, 1>}, {transform_indices = @transform_4, window_bounds = array<i64: 8, 512>}]} {
    %c0 = arith.constant 0 : index
    %c0_0 = arith.constant 0 : index
    %0 = vector.load %arg1[%c0, %c0_0] : memref<36x512xbf16, #tpu.memory_space<vmem>>, vector<36x512xbf16>
    %c0_1 = arith.constant 0 : index
    %c0_2 = arith.constant 0 : index
    %1 = vector.load %arg6[%c0_1, %c0_2] : memref<40x512xbf16, #tpu.memory_space<vmem>>, vector<36x512xbf16>
    tpu.vector_store %arg6[%c0_1, %c0_2], %0 {strides = array<i32>} : memref<40x512xbf16, #tpu.memory_space<vmem>>, vector<36x512xbf16>,
    %cst = arith.constant 0.000000e+00 : bf16
    %2 = vector.broadcast %cst : bf16 to vector<4x512xbf16>
    %c36 = arith.constant 36 : index
    %c0_3 = arith.constant 0 : index
    %3 = vector.load %arg6[%c36, %c0_3] : memref<40x512xbf16, #tpu.memory_space<vmem>>, vector<4x512xbf16>
    tpu.vector_store %arg6[%c36, %c0_3], %2 {strides = array<i32>} : memref<40x512xbf16, #tpu.memory_space<vmem>>, vector<4x512xbf16>,
    %c0_4 = arith.constant 0 : index
    %c0_5 = arith.constant 0 : index
    %4 = vector.load %arg3[%c0_4, %c0_5] : memref<8x40xbf16, #tpu.memory_space<vmem>>, vector<8x40xbf16>
    %c0_6 = arith.constant 0 : index
    %c0_7 = arith.constant 0 : index
    %5 = vector.load %arg4[%c0_6, %c0_7] : memref<8x1xf32, #tpu.memory_space<vmem>>, vector<8x1xf32>
    %c0_8 = arith.constant 0 : index
    %c0_9 = arith.constant 0 : index
    %6 = vector.load %arg6[%c0_8, %c0_9] : memref<40x512xbf16, #tpu.memory_space<vmem>>, vector<40x512xbf16>
    %cst_10 = arith.constant dense<0.000000e+00> : vector<8x512xf32>
    %7 = tpu.matmul %4, %6, %cst_10 {dimension_numbers = #tpu.dot_dimension_numbers<[1], [0], [0], [1], [0, 0, 1, 1], [], []>} : vector<8x40xbf16>, vector<40x512xbf16>, vector<8x512xf32> -> vector<8x512xf32>
    %8 = vector.broadcast %5 : vector<8x1xf32> to vector<8x512xf32>
    %9 = arith.addf %7, %8 : vector<8x512xf32>
    %cst_11 = arith.constant 0.000000e+00 : f32
    %10 = vector.broadcast %cst_11 : f32 to vector<8x512xf32>
    %11 = arith.maximumf %9, %10 : vector<8x512xf32>
    %c0_12 = arith.constant 0 : index
    %c0_13 = arith.constant 0 : index
    %12 = vector.load %arg5[%c0_12, %c0_13] : memref<8x512xf32, #tpu.memory_space<vmem>>, vector<8x512xf32>
    tpu.vector_store %arg5[%c0_12, %c0_13], %11 {strides = array<i32>} : memref<8x512xf32, #tpu.memory_space<vmem>>, vector<8x512xf32>,
    return
  }
  func.func @transform_0(%arg0: i32) -> (i32, i32) {
    %c0_i32 = arith.constant 0 : i32
    %c0_i32_0 = arith.constant 0 : i32
    return %c0_i32, %arg0 : i32, i32
  }
  func.func @transform_1(%arg0: i32) -> (i32, i32) {
    %c1_i32 = arith.constant 1 : i32
    %0 = arith.addi %arg0, %c1_i32 : i32
    %c4_i32 = arith.constant 4 : i32
    %1 = arith.muli %0, %c4_i32 : i32
    %c0_i32 = arith.constant 0 : i32
    %c0_i32_0 = arith.constant 0 : i32
    return %c0_i32, %1 : i32, i32
  }
  func.func @transform_2(%arg0: i32) -> (i32, i32) {
    %c0_i32 = arith.constant 0 : i32
    %c0_i32_0 = arith.constant 0 : i32
    %c0_i32_1 = arith.constant 0 : i32
    return %c0_i32, %c0_i32_0 : i32, i32
  }
  func.func @transform_3(%arg0: i32) -> (i32, i32) {
    %c0_i32 = arith.constant 0 : i32
    %c0_i32_0 = arith.constant 0 : i32
    %c0_i32_1 = arith.constant 0 : i32
    return %c0_i32, %c0_i32_0 : i32, i32
  }
  func.func @transform_4(%arg0: i32) -> (i32, i32) {
    %c0_i32 = arith.constant 0 : i32
    %c0_i32_0 = arith.constant 0 : i32
    return %c0_i32, %arg0 : i32, i32
  }
}

</mosaic_0001>

<llo_original>
// kernel: tile.13
$region0: #{tile.13}
  #allocation2 [shape = 's32[1]{0}', space=sflag, size = 0x4, scoped, tag = 'scoped memory for tile.13']
  %s0 = inlined_call_operand.hbm [shape: f32[8], index: 0, kind: input, shape index: {}]
  %s1 = inlined_call_operand.vmem [shape: f32[4,8], index: 1, kind: output, shape index: {}]
  $region1: #{tile.13} parent=0
    #allocation0 [shape = 'u8[512]{0}', space=vmem, size = 0x400, scoped, tag = 'operand span for operand 0']
    #allocation1 [shape = 's32[1]{0}', space=sflag, size = 0x4, scoped, tag = 'scoped memory for tile.13']
    %2 = vsyncpa [#allocation1], 0
    // Predicated region
    $region2: #{tile.13} parent=1 // pred_check
      _
    $region3: #{tile.13} parent=1 // pred_check_branch
      %4 = sbr.rel (0) target = $region5
    $region4: #{tile.13} parent=1 // pred_region
      %s6 = ssub.s32 16, 16
      %7 = vsyncadd [#allocation1], %s6
      %s9 = sshll.u32 [#allocation0], 4
      %s10 = int_to_ptr.vmem [resolvable:$true] %s9
      %12 = dma.hbm_to_vmem [thread:$0]  %s0, 16, %s10, [#allocation1]
    $region5: #{tile.13} parent=1 // pred_fallthru
      _
    // Predicated region
    $region6: #{tile.13} parent=1 // pred_check
      _
    $region7: #{tile.13} parent=1 // pred_check_branch
      %14 = sbr.rel (0) target = $region9
    $region8: #{tile.13} parent=1 // pred_region
      %15 = dma.done [#allocation1], 16
    $region9: #{tile.13} parent=1 // pred_fallthru
      _
    %v16 = vld [vmem:[#allocation0] ss:$0 sm:$0xff]
    %17 = vst [vmem:[%s1] sm:$0xf] %v16
    %18 = vsyncpa [#allocation1], 1

// kernel: stdf_forward.8
$region0: #{stdf_forward.8}
  #allocation0 [shape = 'u32[]', space=smem, size = 0x4, offset = 0x4, fixed_abs, tag = 'smem constant byte address 0x4 - core index']
  #allocation1 [shape = 'u32[144,128]{1,0:T(1,128)}', space=vmem, size = 0x12000, scoped, tag = 'internal scratch']
  #allocation2 [shape = 'bf16[72,512]{1,0:T(8,128)(2,1)}', space=vmem, size = 0x12000, scoped, tag = 'scratch operand']
  %s0 = inlined_call_operand.vmem [shape: bf16[8,1152], index: 0, kind: input, shape index: {}, may-alias: {0,1}]
  %s1 = inlined_call_operand.vmem [shape: bf16[8,1152], index: 1, kind: input, shape index: {}, may-alias: {0,1}]
  %s2 = inlined_call_operand.vmem [shape: bf16[8,72], index: 2, kind: input, shape index: {}]
  %s3 = inlined_call_operand.vmem [shape: f32[8,1], index: 3, kind: input, shape index: {}]
  %s4 = inlined_call_operand.vmem [shape: bf16[8,1024], index: 4, kind: output, shape index: {}]
  %s5 = sld [smem:[#allocation0]]
  $region49: #{stdf_forward.8} parent=0
    _
  %s7 = ssub.s32 1, %s5
  %s8 = scalar_select 0, %s7, %s5
  loop: start=0, step=1, limit=4
  $region2: #{stdf_forward.8} parent=0 // loop_pre_header
    _
  $region3: #{stdf_forward.8} parent=0 // loop_header
    %s10 = sphi 0, %s14
    %p11 = scmp.ge.s32.totalorder %s10, 4
    %s20 = sphi 0, %s22
    %s23 = sphi 0, %s20
    %s24 = sphi 0, %s23
    %s40 = sphi 0, %s24
    %s50 = sphi 0, %s52
    %s53 = sphi 0, %s50
    %s54 = sphi 0, %s53
    %s70 = sphi 0, %s54
    %s74 = sphi 0, %s74
    %s76 = sphi 0, %s74
    %s77 = sphi 0, %s76
    %s91 = sphi 0, %s77
    %s95 = sphi 0, %s95
    %s97 = sphi 0, %s95
    %s98 = sphi 0, %s97
    %s112 = sphi 0, %s98
    %s118 = sphi 0, %s120
    %s121 = sphi 0, %s118
    %s122 = sphi 0, %s121
    %s138 = sphi 0, %s122
  $region4: #{stdf_forward.8} parent=0 // loop_header_branch
    %13 = sbr.rel (%p11) target = $region8
  $region5: #{stdf_forward.8} parent=0 // loop_body
    %s15 = ssub.s32 %s10, 1
    %s16 = ssub.s32 %s10, 2
    %s17 = sadd.s32 %s10, 1
    %s18 = ssub.s32 %s10, %s17
    %p19 = scmp.eq.s32.totalorder %s18, 0
    %s21 = sadd.s32 %s20, 1
    %s22 = scalar_select %p19, %s20, %s21
    %p25 = pneg %p19
    %p26 = scmp.eq.s32.totalorder %s10, 1
    %p27 = por %p25, %p26
    %p28 = scmp.ne.s32.totalorder %s20, %s23
    %p29 = scmp.eq.s32.totalorder %s10, 0
    %p30 = por %p28, %p29
    %p31 = scmp.ne.s32.totalorder %s20, %s23
    %p32 = scmp.eq.s32.totalorder %s15, 1
    %p33 = por %p31, %p32
    %p34 = scmp.ne.s32.totalorder %s23, %s24
    %p35 = scmp.eq.s32.totalorder %s15, 0
    %p36 = por %p34, %p35
    %p37 = scmp.ne.s32.totalorder %s23, %s24
    %p38 = scmp.eq.s32.totalorder %s16, 1
    %p39 = por %p37, %p38
    %p41 = scmp.ne.s32.totalorder %s24, %s40
    %p42 = scmp.eq.s32.totalorder %s16, 0
    %p43 = por %p41, %p42
    %s44 = sadd.s32 %s10, 1
    %s45 = smul.u32 %s44, 4
    %s46 = sadd.s32 %s17, 1
    %s47 = smul.u32 %s46, 4
    %s48 = ssub.s32 %s45, %s47
    %p49 = scmp.eq.s32.totalorder %s48, 0
    %s51 = sadd.s32 %s50, 1
    %s52 = scalar_select %p49, %s50, %s51
    %p55 = pneg %p49
    %p56 = scmp.eq.s32.totalorder %s10, 1
    %p57 = por %p55, %p56
    %p58 = scmp.ne.s32.totalorder %s50, %s53
    %p59 = scmp.eq.s32.totalorder %s10, 0
    %p60 = por %p58, %p59
    %p61 = scmp.ne.s32.totalorder %s50, %s53
    %p62 = scmp.eq.s32.totalorder %s15, 1
    %p63 = por %p61, %p62
    %p64 = scmp.ne.s32.totalorder %s53, %s54
    %p65 = scmp.eq.s32.totalorder %s15, 0
    %p66 = por %p64, %p65
    %p67 = scmp.ne.s32.totalorder %s53, %s54
    %p68 = scmp.eq.s32.totalorder %s16, 1
    %p69 = por %p67, %p68
    %p71 = scmp.ne.s32.totalorder %s54, %s70
    %p72 = scmp.eq.s32.totalorder %s16, 0
    %p73 = por %p71, %p72
    %s75 = sadd.s32 %s74, 1
    %p78 = scmp.eq.s32.totalorder %s10, 1
    %p79 = scmp.ne.s32.totalorder %s74, %s76
    %p80 = scmp.eq.s32.totalorder %s10, 0
    %p81 = por %p79, %p80
    %p82 = scmp.ne.s32.totalorder %s74, %s76
    %p83 = scmp.eq.s32.totalorder %s15, 1
    %p84 = por %p82, %p83
    %p85 = scmp.ne.s32.totalorder %s76, %s77
    %p86 = scmp.eq.s32.totalorder %s15, 0
    %p87 = por %p85, %p86
    %p88 = scmp.ne.s32.totalorder %s76, %s77
    %p89 = scmp.eq.s32.totalorder %s16, 1
    %p90 = por %p88, %p89
    %p92 = scmp.ne.s32.totalorder %s77, %s91
    %p93 = scmp.eq.s32.totalorder %s16, 0
    %p94 = por %p92, %p93
    %s96 = sadd.s32 %s95, 1
    %p99 = scmp.eq.s32.totalorder %s10, 1
    %p100 = scmp.ne.s32.totalorder %s95, %s97
    %p101 = scmp.eq.s32.totalorder %s10, 0
    %p102 = por %p100, %p101
    %p103 = scmp.ne.s32.totalorder %s95, %s97
    %p104 = scmp.eq.s32.totalorder %s15, 1
    %p105 = por %p103, %p104
    %p106 = scmp.ne.s32.totalorder %s97, %s98
    %p107 = scmp.eq.s32.totalorder %s15, 0
    %p108 = por %p106, %p107
    %p109 = scmp.ne.s32.totalorder %s97, %s98
    %p110 = scmp.eq.s32.totalorder %s16, 1
    %p111 = por %p109, %p110
    %p113 = scmp.ne.s32.totalorder %s98, %s112
    %p114 = scmp.eq.s32.totalorder %s16, 0
    %p115 = por %p113, %p114
    %s116 = ssub.s32 %s10, %s17
    %p117 = scmp.eq.s32.totalorder %s116, 0
    %s119 = sadd.s32 %s118, 1
    %s120 = scalar_select %p117, %s118, %s119
    %p123 = pneg %p117
    %p124 = scmp.eq.s32.totalorder %s10, 1
    %p125 = por %p123, %p124
    %p126 = scmp.ne.s32.totalorder %s118, %s121
    %p127 = scmp.eq.s32.totalorder %s10, 0
    %p128 = por %p126, %p127
    %p129 = scmp.ne.s32.totalorder %s118, %s121
    %p130 = scmp.eq.s32.totalorder %s15, 1
    %p131 = por %p129, %p130
    %p132 = scmp.ne.s32.totalorder %s121, %s122
    %p133 = scmp.eq.s32.totalorder %s15, 0
    %p134 = por %p132, %p133
    %p135 = scmp.ne.s32.totalorder %s121, %s122
    %p136 = scmp.eq.s32.totalorder %s16, 1
    %p137 = por %p135, %p136
    %p139 = scmp.ne.s32.totalorder %s122, %s138
    %p140 = scmp.eq.s32.totalorder %s16, 0
    %p141 = por %p139, %p140
    %p142 = scmp.le.s32.totalorder 1, %s10
    %p143 = scmp.lt.s32.totalorder %s10, 3
    %p144 = pnand %p142, %p143
    %p145 = pneg %p144
    // Predicated region
    $region9: #{stdf_forward.8} parent=5 // pred_check
      _
    $region10: #{stdf_forward.8} parent=5 // pred_check_branch
      %147 = sbr.rel (%p144) target = $region12
    $region11: #{stdf_forward.8} parent=5 // pred_region
      %s148 = ssub.s32 %s10, 1
      // Predicated region
      $region13: #{stdf_forward.8} parent=11 // pred_check
        %p149 = pneg %p87
      $region14: #{stdf_forward.8} parent=11 // pred_check_branch
        %151 = sbr.rel (%p149) target = $region16
      $region15: #{stdf_forward.8} parent=11 // pred_region
        _
      $region16: #{stdf_forward.8} parent=11 // pred_fallthru
        _
      // Predicated region
      $region17: #{stdf_forward.8} parent=11 // pred_check
        %p152 = pneg %p108
      $region18: #{stdf_forward.8} parent=11 // pred_check_branch
        %154 = sbr.rel (%p152) target = $region20
      $region19: #{stdf_forward.8} parent=11 // pred_region
        _
      $region20: #{stdf_forward.8} parent=11 // pred_fallthru
        _
    $region12: #{stdf_forward.8} parent=5 // pred_fallthru
      _
    %p155 = scmp.lt.s32.totalorder %s10, 2
    // Predicated region
    $region21: #{stdf_forward.8} parent=5 // pred_check
      %p156 = pneg %p155
    $region22: #{stdf_forward.8} parent=5 // pred_check_branch
      %158 = sbr.rel (%p156) target = $region24
    $region23: #{stdf_forward.8} parent=5 // pred_region
      // Predicated region
      $region25: #{stdf_forward.8} parent=23 // pred_check
        %p159 = pneg %p30
      $region26: #{stdf_forward.8} parent=23 // pred_check_branch
        %161 = sbr.rel (%p159) target = $region28
      $region27: #{stdf_forward.8} parent=23 // pred_region
        %s162 = smul.u32 4, %s10
        %s163 = ssub.s32 9, %s162
        %p164 = scmp.lt.s32.totalorder %s163, 4
        %s165 = scalar_select %p164, %s163, 4
        %s166 = smul.u32 64, %s165
        %p167 = scmp.lt.s32.totalorder %s162, 8
        %s168 = scalar_select %p167, %s162, 8
        %s169 = smul.addr %s168, 4
        %s170 = scalar_lea.vmem %s0, %s169
        %s171 = smul.u32 4, %s10
        %s172 = ssub.s32 9, %s171
        %p173 = scmp.lt.s32.totalorder %s172, 4
        %s174 = scalar_select %p173, %s172, 4
        %s175 = smul.u32 64, %s174
      $region28: #{stdf_forward.8} parent=23 // pred_fallthru
        _
      // Predicated region
      $region29: #{stdf_forward.8} parent=23 // pred_check
        %p176 = pneg %p60
      $region30: #{stdf_forward.8} parent=23 // pred_check_branch
        %178 = sbr.rel (%p176) target = $region32
      $region31: #{stdf_forward.8} parent=23 // pred_region
        %s179 = sadd.s32 %s10, 1
        %s180 = smul.u32 %s179, 4
        %p181 = scmp.lt.s32.totalorder %s180, 8
        %s182 = scalar_select %p181, %s180, 8
        %s183 = smul.addr %s182, 4
        %s184 = scalar_lea.vmem %s1, %s183
        %s185 = sadd.s32 %s10, 1
        %s186 = smul.u32 %s185, 4
      $region32: #{stdf_forward.8} parent=23 // pred_fallthru
        _
    $region24: #{stdf_forward.8} parent=5 // pred_fallthru
      _
    %p187 = scmp.le.s32.totalorder 1, %s10
    %p188 = scmp.lt.s32.totalorder %s10, 3
    %p189 = pnand %p187, %p188
    %p190 = pneg %p189
    // Predicated region
    $region33: #{stdf_forward.8} parent=5 // pred_check
      _
    $region34: #{stdf_forward.8} parent=5 // pred_check_branch
      %192 = sbr.rel (%p189) target = $region36
    $region35: #{stdf_forward.8} parent=5 // pred_region
      %s193 = ssub.s32 %s10, 1
      %s194 = smul.u32 4, %s15
      %s195 = ssub.s32 9, %s194
      %p196 = scmp.lt.s32.totalorder %s195, 4
      %s197 = scalar_select %p196, %s195, 4
      %s198 = smul.u32 64, %s197
      %p199 = scmp.lt.s32.totalorder %s194, 8
      %s200 = scalar_select %p199, %s194, 8
      %s201 = smul.addr %s200, 4
      %s202 = scalar_lea.vmem %s0, %s201
      %p203 = pneg %p36
      %p204 = pneg %p33
      %s205 = sadd.s32 %s15, 1
      %s206 = smul.u32 %s205, 4
      %p207 = scmp.lt.s32.totalorder %s206, 8
      %s208 = scalar_select %p207, %s206, 8
      %s209 = smul.addr %s208, 4
      %s210 = scalar_lea.vmem %s1, %s209
      %p211 = pneg %p66
      %p212 = pneg %p63
      %p213 = pneg %p87
      %p214 = pneg %p84
      %p215 = pneg %p108
      %p216 = pneg %p105
      %p217 = pneg %p134
      %p218 = pneg %p131
      %s219 = smul.u32 4, %s15
      %p220 = scmp.lt.s32.totalorder %s219, 7
      %s221 = scalar_select %p220, %s219, 7
      %s222 = smul.addr %s221, 4
      %s223 = scalar_lea.vmem %s4, %s222
      %s224 = smul.u32 4, %s15
      %s225 = ssub.s32 9, %s224
      %p226 = scmp.lt.s32.totalorder %s225, 4
      %s227 = scalar_select %p226, %s225, 4
      %s228 = smul.u32 64, %s227
      %p229 = scmp.lt.s32.totalorder %s224, 8
      %s230 = scalar_select %p229, %s224, 8
      %s231 = smul.addr %s230, 4
      %s232 = scalar_lea.vmem %s0, %s231
      %s233 = smul.u32 4, %s15
      %s234 = ssub.s32 9, %s233
      %p235 = scmp.lt.s32.totalorder %s234, 4
      %s236 = scalar_select %p235, %s234, 4
      %s237 = smul.u32 64, %s236
      %s238 = sadd.s32 %s15, 1
      %s239 = smul.u32 %s238, 4
      %p240 = scmp.lt.s32.totalorder %s239, 8
      %s241 = scalar_select %p240, %s239, 8
      %s242 = smul.addr %s241, 4
      %s243 = scalar_lea.vmem %s1, %s242
      %s244 = sadd.s32 %s15, 1
      %s245 = smul.u32 %s244, 4
      %s246 = smul.u32 4, %s15
      %p247 = scmp.lt.s32.totalorder %s246, 7
      %s248 = scalar_select %p247, %s246, 7
      %s249 = smul.addr %s248, 4
      %s250 = scalar_lea.vmem %s4, %s249
      %s251 = smul.u32 4, %s15
      %v253 = vld [vmem:[%s232] sm:$0xff]
      %v254 = vld [vmem:[%s232 + $0x8] sm:$0xff]
      %255 = vst [vmem:[#allocation2] sm:$0xff] %v253
      %256 = vst [vmem:[#allocation2 + $0x8] sm:$0xff] %v254
      %v257 = vld [vmem:[%s232] sm:$0xff]
      %v258 = vld [vmem:[%s232 + $0x8] sm:$0xff]
      %261 = vrot.lane.b32.xlu0 %v257, 127
      %v262 = vpop.permute.xlu0 %261
      %263 = vrot.lane.b32.xlu0 %v258, 127
      %v264 = vpop.permute.xlu0 %263
      %v265 = vrot.slane %v262, 4
      %v266 = vrot.slane %v264, 4
      %vm267 = vcmask 1043456
      %v268 = vsel %vm267, %v265, %v266
      %vm269 = vcmask 1039360
      %v270 = vsel %vm269, %v262, %v268
      %v271 = vsel %vm269, %v264, %v266
      %274 = vst [vmem:[#allocation2 + $0x10] sm:$0xff] %v270
      %vm275 = vcmask 1043456
      %vm276 = vcmask 1039364
      %vm277 = vmor %vm276, %vm275
      %278 = vst.msk [vmem:[#allocation2 + $0x18] sm:$0xff] %vm277, %v271
      %v279 = vld [vmem:[%s243] sm:$0xf]
      %281 = vrot.lane.b32.xlu0 %v279, 127
      %v282 = vpop.permute.xlu0 %281
      %vm284 = vcmask 1044472
      %285 = vst.msk [vmem:[#allocation2 + $0x1c] sm:$0xf] %vm284, %v282
      %v286 = vld [vmem:[%s232] sm:$0xff]
      %v287 = vld [vmem:[%s232 + $0x8] sm:$0xff]
      %290 = vrot.lane.b32.xlu0 %v286, 126
      %v291 = vpop.permute.xlu0 %290
      %292 = vrot.lane.b32.xlu0 %v287, 126
      %v293 = vpop.permute.xlu0 %292
      %v294 = vrot.slane %v291, 4
      %v295 = vrot.slane %v293, 4
      %v296 = vsel %vm267, %v294, %v295
      %vm297 = vcmask 1031168
      %v298 = vsel %vm297, %v291, %v296
      %v299 = vsel %vm297, %v293, %v295
      %302 = vst [vmem:[#allocation2 + $0x20] sm:$0xff] %v298
      %vm303 = vcmask 1031172
      %vm304 = vmor %vm303, %vm275
      %305 = vst.msk [vmem:[#allocation2 + $0x28] sm:$0xff] %vm304, %v299
      %v306 = vld [vmem:[%s243] sm:$0xf]
      %308 = vrot.lane.b32.xlu0 %v306, 126
      %v309 = vpop.permute.xlu0 %308
      %vm311 = vcmask 1044464
      %312 = vst.msk [vmem:[#allocation2 + $0x2c] sm:$0xf] %vm311, %v309
      %v313 = vld [vmem:[%s232] sm:$0xff]
      %v314 = vld [vmem:[%s232 + $0x8] sm:$0xff]
      %317 = vrot.lane.b32.xlu0 %v313, 110
      %v318 = vpop.permute.xlu0 %317
      %319 = vrot.lane.b32.xlu0 %v314, 110
      %v320 = vpop.permute.xlu0 %319
      %v321 = vrot.slane %v318, 4
      %v322 = vrot.slane %v320, 4
      %v323 = vsel %vm267, %v321, %v322
      %vm324 = vcmask 900096
      %v325 = vsel %vm324, %v318, %v323
      %v326 = vsel %vm324, %v320, %v322
      %329 = vst [vmem:[#allocation2 + $0x30] sm:$0xff] %v325
      %vm330 = vcmask 900100
      %vm331 = vmor %vm330, %vm275
      %332 = vst.msk [vmem:[#allocation2 + $0x38] sm:$0xff] %vm331, %v326
      %v333 = vld [vmem:[%s243] sm:$0xf]
      %335 = vrot.lane.b32.xlu0 %v333, 110
      %v336 = vpop.permute.xlu0 %335
      %vm338 = vcmask 1044336
      %339 = vst.msk [vmem:[#allocation2 + $0x3c] sm:$0xf] %vm338, %v336
      %v340 = vld [vmem:[%s232] sm:$0xff]
      %v341 = vld [vmem:[%s232 + $0x8] sm:$0xff]
      %344 = vrot.lane.b32.xlu0 %v340, 109
      %v345 = vpop.permute.xlu0 %344
      %346 = vrot.lane.b32.xlu0 %v341, 109
      %v347 = vpop.permute.xlu0 %346
      %v348 = vrot.slane %v345, 4
      %v349 = vrot.slane %v347, 4
      %v350 = vsel %vm267, %v348, %v349
      %vm351 = vcmask 891904
      %v352 = vsel %vm351, %v345, %v350
      %v353 = vsel %vm351, %v347, %v349
      %356 = vst [vmem:[#allocation2 + $0x40] sm:$0xff] %v352
      %vm357 = vcmask 891908
      %vm358 = vmor %vm357, %vm275
      %359 = vst.msk [vmem:[#allocation2 + $0x48] sm:$0xff] %vm358, %v353
      %v360 = vld [vmem:[%s243] sm:$0xf]
      %362 = vrot.lane.b32.xlu0 %v360, 109
      %v363 = vpop.permute.xlu0 %362
      %vm365 = vcmask 1044328
      %366 = vst.msk [vmem:[#allocation2 + $0x4c] sm:$0xf] %vm365, %v363
      %v367 = vld [vmem:[%s232] sm:$0xff]
      %v368 = vld [vmem:[%s232 + $0x8] sm:$0xff]
      %371 = vrot.lane.b32.xlu0 %v367, 108
      %v372 = vpop.permute.xlu0 %371
      %373 = vrot.lane.b32.xlu0 %v368, 108
      %v374 = vpop.permute.xlu0 %373
      %v375 = vrot.slane %v372, 4
      %v376 = vrot.slane %v374, 4
      %v377 = vsel %vm267, %v375, %v376
      %vm378 = vcmask 883712
      %v379 = vsel %vm378, %v372, %v377
      %v380 = vsel %vm378, %v374, %v376
      %383 = vst [vmem:[#allocation2 + $0x50] sm:$0xff] %v379
      %vm384 = vcmask 883716
      %vm385 = vmor %vm384, %vm275
      %386 = vst.msk [vmem:[#allocation2 + $0x58] sm:$0xff] %vm385, %v380
      %v387 = vld [vmem:[%s243] sm:$0xf]
      %389 = vrot.lane.b32.xlu0 %v387, 108
      %v390 = vpop.permute.xlu0 %389
      %vm392 = vcmask 1044320
      %393 = vst.msk [vmem:[#allocation2 + $0x5c] sm:$0xf] %vm392, %v390
      %v394 = vld [vmem:[%s232] sm:$0xff]
      %v395 = vld [vmem:[%s232 + $0x8] sm:$0xff]
      %398 = vrot.lane.b32.xlu0 %v394, 92
      %v399 = vpop.permute.xlu0 %398
      %400 = vrot.lane.b32.xlu0 %v395, 92
      %v401 = vpop.permute.xlu0 %400
      %v402 = vrot.slane %v399, 4
      %v403 = vrot.slane %v401, 4
      %v404 = vsel %vm267, %v402, %v403
      %vm405 = vcmask 752640
      %v406 = vsel %vm405, %v399, %v404
      %v407 = vsel %vm405, %v401, %v403
      %410 = vst [vmem:[#allocation2 + $0x60] sm:$0xff] %v406
      %vm411 = vcmask 752644
      %vm412 = vmor %vm411, %vm275
      %413 = vst.msk [vmem:[#allocation2 + $0x68] sm:$0xff] %vm412, %v407
      %v414 = vld [vmem:[%s243] sm:$0xf]
      %416 = vrot.lane.b32.xlu0 %v414, 92
      %v417 = vpop.permute.xlu0 %416
      %vm419 = vcmask 1044192
      %420 = vst.msk [vmem:[#allocation2 + $0x6c] sm:$0xf] %vm419, %v417
      %v421 = vld [vmem:[%s232] sm:$0xff]
      %v422 = vld [vmem:[%s232 + $0x8] sm:$0xff]
      %425 = vrot.lane.b32.xlu0 %v421, 91
      %v426 = vpop.permute.xlu0 %425
      %427 = vrot.lane.b32.xlu0 %v422, 91
      %v428 = vpop.permute.xlu0 %427
      %v429 = vrot.slane %v426, 4
      %v430 = vrot.slane %v428, 4
      %v431 = vsel %vm267, %v429, %v430
      %vm432 = vcmask 744448
      %v433 = vsel %vm432, %v426, %v431
      %v434 = vsel %vm432, %v428, %v430
      %437 = vst [vmem:[#allocation2 + $0x70] sm:$0xff] %v433
      %vm438 = vcmask 744452
      %vm439 = vmor %vm438, %vm275
      %440 = vst.msk [vmem:[#allocation2 + $0x78] sm:$0xff] %vm439, %v434
      %v441 = vld [vmem:[%s243] sm:$0xf]
      %443 = vrot.lane.b32.xlu0 %v441, 91
      %v444 = vpop.permute.xlu0 %443
      %vm446 = vcmask 1044184
      %447 = vst.msk [vmem:[#allocation2 + $0x7c] sm:$0xf] %vm446, %v444
      %v448 = vld [vmem:[%s232] sm:$0xff]
      %v449 = vld [vmem:[%s232 + $0x8] sm:$0xff]
      %452 = vrot.lane.b32.xlu0 %v448, 90
      %v453 = vpop.permute.xlu0 %452
      %454 = vrot.lane.b32.xlu0 %v449, 90
      %v455 = vpop.permute.xlu0 %454
      %v456 = vrot.slane %v453, 4
      %v457 = vrot.slane %v455, 4
      %v458 = vsel %vm267, %v456, %v457
      %vm459 = vcmask 736256
      %v460 = vsel %vm459, %v453, %v458
      %v461 = vsel %vm459, %v455, %v457
      %464 = vst [vmem:[#allocation2 + $0x80] sm:$0xff] %v460
      %vm465 = vcmask 736260
      %vm466 = vmor %vm465, %vm275
      %467 = vst.msk [vmem:[#allocation2 + $0x88] sm:$0xff] %vm466, %v461
      %v468 = vld [vmem:[%s243] sm:$0xf]
      %470 = vrot.lane.b32.xlu0 %v468, 90
      %v471 = vpop.permute.xlu0 %470
      %vm473 = vcmask 1044176
      %474 = vst.msk [vmem:[#allocation2 + $0x8c] sm:$0xf] %vm473, %v471
      %v475 = vld [vmem:[%s2] sm:$0xf]
      %v476 = vld [vmem:[%s3] sm:$0xff]
      %v477 = vld [vmem:[#allocation2] sm:$0xff]
      %v478 = vld [vmem:[#allocation2 + $0x8] sm:$0xff]
      %v479 = vld [vmem:[#allocation2 + $0x10] sm:$0xff]
      %v480 = vld [vmem:[#allocation2 + $0x18] sm:$0xff]
      %v481 = vld [vmem:[#allocation2 + $0x20] sm:$0xff]
      %v482 = vld [vmem:[#allocation2 + $0x28] sm:$0xff]
      %v483 = vld [vmem:[#allocation2 + $0x30] sm:$0xff]
      %v484 = vld [vmem:[#allocation2 + $0x38] sm:$0xff]
      %v485 = vld [vmem:[#allocation2 + $0x40] sm:$0xff]
      %v486 = vld [vmem:[#allocation2 + $0x48] sm:$0xff]
      %v487 = vld [vmem:[#allocation2 + $0x50] sm:$0xff]
      %v488 = vld [vmem:[#allocation2 + $0x58] sm:$0xff]
      %v489 = vld [vmem:[#allocation2 + $0x60] sm:$0xff]
      %v490 = vld [vmem:[#allocation2 + $0x68] sm:$0xff]
      %v491 = vld [vmem:[#allocation2 + $0x70] sm:$0xff]
      %v492 = vld [vmem:[#allocation2 + $0x78] sm:$0xff]
      %v493 = vld [vmem:[#allocation2 + $0x80] sm:$0xff]
      %v494 = vld [vmem:[#allocation2 + $0x88] sm:$0xff]
      %496 = vset.pattern.permute.xlu0 0
      %497 = vperm.xlu0 %496, %v476
      %v498 = vpop.permute.xlu0 %497
      %v518 = vunpack.c.l.b16 %v477
      %v519 = vunpack.c.h.b16 %v477
      %v520 = vunpack.c.l.b16 %v478
      %v521 = vunpack.c.h.b16 %v478
      %v522 = vunpack.c.l.b16 %v479
      %v523 = vunpack.c.h.b16 %v479
      %v524 = vunpack.c.l.b16 %v480
      %v525 = vunpack.c.h.b16 %v480
      %v526 = vunpack.c.l.b16 %v481
      %v527 = vunpack.c.h.b16 %v481
      %v528 = vunpack.c.l.b16 %v482
      %v529 = vunpack.c.h.b16 %v482
      %v530 = vunpack.c.l.b16 %v483
      %v531 = vunpack.c.h.b16 %v483
      %v532 = vunpack.c.l.b16 %v484
      %v533 = vunpack.c.h.b16 %v484
      %v534 = vunpack.c.l.b16 %v485
      %v535 = vunpack.c.h.b16 %v485
      %v536 = vunpack.c.l.b16 %v486
      %v537 = vunpack.c.h.b16 %v486
      %v538 = vunpack.c.l.b16 %v487
      %v539 = vunpack.c.h.b16 %v487
      %v540 = vunpack.c.l.b16 %v488
      %v541 = vunpack.c.h.b16 %v488
      %v542 = vunpack.c.l.b16 %v489
      %v543 = vunpack.c.h.b16 %v489
      %v544 = vunpack.c.l.b16 %v490
      %v545 = vunpack.c.h.b16 %v490
      %v546 = vunpack.c.l.b16 %v491
      %v547 = vunpack.c.h.b16 %v491
      %v548 = vunpack.c.l.b16 %v492
      %v549 = vunpack.c.h.b16 %v492
      %v550 = vunpack.c.l.b16 %v493
      %v551 = vunpack.c.h.b16 %v493
      %v552 = vunpack.c.l.b16 %v494
      %v553 = vunpack.c.h.b16 %v494
      %v554 = vpack.c.b16 %v522, %v518
      %v555 = vpack.c.b16 %v523, %v519
      %v556 = vpack.c.b16 %v524, %v520
      %v557 = vpack.c.b16 %v525, %v521
      %v558 = vpack.c.b16 %v530, %v526
      %v559 = vpack.c.b16 %v531, %v527
      %v560 = vpack.c.b16 %v532, %v528
      %v561 = vpack.c.b16 %v533, %v529
      %v562 = vpack.c.b16 %v538, %v534
      %v563 = vpack.c.b16 %v539, %v535
      %v564 = vpack.c.b16 %v540, %v536
      %v565 = vpack.c.b16 %v541, %v537
      %v566 = vpack.c.b16 %v546, %v542
      %v567 = vpack.c.b16 %v547, %v543
      %v568 = vpack.c.b16 %v548, %v544
      %v569 = vpack.c.b16 %v549, %v545
      %v570 = vpack.c.b16 %v550, %v550
      %v571 = vpack.c.b16 %v551, %v551
      %v572 = vpack.c.b16 %v552, %v552
      %v573 = vpack.c.b16 %v553, %v553
      %vm590 = vcmask 588800
      %v592 = vsel %vm590, %v475, 0
      %v595 = vsel %vm275, %v570, 0
      %v598 = vsel %vm275, %v571, 0
      %v601 = vsel %vm275, %v572, 0
      %v604 = vsel %vm275, %v573, 0
      %606 = vmatprep.subr.bf16.mxu0 %v555
      %607 = vmatpush1.bf16.msra.mxu0 %v554
      %608 = vmatprep.subr.bf16.mxu0 %v559
      %609 = vmatpush1.bf16.msra.mxu0 %v558
      %610 = vmatprep.subr.bf16.mxu0 %v563
      %611 = vmatpush1.bf16.msra.mxu0 %v562
      %612 = vmatprep.subr.bf16.mxu0 %v567
      %613 = vmatpush1.bf16.msra.mxu0 %v566
      %614 = vmatprep.subr.bf16.mxu0 %v598
      %615 = vmatpush1.bf16.msra.mxu0 %v595
      %616 = vmatprep.subr.bf16.mxu0 0
      %617 = vmatpush1.bf16.msra.mxu0 0
      %618 = vmatprep.subr.bf16.mxu0 0
      %619 = vmatpush1.bf16.msra.mxu0 0
      %620 = vmatprep.subr.bf16.mxu0 0
      %621 = vmatpush1.bf16.msra.mxu0 0
      %622 = vmatprep.subr.bf16.mxu0 0
      %623 = vmatpush1.bf16.msra.mxu0 0
      %624 = vmatprep.subr.bf16.mxu0 0
      %625 = vmatpush1.bf16.msra.mxu0 0
      %626 = vmatprep.subr.bf16.mxu0 0
      %627 = vmatpush1.bf16.msra.mxu0 0
      %628 = vmatprep.subr.bf16.mxu0 0
      %629 = vmatpush1.bf16.msra.mxu0 0
      %630 = vmatprep.subr.bf16.mxu0 0
      %631 = vmatpush1.bf16.msra.mxu0 0
      %632 = vmatprep.subr.bf16.mxu0 0
      %633 = vmatpush1.bf16.msra.mxu0 0
      %634 = vmatprep.subr.bf16.mxu0 0
      %635 = vmatpush1.bf16.msra.mxu0 0
      %636 = vmatprep.subr.bf16.mxu0 0
      %637 = vmatpush1.bf16.msra.mxu0 0
      %638 = vmatprep.mubr.bf16.mxu0 0
      %639 = vmatmul.mubr.bf16.gmra.mrb[0].mxu0 %v592
      %v640 = vpop.f32.mrb[0].mxu0
      %v641 = vadd.f32 %v498, %v640
      %v642 = vpop.f32.mrb[0].mxu0
      %v643 = vadd.f32 %v498, %v642
      %v644 = vpop.f32.mrb[0].mxu0
      %v645 = vpop.f32.mrb[0].mxu0
      %646 = vdwg.mxu0
      %647 = vmatprep.subr.bf16.mxu0 %v557
      %648 = vmatpush1.bf16.msra.mxu0 %v556
      %649 = vmatprep.subr.bf16.mxu0 %v561
      %650 = vmatpush1.bf16.msra.mxu0 %v560
      %651 = vmatprep.subr.bf16.mxu0 %v565
      %652 = vmatpush1.bf16.msra.mxu0 %v564
      %653 = vmatprep.subr.bf16.mxu0 %v569
      %654 = vmatpush1.bf16.msra.mxu0 %v568
      %655 = vmatprep.subr.bf16.mxu0 %v604
      %656 = vmatpush1.bf16.msra.mxu0 %v601
      %657 = vmatprep.subr.bf16.mxu0 0
      %658 = vmatpush1.bf16.msra.mxu0 0
      %659 = vmatprep.subr.bf16.mxu0 0
      %660 = vmatpush1.bf16.msra.mxu0 0
      %661 = vmatprep.subr.bf16.mxu0 0
      %662 = vmatpush1.bf16.msra.mxu0 0
      %663 = vmatprep.subr.bf16.mxu0 0
      %664 = vmatpush1.bf16.msra.mxu0 0
      %665 = vmatprep.subr.bf16.mxu0 0
      %666 = vmatpush1.bf16.msra.mxu0 0
      %667 = vmatprep.subr.bf16.mxu0 0
      %668 = vmatpush1.bf16.msra.mxu0 0
      %669 = vmatprep.subr.bf16.mxu0 0
      %670 = vmatpush1.bf16.msra.mxu0 0
      %671 = vmatprep.subr.bf16.mxu0 0
      %672 = vmatpush1.bf16.msra.mxu0 0
      %673 = vmatprep.subr.bf16.mxu0 0
      %674 = vmatpush1.bf16.msra.mxu0 0
      %675 = vmatprep.subr.bf16.mxu0 0
      %676 = vmatpush1.bf16.msra.mxu0 0
      %677 = vmatprep.subr.bf16.mxu0 0
      %678 = vmatpush1.bf16.msra.mxu0 0
      %679 = vmatprep.mubr.bf16.mxu0 0
      %680 = vmatmul.mubr.bf16.gmra.mrb[0].mxu0 %v592
      %v681 = vpop.f32.mrb[0].mxu0
      %v682 = vadd.f32 %v498, %v681
      %v683 = vpop.f32.mrb[0].mxu0
      %v684 = vadd.f32 %v498, %v683
      %v685 = vpop.f32.mrb[0].mxu0
      %v686 = vpop.f32.mrb[0].mxu0
      %687 = vdwg.mxu0
      %v688 = vmax.f32 %v641, 0.0
      %v689 = vmax.f32 %v643, 0.0
      %v690 = vmax.f32 %v682, 0.0
      %v691 = vmax.f32 %v684, 0.0
      %v692 = vpack.c.bf16 %v688, %v688
      %v693 = vpack.c.bf16 %v689, %v689
      %v694 = vpack.c.bf16 %v690, %v690
      %v695 = vpack.c.bf16 %v691, %v691
      %v700 = vunpack.c.l.b16 %v692
      %v701 = vunpack.c.l.b16 %v693
      %v702 = vunpack.c.l.b16 %v694
      %v703 = vunpack.c.l.b16 %v695
      %v704 = vpack.c.b16 %v701, %v700
      %v705 = vpack.c.b16 %v703, %v702
      %708 = vst [vmem:[%s250] sm:$0xff] %v704
      %709 = vst [vmem:[%s250 + $0x8] sm:$0xff] %v705
      %s710 = smul.u32 4, %s15
      %p711 = scmp.lt.s32.totalorder %s710, 7
      %s712 = scalar_select %p711, %s710, 7
      %s713 = smul.addr %s712, 4
      %s714 = scalar_lea.vmem %s4, %s713
      // Predicated region
      $region37: #{stdf_forward.8} parent=35 // pred_check
        %p715 = pneg %p131
      $region38: #{stdf_forward.8} parent=35 // pred_check_branch
        %717 = sbr.rel (%p715) target = $region40
      $region39: #{stdf_forward.8} parent=35 // pred_region
        %s718 = smul.u32 4, %s15
      $region40: #{stdf_forward.8} parent=35 // pred_fallthru
        _
    $region36: #{stdf_forward.8} parent=5 // pred_fallthru
      _
    %p719 = scmp.le.s32.totalorder 2, %s10
    // Predicated region
    $region41: #{stdf_forward.8} parent=5 // pred_check
      %p720 = pneg %p719
    $region42: #{stdf_forward.8} parent=5 // pred_check_branch
      %722 = sbr.rel (%p720) target = $region44
    $region43: #{stdf_forward.8} parent=5 // pred_region
      %s723 = ssub.s32 %s10, 2
      // Predicated region
      $region45: #{stdf_forward.8} parent=43 // pred_check
        %p724 = pneg %p137
      $region46: #{stdf_forward.8} parent=43 // pred_check_branch
        %726 = sbr.rel (%p724) target = $region48
      $region47: #{stdf_forward.8} parent=43 // pred_region
        %s727 = smul.u32 4, %s16
        %p728 = scmp.lt.s32.totalorder %s727, 7
        %s729 = scalar_select %p728, %s727, 7
        %s730 = smul.addr %s729, 4
        %s731 = scalar_lea.vmem %s4, %s730
      $region48: #{stdf_forward.8} parent=43 // pred_fallthru
        _
    $region44: #{stdf_forward.8} parent=5 // pred_fallthru
      _
  $region6: #{stdf_forward.8} parent=0 // loop_footer
    %s14 = sadd.s32 1, %s10
  $region7: #{stdf_forward.8} parent=0 // loop_footer_branch
    %9 = sbr.rel target = $region3
  $region8: #{stdf_forward.8} parent=0 // loop_exit
    _

// kernel: stdf_forward.9
$region0: #{stdf_forward.9}
  #allocation0 [shape = 'u32[]', space=smem, size = 0x4, offset = 0x4, fixed_abs, tag = 'smem constant byte address 0x4 - core index']
  #allocation1 [shape = 'u32[144,128]{1,0:T(1,128)}', space=vmem, size = 0x12000, scoped, tag = 'internal scratch']
  #allocation2 [shape = 'bf16[128,256]{1,0:T(16,128)(2,1)}', space=vmem, size = 0x10000, scoped, tag = 'scratch operand']
  %s0 = inlined_call_operand.vmem [shape: bf16[32,384], index: 0, kind: input, shape index: {}, may-alias: {0,1}]
  %s1 = inlined_call_operand.vmem [shape: bf16[32,384], index: 1, kind: input, shape index: {}, may-alias: {0,1}]
  %s2 = inlined_call_operand.vmem [shape: bf16[8,128], index: 2, kind: input, shape index: {}]
  %s3 = inlined_call_operand.vmem [shape: f32[8,1], index: 3, kind: input, shape index: {}]
  %s4 = inlined_call_operand.vmem [shape: bf16[8,256], index: 4, kind: output, shape index: {}]
  %s5 = sld [smem:[#allocation0]]
  $region105: #{stdf_forward.9} parent=0
    _
  %s7 = ssub.s32 1, %s5
  %s8 = scalar_select 0, %s7, %s5
  $region1: #{stdf_forward.9} parent=0
    #allocation3 [shape = 'u8[16384]{0}', space=vmem, size = 0x4000, scoped, tag = 'input window, operand 0, single buffered']
    #allocation4 [shape = 'u8[8192]{0}', space=vmem, size = 0x2000, scoped, tag = 'input window, operand 1, single buffered']
    // Predicated region
    $region2: #{stdf_forward.9} parent=1 // pred_check
      _
    $region3: #{stdf_forward.9} parent=1 // pred_check_branch
      %10 = sbr.rel (0) target = $region5
    $region4: #{stdf_forward.9} parent=1 // pred_region
      // Predicated region
      $region6: #{stdf_forward.9} parent=4 // pred_check
        _
      $region7: #{stdf_forward.9} parent=4 // pred_check_branch
        %12 = sbr.rel (0) target = $region9
      $region8: #{stdf_forward.9} parent=4 // pred_region
        // Predicated region
        $region10: #{stdf_forward.9} parent=8 // pred_check
          _
        $region11: #{stdf_forward.9} parent=8 // pred_check_branch
          %14 = sbr.rel (0) target = $region13
        $region12: #{stdf_forward.9} parent=8 // pred_region
          // Predicated region
          $region25: #{stdf_forward.9} parent=12 // pred_check
            _
          $region26: #{stdf_forward.9} parent=12 // pred_check_branch
            %35 = sbr.rel (0) target = $region28
          $region27: #{stdf_forward.9} parent=12 // pred_region
            loop: start=0, step=1, limit=1
            $region29: #{stdf_forward.9} parent=27 // loop_pre_header
              _
            $region30: #{stdf_forward.9} parent=27 // loop_header
              %s37 = sphi 0, %s41
              %p38 = scmp.ge.s32.totalorder %s37, 1
              %s42 = sphi %s0, %s0
              %s43 = sphi [#allocation3], [#allocation3]
            $region31: #{stdf_forward.9} parent=27 // loop_header_branch
              %40 = sbr.rel (%p38) target = $region35
            $region32: #{stdf_forward.9} parent=27 // loop_body
              %v44 = vld [vmem:[%s42] sm:$0xff]
              %45 = vst [vmem:[%s43] sm:$0xff] %v44
              %v46 = vld [vmem:[%s42 + $0xc] sm:$0xff]
              %47 = vst [vmem:[%s43 + $0x8] sm:$0xff] %v46
              %v48 = vld [vmem:[%s42 + $0x18] sm:$0xff]
              %49 = vst [vmem:[%s43 + $0x10] sm:$0xff] %v48
              %v50 = vld [vmem:[%s42 + $0x24] sm:$0xff]
              %51 = vst [vmem:[%s43 + $0x18] sm:$0xff] %v50
            $region33: #{stdf_forward.9} parent=27 // loop_footer
              %s41 = sadd.s32 1, %s37
            $region34: #{stdf_forward.9} parent=27 // loop_footer_branch
              %36 = sbr.rel target = $region30
            $region35: #{stdf_forward.9} parent=27 // loop_exit
              _
          $region28: #{stdf_forward.9} parent=12 // pred_fallthru
            _
          // Predicated region
          $region36: #{stdf_forward.9} parent=12 // pred_check
            _
          $region37: #{stdf_forward.9} parent=12 // pred_check_branch
            %53 = sbr.rel target = $region39
          $region38: #{stdf_forward.9} parent=12 // pred_region
            _
          $region39: #{stdf_forward.9} parent=12 // pred_fallthru
            _
        $region13: #{stdf_forward.9} parent=8 // pred_fallthru
          _
        // Predicated region
        $region14: #{stdf_forward.9} parent=8 // pred_check
          _
        $region15: #{stdf_forward.9} parent=8 // pred_check_branch
          %16 = sbr.rel target = $region17
        $region16: #{stdf_forward.9} parent=8 // pred_region
          loop: start=0, step=1, limit=1
          $region18: #{stdf_forward.9} parent=16 // loop_pre_header
            _
          $region19: #{stdf_forward.9} parent=16 // loop_header
            %s19 = sphi 0, %s23
            %p20 = scmp.ge.s32.totalorder %s19, 1
            %s24 = sphi %s0, %s0
            %s25 = sphi [#allocation3], [#allocation3]
          $region20: #{stdf_forward.9} parent=16 // loop_header_branch
            %22 = sbr.rel (%p20) target = $region24
          $region21: #{stdf_forward.9} parent=16 // loop_body
            %v26 = vld [vmem:[%s24] sm:$0xff]
            %27 = vst [vmem:[%s25] sm:$0xff] %v26
            %v28 = vld [vmem:[%s24 + $0xc] sm:$0xff]
            %29 = vst [vmem:[%s25 + $0x8] sm:$0xff] %v28
            %v30 = vld [vmem:[%s24 + $0x18] sm:$0xff]
            %31 = vst [vmem:[%s25 + $0x10] sm:$0xff] %v30
            %v32 = vld [vmem:[%s24 + $0x24] sm:$0xff]
            %33 = vst [vmem:[%s25 + $0x18] sm:$0xff] %v32
          $region22: #{stdf_forward.9} parent=16 // loop_footer
            %s23 = sadd.s32 1, %s19
          $region23: #{stdf_forward.9} parent=16 // loop_footer_branch
            %18 = sbr.rel target = $region19
          $region24: #{stdf_forward.9} parent=16 // loop_exit
            _
        $region17: #{stdf_forward.9} parent=8 // pred_fallthru
          _
      $region9: #{stdf_forward.9} parent=4 // pred_fallthru
        _
      %54 = vnop
    $region5: #{stdf_forward.9} parent=1 // pred_fallthru
      _
    // Predicated region
    $region40: #{stdf_forward.9} parent=1 // pred_check
      _
    $region41: #{stdf_forward.9} parent=1 // pred_check_branch
      %56 = sbr.rel (0) target = $region43
    $region42: #{stdf_forward.9} parent=1 // pred_region
      %s57 = sadd.s32 0, 1
      %s58 = smul.u32 %s57, 2
      %s59 = smul.addr %s58, 4
      %s60 = scalar_lea.vmem %s1, %s59
      // Predicated region
      $region44: #{stdf_forward.9} parent=42 // pred_check
        _
      $region45: #{stdf_forward.9} parent=42 // pred_check_branch
        %62 = sbr.rel (0) target = $region47
      $region46: #{stdf_forward.9} parent=42 // pred_region
        // Predicated region
        $region48: #{stdf_forward.9} parent=46 // pred_check
          _
        $region49: #{stdf_forward.9} parent=46 // pred_check_branch
          %64 = sbr.rel target = $region51
        $region50: #{stdf_forward.9} parent=46 // pred_region
          // Predicated region
          $region63: #{stdf_forward.9} parent=50 // pred_check
            _
          $region64: #{stdf_forward.9} parent=50 // pred_check_branch
            %85 = sbr.rel (0) target = $region66
          $region65: #{stdf_forward.9} parent=50 // pred_region
            loop: start=0, step=1, limit=1
            $region67: #{stdf_forward.9} parent=65 // loop_pre_header
              _
            $region68: #{stdf_forward.9} parent=65 // loop_header
              %s87 = sphi 0, %s91
              %p88 = scmp.ge.s32.totalorder %s87, 1
              %s92 = sphi %s60, %s60
              %s93 = sphi [#allocation4], [#allocation4]
            $region69: #{stdf_forward.9} parent=65 // loop_header_branch
              %90 = sbr.rel (%p88) target = $region73
            $region70: #{stdf_forward.9} parent=65 // loop_body
              _
            $region71: #{stdf_forward.9} parent=65 // loop_footer
              %s91 = sadd.s32 1, %s87
            $region72: #{stdf_forward.9} parent=65 // loop_footer_branch
              %86 = sbr.rel target = $region68
            $region73: #{stdf_forward.9} parent=65 // loop_exit
              _
            loop: start=0, step=1, limit=1
            $region74: #{stdf_forward.9} parent=65 // loop_pre_header
              _
            $region75: #{stdf_forward.9} parent=65 // loop_header
              %s96 = sphi 0, %s100
              %p97 = scmp.ge.s32.totalorder %s96, 1
              %s101 = sphi %s60, %s60
              %s102 = sphi [#allocation4], [#allocation4]
            $region76: #{stdf_forward.9} parent=65 // loop_header_branch
              %99 = sbr.rel (%p97) target = $region80
            $region77: #{stdf_forward.9} parent=65 // loop_body
              %v103 = vld [vmem:[%s101] sm:$0xf]
              %104 = vst [vmem:[%s102] sm:$0xf] %v103
              %v105 = vld [vmem:[%s101 + $0xc] sm:$0xf]
              %106 = vst [vmem:[%s102 + $0x4] sm:$0xf] %v105
              %v107 = vld [vmem:[%s101 + $0x18] sm:$0xf]
              %108 = vst [vmem:[%s102 + $0x8] sm:$0xf] %v107
              %v109 = vld [vmem:[%s101 + $0x24] sm:$0xf]
              %110 = vst [vmem:[%s102 + $0xc] sm:$0xf] %v109
            $region78: #{stdf_forward.9} parent=65 // loop_footer
              %s100 = sadd.s32 1, %s96
            $region79: #{stdf_forward.9} parent=65 // loop_footer_branch
              %95 = sbr.rel target = $region75
            $region80: #{stdf_forward.9} parent=65 // loop_exit
              _
          $region66: #{stdf_forward.9} parent=50 // pred_fallthru
            _
        $region51: #{stdf_forward.9} parent=46 // pred_fallthru
          _
        // Predicated region
        $region52: #{stdf_forward.9} parent=46 // pred_check
          _
        $region53: #{stdf_forward.9} parent=46 // pred_check_branch
          %66 = sbr.rel (0) target = $region55
        $region54: #{stdf_forward.9} parent=46 // pred_region
          loop: start=0, step=1, limit=1
          $region56: #{stdf_forward.9} parent=54 // loop_pre_header
            _
          $region57: #{stdf_forward.9} parent=54 // loop_header
            %s69 = sphi 0, %s73
            %p70 = scmp.ge.s32.totalorder %s69, 1
            %s74 = sphi %s60, %s60
            %s75 = sphi [#allocation4], [#allocation4]
          $region58: #{stdf_forward.9} parent=54 // loop_header_branch
            %72 = sbr.rel (%p70) target = $region62
          $region59: #{stdf_forward.9} parent=54 // loop_body
            %v76 = vld [vmem:[%s74] sm:$0xf]
            %77 = vst [vmem:[%s75] sm:$0xf] %v76
            %v78 = vld [vmem:[%s74 + $0xc] sm:$0xf]
            %79 = vst [vmem:[%s75 + $0x4] sm:$0xf] %v78
            %v80 = vld [vmem:[%s74 + $0x18] sm:$0xf]
            %81 = vst [vmem:[%s75 + $0x8] sm:$0xf] %v80
            %v82 = vld [vmem:[%s74 + $0x24] sm:$0xf]
            %83 = vst [vmem:[%s75 + $0xc] sm:$0xf] %v82
          $region60: #{stdf_forward.9} parent=54 // loop_footer
            %s73 = sadd.s32 1, %s69
          $region61: #{stdf_forward.9} parent=54 // loop_footer_branch
            %68 = sbr.rel target = $region57
          $region62: #{stdf_forward.9} parent=54 // loop_exit
            _
        $region55: #{stdf_forward.9} parent=46 // pred_fallthru
          _
      $region47: #{stdf_forward.9} parent=42 // pred_fallthru
        _
      %111 = vnop
    $region43: #{stdf_forward.9} parent=1 // pred_fallthru
      _
    // Predicated region
    $region81: #{stdf_forward.9} parent=1 // pred_check
      _
    $region82: #{stdf_forward.9} parent=1 // pred_check_branch
      %113 = sbr.rel (0) target = $region84
    $region83: #{stdf_forward.9} parent=1 // pred_region
      _
    $region84: #{stdf_forward.9} parent=1 // pred_fallthru
      _
    // Predicated region
    $region85: #{stdf_forward.9} parent=1 // pred_check
      _
    $region86: #{stdf_forward.9} parent=1 // pred_check_branch
      %115 = sbr.rel (0) target = $region88
    $region87: #{stdf_forward.9} parent=1 // pred_region
      _
    $region88: #{stdf_forward.9} parent=1 // pred_fallthru
      _
    // Predicated region
    $region89: #{stdf_forward.9} parent=1 // pred_check
      _
    $region90: #{stdf_forward.9} parent=1 // pred_check_branch
      %117 = sbr.rel (0) target = $region92
    $region91: #{stdf_forward.9} parent=1 // pred_region
      _
    $region92: #{stdf_forward.9} parent=1 // pred_fallthru
      _
    // Predicated region
    $region93: #{stdf_forward.9} parent=1 // pred_check
      _
    $region94: #{stdf_forward.9} parent=1 // pred_check_branch
      %119 = sbr.rel (0) target = $region96
    $region95: #{stdf_forward.9} parent=1 // pred_region
      _
    $region96: #{stdf_forward.9} parent=1 // pred_fallthru
      _
    %s120 = sadd.s32 0, 1
    %s121 = smul.u32 %s120, 2
    %v123 = vld [vmem:[#allocation3] sm:$0xff]
    %v124 = vld [vmem:[#allocation3 + $0x8] sm:$0xff]
    %v125 = vld [vmem:[#allocation3 + $0x10] sm:$0xff]
    %v126 = vld [vmem:[#allocation3 + $0x18] sm:$0xff]
    %v131 = vunpack.c.l.b16 %v123
    %v132 = vunpack.c.h.b16 %v123
    %v133 = vunpack.c.l.b16 %v124
    %v134 = vunpack.c.h.b16 %v124
    %v135 = vunpack.c.l.b16 %v125
    %v136 = vunpack.c.h.b16 %v125
    %v137 = vunpack.c.l.b16 %v126
    %v138 = vunpack.c.h.b16 %v126
    %v139 = vpack.c.b16 %v133, %v131
    %v140 = vpack.c.b16 %v134, %v132
    %v141 = vpack.c.b16 %v137, %v135
    %v142 = vpack.c.b16 %v138, %v136
    %147 = vst [vmem:[#allocation2] sm:$0xff] %v139
    %148 = vst [vmem:[#allocation2 + $0x8] sm:$0xff] %v140
    %149 = vst [vmem:[#allocation2 + $0x10] sm:$0xff] %v141
    %150 = vst [vmem:[#allocation2 + $0x18] sm:$0xff] %v142
    %v151 = vld [vmem:[#allocation3] sm:$0xff]
    %v152 = vld [vmem:[#allocation3 + $0x8] sm:$0xff]
    %v153 = vld [vmem:[#allocation3 + $0x10] sm:$0xff]
    %v154 = vld [vmem:[#allocation3 + $0x18] sm:$0xff]
    %v159 = vunpack.c.l.b16 %v151
    %v160 = vunpack.c.h.b16 %v151
    %v161 = vunpack.c.l.b16 %v152
    %v162 = vunpack.c.h.b16 %v152
    %v163 = vunpack.c.l.b16 %v153
    %v164 = vunpack.c.h.b16 %v153
    %v165 = vunpack.c.l.b16 %v154
    %v166 = vunpack.c.h.b16 %v154
    %v167 = vpack.c.b16 %v161, %v159
    %v168 = vpack.c.b16 %v162, %v160
    %v169 = vpack.c.b16 %v165, %v163
    %v170 = vpack.c.b16 %v166, %v164
    %171 = vrot.lane.b32.xlu0 %v167, 127
    %v172 = vpop.permute.xlu0 %171
    %173 = vrot.lane.b32.xlu0 %v168, 127
    %v174 = vpop.permute.xlu0 %173
    %175 = vrot.lane.b32.xlu0 %v169, 127
    %v176 = vpop.permute.xlu0 %175
    %177 = vrot.lane.b32.xlu0 %v170, 127
    %v178 = vpop.permute.xlu0 %177
    %vm179 = vcmask 1039360
    %v180 = vsel %vm179, %v172, %v174
    %v181 = vsel %vm179, %v176, %v178
    %186 = vst [vmem:[#allocation2 + $0x20] sm:$0xff] %v180
    %vm187 = vcmask 1039360
    %188 = vst.msk [vmem:[#allocation2 + $0x28] sm:$0xff] %vm187, %v174
    %189 = vst [vmem:[#allocation2 + $0x30] sm:$0xff] %v181
    %190 = vst.msk [vmem:[#allocation2 + $0x38] sm:$0xff] %vm187, %v178
    %v191 = vld [vmem:[#allocation4] sm:$0xf]
    %v192 = vld [vmem:[#allocation4 + $0x4] sm:$0xf]
    %v193 = vld [vmem:[#allocation4 + $0x8] sm:$0xf]
    %v194 = vld [vmem:[#allocation4 + $0xc] sm:$0xf]
    %v199 = vunpack.c.l.b16 %v191
    %v200 = vunpack.c.l.b16 %v192
    %v201 = vunpack.c.l.b16 %v193
    %v202 = vunpack.c.l.b16 %v194
    %v203 = vpack.c.b16 %v200, %v199
    %v204 = vpack.c.b16 %v202, %v201
    %205 = vrot.lane.b32.xlu0 %v203, 127
    %v206 = vpop.permute.xlu0 %205
    %207 = vrot.lane.b32.xlu0 %v204, 127
    %v208 = vpop.permute.xlu0 %207
    %vm211 = vcmask 1048568
    %212 = vst.msk [vmem:[#allocation2 + $0x28] sm:$0xff] %vm211, %v206
    %213 = vst.msk [vmem:[#allocation2 + $0x38] sm:$0xff] %vm211, %v208
    %v214 = vld [vmem:[#allocation3] sm:$0xff]
    %v215 = vld [vmem:[#allocation3 + $0x8] sm:$0xff]
    %v216 = vld [vmem:[#allocation3 + $0x10] sm:$0xff]
    %v217 = vld [vmem:[#allocation3 + $0x18] sm:$0xff]
    %v222 = vunpack.c.l.b16 %v214
    %v223 = vunpack.c.h.b16 %v214
    %v224 = vunpack.c.l.b16 %v215
    %v225 = vunpack.c.h.b16 %v215
    %v226 = vunpack.c.l.b16 %v216
    %v227 = vunpack.c.h.b16 %v216
    %v228 = vunpack.c.l.b16 %v217
    %v229 = vunpack.c.h.b16 %v217
    %v230 = vpack.c.b16 %v224, %v222
    %v231 = vpack.c.b16 %v225, %v223
    %v232 = vpack.c.b16 %v228, %v226
    %v233 = vpack.c.b16 %v229, %v227
    %234 = vrot.lane.b32.xlu0 %v230, 119
    %v235 = vpop.permute.xlu0 %234
    %236 = vrot.lane.b32.xlu0 %v231, 119
    %v237 = vpop.permute.xlu0 %236
    %238 = vrot.lane.b32.xlu0 %v232, 119
    %v239 = vpop.permute.xlu0 %238
    %240 = vrot.lane.b32.xlu0 %v233, 119
    %v241 = vpop.permute.xlu0 %240
    %vm242 = vcmask 973824
    %v243 = vsel %vm242, %v235, %v237
    %v244 = vsel %vm242, %v239, %v241
    %249 = vst [vmem:[#allocation2 + $0x40] sm:$0xff] %v243
    %vm250 = vcmask 973824
    %251 = vst.msk [vmem:[#allocation2 + $0x48] sm:$0xff] %vm250, %v237
    %252 = vst [vmem:[#allocation2 + $0x50] sm:$0xff] %v244
    %253 = vst.msk [vmem:[#allocation2 + $0x58] sm:$0xff] %vm250, %v241
    %v254 = vld [vmem:[#allocation4] sm:$0xf]
    %v255 = vld [vmem:[#allocation4 + $0x4] sm:$0xf]
    %v256 = vld [vmem:[#allocation4 + $0x8] sm:$0xf]
    %v257 = vld [vmem:[#allocation4 + $0xc] sm:$0xf]
    %v262 = vunpack.c.l.b16 %v254
    %v263 = vunpack.c.l.b16 %v255
    %v264 = vunpack.c.l.b16 %v256
    %v265 = vunpack.c.l.b16 %v257
    %v266 = vpack.c.b16 %v263, %v262
    %v267 = vpack.c.b16 %v265, %v264
    %268 = vrot.lane.b32.xlu0 %v266, 119
    %v269 = vpop.permute.xlu0 %268
    %270 = vrot.lane.b32.xlu0 %v267, 119
    %v271 = vpop.permute.xlu0 %270
    %vm274 = vcmask 1048504
    %275 = vst.msk [vmem:[#allocation2 + $0x48] sm:$0xff] %vm274, %v269
    %276 = vst.msk [vmem:[#allocation2 + $0x58] sm:$0xff] %vm274, %v271
    %v277 = vld [vmem:[#allocation3] sm:$0xff]
    %v278 = vld [vmem:[#allocation3 + $0x8] sm:$0xff]
    %v279 = vld [vmem:[#allocation3 + $0x10] sm:$0xff]
    %v280 = vld [vmem:[#allocation3 + $0x18] sm:$0xff]
    %v285 = vunpack.c.l.b16 %v277
    %v286 = vunpack.c.h.b16 %v277
    %v287 = vunpack.c.l.b16 %v278
    %v288 = vunpack.c.h.b16 %v278
    %v289 = vunpack.c.l.b16 %v279
    %v290 = vunpack.c.h.b16 %v279
    %v291 = vunpack.c.l.b16 %v280
    %v292 = vunpack.c.h.b16 %v280
    %v293 = vpack.c.b16 %v287, %v285
    %v294 = vpack.c.b16 %v288, %v286
    %v295 = vpack.c.b16 %v291, %v289
    %v296 = vpack.c.b16 %v292, %v290
    %297 = vrot.lane.b32.xlu0 %v293, 118
    %v298 = vpop.permute.xlu0 %297
    %299 = vrot.lane.b32.xlu0 %v294, 118
    %v300 = vpop.permute.xlu0 %299
    %301 = vrot.lane.b32.xlu0 %v295, 118
    %v302 = vpop.permute.xlu0 %301
    %303 = vrot.lane.b32.xlu0 %v296, 118
    %v304 = vpop.permute.xlu0 %303
    %vm305 = vcmask 965632
    %v306 = vsel %vm305, %v298, %v300
    %v307 = vsel %vm305, %v302, %v304
    %312 = vst [vmem:[#allocation2 + $0x60] sm:$0xff] %v306
    %vm313 = vcmask 965632
    %314 = vst.msk [vmem:[#allocation2 + $0x68] sm:$0xff] %vm313, %v300
    %315 = vst [vmem:[#allocation2 + $0x70] sm:$0xff] %v307
    %316 = vst.msk [vmem:[#allocation2 + $0x78] sm:$0xff] %vm313, %v304
    %v317 = vld [vmem:[#allocation4] sm:$0xf]
    %v318 = vld [vmem:[#allocation4 + $0x4] sm:$0xf]
    %v319 = vld [vmem:[#allocation4 + $0x8] sm:$0xf]
    %v320 = vld [vmem:[#allocation4 + $0xc] sm:$0xf]
    %v325 = vunpack.c.l.b16 %v317
    %v326 = vunpack.c.l.b16 %v318
    %v327 = vunpack.c.l.b16 %v319
    %v328 = vunpack.c.l.b16 %v320
    %v329 = vpack.c.b16 %v326, %v325
    %v330 = vpack.c.b16 %v328, %v327
    %331 = vrot.lane.b32.xlu0 %v329, 118
    %v332 = vpop.permute.xlu0 %331
    %333 = vrot.lane.b32.xlu0 %v330, 118
    %v334 = vpop.permute.xlu0 %333
    %vm337 = vcmask 1048496
    %338 = vst.msk [vmem:[#allocation2 + $0x68] sm:$0xff] %vm337, %v332
    %339 = vst.msk [vmem:[#allocation2 + $0x78] sm:$0xff] %vm337, %v334
    %v340 = vld [vmem:[%s2] sm:$0xf]
    %v341 = vld [vmem:[%s3] sm:$0xff]
    %v342 = vld [vmem:[#allocation2] sm:$0xff]
    %v343 = vld [vmem:[#allocation2 + $0x8] sm:$0xff]
    %v344 = vld [vmem:[#allocation2 + $0x10] sm:$0xff]
    %v345 = vld [vmem:[#allocation2 + $0x18] sm:$0xff]
    %v346 = vld [vmem:[#allocation2 + $0x20] sm:$0xff]
    %v347 = vld [vmem:[#allocation2 + $0x28] sm:$0xff]
    %v348 = vld [vmem:[#allocation2 + $0x30] sm:$0xff]
    %v349 = vld [vmem:[#allocation2 + $0x38] sm:$0xff]
    %v350 = vld [vmem:[#allocation2 + $0x40] sm:$0xff]
    %v351 = vld [vmem:[#allocation2 + $0x48] sm:$0xff]
    %v352 = vld [vmem:[#allocation2 + $0x50] sm:$0xff]
    %v353 = vld [vmem:[#allocation2 + $0x58] sm:$0xff]
    %v354 = vld [vmem:[#allocation2 + $0x60] sm:$0xff]
    %v355 = vld [vmem:[#allocation2 + $0x68] sm:$0xff]
    %v356 = vld [vmem:[#allocation2 + $0x70] sm:$0xff]
    %v357 = vld [vmem:[#allocation2 + $0x78] sm:$0xff]
    %359 = vset.pattern.permute.xlu0 0
    %360 = vperm.xlu0 %359, %v341
    %v361 = vpop.permute.xlu0 %360
    %363 = vmatprep.subr.bf16.mxu0 %v343
    %364 = vmatpush1.bf16.msra.mxu0 %v342
    %365 = vmatprep.subr.bf16.mxu0 %v345
    %366 = vmatpush1.bf16.msra.mxu0 %v344
    %367 = vmatprep.subr.bf16.mxu0 %v347
    %368 = vmatpush1.bf16.msra.mxu0 %v346
    %369 = vmatprep.subr.bf16.mxu0 %v349
    %370 = vmatpush1.bf16.msra.mxu0 %v348
    %371 = vmatprep.subr.bf16.mxu0 %v351
    %372 = vmatpush1.bf16.msra.mxu0 %v350
    %373 = vmatprep.subr.bf16.mxu0 %v353
    %374 = vmatpush1.bf16.msra.mxu0 %v352
    %375 = vmatprep.subr.bf16.mxu0 %v355
    %376 = vmatpush1.bf16.msra.mxu0 %v354
    %377 = vmatprep.subr.bf16.mxu0 %v357
    %378 = vmatpush1.bf16.msra.mxu0 %v356
    %379 = vmatprep.subr.bf16.mxu0 0
    %380 = vmatpush1.bf16.msra.mxu0 0
    %381 = vmatprep.subr.bf16.mxu0 0
    %382 = vmatpush1.bf16.msra.mxu0 0
    %383 = vmatprep.subr.bf16.mxu0 0
    %384 = vmatpush1.bf16.msra.mxu0 0
    %385 = vmatprep.subr.bf16.mxu0 0
    %386 = vmatpush1.bf16.msra.mxu0 0
    %387 = vmatprep.subr.bf16.mxu0 0
    %388 = vmatpush1.bf16.msra.mxu0 0
    %389 = vmatprep.subr.bf16.mxu0 0
    %390 = vmatpush1.bf16.msra.mxu0 0
    %391 = vmatprep.subr.bf16.mxu0 0
    %392 = vmatpush1.bf16.msra.mxu0 0
    %393 = vmatprep.subr.bf16.mxu0 0
    %394 = vmatpush1.bf16.msra.mxu0 0
    %395 = vmatprep.mubr.bf16.mxu0 0
    %396 = vmatmul.mubr.bf16.gmra.mrb[0].mxu0 %v340
    %v397 = vpop.f32.mrb[0].mxu0
    %v398 = vadd.f32 %v361, %v397
    %v399 = vpop.f32.mrb[0].mxu0
    %v400 = vadd.f32 %v361, %v399
    %v401 = vpop.f32.mrb[0].mxu0
    %v402 = vpop.f32.mrb[0].mxu0
    %403 = vdwg.mxu0
    %v404 = vmax.f32 %v398, 0.0
    %v405 = vmax.f32 %v400, 0.0
    %v406 = vpack.c.bf16 %v404, %v404
    %v407 = vpack.c.bf16 %v405, %v405
    %v410 = vunpack.c.l.b16 %v406
    %v411 = vunpack.c.l.b16 %v407
    %v412 = vpack.c.b16 %v411, %v410
    %414 = vst [vmem:[%s4] sm:$0xff] %v412
    // Predicated region
    $region97: #{stdf_forward.9} parent=1 // pred_check
      _
    $region98: #{stdf_forward.9} parent=1 // pred_check_branch
      %416 = sbr.rel (0) target = $region100
    $region99: #{stdf_forward.9} parent=1 // pred_region
      _
    $region100: #{stdf_forward.9} parent=1 // pred_fallthru
      _
    // Predicated region
    $region101: #{stdf_forward.9} parent=1 // pred_check
      _
    $region102: #{stdf_forward.9} parent=1 // pred_check_branch
      %418 = sbr.rel (0) target = $region104
    $region103: #{stdf_forward.9} parent=1 // pred_region
      _
    $region104: #{stdf_forward.9} parent=1 // pred_fallthru
      _

// kernel: stdf_forward.10
$region0: #{stdf_forward.10}
  #allocation0 [shape = 'u32[]', space=smem, size = 0x4, offset = 0x4, fixed_abs, tag = 'smem constant byte address 0x4 - core index']
  #allocation1 [shape = 'u32[144,128]{1,0:T(1,128)}', space=vmem, size = 0x12000, scoped, tag = 'internal scratch']
  #allocation2 [shape = 'bf16[128,128]{1,0:T(16,128)(2,1)}', space=vmem, size = 0x8000, scoped, tag = 'scratch operand']
  %s0 = inlined_call_operand.vmem [shape: bf16[32,256], index: 0, kind: input, shape index: {}, may-alias: {0,1}]
  %s1 = inlined_call_operand.vmem [shape: bf16[32,256], index: 1, kind: input, shape index: {}, may-alias: {0,1}]
  %s2 = inlined_call_operand.vmem [shape: bf16[8,128], index: 2, kind: input, shape index: {}]
  %s3 = inlined_call_operand.vmem [shape: f32[8,1], index: 3, kind: input, shape index: {}]
  %s4 = inlined_call_operand.vmem [shape: bf16[8,128], index: 4, kind: output, shape index: {}]
  %s5 = sld [smem:[#allocation0]]
  $region108: #{stdf_forward.10} parent=0
    _
  %s7 = ssub.s32 1, %s5
  %s8 = scalar_select 0, %s7, %s5
  $region1: #{stdf_forward.10} parent=0
    #allocation3 [shape = 'u8[8192]{0}', space=vmem, size = 0x2000, scoped, tag = 'input window, operand 0, single buffered']
    #allocation4 [shape = 'u8[8192]{0}', space=vmem, size = 0x2000, scoped, tag = 'input window, operand 1, single buffered']
    // Predicated region
    $region2: #{stdf_forward.10} parent=1 // pred_check
      _
    $region3: #{stdf_forward.10} parent=1 // pred_check_branch
      %10 = sbr.rel (0) target = $region5
    $region4: #{stdf_forward.10} parent=1 // pred_region
      // Predicated region
      $region6: #{stdf_forward.10} parent=4 // pred_check
        _
      $region7: #{stdf_forward.10} parent=4 // pred_check_branch
        %12 = sbr.rel (0) target = $region9
      $region8: #{stdf_forward.10} parent=4 // pred_region
        // Predicated region
        $region10: #{stdf_forward.10} parent=8 // pred_check
          _
        $region11: #{stdf_forward.10} parent=8 // pred_check_branch
          %14 = sbr.rel target = $region13
        $region12: #{stdf_forward.10} parent=8 // pred_region
          // Predicated region
          $region25: #{stdf_forward.10} parent=12 // pred_check
            _
          $region26: #{stdf_forward.10} parent=12 // pred_check_branch
            %35 = sbr.rel (0) target = $region28
          $region27: #{stdf_forward.10} parent=12 // pred_region
            loop: start=0, step=1, limit=1
            $region29: #{stdf_forward.10} parent=27 // loop_pre_header
              _
            $region30: #{stdf_forward.10} parent=27 // loop_header
              %s37 = sphi 0, %s41
              %p38 = scmp.ge.s32.totalorder %s37, 1
              %s42 = sphi %s0, %s0
              %s43 = sphi [#allocation3], [#allocation3]
            $region31: #{stdf_forward.10} parent=27 // loop_header_branch
              %40 = sbr.rel (%p38) target = $region35
            $region32: #{stdf_forward.10} parent=27 // loop_body
              _
            $region33: #{stdf_forward.10} parent=27 // loop_footer
              %s41 = sadd.s32 1, %s37
            $region34: #{stdf_forward.10} parent=27 // loop_footer_branch
              %36 = sbr.rel target = $region30
            $region35: #{stdf_forward.10} parent=27 // loop_exit
              _
            loop: start=0, step=1, limit=1
            $region36: #{stdf_forward.10} parent=27 // loop_pre_header
              _
            $region37: #{stdf_forward.10} parent=27 // loop_header
              %s46 = sphi 0, %s50
              %p47 = scmp.ge.s32.totalorder %s46, 1
              %s51 = sphi %s0, %s0
              %s52 = sphi [#allocation3], [#allocation3]
            $region38: #{stdf_forward.10} parent=27 // loop_header_branch
              %49 = sbr.rel (%p47) target = $region42
            $region39: #{stdf_forward.10} parent=27 // loop_body
              %v53 = vld [vmem:[%s51] sm:$0xf]
              %54 = vst [vmem:[%s52] sm:$0xf] %v53
              %v55 = vld [vmem:[%s51 + $0x8] sm:$0xf]
              %56 = vst [vmem:[%s52 + $0x4] sm:$0xf] %v55
              %v57 = vld [vmem:[%s51 + $0x10] sm:$0xf]
              %58 = vst [vmem:[%s52 + $0x8] sm:$0xf] %v57
              %v59 = vld [vmem:[%s51 + $0x18] sm:$0xf]
              %60 = vst [vmem:[%s52 + $0xc] sm:$0xf] %v59
            $region40: #{stdf_forward.10} parent=27 // loop_footer
              %s50 = sadd.s32 1, %s46
            $region41: #{stdf_forward.10} parent=27 // loop_footer_branch
              %45 = sbr.rel target = $region37
            $region42: #{stdf_forward.10} parent=27 // loop_exit
              _
          $region28: #{stdf_forward.10} parent=12 // pred_fallthru
            _
        $region13: #{stdf_forward.10} parent=8 // pred_fallthru
          _
        // Predicated region
        $region14: #{stdf_forward.10} parent=8 // pred_check
          _
        $region15: #{stdf_forward.10} parent=8 // pred_check_branch
          %16 = sbr.rel (0) target = $region17
        $region16: #{stdf_forward.10} parent=8 // pred_region
          loop: start=0, step=1, limit=1
          $region18: #{stdf_forward.10} parent=16 // loop_pre_header
            _
          $region19: #{stdf_forward.10} parent=16 // loop_header
            %s19 = sphi 0, %s23
            %p20 = scmp.ge.s32.totalorder %s19, 1
            %s24 = sphi %s0, %s0
            %s25 = sphi [#allocation3], [#allocation3]
          $region20: #{stdf_forward.10} parent=16 // loop_header_branch
            %22 = sbr.rel (%p20) target = $region24
          $region21: #{stdf_forward.10} parent=16 // loop_body
            %v26 = vld [vmem:[%s24] sm:$0xf]
            %27 = vst [vmem:[%s25] sm:$0xf] %v26
            %v28 = vld [vmem:[%s24 + $0x8] sm:$0xf]
            %29 = vst [vmem:[%s25 + $0x4] sm:$0xf] %v28
            %v30 = vld [vmem:[%s24 + $0x10] sm:$0xf]
            %31 = vst [vmem:[%s25 + $0x8] sm:$0xf] %v30
            %v32 = vld [vmem:[%s24 + $0x18] sm:$0xf]
            %33 = vst [vmem:[%s25 + $0xc] sm:$0xf] %v32
          $region22: #{stdf_forward.10} parent=16 // loop_footer
            %s23 = sadd.s32 1, %s19
          $region23: #{stdf_forward.10} parent=16 // loop_footer_branch
            %18 = sbr.rel target = $region19
          $region24: #{stdf_forward.10} parent=16 // loop_exit
            _
        $region17: #{stdf_forward.10} parent=8 // pred_fallthru
          _
      $region9: #{stdf_forward.10} parent=4 // pred_fallthru
        _
      %61 = vnop
    $region5: #{stdf_forward.10} parent=1 // pred_fallthru
      _
    // Predicated region
    $region43: #{stdf_forward.10} parent=1 // pred_check
      _
    $region44: #{stdf_forward.10} parent=1 // pred_check_branch
      %63 = sbr.rel (0) target = $region46
    $region45: #{stdf_forward.10} parent=1 // pred_region
      %s64 = sadd.s32 0, 1
      %s65 = smul.addr %s64, 4
      %s66 = scalar_lea.vmem %s1, %s65
      // Predicated region
      $region47: #{stdf_forward.10} parent=45 // pred_check
        _
      $region48: #{stdf_forward.10} parent=45 // pred_check_branch
        %68 = sbr.rel (0) target = $region50
      $region49: #{stdf_forward.10} parent=45 // pred_region
        // Predicated region
        $region51: #{stdf_forward.10} parent=49 // pred_check
          _
        $region52: #{stdf_forward.10} parent=49 // pred_check_branch
          %70 = sbr.rel target = $region54
        $region53: #{stdf_forward.10} parent=49 // pred_region
          // Predicated region
          $region66: #{stdf_forward.10} parent=53 // pred_check
            _
          $region67: #{stdf_forward.10} parent=53 // pred_check_branch
            %91 = sbr.rel (0) target = $region69
          $region68: #{stdf_forward.10} parent=53 // pred_region
            loop: start=0, step=1, limit=1
            $region70: #{stdf_forward.10} parent=68 // loop_pre_header
              _
            $region71: #{stdf_forward.10} parent=68 // loop_header
              %s93 = sphi 0, %s97
              %p94 = scmp.ge.s32.totalorder %s93, 1
              %s98 = sphi %s66, %s66
              %s99 = sphi [#allocation4], [#allocation4]
            $region72: #{stdf_forward.10} parent=68 // loop_header_branch
              %96 = sbr.rel (%p94) target = $region76
            $region73: #{stdf_forward.10} parent=68 // loop_body
              _
            $region74: #{stdf_forward.10} parent=68 // loop_footer
              %s97 = sadd.s32 1, %s93
            $region75: #{stdf_forward.10} parent=68 // loop_footer_branch
              %92 = sbr.rel target = $region71
            $region76: #{stdf_forward.10} parent=68 // loop_exit
              _
            loop: start=0, step=1, limit=1
            $region77: #{stdf_forward.10} parent=68 // loop_pre_header
              _
            $region78: #{stdf_forward.10} parent=68 // loop_header
              %s102 = sphi 0, %s106
              %p103 = scmp.ge.s32.totalorder %s102, 1
              %s107 = sphi %s66, %s66
              %s108 = sphi [#allocation4], [#allocation4]
            $region79: #{stdf_forward.10} parent=68 // loop_header_branch
              %105 = sbr.rel (%p103) target = $region83
            $region80: #{stdf_forward.10} parent=68 // loop_body
              %v109 = vld [vmem:[%s107] sm:$0xf]
              %110 = vst [vmem:[%s108] sm:$0xf] %v109
              %v111 = vld [vmem:[%s107 + $0x8] sm:$0xf]
              %112 = vst [vmem:[%s108 + $0x4] sm:$0xf] %v111
              %v113 = vld [vmem:[%s107 + $0x10] sm:$0xf]
              %114 = vst [vmem:[%s108 + $0x8] sm:$0xf] %v113
              %v115 = vld [vmem:[%s107 + $0x18] sm:$0xf]
              %116 = vst [vmem:[%s108 + $0xc] sm:$0xf] %v115
            $region81: #{stdf_forward.10} parent=68 // loop_footer
              %s106 = sadd.s32 1, %s102
            $region82: #{stdf_forward.10} parent=68 // loop_footer_branch
              %101 = sbr.rel target = $region78
            $region83: #{stdf_forward.10} parent=68 // loop_exit
              _
          $region69: #{stdf_forward.10} parent=53 // pred_fallthru
            _
        $region54: #{stdf_forward.10} parent=49 // pred_fallthru
          _
        // Predicated region
        $region55: #{stdf_forward.10} parent=49 // pred_check
          _
        $region56: #{stdf_forward.10} parent=49 // pred_check_branch
          %72 = sbr.rel (0) target = $region58
        $region57: #{stdf_forward.10} parent=49 // pred_region
          loop: start=0, step=1, limit=1
          $region59: #{stdf_forward.10} parent=57 // loop_pre_header
            _
          $region60: #{stdf_forward.10} parent=57 // loop_header
            %s75 = sphi 0, %s79
            %p76 = scmp.ge.s32.totalorder %s75, 1
            %s80 = sphi %s66, %s66
            %s81 = sphi [#allocation4], [#allocation4]
          $region61: #{stdf_forward.10} parent=57 // loop_header_branch
            %78 = sbr.rel (%p76) target = $region65
          $region62: #{stdf_forward.10} parent=57 // loop_body
            %v82 = vld [vmem:[%s80] sm:$0xf]
            %83 = vst [vmem:[%s81] sm:$0xf] %v82
            %v84 = vld [vmem:[%s80 + $0x8] sm:$0xf]
            %85 = vst [vmem:[%s81 + $0x4] sm:$0xf] %v84
            %v86 = vld [vmem:[%s80 + $0x10] sm:$0xf]
            %87 = vst [vmem:[%s81 + $0x8] sm:$0xf] %v86
            %v88 = vld [vmem:[%s80 + $0x18] sm:$0xf]
            %89 = vst [vmem:[%s81 + $0xc] sm:$0xf] %v88
          $region63: #{stdf_forward.10} parent=57 // loop_footer
            %s79 = sadd.s32 1, %s75
          $region64: #{stdf_forward.10} parent=57 // loop_footer_branch
            %74 = sbr.rel target = $region60
          $region65: #{stdf_forward.10} parent=57 // loop_exit
            _
        $region58: #{stdf_forward.10} parent=49 // pred_fallthru
          _
      $region50: #{stdf_forward.10} parent=45 // pred_fallthru
        _
      %117 = vnop
    $region46: #{stdf_forward.10} parent=1 // pred_fallthru
      _
    // Predicated region
    $region84: #{stdf_forward.10} parent=1 // pred_check
      _
    $region85: #{stdf_forward.10} parent=1 // pred_check_branch
      %119 = sbr.rel (0) target = $region87
    $region86: #{stdf_forward.10} parent=1 // pred_region
      _
    $region87: #{stdf_forward.10} parent=1 // pred_fallthru
      _
    // Predicated region
    $region88: #{stdf_forward.10} parent=1 // pred_check
      _
    $region89: #{stdf_forward.10} parent=1 // pred_check_branch
      %121 = sbr.rel (0) target = $region91
    $region90: #{stdf_forward.10} parent=1 // pred_region
      _
    $region91: #{stdf_forward.10} parent=1 // pred_fallthru
      _
    // Predicated region
    $region92: #{stdf_forward.10} parent=1 // pred_check
      _
    $region93: #{stdf_forward.10} parent=1 // pred_check_branch
      %123 = sbr.rel (0) target = $region95
    $region94: #{stdf_forward.10} parent=1 // pred_region
      _
    $region95: #{stdf_forward.10} parent=1 // pred_fallthru
      _
    // Predicated region
    $region96: #{stdf_forward.10} parent=1 // pred_check
      _
    $region97: #{stdf_forward.10} parent=1 // pred_check_branch
      %125 = sbr.rel (0) target = $region99
    $region98: #{stdf_forward.10} parent=1 // pred_region
      _
    $region99: #{stdf_forward.10} parent=1 // pred_fallthru
      _
    %s126 = sadd.s32 0, 1
    %v128 = vld [vmem:[#allocation3] sm:$0xf]
    %v129 = vld [vmem:[#allocation3 + $0x4] sm:$0xf]
    %v130 = vld [vmem:[#allocation3 + $0x8] sm:$0xf]
    %v131 = vld [vmem:[#allocation3 + $0xc] sm:$0xf]
    %v136 = vunpack.c.l.b16 %v128
    %v137 = vunpack.c.l.b16 %v129
    %v138 = vunpack.c.l.b16 %v130
    %v139 = vunpack.c.l.b16 %v131
    %v140 = vpack.c.b16 %v137, %v136
    %v141 = vpack.c.b16 %v139, %v138
    %144 = vst [vmem:[#allocation2] sm:$0xff] %v140
    %145 = vst [vmem:[#allocation2 + $0x8] sm:$0xff] %v141
    %v146 = vld [vmem:[#allocation3] sm:$0xf]
    %v147 = vld [vmem:[#allocation3 + $0x4] sm:$0xf]
    %v148 = vld [vmem:[#allocation3 + $0x8] sm:$0xf]
    %v149 = vld [vmem:[#allocation3 + $0xc] sm:$0xf]
    %v154 = vunpack.c.l.b16 %v146
    %v155 = vunpack.c.l.b16 %v147
    %v156 = vunpack.c.l.b16 %v148
    %v157 = vunpack.c.l.b16 %v149
    %v158 = vpack.c.b16 %v155, %v154
    %v159 = vpack.c.b16 %v157, %v156
    %160 = vrot.lane.b32.xlu0 %v158, 127
    %v161 = vpop.permute.xlu0 %160
    %162 = vrot.lane.b32.xlu0 %v159, 127
    %v163 = vpop.permute.xlu0 %162
    %vm166 = vcmask 1039360
    %167 = vst.msk [vmem:[#allocation2 + $0x10] sm:$0xff] %vm166, %v161
    %168 = vst.msk [vmem:[#allocation2 + $0x18] sm:$0xff] %vm166, %v163
    %v169 = vld [vmem:[#allocation4] sm:$0xf]
    %v170 = vld [vmem:[#allocation4 + $0x4] sm:$0xf]
    %v171 = vld [vmem:[#allocation4 + $0x8] sm:$0xf]
    %v172 = vld [vmem:[#allocation4 + $0xc] sm:$0xf]
    %v177 = vunpack.c.l.b16 %v169
    %v178 = vunpack.c.l.b16 %v170
    %v179 = vunpack.c.l.b16 %v171
    %v180 = vunpack.c.l.b16 %v172
    %v181 = vpack.c.b16 %v178, %v177
    %v182 = vpack.c.b16 %v180, %v179
    %183 = vrot.lane.b32.xlu0 %v181, 127
    %v184 = vpop.permute.xlu0 %183
    %185 = vrot.lane.b32.xlu0 %v182, 127
    %v186 = vpop.permute.xlu0 %185
    %vm189 = vcmask 1048568
    %190 = vst.msk [vmem:[#allocation2 + $0x10] sm:$0xff] %vm189, %v184
    %191 = vst.msk [vmem:[#allocation2 + $0x18] sm:$0xff] %vm189, %v186
    %v192 = vld [vmem:[#allocation3] sm:$0xf]
    %v193 = vld [vmem:[#allocation3 + $0x4] sm:$0xf]
    %v194 = vld [vmem:[#allocation3 + $0x8] sm:$0xf]
    %v195 = vld [vmem:[#allocation3 + $0xc] sm:$0xf]
    %v200 = vunpack.c.l.b16 %v192
    %v201 = vunpack.c.l.b16 %v193
    %v202 = vunpack.c.l.b16 %v194
    %v203 = vunpack.c.l.b16 %v195
    %v204 = vpack.c.b16 %v201, %v200
    %v205 = vpack.c.b16 %v203, %v202
    %206 = vrot.lane.b32.xlu0 %v204, 123
    %v207 = vpop.permute.xlu0 %206
    %208 = vrot.lane.b32.xlu0 %v205, 123
    %v209 = vpop.permute.xlu0 %208
    %vm212 = vcmask 1006592
    %213 = vst.msk [vmem:[#allocation2 + $0x20] sm:$0xff] %vm212, %v207
    %214 = vst.msk [vmem:[#allocation2 + $0x28] sm:$0xff] %vm212, %v209
    %v215 = vld [vmem:[#allocation4] sm:$0xf]
    %v216 = vld [vmem:[#allocation4 + $0x4] sm:$0xf]
    %v217 = vld [vmem:[#allocation4 + $0x8] sm:$0xf]
    %v218 = vld [vmem:[#allocation4 + $0xc] sm:$0xf]
    %v223 = vunpack.c.l.b16 %v215
    %v224 = vunpack.c.l.b16 %v216
    %v225 = vunpack.c.l.b16 %v217
    %v226 = vunpack.c.l.b16 %v218
    %v227 = vpack.c.b16 %v224, %v223
    %v228 = vpack.c.b16 %v226, %v225
    %229 = vrot.lane.b32.xlu0 %v227, 123
    %v230 = vpop.permute.xlu0 %229
    %231 = vrot.lane.b32.xlu0 %v228, 123
    %v232 = vpop.permute.xlu0 %231
    %vm235 = vcmask 1048536
    %236 = vst.msk [vmem:[#allocation2 + $0x20] sm:$0xff] %vm235, %v230
    %237 = vst.msk [vmem:[#allocation2 + $0x28] sm:$0xff] %vm235, %v232
    %v238 = vld [vmem:[#allocation3] sm:$0xf]
    %v239 = vld [vmem:[#allocation3 + $0x4] sm:$0xf]
    %v240 = vld [vmem:[#allocation3 + $0x8] sm:$0xf]
    %v241 = vld [vmem:[#allocation3 + $0xc] sm:$0xf]
    %v246 = vunpack.c.l.b16 %v238
    %v247 = vunpack.c.l.b16 %v239
    %v248 = vunpack.c.l.b16 %v240
    %v249 = vunpack.c.l.b16 %v241
    %v250 = vpack.c.b16 %v247, %v246
    %v251 = vpack.c.b16 %v249, %v248
    %252 = vrot.lane.b32.xlu0 %v250, 122
    %v253 = vpop.permute.xlu0 %252
    %254 = vrot.lane.b32.xlu0 %v251, 122
    %v255 = vpop.permute.xlu0 %254
    %vm258 = vcmask 998400
    %259 = vst.msk [vmem:[#allocation2 + $0x30] sm:$0xff] %vm258, %v253
    %260 = vst.msk [vmem:[#allocation2 + $0x38] sm:$0xff] %vm258, %v255
    %v261 = vld [vmem:[#allocation4] sm:$0xf]
    %v262 = vld [vmem:[#allocation4 + $0x4] sm:$0xf]
    %v263 = vld [vmem:[#allocation4 + $0x8] sm:$0xf]
    %v264 = vld [vmem:[#allocation4 + $0xc] sm:$0xf]
    %v269 = vunpack.c.l.b16 %v261
    %v270 = vunpack.c.l.b16 %v262
    %v271 = vunpack.c.l.b16 %v263
    %v272 = vunpack.c.l.b16 %v264
    %v273 = vpack.c.b16 %v270, %v269
    %v274 = vpack.c.b16 %v272, %v271
    %275 = vrot.lane.b32.xlu0 %v273, 122
    %v276 = vpop.permute.xlu0 %275
    %277 = vrot.lane.b32.xlu0 %v274, 122
    %v278 = vpop.permute.xlu0 %277
    %vm281 = vcmask 1048528
    %282 = vst.msk [vmem:[#allocation2 + $0x30] sm:$0xff] %vm281, %v276
    %283 = vst.msk [vmem:[#allocation2 + $0x38] sm:$0xff] %vm281, %v278
    %v284 = vld [vmem:[%s2] sm:$0xf]
    %v285 = vld [vmem:[%s3] sm:$0xff]
    %v286 = vld [vmem:[#allocation2] sm:$0xff]
    %v287 = vld [vmem:[#allocation2 + $0x8] sm:$0xff]
    %v288 = vld [vmem:[#allocation2 + $0x10] sm:$0xff]
    %v289 = vld [vmem:[#allocation2 + $0x18] sm:$0xff]
    %v290 = vld [vmem:[#allocation2 + $0x20] sm:$0xff]
    %v291 = vld [vmem:[#allocation2 + $0x28] sm:$0xff]
    %v292 = vld [vmem:[#allocation2 + $0x30] sm:$0xff]
    %v293 = vld [vmem:[#allocation2 + $0x38] sm:$0xff]
    %295 = vset.pattern.permute.xlu0 0
    %296 = vperm.xlu0 %295, %v285
    %v297 = vpop.permute.xlu0 %296
    %299 = vmatprep.subr.bf16.mxu0 0
    %300 = vmatpush1.bf16.msra.mxu0 %v286
    %301 = vmatprep.subr.bf16.mxu0 0
    %302 = vmatpush1.bf16.msra.mxu0 %v287
    %303 = vmatprep.subr.bf16.mxu0 0
    %304 = vmatpush1.bf16.msra.mxu0 %v288
    %305 = vmatprep.subr.bf16.mxu0 0
    %306 = vmatpush1.bf16.msra.mxu0 %v289
    %307 = vmatprep.subr.bf16.mxu0 0
    %308 = vmatpush1.bf16.msra.mxu0 %v290
    %309 = vmatprep.subr.bf16.mxu0 0
    %310 = vmatpush1.bf16.msra.mxu0 %v291
    %311 = vmatprep.subr.bf16.mxu0 0
    %312 = vmatpush1.bf16.msra.mxu0 %v292
    %313 = vmatprep.subr.bf16.mxu0 0
    %314 = vmatpush1.bf16.msra.mxu0 %v293
    %315 = vmatprep.subr.bf16.mxu0 0
    %316 = vmatpush1.bf16.msra.mxu0 0
    %317 = vmatprep.subr.bf16.mxu0 0
    %318 = vmatpush1.bf16.msra.mxu0 0
    %319 = vmatprep.subr.bf16.mxu0 0
    %320 = vmatpush1.bf16.msra.mxu0 0
    %321 = vmatprep.subr.bf16.mxu0 0
    %322 = vmatpush1.bf16.msra.mxu0 0
    %323 = vmatprep.subr.bf16.mxu0 0
    %324 = vmatpush1.bf16.msra.mxu0 0
    %325 = vmatprep.subr.bf16.mxu0 0
    %326 = vmatpush1.bf16.msra.mxu0 0
    %327 = vmatprep.subr.bf16.mxu0 0
    %328 = vmatpush1.bf16.msra.mxu0 0
    %329 = vmatprep.subr.bf16.mxu0 0
    %330 = vmatpush1.bf16.msra.mxu0 0
    %331 = vmatprep.mubr.bf16.mxu0 0
    %332 = vmatmul.mubr.bf16.gmra.mrb[0].mxu0 %v284
    %v333 = vpop.f32.mrb[0].mxu0
    %v334 = vadd.f32 %v297, %v333
    %v335 = vpop.f32.mrb[0].mxu0
    %v336 = vpop.f32.mrb[0].mxu0
    %v337 = vpop.f32.mrb[0].mxu0
    %338 = vdwg.mxu0
    %v339 = vmax.f32 %v334, 0.0
    %v340 = vpack.c.bf16 %v339, %v339
    %341 = vst [vmem:[%s4] sm:$0xf] %v340
    // Predicated region
    $region100: #{stdf_forward.10} parent=1 // pred_check
      _
    $region101: #{stdf_forward.10} parent=1 // pred_check_branch
      %343 = sbr.rel (0) target = $region103
    $region102: #{stdf_forward.10} parent=1 // pred_region
      _
    $region103: #{stdf_forward.10} parent=1 // pred_fallthru
      _
    // Predicated region
    $region104: #{stdf_forward.10} parent=1 // pred_check
      _
    $region105: #{stdf_forward.10} parent=1 // pred_check_branch
      %345 = sbr.rel (0) target = $region107
    $region106: #{stdf_forward.10} parent=1 // pred_region
      _
    $region107: #{stdf_forward.10} parent=1 // pred_fallthru
      _

// kernel: stdf_forward.11
$region0: #{stdf_forward.11}
  #allocation0 [shape = 'u32[]', space=smem, size = 0x4, offset = 0x4, fixed_abs, tag = 'smem constant byte address 0x4 - core index']
  #allocation1 [shape = 'u32[144,128]{1,0:T(1,128)}', space=vmem, size = 0x12000, scoped, tag = 'internal scratch']
  #allocation2 [shape = 'bf16[32,128]{1,0:T(16,128)(2,1)}', space=vmem, size = 0x2000, scoped, tag = 'scratch operand']
  %s0 = inlined_call_operand.vmem [shape: bf16[8,256], index: 0, kind: input, shape index: {}, may-alias: {0,1}]
  %s1 = inlined_call_operand.vmem [shape: bf16[8,256], index: 1, kind: input, shape index: {}, may-alias: {0,1}]
  %s2 = inlined_call_operand.vmem [shape: bf16[32,32], index: 2, kind: input, shape index: {}]
  %s3 = inlined_call_operand.vmem [shape: f32[32,1], index: 3, kind: input, shape index: {}]
  %s4 = inlined_call_operand.vmem [shape: bf16[32,128], index: 4, kind: output, shape index: {}]
  %s5 = sld [smem:[#allocation0]]
  $region26: #{stdf_forward.11} parent=0
    _
  %s7 = ssub.s32 1, %s5
  %s8 = scalar_select 0, %s7, %s5
  // Predicated region
  $region2: #{stdf_forward.11} parent=0 // pred_check
    _
  $region3: #{stdf_forward.11} parent=0 // pred_check_branch
    %10 = sbr.rel (0) target = $region5
  $region4: #{stdf_forward.11} parent=0 // pred_region
    _
  $region5: #{stdf_forward.11} parent=0 // pred_fallthru
    _
  // Predicated region
  $region6: #{stdf_forward.11} parent=0 // pred_check
    _
  $region7: #{stdf_forward.11} parent=0 // pred_check_branch
    %12 = sbr.rel (0) target = $region9
  $region8: #{stdf_forward.11} parent=0 // pred_region
    %s13 = sadd.s32 0, 1
    %p14 = scmp.lt.s32.totalorder %s13, 1
    %s15 = scalar_select %p14, %s13, 1
    %s16 = smul.addr %s15, 4
    %s17 = scalar_lea.vmem %s1, %s16
    %s18 = sadd.s32 0, 1
  $region9: #{stdf_forward.11} parent=0 // pred_fallthru
    _
  // Predicated region
  $region10: #{stdf_forward.11} parent=0 // pred_check
    _
  $region11: #{stdf_forward.11} parent=0 // pred_check_branch
    %20 = sbr.rel (0) target = $region13
  $region12: #{stdf_forward.11} parent=0 // pred_region
    _
  $region13: #{stdf_forward.11} parent=0 // pred_fallthru
    _
  // Predicated region
  $region14: #{stdf_forward.11} parent=0 // pred_check
    _
  $region15: #{stdf_forward.11} parent=0 // pred_check_branch
    %22 = sbr.rel (0) target = $region17
  $region16: #{stdf_forward.11} parent=0 // pred_region
    _
  $region17: #{stdf_forward.11} parent=0 // pred_fallthru
    _
  %s23 = sadd.s32 0, 1
  %p24 = scmp.lt.s32.totalorder %s23, 1
  %s25 = scalar_select %p24, %s23, 1
  %s26 = smul.addr %s25, 4
  %s27 = scalar_lea.vmem %s1, %s26
  %s28 = sadd.s32 0, 1
  %p29 = scmp.lt.s32.totalorder %s28, 1
  %s30 = scalar_select %p29, %s28, 1
  %s31 = smul.addr %s30, 4
  %s32 = scalar_lea.vmem %s1, %s31
  %s33 = sadd.s32 0, 1
  %v35 = vld [vmem:[%s0] sm:$0xf]
  %36 = vst [vmem:[#allocation2] sm:$0xf] %v35
  %v37 = vld [vmem:[%s0] sm:$0xf]
  %v39 = vunpack.c.l.b16 %v37
  %v40 = vpack.c.b16 %v39, %v39
  %41 = vrot.lane.b32.xlu0 %v40, 127
  %v42 = vpop.permute.xlu0 %41
  %vm44 = vcmask 1039364
  %45 = vst.msk [vmem:[#allocation2] sm:$0xf0] %vm44, %v42
  %v46 = vld [vmem:[%s32] sm:$0xf]
  %v48 = vunpack.c.l.b16 %v46
  %v49 = vpack.c.b16 %v48, %v48
  %50 = vrot.lane.b32.xlu0 %v49, 127
  %v51 = vpop.permute.xlu0 %50
  %vm53 = vcmask 1048572
  %54 = vst.msk [vmem:[#allocation2] sm:$0xf0] %vm53, %v51
  %v55 = vld [vmem:[%s0] sm:$0xf]
  %v57 = vunpack.c.l.b16 %v55
  %v58 = vpack.c.b16 %v57, %v57
  %59 = vrot.lane.b32.xlu0 %v58, 122
  %v60 = vpop.permute.xlu0 %59
  %vm62 = vcmask 994304
  %63 = vst.msk [vmem:[#allocation2 + $0x8] sm:$0xf] %vm62, %v60
  %v64 = vld [vmem:[%s32] sm:$0xf]
  %v66 = vunpack.c.l.b16 %v64
  %v67 = vpack.c.b16 %v66, %v66
  %68 = vrot.lane.b32.xlu0 %v67, 122
  %v69 = vpop.permute.xlu0 %68
  %vm71 = vcmask 1044432
  %72 = vst.msk [vmem:[#allocation2 + $0x8] sm:$0xf] %vm71, %v69
  %v73 = vld [vmem:[%s0] sm:$0xf]
  %v75 = vunpack.c.l.b16 %v73
  %v76 = vpack.c.b16 %v75, %v75
  %77 = vrot.lane.b32.xlu0 %v76, 121
  %v78 = vpop.permute.xlu0 %77
  %vm80 = vcmask 990212
  %81 = vst.msk [vmem:[#allocation2 + $0x8] sm:$0xf0] %vm80, %v78
  %v82 = vld [vmem:[%s32] sm:$0xf]
  %v84 = vunpack.c.l.b16 %v82
  %v85 = vpack.c.b16 %v84, %v84
  %86 = vrot.lane.b32.xlu0 %v85, 121
  %v87 = vpop.permute.xlu0 %86
  %vm89 = vcmask 1048524
  %90 = vst.msk [vmem:[#allocation2 + $0x8] sm:$0xf0] %vm89, %v87
  %v91 = vld [vmem:[%s2] sm:$0xf]
  %v92 = vld [vmem:[%s2 + $0x4] sm:$0xf]
  %v93 = vld [vmem:[%s2 + $0x8] sm:$0xf]
  %v94 = vld [vmem:[%s2 + $0xc] sm:$0xf]
  %v95 = vld [vmem:[%s3] sm:$0xff]
  %v96 = vld [vmem:[%s3 + $0x8] sm:$0xff]
  %v97 = vld [vmem:[%s3 + $0x10] sm:$0xff]
  %v98 = vld [vmem:[%s3 + $0x18] sm:$0xff]
  %v99 = vld [vmem:[#allocation2] sm:$0xff]
  %v100 = vld [vmem:[#allocation2 + $0x8] sm:$0xff]
  %102 = vset.pattern.permute.xlu0 0
  %103 = vperm.xlu0 %102, %v95
  %v104 = vpop.permute.xlu0 %103
  %107 = vset.pattern.permute.xlu0 0
  %108 = vperm.xlu0 %107, %v96
  %v109 = vpop.permute.xlu0 %108
  %112 = vset.pattern.permute.xlu0 0
  %113 = vperm.xlu0 %112, %v97
  %v114 = vpop.permute.xlu0 %113
  %117 = vset.pattern.permute.xlu0 0
  %118 = vperm.xlu0 %117, %v98
  %v119 = vpop.permute.xlu0 %118
  %v125 = vunpack.c.l.b16 %v91
  %v126 = vunpack.c.l.b16 %v92
  %v127 = vunpack.c.l.b16 %v93
  %v128 = vunpack.c.l.b16 %v94
  %v129 = vpack.c.b16 %v126, %v125
  %v130 = vpack.c.b16 %v128, %v127
  %vm131 = vcmask 261120
  %v133 = vsel %vm131, %v129, 0
  %v136 = vsel %vm131, %v130, 0
  %138 = vmatprep.subr.bf16.mxu0 0
  %139 = vmatpush1.bf16.msra.mxu0 %v99
  %140 = vmatprep.subr.bf16.mxu0 0
  %141 = vmatpush1.bf16.msra.mxu0 %v100
  %142 = vmatprep.subr.bf16.mxu0 0
  %143 = vmatpush1.bf16.msra.mxu0 0
  %144 = vmatprep.subr.bf16.mxu0 0
  %145 = vmatpush1.bf16.msra.mxu0 0
  %146 = vmatprep.subr.bf16.mxu0 0
  %147 = vmatpush1.bf16.msra.mxu0 0
  %148 = vmatprep.subr.bf16.mxu0 0
  %149 = vmatpush1.bf16.msra.mxu0 0
  %150 = vmatprep.subr.bf16.mxu0 0
  %151 = vmatpush1.bf16.msra.mxu0 0
  %152 = vmatprep.subr.bf16.mxu0 0
  %153 = vmatpush1.bf16.msra.mxu0 0
  %154 = vmatprep.subr.bf16.mxu0 0
  %155 = vmatpush1.bf16.msra.mxu0 0
  %156 = vmatprep.subr.bf16.mxu0 0
  %157 = vmatpush1.bf16.msra.mxu0 0
  %158 = vmatprep.subr.bf16.mxu0 0
  %159 = vmatpush1.bf16.msra.mxu0 0
  %160 = vmatprep.subr.bf16.mxu0 0
  %161 = vmatpush1.bf16.msra.mxu0 0
  %162 = vmatprep.subr.bf16.mxu0 0
  %163 = vmatpush1.bf16.msra.mxu0 0
  %164 = vmatprep.subr.bf16.mxu0 0
  %165 = vmatpush1.bf16.msra.mxu0 0
  %166 = vmatprep.subr.bf16.mxu0 0
  %167 = vmatpush1.bf16.msra.mxu0 0
  %168 = vmatprep.subr.bf16.mxu0 0
  %169 = vmatpush1.bf16.msra.mxu0 0
  %170 = vmatprep.mubr.bf16.mxu0 0
  %171 = vmatmul.mubr.bf16.gmra.mrb[0].mxu0 %v133
  %v172 = vpop.f32.mrb[0].mxu0
  %v173 = vadd.f32 %v104, %v172
  %v174 = vpop.f32.mrb[0].mxu0
  %v175 = vpop.f32.mrb[0].mxu0
  %v176 = vadd.f32 %v109, %v175
  %v177 = vpop.f32.mrb[0].mxu0
  %178 = vmatprep.mubr.bf16.mxu0 0
  %179 = vmatmul.mubr.bf16.gmra.mrb[0].mxu0 %v136
  %v180 = vpop.f32.mrb[0].mxu0
  %v181 = vadd.f32 %v114, %v180
  %v182 = vpop.f32.mrb[0].mxu0
  %v183 = vpop.f32.mrb[0].mxu0
  %v184 = vadd.f32 %v119, %v183
  %v185 = vpop.f32.mrb[0].mxu0
  %186 = vdwg.mxu0
  %v187 = vmax.f32 %v173, 0.0
  %v188 = vmax.f32 %v176, 0.0
  %v189 = vmax.f32 %v181, 0.0
  %v190 = vmax.f32 %v184, 0.0
  %v191 = vpack.c.bf16 %v188, %v187
  %v192 = vpack.c.bf16 %v190, %v189
  %v195 = vunpack.c.l.b16 %v191
  %v196 = vunpack.c.h.b16 %v191
  %v197 = vunpack.c.l.b16 %v192
  %v198 = vunpack.c.h.b16 %v192
  %v199 = vpack.c.b16 %v195, %v195
  %v200 = vpack.c.b16 %v196, %v196
  %v201 = vpack.c.b16 %v197, %v197
  %v202 = vpack.c.b16 %v198, %v198
  %207 = vst [vmem:[%s4] sm:$0xf] %v199
  %208 = vst [vmem:[%s4 + $0x4] sm:$0xf] %v200
  %209 = vst [vmem:[%s4 + $0x8] sm:$0xf] %v201
  %210 = vst [vmem:[%s4 + $0xc] sm:$0xf] %v202
  // Predicated region
  $region18: #{stdf_forward.11} parent=0 // pred_check
    _
  $region19: #{stdf_forward.11} parent=0 // pred_check_branch
    %212 = sbr.rel (0) target = $region21
  $region20: #{stdf_forward.11} parent=0 // pred_region
    _
  $region21: #{stdf_forward.11} parent=0 // pred_fallthru
    _
  // Predicated region
  $region22: #{stdf_forward.11} parent=0 // pred_check
    _
  $region23: #{stdf_forward.11} parent=0 // pred_check_branch
    %214 = sbr.rel (0) target = $region25
  $region24: #{stdf_forward.11} parent=0 // pred_region
    _
  $region25: #{stdf_forward.11} parent=0 // pred_fallthru
    _

// kernel: stdf_forward.12
$region0: #{stdf_forward.12}
  #allocation0 [shape = 'u32[]', space=smem, size = 0x4, offset = 0x4, fixed_abs, tag = 'smem constant byte address 0x4 - core index']
  #allocation1 [shape = 'u32[144,128]{1,0:T(1,128)}', space=vmem, size = 0x12000, scoped, tag = 'internal scratch']
  #allocation2 [shape = 'bf16[144,256]{1,0:T(16,128)(2,1)}', space=vmem, size = 0x12000, scoped, tag = 'scratch operand']
  %s0 = inlined_call_operand.vmem [shape: bf16[16,384], index: 0, kind: input, shape index: {}, may-alias: {0,1}]
  %s1 = inlined_call_operand.vmem [shape: bf16[16,384], index: 1, kind: input, shape index: {}, may-alias: {0,1}]
  %s2 = inlined_call_operand.vmem [shape: bf16[8,144], index: 2, kind: input, shape index: {}]
  %s3 = inlined_call_operand.vmem [shape: f32[8,1], index: 3, kind: input, shape index: {}]
  %s4 = inlined_call_operand.vmem [shape: bf16[8,256], index: 4, kind: output, shape index: {}]
  %s5 = sld [smem:[#allocation0]]
  $region105: #{stdf_forward.12} parent=0
    _
  %s7 = ssub.s32 1, %s5
  %s8 = scalar_select 0, %s7, %s5
  $region1: #{stdf_forward.12} parent=0
    #allocation3 [shape = 'u8[8192]{0}', space=vmem, size = 0x2000, scoped, tag = 'input window, operand 0, single buffered']
    #allocation4 [shape = 'u8[4096]{0}', space=vmem, size = 0x1000, scoped, tag = 'input window, operand 1, single buffered']
    // Predicated region
    $region2: #{stdf_forward.12} parent=1 // pred_check
      _
    $region3: #{stdf_forward.12} parent=1 // pred_check_branch
      %10 = sbr.rel (0) target = $region5
    $region4: #{stdf_forward.12} parent=1 // pred_region
      // Predicated region
      $region6: #{stdf_forward.12} parent=4 // pred_check
        _
      $region7: #{stdf_forward.12} parent=4 // pred_check_branch
        %12 = sbr.rel (0) target = $region9
      $region8: #{stdf_forward.12} parent=4 // pred_region
        // Predicated region
        $region10: #{stdf_forward.12} parent=8 // pred_check
          _
        $region11: #{stdf_forward.12} parent=8 // pred_check_branch
          %14 = sbr.rel (0) target = $region13
        $region12: #{stdf_forward.12} parent=8 // pred_region
          // Predicated region
          $region25: #{stdf_forward.12} parent=12 // pred_check
            _
          $region26: #{stdf_forward.12} parent=12 // pred_check_branch
            %31 = sbr.rel (0) target = $region28
          $region27: #{stdf_forward.12} parent=12 // pred_region
            loop: start=0, step=1, limit=1
            $region29: #{stdf_forward.12} parent=27 // loop_pre_header
              _
            $region30: #{stdf_forward.12} parent=27 // loop_header
              %s33 = sphi 0, %s37
              %p34 = scmp.ge.s32.totalorder %s33, 1
              %s38 = sphi %s0, %s0
              %s39 = sphi [#allocation3], [#allocation3]
            $region31: #{stdf_forward.12} parent=27 // loop_header_branch
              %36 = sbr.rel (%p34) target = $region35
            $region32: #{stdf_forward.12} parent=27 // loop_body
              %v40 = vld [vmem:[%s38] sm:$0xff]
              %41 = vst [vmem:[%s39] sm:$0xff] %v40
              %v42 = vld [vmem:[%s38 + $0xc] sm:$0xff]
              %43 = vst [vmem:[%s39 + $0x8] sm:$0xff] %v42
            $region33: #{stdf_forward.12} parent=27 // loop_footer
              %s37 = sadd.s32 1, %s33
            $region34: #{stdf_forward.12} parent=27 // loop_footer_branch
              %32 = sbr.rel target = $region30
            $region35: #{stdf_forward.12} parent=27 // loop_exit
              _
          $region28: #{stdf_forward.12} parent=12 // pred_fallthru
            _
          // Predicated region
          $region36: #{stdf_forward.12} parent=12 // pred_check
            _
          $region37: #{stdf_forward.12} parent=12 // pred_check_branch
            %45 = sbr.rel target = $region39
          $region38: #{stdf_forward.12} parent=12 // pred_region
            _
          $region39: #{stdf_forward.12} parent=12 // pred_fallthru
            _
        $region13: #{stdf_forward.12} parent=8 // pred_fallthru
          _
        // Predicated region
        $region14: #{stdf_forward.12} parent=8 // pred_check
          _
        $region15: #{stdf_forward.12} parent=8 // pred_check_branch
          %16 = sbr.rel target = $region17
        $region16: #{stdf_forward.12} parent=8 // pred_region
          loop: start=0, step=1, limit=1
          $region18: #{stdf_forward.12} parent=16 // loop_pre_header
            _
          $region19: #{stdf_forward.12} parent=16 // loop_header
            %s19 = sphi 0, %s23
            %p20 = scmp.ge.s32.totalorder %s19, 1
            %s24 = sphi %s0, %s0
            %s25 = sphi [#allocation3], [#allocation3]
          $region20: #{stdf_forward.12} parent=16 // loop_header_branch
            %22 = sbr.rel (%p20) target = $region24
          $region21: #{stdf_forward.12} parent=16 // loop_body
            %v26 = vld [vmem:[%s24] sm:$0xff]
            %27 = vst [vmem:[%s25] sm:$0xff] %v26
            %v28 = vld [vmem:[%s24 + $0xc] sm:$0xff]
            %29 = vst [vmem:[%s25 + $0x8] sm:$0xff] %v28
          $region22: #{stdf_forward.12} parent=16 // loop_footer
            %s23 = sadd.s32 1, %s19
          $region23: #{stdf_forward.12} parent=16 // loop_footer_branch
            %18 = sbr.rel target = $region19
          $region24: #{stdf_forward.12} parent=16 // loop_exit
            _
        $region17: #{stdf_forward.12} parent=8 // pred_fallthru
          _
      $region9: #{stdf_forward.12} parent=4 // pred_fallthru
        _
      %46 = vnop
    $region5: #{stdf_forward.12} parent=1 // pred_fallthru
      _
    // Predicated region
    $region40: #{stdf_forward.12} parent=1 // pred_check
      _
    $region41: #{stdf_forward.12} parent=1 // pred_check_branch
      %48 = sbr.rel (0) target = $region43
    $region42: #{stdf_forward.12} parent=1 // pred_region
      %s49 = sadd.s32 0, 1
      %s50 = smul.u32 %s49, 2
      %s51 = smul.addr %s50, 4
      %s52 = scalar_lea.vmem %s1, %s51
      // Predicated region
      $region44: #{stdf_forward.12} parent=42 // pred_check
        _
      $region45: #{stdf_forward.12} parent=42 // pred_check_branch
        %54 = sbr.rel (0) target = $region47
      $region46: #{stdf_forward.12} parent=42 // pred_region
        // Predicated region
        $region48: #{stdf_forward.12} parent=46 // pred_check
          _
        $region49: #{stdf_forward.12} parent=46 // pred_check_branch
          %56 = sbr.rel target = $region51
        $region50: #{stdf_forward.12} parent=46 // pred_region
          // Predicated region
          $region63: #{stdf_forward.12} parent=50 // pred_check
            _
          $region64: #{stdf_forward.12} parent=50 // pred_check_branch
            %73 = sbr.rel (0) target = $region66
          $region65: #{stdf_forward.12} parent=50 // pred_region
            loop: start=0, step=1, limit=1
            $region67: #{stdf_forward.12} parent=65 // loop_pre_header
              _
            $region68: #{stdf_forward.12} parent=65 // loop_header
              %s75 = sphi 0, %s79
              %p76 = scmp.ge.s32.totalorder %s75, 1
              %s80 = sphi %s52, %s52
              %s81 = sphi [#allocation4], [#allocation4]
            $region69: #{stdf_forward.12} parent=65 // loop_header_branch
              %78 = sbr.rel (%p76) target = $region73
            $region70: #{stdf_forward.12} parent=65 // loop_body
              _
            $region71: #{stdf_forward.12} parent=65 // loop_footer
              %s79 = sadd.s32 1, %s75
            $region72: #{stdf_forward.12} parent=65 // loop_footer_branch
              %74 = sbr.rel target = $region68
            $region73: #{stdf_forward.12} parent=65 // loop_exit
              _
            loop: start=0, step=1, limit=1
            $region74: #{stdf_forward.12} parent=65 // loop_pre_header
              _
            $region75: #{stdf_forward.12} parent=65 // loop_header
              %s84 = sphi 0, %s88
              %p85 = scmp.ge.s32.totalorder %s84, 1
              %s89 = sphi %s52, %s52
              %s90 = sphi [#allocation4], [#allocation4]
            $region76: #{stdf_forward.12} parent=65 // loop_header_branch
              %87 = sbr.rel (%p85) target = $region80
            $region77: #{stdf_forward.12} parent=65 // loop_body
              %v91 = vld [vmem:[%s89] sm:$0xf]
              %92 = vst [vmem:[%s90] sm:$0xf] %v91
              %v93 = vld [vmem:[%s89 + $0xc] sm:$0xf]
              %94 = vst [vmem:[%s90 + $0x4] sm:$0xf] %v93
            $region78: #{stdf_forward.12} parent=65 // loop_footer
              %s88 = sadd.s32 1, %s84
            $region79: #{stdf_forward.12} parent=65 // loop_footer_branch
              %83 = sbr.rel target = $region75
            $region80: #{stdf_forward.12} parent=65 // loop_exit
              _
          $region66: #{stdf_forward.12} parent=50 // pred_fallthru
            _
        $region51: #{stdf_forward.12} parent=46 // pred_fallthru
          _
        // Predicated region
        $region52: #{stdf_forward.12} parent=46 // pred_check
          _
        $region53: #{stdf_forward.12} parent=46 // pred_check_branch
          %58 = sbr.rel (0) target = $region55
        $region54: #{stdf_forward.12} parent=46 // pred_region
          loop: start=0, step=1, limit=1
          $region56: #{stdf_forward.12} parent=54 // loop_pre_header
            _
          $region57: #{stdf_forward.12} parent=54 // loop_header
            %s61 = sphi 0, %s65
            %p62 = scmp.ge.s32.totalorder %s61, 1
            %s66 = sphi %s52, %s52
            %s67 = sphi [#allocation4], [#allocation4]
          $region58: #{stdf_forward.12} parent=54 // loop_header_branch
            %64 = sbr.rel (%p62) target = $region62
          $region59: #{stdf_forward.12} parent=54 // loop_body
            %v68 = vld [vmem:[%s66] sm:$0xf]
            %69 = vst [vmem:[%s67] sm:$0xf] %v68
            %v70 = vld [vmem:[%s66 + $0xc] sm:$0xf]
            %71 = vst [vmem:[%s67 + $0x4] sm:$0xf] %v70
          $region60: #{stdf_forward.12} parent=54 // loop_footer
            %s65 = sadd.s32 1, %s61
          $region61: #{stdf_forward.12} parent=54 // loop_footer_branch
            %60 = sbr.rel target = $region57
          $region62: #{stdf_forward.12} parent=54 // loop_exit
            _
        $region55: #{stdf_forward.12} parent=46 // pred_fallthru
          _
      $region47: #{stdf_forward.12} parent=42 // pred_fallthru
        _
      %95 = vnop
    $region43: #{stdf_forward.12} parent=1 // pred_fallthru
      _
    // Predicated region
    $region81: #{stdf_forward.12} parent=1 // pred_check
      _
    $region82: #{stdf_forward.12} parent=1 // pred_check_branch
      %97 = sbr.rel (0) target = $region84
    $region83: #{stdf_forward.12} parent=1 // pred_region
      _
    $region84: #{stdf_forward.12} parent=1 // pred_fallthru
      _
    // Predicated region
    $region85: #{stdf_forward.12} parent=1 // pred_check
      _
    $region86: #{stdf_forward.12} parent=1 // pred_check_branch
      %99 = sbr.rel (0) target = $region88
    $region87: #{stdf_forward.12} parent=1 // pred_region
      _
    $region88: #{stdf_forward.12} parent=1 // pred_fallthru
      _
    // Predicated region
    $region89: #{stdf_forward.12} parent=1 // pred_check
      _
    $region90: #{stdf_forward.12} parent=1 // pred_check_branch
      %101 = sbr.rel (0) target = $region92
    $region91: #{stdf_forward.12} parent=1 // pred_region
      _
    $region92: #{stdf_forward.12} parent=1 // pred_fallthru
      _
    // Predicated region
    $region93: #{stdf_forward.12} parent=1 // pred_check
      _
    $region94: #{stdf_forward.12} parent=1 // pred_check_branch
      %103 = sbr.rel (0) target = $region96
    $region95: #{stdf_forward.12} parent=1 // pred_region
      _
    $region96: #{stdf_forward.12} parent=1 // pred_fallthru
      _
    %s104 = sadd.s32 0, 1
    %s105 = smul.u32 %s104, 2
    %v107 = vld [vmem:[#allocation3] sm:$0xff]
    %v108 = vld [vmem:[#allocation3 + $0x8] sm:$0xff]
    %v111 = vunpack.c.l.b16 %v107
    %v112 = vunpack.c.h.b16 %v107
    %v113 = vunpack.c.l.b16 %v108
    %v114 = vunpack.c.h.b16 %v108
    %v115 = vpack.c.b16 %v113, %v111
    %v116 = vpack.c.b16 %v114, %v112
    %119 = vst [vmem:[#allocation2] sm:$0xff] %v115
    %120 = vst [vmem:[#allocation2 + $0x8] sm:$0xff] %v116
    %v121 = vld [vmem:[#allocation3] sm:$0xff]
    %v122 = vld [vmem:[#allocation3 + $0x8] sm:$0xff]
    %v125 = vunpack.c.l.b16 %v121
    %v126 = vunpack.c.h.b16 %v121
    %v127 = vunpack.c.l.b16 %v122
    %v128 = vunpack.c.h.b16 %v122
    %v129 = vpack.c.b16 %v127, %v125
    %v130 = vpack.c.b16 %v128, %v126
    %131 = vrot.lane.b32.xlu0 %v129, 127
    %v132 = vpop.permute.xlu0 %131
    %133 = vrot.lane.b32.xlu0 %v130, 127
    %v134 = vpop.permute.xlu0 %133
    %vm135 = vcmask 1039360
    %v136 = vsel %vm135, %v132, %v134
    %139 = vst [vmem:[#allocation2 + $0x10] sm:$0xff] %v136
    %vm140 = vcmask 1039360
    %141 = vst.msk [vmem:[#allocation2 + $0x18] sm:$0xff] %vm140, %v134
    %v142 = vld [vmem:[#allocation4] sm:$0xf]
    %v143 = vld [vmem:[#allocation4 + $0x4] sm:$0xf]
    %v146 = vunpack.c.l.b16 %v142
    %v147 = vunpack.c.l.b16 %v143
    %v148 = vpack.c.b16 %v147, %v146
    %149 = vrot.lane.b32.xlu0 %v148, 127
    %v150 = vpop.permute.xlu0 %149
    %vm152 = vcmask 1048568
    %153 = vst.msk [vmem:[#allocation2 + $0x18] sm:$0xff] %vm152, %v150
    %v154 = vld [vmem:[#allocation3] sm:$0xff]
    %v155 = vld [vmem:[#allocation3 + $0x8] sm:$0xff]
    %v158 = vunpack.c.l.b16 %v154
    %v159 = vunpack.c.h.b16 %v154
    %v160 = vunpack.c.l.b16 %v155
    %v161 = vunpack.c.h.b16 %v155
    %v162 = vpack.c.b16 %v160, %v158
    %v163 = vpack.c.b16 %v161, %v159
    %164 = vrot.lane.b32.xlu0 %v162, 126
    %v165 = vpop.permute.xlu0 %164
    %166 = vrot.lane.b32.xlu0 %v163, 126
    %v167 = vpop.permute.xlu0 %166
    %vm168 = vcmask 1031168
    %v169 = vsel %vm168, %v165, %v167
    %172 = vst [vmem:[#allocation2 + $0x20] sm:$0xff] %v169
    %vm173 = vcmask 1031168
    %174 = vst.msk [vmem:[#allocation2 + $0x28] sm:$0xff] %vm173, %v167
    %v175 = vld [vmem:[#allocation4] sm:$0xf]
    %v176 = vld [vmem:[#allocation4 + $0x4] sm:$0xf]
    %v179 = vunpack.c.l.b16 %v175
    %v180 = vunpack.c.l.b16 %v176
    %v181 = vpack.c.b16 %v180, %v179
    %182 = vrot.lane.b32.xlu0 %v181, 126
    %v183 = vpop.permute.xlu0 %182
    %vm185 = vcmask 1048560
    %186 = vst.msk [vmem:[#allocation2 + $0x28] sm:$0xff] %vm185, %v183
    %v187 = vld [vmem:[#allocation3] sm:$0xff]
    %v188 = vld [vmem:[#allocation3 + $0x8] sm:$0xff]
    %v191 = vunpack.c.l.b16 %v187
    %v192 = vunpack.c.h.b16 %v187
    %v193 = vunpack.c.l.b16 %v188
    %v194 = vunpack.c.h.b16 %v188
    %v195 = vpack.c.b16 %v193, %v191
    %v196 = vpack.c.b16 %v194, %v192
    %197 = vrot.lane.b32.xlu0 %v195, 118
    %v198 = vpop.permute.xlu0 %197
    %199 = vrot.lane.b32.xlu0 %v196, 118
    %v200 = vpop.permute.xlu0 %199
    %vm201 = vcmask 965632
    %v202 = vsel %vm201, %v198, %v200
    %205 = vst [vmem:[#allocation2 + $0x30] sm:$0xff] %v202
    %vm206 = vcmask 965632
    %207 = vst.msk [vmem:[#allocation2 + $0x38] sm:$0xff] %vm206, %v200
    %v208 = vld [vmem:[#allocation4] sm:$0xf]
    %v209 = vld [vmem:[#allocation4 + $0x4] sm:$0xf]
    %v212 = vunpack.c.l.b16 %v208
    %v213 = vunpack.c.l.b16 %v209
    %v214 = vpack.c.b16 %v213, %v212
    %215 = vrot.lane.b32.xlu0 %v214, 118
    %v216 = vpop.permute.xlu0 %215
    %vm218 = vcmask 1048496
    %219 = vst.msk [vmem:[#allocation2 + $0x38] sm:$0xff] %vm218, %v216
    %v220 = vld [vmem:[#allocation3] sm:$0xff]
    %v221 = vld [vmem:[#allocation3 + $0x8] sm:$0xff]
    %v224 = vunpack.c.l.b16 %v220
    %v225 = vunpack.c.h.b16 %v220
    %v226 = vunpack.c.l.b16 %v221
    %v227 = vunpack.c.h.b16 %v221
    %v228 = vpack.c.b16 %v226, %v224
    %v229 = vpack.c.b16 %v227, %v225
    %230 = vrot.lane.b32.xlu0 %v228, 117
    %v231 = vpop.permute.xlu0 %230
    %232 = vrot.lane.b32.xlu0 %v229, 117
    %v233 = vpop.permute.xlu0 %232
    %vm234 = vcmask 957440
    %v235 = vsel %vm234, %v231, %v233
    %238 = vst [vmem:[#allocation2 + $0x40] sm:$0xff] %v235
    %vm239 = vcmask 957440
    %240 = vst.msk [vmem:[#allocation2 + $0x48] sm:$0xff] %vm239, %v233
    %v241 = vld [vmem:[#allocation4] sm:$0xf]
    %v242 = vld [vmem:[#allocation4 + $0x4] sm:$0xf]
    %v245 = vunpack.c.l.b16 %v241
    %v246 = vunpack.c.l.b16 %v242
    %v247 = vpack.c.b16 %v246, %v245
    %248 = vrot.lane.b32.xlu0 %v247, 117
    %v249 = vpop.permute.xlu0 %248
    %vm251 = vcmask 1048488
    %252 = vst.msk [vmem:[#allocation2 + $0x48] sm:$0xff] %vm251, %v249
    %v253 = vld [vmem:[#allocation3] sm:$0xff]
    %v254 = vld [vmem:[#allocation3 + $0x8] sm:$0xff]
    %v257 = vunpack.c.l.b16 %v253
    %v258 = vunpack.c.h.b16 %v253
    %v259 = vunpack.c.l.b16 %v254
    %v260 = vunpack.c.h.b16 %v254
    %v261 = vpack.c.b16 %v259, %v257
    %v262 = vpack.c.b16 %v260, %v258
    %263 = vrot.lane.b32.xlu0 %v261, 116
    %v264 = vpop.permute.xlu0 %263
    %265 = vrot.lane.b32.xlu0 %v262, 116
    %v266 = vpop.permute.xlu0 %265
    %vm267 = vcmask 949248
    %v268 = vsel %vm267, %v264, %v266
    %271 = vst [vmem:[#allocation2 + $0x50] sm:$0xff] %v268
    %vm272 = vcmask 949248
    %273 = vst.msk [vmem:[#allocation2 + $0x58] sm:$0xff] %vm272, %v266
    %v274 = vld [vmem:[#allocation4] sm:$0xf]
    %v275 = vld [vmem:[#allocation4 + $0x4] sm:$0xf]
    %v278 = vunpack.c.l.b16 %v274
    %v279 = vunpack.c.l.b16 %v275
    %v280 = vpack.c.b16 %v279, %v278
    %281 = vrot.lane.b32.xlu0 %v280, 116
    %v282 = vpop.permute.xlu0 %281
    %vm284 = vcmask 1048480
    %285 = vst.msk [vmem:[#allocation2 + $0x58] sm:$0xff] %vm284, %v282
    %v286 = vld [vmem:[#allocation3] sm:$0xff]
    %v287 = vld [vmem:[#allocation3 + $0x8] sm:$0xff]
    %v290 = vunpack.c.l.b16 %v286
    %v291 = vunpack.c.h.b16 %v286
    %v292 = vunpack.c.l.b16 %v287
    %v293 = vunpack.c.h.b16 %v287
    %v294 = vpack.c.b16 %v292, %v290
    %v295 = vpack.c.b16 %v293, %v291
    %296 = vrot.lane.b32.xlu0 %v294, 108
    %v297 = vpop.permute.xlu0 %296
    %298 = vrot.lane.b32.xlu0 %v295, 108
    %v299 = vpop.permute.xlu0 %298
    %vm300 = vcmask 883712
    %v301 = vsel %vm300, %v297, %v299
    %304 = vst [vmem:[#allocation2 + $0x60] sm:$0xff] %v301
    %vm305 = vcmask 883712
    %306 = vst.msk [vmem:[#allocation2 + $0x68] sm:$0xff] %vm305, %v299
    %v307 = vld [vmem:[#allocation4] sm:$0xf]
    %v308 = vld [vmem:[#allocation4 + $0x4] sm:$0xf]
    %v311 = vunpack.c.l.b16 %v307
    %v312 = vunpack.c.l.b16 %v308
    %v313 = vpack.c.b16 %v312, %v311
    %314 = vrot.lane.b32.xlu0 %v313, 108
    %v315 = vpop.permute.xlu0 %314
    %vm317 = vcmask 1048416
    %318 = vst.msk [vmem:[#allocation2 + $0x68] sm:$0xff] %vm317, %v315
    %v319 = vld [vmem:[#allocation3] sm:$0xff]
    %v320 = vld [vmem:[#allocation3 + $0x8] sm:$0xff]
    %v323 = vunpack.c.l.b16 %v319
    %v324 = vunpack.c.h.b16 %v319
    %v325 = vunpack.c.l.b16 %v320
    %v326 = vunpack.c.h.b16 %v320
    %v327 = vpack.c.b16 %v325, %v323
    %v328 = vpack.c.b16 %v326, %v324
    %329 = vrot.lane.b32.xlu0 %v327, 107
    %v330 = vpop.permute.xlu0 %329
    %331 = vrot.lane.b32.xlu0 %v328, 107
    %v332 = vpop.permute.xlu0 %331
    %vm333 = vcmask 875520
    %v334 = vsel %vm333, %v330, %v332
    %337 = vst [vmem:[#allocation2 + $0x70] sm:$0xff] %v334
    %vm338 = vcmask 875520
    %339 = vst.msk [vmem:[#allocation2 + $0x78] sm:$0xff] %vm338, %v332
    %v340 = vld [vmem:[#allocation4] sm:$0xf]
    %v341 = vld [vmem:[#allocation4 + $0x4] sm:$0xf]
    %v344 = vunpack.c.l.b16 %v340
    %v345 = vunpack.c.l.b16 %v341
    %v346 = vpack.c.b16 %v345, %v344
    %347 = vrot.lane.b32.xlu0 %v346, 107
    %v348 = vpop.permute.xlu0 %347
    %vm350 = vcmask 1048408
    %351 = vst.msk [vmem:[#allocation2 + $0x78] sm:$0xff] %vm350, %v348
    %v352 = vld [vmem:[#allocation3] sm:$0xff]
    %v353 = vld [vmem:[#allocation3 + $0x8] sm:$0xff]
    %v356 = vunpack.c.l.b16 %v352
    %v357 = vunpack.c.h.b16 %v352
    %v358 = vunpack.c.l.b16 %v353
    %v359 = vunpack.c.h.b16 %v353
    %v360 = vpack.c.b16 %v358, %v356
    %v361 = vpack.c.b16 %v359, %v357
    %362 = vrot.lane.b32.xlu0 %v360, 106
    %v363 = vpop.permute.xlu0 %362
    %364 = vrot.lane.b32.xlu0 %v361, 106
    %v365 = vpop.permute.xlu0 %364
    %vm366 = vcmask 867328
    %v367 = vsel %vm366, %v363, %v365
    %370 = vst [vmem:[#allocation2 + $0x80] sm:$0xff] %v367
    %vm371 = vcmask 867328
    %372 = vst.msk [vmem:[#allocation2 + $0x88] sm:$0xff] %vm371, %v365
    %v373 = vld [vmem:[#allocation4] sm:$0xf]
    %v374 = vld [vmem:[#allocation4 + $0x4] sm:$0xf]
    %v377 = vunpack.c.l.b16 %v373
    %v378 = vunpack.c.l.b16 %v374
    %v379 = vpack.c.b16 %v378, %v377
    %380 = vrot.lane.b32.xlu0 %v379, 106
    %v381 = vpop.permute.xlu0 %380
    %vm383 = vcmask 1048400
    %384 = vst.msk [vmem:[#allocation2 + $0x88] sm:$0xff] %vm383, %v381
    %v385 = vld [vmem:[%s2] sm:$0xff]
    %v386 = vld [vmem:[%s3] sm:$0xff]
    %v387 = vld [vmem:[#allocation2] sm:$0xff]
    %v388 = vld [vmem:[#allocation2 + $0x8] sm:$0xff]
    %v389 = vld [vmem:[#allocation2 + $0x10] sm:$0xff]
    %v390 = vld [vmem:[#allocation2 + $0x18] sm:$0xff]
    %v391 = vld [vmem:[#allocation2 + $0x20] sm:$0xff]
    %v392 = vld [vmem:[#allocation2 + $0x28] sm:$0xff]
    %v393 = vld [vmem:[#allocation2 + $0x30] sm:$0xff]
    %v394 = vld [vmem:[#allocation2 + $0x38] sm:$0xff]
    %v395 = vld [vmem:[#allocation2 + $0x40] sm:$0xff]
    %v396 = vld [vmem:[#allocation2 + $0x48] sm:$0xff]
    %v397 = vld [vmem:[#allocation2 + $0x50] sm:$0xff]
    %v398 = vld [vmem:[#allocation2 + $0x58] sm:$0xff]
    %v399 = vld [vmem:[#allocation2 + $0x60] sm:$0xff]
    %v400 = vld [vmem:[#allocation2 + $0x68] sm:$0xff]
    %v401 = vld [vmem:[#allocation2 + $0x70] sm:$0xff]
    %v402 = vld [vmem:[#allocation2 + $0x78] sm:$0xff]
    %v403 = vld [vmem:[#allocation2 + $0x80] sm:$0xff]
    %v404 = vld [vmem:[#allocation2 + $0x88] sm:$0xff]
    %406 = vset.pattern.permute.xlu0 0
    %407 = vperm.xlu0 %406, %v386
    %v408 = vpop.permute.xlu0 %407
    %v411 = vunpack.c.l.b16 %v385
    %v412 = vunpack.c.h.b16 %v385
    %v413 = vpack.c.b16 %v411, %v411
    %v414 = vpack.c.b16 %v412, %v412
    %vm416 = vcmask 130048
    %v418 = vsel %vm416, %v414, 0
    %420 = vmatprep.subr.bf16.mxu0 %v388
    %421 = vmatpush1.bf16.msra.mxu0 %v387
    %422 = vmatprep.subr.bf16.mxu0 %v390
    %423 = vmatpush1.bf16.msra.mxu0 %v389
    %424 = vmatprep.subr.bf16.mxu0 %v392
    %425 = vmatpush1.bf16.msra.mxu0 %v391
    %426 = vmatprep.subr.bf16.mxu0 %v394
    %427 = vmatpush1.bf16.msra.mxu0 %v393
    %428 = vmatprep.subr.bf16.mxu0 %v396
    %429 = vmatpush1.bf16.msra.mxu0 %v395
    %430 = vmatprep.subr.bf16.mxu0 %v398
    %431 = vmatpush1.bf16.msra.mxu0 %v397
    %432 = vmatprep.subr.bf16.mxu0 %v400
    %433 = vmatpush1.bf16.msra.mxu0 %v399
    %434 = vmatprep.subr.bf16.mxu0 %v402
    %435 = vmatpush1.bf16.msra.mxu0 %v401
    %436 = vmatprep.subr.bf16.mxu0 %v404
    %437 = vmatpush1.bf16.msra.mxu0 %v403
    %438 = vmatprep.subr.bf16.mxu0 0
    %439 = vmatpush1.bf16.msra.mxu0 0
    %440 = vmatprep.subr.bf16.mxu0 0
    %441 = vmatpush1.bf16.msra.mxu0 0
    %442 = vmatprep.subr.bf16.mxu0 0
    %443 = vmatpush1.bf16.msra.mxu0 0
    %444 = vmatprep.subr.bf16.mxu0 0
    %445 = vmatpush1.bf16.msra.mxu0 0
    %446 = vmatprep.subr.bf16.mxu0 0
    %447 = vmatpush1.bf16.msra.mxu0 0
    %448 = vmatprep.subr.bf16.mxu0 0
    %449 = vmatpush1.bf16.msra.mxu0 0
    %450 = vmatprep.subr.bf16.mxu0 0
    %451 = vmatpush1.bf16.msra.mxu0 0
    %452 = vmatprep.mubr.bf16.mxu0 %v418
    %453 = vmatmul.mubr.bf16.gmra.mrb[0].mxu0 %v413
    %v454 = vpop.f32.mrb[0].mxu0
    %v455 = vadd.f32 %v408, %v454
    %v456 = vpop.f32.mrb[0].mxu0
    %v457 = vadd.f32 %v408, %v456
    %v458 = vpop.f32.mrb[0].mxu0
    %v459 = vpop.f32.mrb[0].mxu0
    %460 = vdwg.mxu0
    %v461 = vmax.f32 %v455, 0.0
    %v462 = vmax.f32 %v457, 0.0
    %v463 = vpack.c.bf16 %v461, %v461
    %v464 = vpack.c.bf16 %v462, %v462
    %v467 = vunpack.c.l.b16 %v463
    %v468 = vunpack.c.l.b16 %v464
    %v469 = vpack.c.b16 %v468, %v467
    %471 = vst [vmem:[%s4] sm:$0xff] %v469
    // Predicated region
    $region97: #{stdf_forward.12} parent=1 // pred_check
      _
    $region98: #{stdf_forward.12} parent=1 // pred_check_branch
      %473 = sbr.rel (0) target = $region100
    $region99: #{stdf_forward.12} parent=1 // pred_region
      _
    $region100: #{stdf_forward.12} parent=1 // pred_fallthru
      _
    // Predicated region
    $region101: #{stdf_forward.12} parent=1 // pred_check
      _
    $region102: #{stdf_forward.12} parent=1 // pred_check_branch
      %475 = sbr.rel (0) target = $region104
    $region103: #{stdf_forward.12} parent=1 // pred_region
      _
    $region104: #{stdf_forward.12} parent=1 // pred_fallthru
      _

// kernel: stdf_forward.13
$region0: #{stdf_forward.13}
  #allocation0 [shape = 'u32[]', space=smem, size = 0x4, offset = 0x4, fixed_abs, tag = 'smem constant byte address 0x4 - core index']
  #allocation1 [shape = 'u32[144,128]{1,0:T(1,128)}', space=vmem, size = 0x12000, scoped, tag = 'internal scratch']
  #allocation2 [shape = 'bf16[32,256]{1,0:T(16,128)(2,1)}', space=vmem, size = 0x4000, scoped, tag = 'scratch operand']
  %s0 = inlined_call_operand.vmem [shape: bf16[8,384], index: 0, kind: input, shape index: {}, may-alias: {0,1}]
  %s1 = inlined_call_operand.vmem [shape: bf16[8,384], index: 1, kind: input, shape index: {}, may-alias: {0,1}]
  %s2 = inlined_call_operand.vmem [shape: bf16[32,32], index: 2, kind: input, shape index: {}]
  %s3 = inlined_call_operand.vmem [shape: f32[32,1], index: 3, kind: input, shape index: {}]
  %s4 = inlined_call_operand.vmem [shape: bf16[32,256], index: 4, kind: output, shape index: {}]
  %s5 = sld [smem:[#allocation0]]
  $region26: #{stdf_forward.13} parent=0
    _
  %s7 = ssub.s32 1, %s5
  %s8 = scalar_select 0, %s7, %s5
  // Predicated region
  $region2: #{stdf_forward.13} parent=0 // pred_check
    _
  $region3: #{stdf_forward.13} parent=0 // pred_check_branch
    %10 = sbr.rel (0) target = $region5
  $region4: #{stdf_forward.13} parent=0 // pred_region
    _
  $region5: #{stdf_forward.13} parent=0 // pred_fallthru
    _
  // Predicated region
  $region6: #{stdf_forward.13} parent=0 // pred_check
    _
  $region7: #{stdf_forward.13} parent=0 // pred_check_branch
    %12 = sbr.rel (0) target = $region9
  $region8: #{stdf_forward.13} parent=0 // pred_region
    %s13 = sadd.s32 0, 1
    %s14 = smul.u32 %s13, 2
    %p15 = scmp.lt.s32.totalorder %s14, 2
    %s16 = scalar_select %p15, %s14, 2
    %s17 = smul.addr %s16, 4
    %s18 = scalar_lea.vmem %s1, %s17
    %s19 = sadd.s32 0, 1
    %s20 = smul.u32 %s19, 2
  $region9: #{stdf_forward.13} parent=0 // pred_fallthru
    _
  // Predicated region
  $region10: #{stdf_forward.13} parent=0 // pred_check
    _
  $region11: #{stdf_forward.13} parent=0 // pred_check_branch
    %22 = sbr.rel (0) target = $region13
  $region12: #{stdf_forward.13} parent=0 // pred_region
    _
  $region13: #{stdf_forward.13} parent=0 // pred_fallthru
    _
  // Predicated region
  $region14: #{stdf_forward.13} parent=0 // pred_check
    _
  $region15: #{stdf_forward.13} parent=0 // pred_check_branch
    %24 = sbr.rel (0) target = $region17
  $region16: #{stdf_forward.13} parent=0 // pred_region
    _
  $region17: #{stdf_forward.13} parent=0 // pred_fallthru
    _
  %s25 = sadd.s32 0, 1
  %s26 = smul.u32 %s25, 2
  %p27 = scmp.lt.s32.totalorder %s26, 2
  %s28 = scalar_select %p27, %s26, 2
  %s29 = smul.addr %s28, 4
  %s30 = scalar_lea.vmem %s1, %s29
  %s31 = sadd.s32 0, 1
  %s32 = smul.u32 %s31, 2
  %p33 = scmp.lt.s32.totalorder %s32, 2
  %s34 = scalar_select %p33, %s32, 2
  %s35 = smul.addr %s34, 4
  %s36 = scalar_lea.vmem %s1, %s35
  %s37 = sadd.s32 0, 1
  %s38 = smul.u32 %s37, 2
  %v40 = vld [vmem:[%s0] sm:$0xff]
  %v42 = vunpack.c.l.b16 %v40
  %v43 = vunpack.c.h.b16 %v40
  %v44 = vpack.c.b16 %v42, %v42
  %v45 = vpack.c.b16 %v43, %v43
  %48 = vst [vmem:[#allocation2] sm:$0xf] %v44
  %49 = vst [vmem:[#allocation2 + $0x8] sm:$0xf] %v45
  %v50 = vld [vmem:[%s0] sm:$0xff]
  %v52 = vunpack.c.l.b16 %v50
  %v53 = vunpack.c.h.b16 %v50
  %v54 = vpack.c.b16 %v52, %v52
  %v55 = vpack.c.b16 %v53, %v53
  %56 = vrot.lane.b32.xlu0 %v54, 127
  %v57 = vpop.permute.xlu0 %56
  %58 = vrot.lane.b32.xlu0 %v55, 127
  %v59 = vpop.permute.xlu0 %58
  %vm60 = vcmask 1039360
  %v61 = vsel %vm60, %v57, %v59
  %64 = vst [vmem:[#allocation2] sm:$0xf0] %v61
  %vm65 = vcmask 1039364
  %66 = vst.msk [vmem:[#allocation2 + $0x8] sm:$0xf0] %vm65, %v59
  %v67 = vld [vmem:[%s36] sm:$0xf]
  %v69 = vunpack.c.l.b16 %v67
  %v70 = vpack.c.b16 %v69, %v69
  %71 = vrot.lane.b32.xlu0 %v70, 127
  %v72 = vpop.permute.xlu0 %71
  %vm74 = vcmask 1048572
  %75 = vst.msk [vmem:[#allocation2 + $0x8] sm:$0xf0] %vm74, %v72
  %v76 = vld [vmem:[%s0] sm:$0xff]
  %v78 = vunpack.c.l.b16 %v76
  %v79 = vunpack.c.h.b16 %v76
  %v80 = vpack.c.b16 %v78, %v78
  %v81 = vpack.c.b16 %v79, %v79
  %82 = vrot.lane.b32.xlu0 %v80, 118
  %v83 = vpop.permute.xlu0 %82
  %84 = vrot.lane.b32.xlu0 %v81, 118
  %v85 = vpop.permute.xlu0 %84
  %vm86 = vcmask 965632
  %v87 = vsel %vm86, %v83, %v85
  %90 = vst [vmem:[#allocation2 + $0x10] sm:$0xf] %v87
  %vm91 = vcmask 961536
  %92 = vst.msk [vmem:[#allocation2 + $0x18] sm:$0xf] %vm91, %v85
  %v93 = vld [vmem:[%s36] sm:$0xf]
  %v95 = vunpack.c.l.b16 %v93
  %v96 = vpack.c.b16 %v95, %v95
  %97 = vrot.lane.b32.xlu0 %v96, 118
  %v98 = vpop.permute.xlu0 %97
  %vm100 = vcmask 1044400
  %101 = vst.msk [vmem:[#allocation2 + $0x18] sm:$0xf] %vm100, %v98
  %v102 = vld [vmem:[%s0] sm:$0xff]
  %v104 = vunpack.c.l.b16 %v102
  %v105 = vunpack.c.h.b16 %v102
  %v106 = vpack.c.b16 %v104, %v104
  %v107 = vpack.c.b16 %v105, %v105
  %108 = vrot.lane.b32.xlu0 %v106, 117
  %v109 = vpop.permute.xlu0 %108
  %110 = vrot.lane.b32.xlu0 %v107, 117
  %v111 = vpop.permute.xlu0 %110
  %vm112 = vcmask 957440
  %v113 = vsel %vm112, %v109, %v111
  %116 = vst [vmem:[#allocation2 + $0x10] sm:$0xf0] %v113
  %vm117 = vcmask 957444
  %118 = vst.msk [vmem:[#allocation2 + $0x18] sm:$0xf0] %vm117, %v111
  %v119 = vld [vmem:[%s36] sm:$0xf]
  %v121 = vunpack.c.l.b16 %v119
  %v122 = vpack.c.b16 %v121, %v121
  %123 = vrot.lane.b32.xlu0 %v122, 117
  %v124 = vpop.permute.xlu0 %123
  %vm126 = vcmask 1048492
  %127 = vst.msk [vmem:[#allocation2 + $0x18] sm:$0xf0] %vm126, %v124
  %v128 = vld [vmem:[%s2] sm:$0xf]
  %v129 = vld [vmem:[%s2 + $0x4] sm:$0xf]
  %v130 = vld [vmem:[%s2 + $0x8] sm:$0xf]
  %v131 = vld [vmem:[%s2 + $0xc] sm:$0xf]
  %v132 = vld [vmem:[%s3] sm:$0xff]
  %v133 = vld [vmem:[%s3 + $0x8] sm:$0xff]
  %v134 = vld [vmem:[%s3 + $0x10] sm:$0xff]
  %v135 = vld [vmem:[%s3 + $0x18] sm:$0xff]
  %v136 = vld [vmem:[#allocation2] sm:$0xff]
  %v137 = vld [vmem:[#allocation2 + $0x8] sm:$0xff]
  %v138 = vld [vmem:[#allocation2 + $0x10] sm:$0xff]
  %v139 = vld [vmem:[#allocation2 + $0x18] sm:$0xff]
  %141 = vset.pattern.permute.xlu0 0
  %142 = vperm.xlu0 %141, %v132
  %v143 = vpop.permute.xlu0 %142
  %146 = vset.pattern.permute.xlu0 0
  %147 = vperm.xlu0 %146, %v133
  %v148 = vpop.permute.xlu0 %147
  %151 = vset.pattern.permute.xlu0 0
  %152 = vperm.xlu0 %151, %v134
  %v153 = vpop.permute.xlu0 %152
  %156 = vset.pattern.permute.xlu0 0
  %157 = vperm.xlu0 %156, %v135
  %v158 = vpop.permute.xlu0 %157
  %v164 = vunpack.c.l.b16 %v128
  %v165 = vunpack.c.l.b16 %v129
  %v166 = vunpack.c.l.b16 %v130
  %v167 = vunpack.c.l.b16 %v131
  %v168 = vpack.c.b16 %v165, %v164
  %v169 = vpack.c.b16 %v167, %v166
  %vm170 = vcmask 261120
  %v172 = vsel %vm170, %v168, 0
  %v175 = vsel %vm170, %v169, 0
  %177 = vmatprep.subr.bf16.mxu0 %v137
  %178 = vmatpush1.bf16.msra.mxu0 %v136
  %179 = vmatprep.subr.bf16.mxu0 %v139
  %180 = vmatpush1.bf16.msra.mxu0 %v138
  %181 = vmatprep.subr.bf16.mxu0 0
  %182 = vmatpush1.bf16.msra.mxu0 0
  %183 = vmatprep.subr.bf16.mxu0 0
  %184 = vmatpush1.bf16.msra.mxu0 0
  %185 = vmatprep.subr.bf16.mxu0 0
  %186 = vmatpush1.bf16.msra.mxu0 0
  %187 = vmatprep.subr.bf16.mxu0 0
  %188 = vmatpush1.bf16.msra.mxu0 0
  %189 = vmatprep.subr.bf16.mxu0 0
  %190 = vmatpush1.bf16.msra.mxu0 0
  %191 = vmatprep.subr.bf16.mxu0 0
  %192 = vmatpush1.bf16.msra.mxu0 0
  %193 = vmatprep.subr.bf16.mxu0 0
  %194 = vmatpush1.bf16.msra.mxu0 0
  %195 = vmatprep.subr.bf16.mxu0 0
  %196 = vmatpush1.bf16.msra.mxu0 0
  %197 = vmatprep.subr.bf16.mxu0 0
  %198 = vmatpush1.bf16.msra.mxu0 0
  %199 = vmatprep.subr.bf16.mxu0 0
  %200 = vmatpush1.bf16.msra.mxu0 0
  %201 = vmatprep.subr.bf16.mxu0 0
  %202 = vmatpush1.bf16.msra.mxu0 0
  %203 = vmatprep.subr.bf16.mxu0 0
  %204 = vmatpush1.bf16.msra.mxu0 0
  %205 = vmatprep.subr.bf16.mxu0 0
  %206 = vmatpush1.bf16.msra.mxu0 0
  %207 = vmatprep.subr.bf16.mxu0 0
  %208 = vmatpush1.bf16.msra.mxu0 0
  %209 = vmatprep.mubr.bf16.mxu0 0
  %210 = vmatmul.mubr.bf16.gmra.mrb[0].mxu0 %v172
  %v211 = vpop.f32.mrb[0].mxu0
  %v212 = vadd.f32 %v143, %v211
  %v213 = vpop.f32.mrb[0].mxu0
  %v214 = vadd.f32 %v143, %v213
  %v215 = vpop.f32.mrb[0].mxu0
  %v216 = vadd.f32 %v148, %v215
  %v217 = vpop.f32.mrb[0].mxu0
  %v218 = vadd.f32 %v148, %v217
  %219 = vmatprep.mubr.bf16.mxu0 0
  %220 = vmatmul.mubr.bf16.gmra.mrb[0].mxu0 %v175
  %v221 = vpop.f32.mrb[0].mxu0
  %v222 = vadd.f32 %v153, %v221
  %v223 = vpop.f32.mrb[0].mxu0
  %v224 = vadd.f32 %v153, %v223
  %v225 = vpop.f32.mrb[0].mxu0
  %v226 = vadd.f32 %v158, %v225
  %v227 = vpop.f32.mrb[0].mxu0
  %v228 = vadd.f32 %v158, %v227
  %229 = vdwg.mxu0
  %v230 = vmax.f32 %v212, 0.0
  %v231 = vmax.f32 %v214, 0.0
  %v232 = vmax.f32 %v216, 0.0
  %v233 = vmax.f32 %v218, 0.0
  %v234 = vmax.f32 %v222, 0.0
  %v235 = vmax.f32 %v224, 0.0
  %v236 = vmax.f32 %v226, 0.0
  %v237 = vmax.f32 %v228, 0.0
  %v238 = vpack.c.bf16 %v232, %v230
  %v239 = vpack.c.bf16 %v233, %v231
  %v240 = vpack.c.bf16 %v236, %v234
  %v241 = vpack.c.bf16 %v237, %v235
  %v246 = vunpack.c.l.b16 %v238
  %v247 = vunpack.c.l.b16 %v239
  %v248 = vunpack.c.h.b16 %v238
  %v249 = vunpack.c.h.b16 %v239
  %v250 = vunpack.c.l.b16 %v240
  %v251 = vunpack.c.l.b16 %v241
  %v252 = vunpack.c.h.b16 %v240
  %v253 = vunpack.c.h.b16 %v241
  %v254 = vpack.c.b16 %v247, %v246
  %v255 = vpack.c.b16 %v249, %v248
  %v256 = vpack.c.b16 %v251, %v250
  %v257 = vpack.c.b16 %v253, %v252
  %262 = vst [vmem:[%s4] sm:$0xff] %v254
  %263 = vst [vmem:[%s4 + $0x8] sm:$0xff] %v255
  %264 = vst [vmem:[%s4 + $0x10] sm:$0xff] %v256
  %265 = vst [vmem:[%s4 + $0x18] sm:$0xff] %v257
  // Predicated region
  $region18: #{stdf_forward.13} parent=0 // pred_check
    _
  $region19: #{stdf_forward.13} parent=0 // pred_check_branch
    %267 = sbr.rel (0) target = $region21
  $region20: #{stdf_forward.13} parent=0 // pred_region
    _
  $region21: #{stdf_forward.13} parent=0 // pred_fallthru
    _
  // Predicated region
  $region22: #{stdf_forward.13} parent=0 // pred_check
    _
  $region23: #{stdf_forward.13} parent=0 // pred_check_branch
    %269 = sbr.rel (0) target = $region25
  $region24: #{stdf_forward.13} parent=0 // pred_region
    _
  $region25: #{stdf_forward.13} parent=0 // pred_fallthru
    _

// kernel: stdf_forward.14
$region0: #{stdf_forward.14}
  #allocation0 [shape = 'u32[]', space=smem, size = 0x4, offset = 0x4, fixed_abs, tag = 'smem constant byte address 0x4 - core index']
  #allocation1 [shape = 'u32[144,128]{1,0:T(1,128)}', space=vmem, size = 0x12000, scoped, tag = 'internal scratch']
  #allocation2 [shape = 'bf16[72,512]{1,0:T(8,128)(2,1)}', space=vmem, size = 0x12000, scoped, tag = 'scratch operand']
  %s0 = inlined_call_operand.vmem [shape: bf16[8,1152], index: 0, kind: input, shape index: {}, may-alias: {0,1}]
  %s1 = inlined_call_operand.vmem [shape: bf16[8,1152], index: 1, kind: input, shape index: {}, may-alias: {0,1}]
  %s2 = inlined_call_operand.vmem [shape: bf16[112,72], index: 2, kind: input, shape index: {}]
  %s3 = inlined_call_operand.vmem [shape: f32[112,1], index: 3, kind: input, shape index: {}]
  %s4 = inlined_call_operand.vmem [shape: f32[112,1024], index: 4, kind: output, shape index: {}]
  %s5 = sld [smem:[#allocation0]]
  $region68: #{stdf_forward.14} parent=0
    _
  %s7 = ssub.s32 1, %s5
  %s8 = scalar_select 0, %s7, %s5
  $region1: #{stdf_forward.14} parent=0
    #allocation3 [shape = 'u8[458752]{0}', space=vmem, size = 0x70000, scoped, tag = 'output window, operand 0']
    loop: start=0, step=1, limit=4
    $region2: #{stdf_forward.14} parent=1 // loop_pre_header
      _
    $region3: #{stdf_forward.14} parent=1 // loop_header
      %s10 = sphi 0, %s14
      %p11 = scmp.ge.s32.totalorder %s10, 4
      %s20 = sphi 0, %s22
      %s23 = sphi 0, %s20
      %s24 = sphi 0, %s23
      %s40 = sphi 0, %s24
      %s50 = sphi 0, %s52
      %s53 = sphi 0, %s50
      %s54 = sphi 0, %s53
      %s70 = sphi 0, %s54
      %s74 = sphi 0, %s74
      %s76 = sphi 0, %s74
      %s77 = sphi 0, %s76
      %s91 = sphi 0, %s77
      %s95 = sphi 0, %s95
      %s97 = sphi 0, %s95
      %s98 = sphi 0, %s97
      %s112 = sphi 0, %s98
      %s118 = sphi 0, %s120
      %s121 = sphi 0, %s118
      %s122 = sphi 0, %s121
      %s138 = sphi 0, %s122
    $region4: #{stdf_forward.14} parent=1 // loop_header_branch
      %13 = sbr.rel (%p11) target = $region8
    $region5: #{stdf_forward.14} parent=1 // loop_body
      %s15 = ssub.s32 %s10, 1
      %s16 = ssub.s32 %s10, 2
      %s17 = sadd.s32 %s10, 1
      %s18 = ssub.s32 %s10, %s17
      %p19 = scmp.eq.s32.totalorder %s18, 0
      %s21 = sadd.s32 %s20, 1
      %s22 = scalar_select %p19, %s20, %s21
      %p25 = pneg %p19
      %p26 = scmp.eq.s32.totalorder %s10, 1
      %p27 = por %p25, %p26
      %p28 = scmp.ne.s32.totalorder %s20, %s23
      %p29 = scmp.eq.s32.totalorder %s10, 0
      %p30 = por %p28, %p29
      %p31 = scmp.ne.s32.totalorder %s20, %s23
      %p32 = scmp.eq.s32.totalorder %s15, 1
      %p33 = por %p31, %p32
      %p34 = scmp.ne.s32.totalorder %s23, %s24
      %p35 = scmp.eq.s32.totalorder %s15, 0
      %p36 = por %p34, %p35
      %p37 = scmp.ne.s32.totalorder %s23, %s24
      %p38 = scmp.eq.s32.totalorder %s16, 1
      %p39 = por %p37, %p38
      %p41 = scmp.ne.s32.totalorder %s24, %s40
      %p42 = scmp.eq.s32.totalorder %s16, 0
      %p43 = por %p41, %p42
      %s44 = sadd.s32 %s10, 1
      %s45 = smul.u32 %s44, 4
      %s46 = sadd.s32 %s17, 1
      %s47 = smul.u32 %s46, 4
      %s48 = ssub.s32 %s45, %s47
      %p49 = scmp.eq.s32.totalorder %s48, 0
      %s51 = sadd.s32 %s50, 1
      %s52 = scalar_select %p49, %s50, %s51
      %p55 = pneg %p49
      %p56 = scmp.eq.s32.totalorder %s10, 1
      %p57 = por %p55, %p56
      %p58 = scmp.ne.s32.totalorder %s50, %s53
      %p59 = scmp.eq.s32.totalorder %s10, 0
      %p60 = por %p58, %p59
      %p61 = scmp.ne.s32.totalorder %s50, %s53
      %p62 = scmp.eq.s32.totalorder %s15, 1
      %p63 = por %p61, %p62
      %p64 = scmp.ne.s32.totalorder %s53, %s54
      %p65 = scmp.eq.s32.totalorder %s15, 0
      %p66 = por %p64, %p65
      %p67 = scmp.ne.s32.totalorder %s53, %s54
      %p68 = scmp.eq.s32.totalorder %s16, 1
      %p69 = por %p67, %p68
      %p71 = scmp.ne.s32.totalorder %s54, %s70
      %p72 = scmp.eq.s32.totalorder %s16, 0
      %p73 = por %p71, %p72
      %s75 = sadd.s32 %s74, 1
      %p78 = scmp.eq.s32.totalorder %s10, 1
      %p79 = scmp.ne.s32.totalorder %s74, %s76
      %p80 = scmp.eq.s32.totalorder %s10, 0
      %p81 = por %p79, %p80
      %p82 = scmp.ne.s32.totalorder %s74, %s76
      %p83 = scmp.eq.s32.totalorder %s15, 1
      %p84 = por %p82, %p83
      %p85 = scmp.ne.s32.totalorder %s76, %s77
      %p86 = scmp.eq.s32.totalorder %s15, 0
      %p87 = por %p85, %p86
      %p88 = scmp.ne.s32.totalorder %s76, %s77
      %p89 = scmp.eq.s32.totalorder %s16, 1
      %p90 = por %p88, %p89
      %p92 = scmp.ne.s32.totalorder %s77, %s91
      %p93 = scmp.eq.s32.totalorder %s16, 0
      %p94 = por %p92, %p93
      %s96 = sadd.s32 %s95, 1
      %p99 = scmp.eq.s32.totalorder %s10, 1
      %p100 = scmp.ne.s32.totalorder %s95, %s97
      %p101 = scmp.eq.s32.totalorder %s10, 0
      %p102 = por %p100, %p101
      %p103 = scmp.ne.s32.totalorder %s95, %s97
      %p104 = scmp.eq.s32.totalorder %s15, 1
      %p105 = por %p103, %p104
      %p106 = scmp.ne.s32.totalorder %s97, %s98
      %p107 = scmp.eq.s32.totalorder %s15, 0
      %p108 = por %p106, %p107
      %p109 = scmp.ne.s32.totalorder %s97, %s98
      %p110 = scmp.eq.s32.totalorder %s16, 1
      %p111 = por %p109, %p110
      %p113 = scmp.ne.s32.totalorder %s98, %s112
      %p114 = scmp.eq.s32.totalorder %s16, 0
      %p115 = por %p113, %p114
      %s116 = ssub.s32 %s10, %s17
      %p117 = scmp.eq.s32.totalorder %s116, 0
      %s119 = sadd.s32 %s118, 1
      %s120 = scalar_select %p117, %s118, %s119
      %p123 = pneg %p117
      %p124 = scmp.eq.s32.totalorder %s10, 1
      %p125 = por %p123, %p124
      %p126 = scmp.ne.s32.totalorder %s118, %s121
      %p127 = scmp.eq.s32.totalorder %s10, 0
      %p128 = por %p126, %p127
      %p129 = scmp.ne.s32.totalorder %s118, %s121
      %p130 = scmp.eq.s32.totalorder %s15, 1
      %p131 = por %p129, %p130
      %p132 = scmp.ne.s32.totalorder %s121, %s122
      %p133 = scmp.eq.s32.totalorder %s15, 0
      %p134 = por %p132, %p133
      %p135 = scmp.ne.s32.totalorder %s121, %s122
      %p136 = scmp.eq.s32.totalorder %s16, 1
      %p137 = por %p135, %p136
      %p139 = scmp.ne.s32.totalorder %s122, %s138
      %p140 = scmp.eq.s32.totalorder %s16, 0
      %p141 = por %p139, %p140
      %p142 = scmp.le.s32.totalorder 1, %s10
      %p143 = scmp.lt.s32.totalorder %s10, 3
      %p144 = pnand %p142, %p143
      %p145 = pneg %p144
      // Predicated region
      $region9: #{stdf_forward.14} parent=5 // pred_check
        _
      $region10: #{stdf_forward.14} parent=5 // pred_check_branch
        %147 = sbr.rel (%p144) target = $region12
      $region11: #{stdf_forward.14} parent=5 // pred_region
        %s148 = ssub.s32 %s10, 1
        // Predicated region
        $region13: #{stdf_forward.14} parent=11 // pred_check
          %p149 = pneg %p87
        $region14: #{stdf_forward.14} parent=11 // pred_check_branch
          %151 = sbr.rel (%p149) target = $region16
        $region15: #{stdf_forward.14} parent=11 // pred_region
          _
        $region16: #{stdf_forward.14} parent=11 // pred_fallthru
          _
        // Predicated region
        $region17: #{stdf_forward.14} parent=11 // pred_check
          %p152 = pneg %p108
        $region18: #{stdf_forward.14} parent=11 // pred_check_branch
          %154 = sbr.rel (%p152) target = $region20
        $region19: #{stdf_forward.14} parent=11 // pred_region
          _
        $region20: #{stdf_forward.14} parent=11 // pred_fallthru
          _
      $region12: #{stdf_forward.14} parent=5 // pred_fallthru
        _
      %p155 = scmp.lt.s32.totalorder %s10, 2
      // Predicated region
      $region21: #{stdf_forward.14} parent=5 // pred_check
        %p156 = pneg %p155
      $region22: #{stdf_forward.14} parent=5 // pred_check_branch
        %158 = sbr.rel (%p156) target = $region24
      $region23: #{stdf_forward.14} parent=5 // pred_region
        // Predicated region
        $region25: #{stdf_forward.14} parent=23 // pred_check
          %p159 = pneg %p30
        $region26: #{stdf_forward.14} parent=23 // pred_check_branch
          %161 = sbr.rel (%p159) target = $region28
        $region27: #{stdf_forward.14} parent=23 // pred_region
          %s162 = smul.u32 4, %s10
          %s163 = ssub.s32 9, %s162
          %p164 = scmp.lt.s32.totalorder %s163, 4
          %s165 = scalar_select %p164, %s163, 4
          %s166 = smul.u32 64, %s165
          %p167 = scmp.lt.s32.totalorder %s162, 8
          %s168 = scalar_select %p167, %s162, 8
          %s169 = smul.addr %s168, 4
          %s170 = scalar_lea.vmem %s0, %s169
          %s171 = smul.u32 4, %s10
          %s172 = ssub.s32 9, %s171
          %p173 = scmp.lt.s32.totalorder %s172, 4
          %s174 = scalar_select %p173, %s172, 4
          %s175 = smul.u32 64, %s174
        $region28: #{stdf_forward.14} parent=23 // pred_fallthru
          _
        // Predicated region
        $region29: #{stdf_forward.14} parent=23 // pred_check
          %p176 = pneg %p60
        $region30: #{stdf_forward.14} parent=23 // pred_check_branch
          %178 = sbr.rel (%p176) target = $region32
        $region31: #{stdf_forward.14} parent=23 // pred_region
          %s179 = sadd.s32 %s10, 1
          %s180 = smul.u32 %s179, 4
          %p181 = scmp.lt.s32.totalorder %s180, 8
          %s182 = scalar_select %p181, %s180, 8
          %s183 = smul.addr %s182, 4
          %s184 = scalar_lea.vmem %s1, %s183
          %s185 = sadd.s32 %s10, 1
          %s186 = smul.u32 %s185, 4
        $region32: #{stdf_forward.14} parent=23 // pred_fallthru
          _
      $region24: #{stdf_forward.14} parent=5 // pred_fallthru
        _
      %p187 = scmp.le.s32.totalorder 1, %s10
      %p188 = scmp.lt.s32.totalorder %s10, 3
      %p189 = pnand %p187, %p188
      %p190 = pneg %p189
      // Predicated region
      $region33: #{stdf_forward.14} parent=5 // pred_check
        _
      $region34: #{stdf_forward.14} parent=5 // pred_check_branch
        %192 = sbr.rel (%p189) target = $region36
      $region35: #{stdf_forward.14} parent=5 // pred_region
        %s193 = ssub.s32 %s10, 1
        %s194 = smul.u32 4, %s15
        %s195 = ssub.s32 9, %s194
        %p196 = scmp.lt.s32.totalorder %s195, 4
        %s197 = scalar_select %p196, %s195, 4
        %s198 = smul.u32 64, %s197
        %p199 = scmp.lt.s32.totalorder %s194, 8
        %s200 = scalar_select %p199, %s194, 8
        %s201 = smul.addr %s200, 4
        %s202 = scalar_lea.vmem %s0, %s201
        %p203 = pneg %p36
        %p204 = pneg %p33
        %s205 = sadd.s32 %s15, 1
        %s206 = smul.u32 %s205, 4
        %p207 = scmp.lt.s32.totalorder %s206, 8
        %s208 = scalar_select %p207, %s206, 8
        %s209 = smul.addr %s208, 4
        %s210 = scalar_lea.vmem %s1, %s209
        %p211 = pneg %p66
        %p212 = pneg %p63
        %p213 = pneg %p87
        %p214 = pneg %p84
        %p215 = pneg %p108
        %p216 = pneg %p105
        %p217 = pneg %p134
        %p218 = pneg %p131
        %s219 = sand.u32 %s121, 1
        %s220 = sand.u32 %s121, 1
        %s221 = smul.addr %s220, 448
        %s222 = scalar_lea.vmem [#allocation3], %s221
        %s223 = smul.u32 4, %s15
        %s224 = ssub.s32 9, %s223
        %p225 = scmp.lt.s32.totalorder %s224, 4
        %s226 = scalar_select %p225, %s224, 4
        %s227 = smul.u32 64, %s226
        %p228 = scmp.lt.s32.totalorder %s223, 8
        %s229 = scalar_select %p228, %s223, 8
        %s230 = smul.addr %s229, 4
        %s231 = scalar_lea.vmem %s0, %s230
        %s232 = smul.u32 4, %s15
        %s233 = ssub.s32 9, %s232
        %p234 = scmp.lt.s32.totalorder %s233, 4
        %s235 = scalar_select %p234, %s233, 4
        %s236 = smul.u32 64, %s235
        %s237 = sadd.s32 %s15, 1
        %s238 = smul.u32 %s237, 4
        %p239 = scmp.lt.s32.totalorder %s238, 8
        %s240 = scalar_select %p239, %s238, 8
        %s241 = smul.addr %s240, 4
        %s242 = scalar_lea.vmem %s1, %s241
        %s243 = sadd.s32 %s15, 1
        %s244 = smul.u32 %s243, 4
        %s245 = smul.u32 4, %s15
        %v247 = vld [vmem:[%s231] sm:$0xff]
        %v248 = vld [vmem:[%s231 + $0x8] sm:$0xff]
        %249 = vst [vmem:[#allocation2] sm:$0xff] %v247
        %250 = vst [vmem:[#allocation2 + $0x8] sm:$0xff] %v248
        %v251 = vld [vmem:[%s231] sm:$0xff]
        %v252 = vld [vmem:[%s231 + $0x8] sm:$0xff]
        %255 = vrot.lane.b32.xlu0 %v251, 127
        %v256 = vpop.permute.xlu0 %255
        %257 = vrot.lane.b32.xlu0 %v252, 127
        %v258 = vpop.permute.xlu0 %257
        %v259 = vrot.slane %v256, 4
        %v260 = vrot.slane %v258, 4
        %vm261 = vcmask 1043456
        %v262 = vsel %vm261, %v259, %v260
        %vm263 = vcmask 1039360
        %v264 = vsel %vm263, %v256, %v262
        %v265 = vsel %vm263, %v258, %v260
        %268 = vst [vmem:[#allocation2 + $0x10] sm:$0xff] %v264
        %vm269 = vcmask 1043456
        %vm270 = vcmask 1039364
        %vm271 = vmor %vm270, %vm269
        %272 = vst.msk [vmem:[#allocation2 + $0x18] sm:$0xff] %vm271, %v265
        %v273 = vld [vmem:[%s242] sm:$0xf]
        %275 = vrot.lane.b32.xlu0 %v273, 127
        %v276 = vpop.permute.xlu0 %275
        %vm278 = vcmask 1044472
        %279 = vst.msk [vmem:[#allocation2 + $0x1c] sm:$0xf] %vm278, %v276
        %v280 = vld [vmem:[%s231] sm:$0xff]
        %v281 = vld [vmem:[%s231 + $0x8] sm:$0xff]
        %284 = vrot.lane.b32.xlu0 %v280, 126
        %v285 = vpop.permute.xlu0 %284
        %286 = vrot.lane.b32.xlu0 %v281, 126
        %v287 = vpop.permute.xlu0 %286
        %v288 = vrot.slane %v285, 4
        %v289 = vrot.slane %v287, 4
        %v290 = vsel %vm261, %v288, %v289
        %vm291 = vcmask 1031168
        %v292 = vsel %vm291, %v285, %v290
        %v293 = vsel %vm291, %v287, %v289
        %296 = vst [vmem:[#allocation2 + $0x20] sm:$0xff] %v292
        %vm297 = vcmask 1031172
        %vm298 = vmor %vm297, %vm269
        %299 = vst.msk [vmem:[#allocation2 + $0x28] sm:$0xff] %vm298, %v293
        %v300 = vld [vmem:[%s242] sm:$0xf]
        %302 = vrot.lane.b32.xlu0 %v300, 126
        %v303 = vpop.permute.xlu0 %302
        %vm305 = vcmask 1044464
        %306 = vst.msk [vmem:[#allocation2 + $0x2c] sm:$0xf] %vm305, %v303
        %v307 = vld [vmem:[%s231] sm:$0xff]
        %v308 = vld [vmem:[%s231 + $0x8] sm:$0xff]
        %311 = vrot.lane.b32.xlu0 %v307, 110
        %v312 = vpop.permute.xlu0 %311
        %313 = vrot.lane.b32.xlu0 %v308, 110
        %v314 = vpop.permute.xlu0 %313
        %v315 = vrot.slane %v312, 4
        %v316 = vrot.slane %v314, 4
        %v317 = vsel %vm261, %v315, %v316
        %vm318 = vcmask 900096
        %v319 = vsel %vm318, %v312, %v317
        %v320 = vsel %vm318, %v314, %v316
        %323 = vst [vmem:[#allocation2 + $0x30] sm:$0xff] %v319
        %vm324 = vcmask 900100
        %vm325 = vmor %vm324, %vm269
        %326 = vst.msk [vmem:[#allocation2 + $0x38] sm:$0xff] %vm325, %v320
        %v327 = vld [vmem:[%s242] sm:$0xf]
        %329 = vrot.lane.b32.xlu0 %v327, 110
        %v330 = vpop.permute.xlu0 %329
        %vm332 = vcmask 1044336
        %333 = vst.msk [vmem:[#allocation2 + $0x3c] sm:$0xf] %vm332, %v330
        %v334 = vld [vmem:[%s231] sm:$0xff]
        %v335 = vld [vmem:[%s231 + $0x8] sm:$0xff]
        %338 = vrot.lane.b32.xlu0 %v334, 109
        %v339 = vpop.permute.xlu0 %338
        %340 = vrot.lane.b32.xlu0 %v335, 109
        %v341 = vpop.permute.xlu0 %340
        %v342 = vrot.slane %v339, 4
        %v343 = vrot.slane %v341, 4
        %v344 = vsel %vm261, %v342, %v343
        %vm345 = vcmask 891904
        %v346 = vsel %vm345, %v339, %v344
        %v347 = vsel %vm345, %v341, %v343
        %350 = vst [vmem:[#allocation2 + $0x40] sm:$0xff] %v346
        %vm351 = vcmask 891908
        %vm352 = vmor %vm351, %vm269
        %353 = vst.msk [vmem:[#allocation2 + $0x48] sm:$0xff] %vm352, %v347
        %v354 = vld [vmem:[%s242] sm:$0xf]
        %356 = vrot.lane.b32.xlu0 %v354, 109
        %v357 = vpop.permute.xlu0 %356
        %vm359 = vcmask 1044328
        %360 = vst.msk [vmem:[#allocation2 + $0x4c] sm:$0xf] %vm359, %v357
        %v361 = vld [vmem:[%s231] sm:$0xff]
        %v362 = vld [vmem:[%s231 + $0x8] sm:$0xff]
        %365 = vrot.lane.b32.xlu0 %v361, 108
        %v366 = vpop.permute.xlu0 %365
        %367 = vrot.lane.b32.xlu0 %v362, 108
        %v368 = vpop.permute.xlu0 %367
        %v369 = vrot.slane %v366, 4
        %v370 = vrot.slane %v368, 4
        %v371 = vsel %vm261, %v369, %v370
        %vm372 = vcmask 883712
        %v373 = vsel %vm372, %v366, %v371
        %v374 = vsel %vm372, %v368, %v370
        %377 = vst [vmem:[#allocation2 + $0x50] sm:$0xff] %v373
        %vm378 = vcmask 883716
        %vm379 = vmor %vm378, %vm269
        %380 = vst.msk [vmem:[#allocation2 + $0x58] sm:$0xff] %vm379, %v374
        %v381 = vld [vmem:[%s242] sm:$0xf]
        %383 = vrot.lane.b32.xlu0 %v381, 108
        %v384 = vpop.permute.xlu0 %383
        %vm386 = vcmask 1044320
        %387 = vst.msk [vmem:[#allocation2 + $0x5c] sm:$0xf] %vm386, %v384
        %v388 = vld [vmem:[%s231] sm:$0xff]
        %v389 = vld [vmem:[%s231 + $0x8] sm:$0xff]
        %392 = vrot.lane.b32.xlu0 %v388, 92
        %v393 = vpop.permute.xlu0 %392
        %394 = vrot.lane.b32.xlu0 %v389, 92
        %v395 = vpop.permute.xlu0 %394
        %v396 = vrot.slane %v393, 4
        %v397 = vrot.slane %v395, 4
        %v398 = vsel %vm261, %v396, %v397
        %vm399 = vcmask 752640
        %v400 = vsel %vm399, %v393, %v398
        %v401 = vsel %vm399, %v395, %v397
        %404 = vst [vmem:[#allocation2 + $0x60] sm:$0xff] %v400
        %vm405 = vcmask 752644
        %vm406 = vmor %vm405, %vm269
        %407 = vst.msk [vmem:[#allocation2 + $0x68] sm:$0xff] %vm406, %v401
        %v408 = vld [vmem:[%s242] sm:$0xf]
        %410 = vrot.lane.b32.xlu0 %v408, 92
        %v411 = vpop.permute.xlu0 %410
        %vm413 = vcmask 1044192
        %414 = vst.msk [vmem:[#allocation2 + $0x6c] sm:$0xf] %vm413, %v411
        %v415 = vld [vmem:[%s231] sm:$0xff]
        %v416 = vld [vmem:[%s231 + $0x8] sm:$0xff]
        %419 = vrot.lane.b32.xlu0 %v415, 91
        %v420 = vpop.permute.xlu0 %419
        %421 = vrot.lane.b32.xlu0 %v416, 91
        %v422 = vpop.permute.xlu0 %421
        %v423 = vrot.slane %v420, 4
        %v424 = vrot.slane %v422, 4
        %v425 = vsel %vm261, %v423, %v424
        %vm426 = vcmask 744448
        %v427 = vsel %vm426, %v420, %v425
        %v428 = vsel %vm426, %v422, %v424
        %431 = vst [vmem:[#allocation2 + $0x70] sm:$0xff] %v427
        %vm432 = vcmask 744452
        %vm433 = vmor %vm432, %vm269
        %434 = vst.msk [vmem:[#allocation2 + $0x78] sm:$0xff] %vm433, %v428
        %v435 = vld [vmem:[%s242] sm:$0xf]
        %437 = vrot.lane.b32.xlu0 %v435, 91
        %v438 = vpop.permute.xlu0 %437
        %vm440 = vcmask 1044184
        %441 = vst.msk [vmem:[#allocation2 + $0x7c] sm:$0xf] %vm440, %v438
        %v442 = vld [vmem:[%s231] sm:$0xff]
        %v443 = vld [vmem:[%s231 + $0x8] sm:$0xff]
        %446 = vrot.lane.b32.xlu0 %v442, 90
        %v447 = vpop.permute.xlu0 %446
        %448 = vrot.lane.b32.xlu0 %v443, 90
        %v449 = vpop.permute.xlu0 %448
        %v450 = vrot.slane %v447, 4
        %v451 = vrot.slane %v449, 4
        %v452 = vsel %vm261, %v450, %v451
        %vm453 = vcmask 736256
        %v454 = vsel %vm453, %v447, %v452
        %v455 = vsel %vm453, %v449, %v451
        %458 = vst [vmem:[#allocation2 + $0x80] sm:$0xff] %v454
        %vm459 = vcmask 736260
        %vm460 = vmor %vm459, %vm269
        %461 = vst.msk [vmem:[#allocation2 + $0x88] sm:$0xff] %vm460, %v455
        %v462 = vld [vmem:[%s242] sm:$0xf]
        %464 = vrot.lane.b32.xlu0 %v462, 90
        %v465 = vpop.permute.xlu0 %464
        %vm467 = vcmask 1044176
        %468 = vst.msk [vmem:[#allocation2 + $0x8c] sm:$0xf] %vm467, %v465
        %v469 = vld [vmem:[%s2] sm:$0xf]
        %v470 = vld [vmem:[%s2 + $0x4] sm:$0xf]
        %v471 = vld [vmem:[%s2 + $0x8] sm:$0xf]
        %v472 = vld [vmem:[%s2 + $0xc] sm:$0xf]
        %v473 = vld [vmem:[%s2 + $0x10] sm:$0xf]
        %v474 = vld [vmem:[%s2 + $0x14] sm:$0xf]
        %v475 = vld [vmem:[%s2 + $0x18] sm:$0xf]
        %v476 = vld [vmem:[%s2 + $0x1c] sm:$0xf]
        %v477 = vld [vmem:[%s2 + $0x20] sm:$0xf]
        %v478 = vld [vmem:[%s2 + $0x24] sm:$0xf]
        %v479 = vld [vmem:[%s2 + $0x28] sm:$0xf]
        %v480 = vld [vmem:[%s2 + $0x2c] sm:$0xf]
        %v481 = vld [vmem:[%s2 + $0x30] sm:$0xf]
        %v482 = vld [vmem:[%s2 + $0x34] sm:$0xf]
        %v483 = vld [vmem:[%s3] sm:$0xff]
        %v484 = vld [vmem:[%s3 + $0x8] sm:$0xff]
        %v485 = vld [vmem:[%s3 + $0x10] sm:$0xff]
        %v486 = vld [vmem:[%s3 + $0x18] sm:$0xff]
        %v487 = vld [vmem:[%s3 + $0x20] sm:$0xff]
        %v488 = vld [vmem:[%s3 + $0x28] sm:$0xff]
        %v489 = vld [vmem:[%s3 + $0x30] sm:$0xff]
        %v490 = vld [vmem:[%s3 + $0x38] sm:$0xff]
        %v491 = vld [vmem:[%s3 + $0x40] sm:$0xff]
        %v492 = vld [vmem:[%s3 + $0x48] sm:$0xff]
        %v493 = vld [vmem:[%s3 + $0x50] sm:$0xff]
        %v494 = vld [vmem:[%s3 + $0x58] sm:$0xff]
        %v495 = vld [vmem:[%s3 + $0x60] sm:$0xff]
        %v496 = vld [vmem:[%s3 + $0x68] sm:$0xff]
        %v497 = vld [vmem:[#allocation2] sm:$0xf]
        %v498 = vld [vmem:[#allocation2 + $0x10] sm:$0xf]
        %v499 = vld [vmem:[#allocation2 + $0x20] sm:$0xf]
        %v500 = vld [vmem:[#allocation2 + $0x30] sm:$0xf]
        %v501 = vld [vmem:[#allocation2 + $0x40] sm:$0xf]
        %v502 = vld [vmem:[#allocation2 + $0x50] sm:$0xf]
        %v503 = vld [vmem:[#allocation2 + $0x60] sm:$0xf]
        %v504 = vld [vmem:[#allocation2 + $0x70] sm:$0xf]
        %v505 = vld [vmem:[#allocation2 + $0x80] sm:$0xf]
        %507 = vset.pattern.permute.xlu0 0
        %508 = vperm.xlu0 %507, %v483
        %v509 = vpop.permute.xlu0 %508
        %512 = vset.pattern.permute.xlu0 0
        %513 = vperm.xlu0 %512, %v484
        %v514 = vpop.permute.xlu0 %513
        %517 = vset.pattern.permute.xlu0 0
        %518 = vperm.xlu0 %517, %v485
        %v519 = vpop.permute.xlu0 %518
        %522 = vset.pattern.permute.xlu0 0
        %523 = vperm.xlu0 %522, %v486
        %v524 = vpop.permute.xlu0 %523
        %527 = vset.pattern.permute.xlu0 0
        %528 = vperm.xlu0 %527, %v487
        %v529 = vpop.permute.xlu0 %528
        %532 = vset.pattern.permute.xlu0 0
        %533 = vperm.xlu0 %532, %v488
        %v534 = vpop.permute.xlu0 %533
        %537 = vset.pattern.permute.xlu0 0
        %538 = vperm.xlu0 %537, %v489
        %v539 = vpop.permute.xlu0 %538
        %542 = vset.pattern.permute.xlu0 0
        %543 = vperm.xlu0 %542, %v490
        %v544 = vpop.permute.xlu0 %543
        %547 = vset.pattern.permute.xlu0 0
        %548 = vperm.xlu0 %547, %v491
        %v549 = vpop.permute.xlu0 %548
        %552 = vset.pattern.permute.xlu0 0
        %553 = vperm.xlu0 %552, %v492
        %v554 = vpop.permute.xlu0 %553
        %557 = vset.pattern.permute.xlu0 0
        %558 = vperm.xlu0 %557, %v493
        %v559 = vpop.permute.xlu0 %558
        %562 = vset.pattern.permute.xlu0 0
        %563 = vperm.xlu0 %562, %v494
        %v564 = vpop.permute.xlu0 %563
        %567 = vset.pattern.permute.xlu0 0
        %568 = vperm.xlu0 %567, %v495
        %v569 = vpop.permute.xlu0 %568
        %572 = vset.pattern.permute.xlu0 0
        %573 = vperm.xlu0 %572, %v496
        %v574 = vpop.permute.xlu0 %573
        %v590 = vunpack.c.l.b16 %v469
        %v591 = vunpack.c.l.b16 %v470
        %v592 = vunpack.c.l.b16 %v471
        %v593 = vunpack.c.l.b16 %v472
        %v594 = vunpack.c.l.b16 %v473
        %v595 = vunpack.c.l.b16 %v474
        %v596 = vunpack.c.l.b16 %v475
        %v597 = vunpack.c.l.b16 %v476
        %v598 = vunpack.c.l.b16 %v477
        %v599 = vunpack.c.l.b16 %v478
        %v600 = vunpack.c.l.b16 %v479
        %v601 = vunpack.c.l.b16 %v480
        %v602 = vunpack.c.l.b16 %v481
        %v603 = vunpack.c.l.b16 %v482
        %v604 = vpack.c.b16 %v591, %v590
        %v605 = vpack.c.b16 %v593, %v592
        %v606 = vpack.c.b16 %v595, %v594
        %v607 = vpack.c.b16 %v597, %v596
        %v608 = vpack.c.b16 %v599, %v598
        %v609 = vpack.c.b16 %v601, %v600
        %v610 = vpack.c.b16 %v603, %v602
        %v620 = vunpack.c.l.b16 %v497
        %v621 = vunpack.c.l.b16 %v498
        %v622 = vunpack.c.l.b16 %v499
        %v623 = vunpack.c.l.b16 %v500
        %v624 = vunpack.c.l.b16 %v501
        %v625 = vunpack.c.l.b16 %v502
        %v626 = vunpack.c.l.b16 %v503
        %v627 = vunpack.c.l.b16 %v504
        %v628 = vunpack.c.l.b16 %v505
        %v629 = vpack.c.b16 %v621, %v620
        %v630 = vpack.c.b16 %v623, %v622
        %v631 = vpack.c.b16 %v625, %v624
        %v632 = vpack.c.b16 %v627, %v626
        %v633 = vpack.c.b16 %v628, %v628
        %vm638 = vcmask 588800
        %v640 = vsel %vm638, %v604, 0
        %v643 = vsel %vm638, %v605, 0
        %v646 = vsel %vm638, %v606, 0
        %v649 = vsel %vm638, %v607, 0
        %v652 = vsel %vm638, %v608, 0
        %v655 = vsel %vm638, %v609, 0
        %v658 = vsel %vm638, %v610, 0
        %v661 = vsel %vm269, %v633, 0
        %663 = vmatprep.subr.bf16.mxu0 0
        %664 = vmatpush1.bf16.msra.mxu0 %v629
        %665 = vmatprep.subr.bf16.mxu0 0
        %666 = vmatpush1.bf16.msra.mxu0 %v630
        %667 = vmatprep.subr.bf16.mxu0 0
        %668 = vmatpush1.bf16.msra.mxu0 %v631
        %669 = vmatprep.subr.bf16.mxu0 0
        %670 = vmatpush1.bf16.msra.mxu0 %v632
        %671 = vmatprep.subr.bf16.mxu0 0
        %672 = vmatpush1.bf16.msra.mxu0 %v661
        %673 = vmatprep.subr.bf16.mxu0 0
        %674 = vmatpush1.bf16.msra.mxu0 0
        %675 = vmatprep.subr.bf16.mxu0 0
        %676 = vmatpush1.bf16.msra.mxu0 0
        %677 = vmatprep.subr.bf16.mxu0 0
        %678 = vmatpush1.bf16.msra.mxu0 0
        %679 = vmatprep.subr.bf16.mxu0 0
        %680 = vmatpush1.bf16.msra.mxu0 0
        %681 = vmatprep.subr.bf16.mxu0 0
        %682 = vmatpush1.bf16.msra.mxu0 0
        %683 = vmatprep.subr.bf16.mxu0 0
        %684 = vmatpush1.bf16.msra.mxu0 0
        %685 = vmatprep.subr.bf16.mxu0 0
        %686 = vmatpush1.bf16.msra.mxu0 0
        %687 = vmatprep.subr.bf16.mxu0 0
        %688 = vmatpush1.bf16.msra.mxu0 0
        %689 = vmatprep.subr.bf16.mxu0 0
        %690 = vmatpush1.bf16.msra.mxu0 0
        %691 = vmatprep.subr.bf16.mxu0 0
        %692 = vmatpush1.bf16.msra.mxu0 0
        %693 = vmatprep.subr.bf16.mxu0 0
        %694 = vmatpush1.bf16.msra.mxu0 0
        %695 = vmatprep.mubr.bf16.mxu0 0
        %696 = vmatmul.mubr.bf16.gmra.mrb[0].mxu0 %v640
        %v697 = vpop.f32.mrb[0].mxu0
        %v698 = vadd.f32 %v509, %v697
        %v699 = vpop.f32.mrb[0].mxu0
        %v700 = vpop.f32.mrb[0].mxu0
        %v701 = vadd.f32 %v514, %v700
        %v702 = vpop.f32.mrb[0].mxu0
        %703 = vmatprep.mubr.bf16.mxu0 0
        %704 = vmatmul.mubr.bf16.gmra.mrb[0].mxu0 %v643
        %v705 = vpop.f32.mrb[0].mxu0
        %v706 = vadd.f32 %v519, %v705
        %v707 = vpop.f32.mrb[0].mxu0
        %v708 = vpop.f32.mrb[0].mxu0
        %v709 = vadd.f32 %v524, %v708
        %v710 = vpop.f32.mrb[0].mxu0
        %711 = vmatprep.mubr.bf16.mxu0 0
        %712 = vmatmul.mubr.bf16.gmra.mrb[0].mxu0 %v646
        %v713 = vpop.f32.mrb[0].mxu0
        %v714 = vadd.f32 %v529, %v713
        %v715 = vpop.f32.mrb[0].mxu0
        %v716 = vpop.f32.mrb[0].mxu0
        %v717 = vadd.f32 %v534, %v716
        %v718 = vpop.f32.mrb[0].mxu0
        %719 = vmatprep.mubr.bf16.mxu0 0
        %720 = vmatmul.mubr.bf16.gmra.mrb[0].mxu0 %v649
        %v721 = vpop.f32.mrb[0].mxu0
        %v722 = vadd.f32 %v539, %v721
        %v723 = vpop.f32.mrb[0].mxu0
        %v724 = vpop.f32.mrb[0].mxu0
        %v725 = vadd.f32 %v544, %v724
        %v726 = vpop.f32.mrb[0].mxu0
        %727 = vmatprep.mubr.bf16.mxu0 0
        %728 = vmatmul.mubr.bf16.gmra.mrb[0].mxu0 %v652
        %v729 = vpop.f32.mrb[0].mxu0
        %v730 = vadd.f32 %v549, %v729
        %v731 = vpop.f32.mrb[0].mxu0
        %v732 = vpop.f32.mrb[0].mxu0
        %v733 = vadd.f32 %v554, %v732
        %v734 = vpop.f32.mrb[0].mxu0
        %735 = vmatprep.mubr.bf16.mxu0 0
        %736 = vmatmul.mubr.bf16.gmra.mrb[0].mxu0 %v655
        %v737 = vpop.f32.mrb[0].mxu0
        %v738 = vadd.f32 %v559, %v737
        %v739 = vpop.f32.mrb[0].mxu0
        %v740 = vpop.f32.mrb[0].mxu0
        %v741 = vadd.f32 %v564, %v740
        %v742 = vpop.f32.mrb[0].mxu0
        %743 = vmatprep.mubr.bf16.mxu0 0
        %744 = vmatmul.mubr.bf16.gmra.mrb[0].mxu0 %v658
        %v745 = vpop.f32.mrb[0].mxu0
        %v746 = vadd.f32 %v569, %v745
        %v747 = vpop.f32.mrb[0].mxu0
        %v748 = vpop.f32.mrb[0].mxu0
        %v749 = vadd.f32 %v574, %v748
        %v750 = vpop.f32.mrb[0].mxu0
        %751 = vdwg.mxu0
        %v752 = vlaneseq
        %v753 = vshrl.u32 %v752, 7
        %v754 = vadd.s32 %v753, 8
        %v755 = vadd.s32 %v753, 16
        %v756 = vadd.s32 %v753, 24
        %v757 = vadd.s32 %v753, 32
        %v758 = vadd.s32 %v753, 40
        %v759 = vadd.s32 %v753, 48
        %v760 = vadd.s32 %v753, 56
        %v761 = vadd.s32 %v753, 64
        %v762 = vadd.s32 %v753, 72
        %v763 = vadd.s32 %v753, 80
        %v764 = vadd.s32 %v753, 88
        %v765 = vadd.s32 %v753, 96
        %v766 = vadd.s32 %v753, 104
        %vm767 = vcmp.ge.s32.totalorder %v753, 72
        %vm768 = vcmp.ge.s32.totalorder %v754, 72
        %vm769 = vcmp.ge.s32.totalorder %v755, 72
        %vm770 = vcmp.ge.s32.totalorder %v756, 72
        %vm771 = vcmp.ge.s32.totalorder %v757, 72
        %vm772 = vcmp.ge.s32.totalorder %v758, 72
        %vm773 = vcmp.ge.s32.totalorder %v759, 72
        %vm774 = vcmp.ge.s32.totalorder %v760, 72
        %vm775 = vcmp.ge.s32.totalorder %v761, 72
        %vm776 = vcmp.ge.s32.totalorder %v762, 72
        %vm777 = vcmp.ge.s32.totalorder %v763, 72
        %vm778 = vcmp.ge.s32.totalorder %v764, 72
        %vm779 = vcmp.ge.s32.totalorder %v765, 72
        %vm780 = vcmp.ge.s32.totalorder %v766, 72
        %v781 = vxor.u32 %v698, 2147483648
        %v782 = vxor.u32 %v701, 2147483648
        %v783 = vxor.u32 %v706, 2147483648
        %v784 = vxor.u32 %v709, 2147483648
        %v785 = vxor.u32 %v714, 2147483648
        %v786 = vxor.u32 %v717, 2147483648
        %v787 = vxor.u32 %v722, 2147483648
        %v788 = vxor.u32 %v725, 2147483648
        %v789 = vxor.u32 %v730, 2147483648
        %v790 = vxor.u32 %v733, 2147483648
        %v791 = vxor.u32 %v738, 2147483648
        %v792 = vxor.u32 %v741, 2147483648
        %v793 = vxor.u32 %v746, 2147483648
        %v794 = vxor.u32 %v749, 2147483648
        %v795 = vmul.f32 %v781, 1.442695
        %v796 = vpow.pop %v795
        %v797 = vmul.f32 %v782, 1.442695
        %v798 = vpow.pop %v797
        %v799 = vmul.f32 %v783, 1.442695
        %v800 = vpow.pop %v799
        %v801 = vmul.f32 %v784, 1.442695
        %v802 = vpow.pop %v801
        %v803 = vmul.f32 %v785, 1.442695
        %v804 = vpow.pop %v803
        %v805 = vmul.f32 %v786, 1.442695
        %v806 = vpow.pop %v805
        %v807 = vmul.f32 %v787, 1.442695
        %v808 = vpow.pop %v807
        %v809 = vmul.f32 %v788, 1.442695
        %v810 = vpow.pop %v809
        %v811 = vmul.f32 %v789, 1.442695
        %v812 = vpow.pop %v811
        %v813 = vmul.f32 %v790, 1.442695
        %v814 = vpow.pop %v813
        %v815 = vmul.f32 %v791, 1.442695
        %v816 = vpow.pop %v815
        %v817 = vmul.f32 %v792, 1.442695
        %v818 = vpow.pop %v817
        %v819 = vmul.f32 %v793, 1.442695
        %v820 = vpow.pop %v819
        %v821 = vmul.f32 %v794, 1.442695
        %v822 = vpow.pop %v821
        %v823 = vadd.f32 %v796, 1.0
        %v824 = vadd.f32 %v798, 1.0
        %v825 = vadd.f32 %v800, 1.0
        %v826 = vadd.f32 %v802, 1.0
        %v827 = vadd.f32 %v804, 1.0
        %v828 = vadd.f32 %v806, 1.0
        %v829 = vadd.f32 %v808, 1.0
        %v830 = vadd.f32 %v810, 1.0
        %v831 = vadd.f32 %v812, 1.0
        %v832 = vadd.f32 %v814, 1.0
        %v833 = vadd.f32 %v816, 1.0
        %v834 = vadd.f32 %v818, 1.0
        %v835 = vadd.f32 %v820, 1.0
        %v836 = vadd.f32 %v822, 1.0
        %v837 = vrcp.pop %v823
        %v838 = vmul.f32 1.0, %v837
        %v839 = vrcp.pop %v824
        %v840 = vmul.f32 1.0, %v839
        %v841 = vrcp.pop %v825
        %v842 = vmul.f32 1.0, %v841
        %v843 = vrcp.pop %v826
        %v844 = vmul.f32 1.0, %v843
        %v845 = vrcp.pop %v827
        %v846 = vmul.f32 1.0, %v845
        %v847 = vrcp.pop %v828
        %v848 = vmul.f32 1.0, %v847
        %v849 = vrcp.pop %v829
        %v850 = vmul.f32 1.0, %v849
        %v851 = vrcp.pop %v830
        %v852 = vmul.f32 1.0, %v851
        %v853 = vrcp.pop %v831
        %v854 = vmul.f32 1.0, %v853
        %v855 = vrcp.pop %v832
        %v856 = vmul.f32 1.0, %v855
        %v857 = vrcp.pop %v833
        %v858 = vmul.f32 1.0, %v857
        %v859 = vrcp.pop %v834
        %v860 = vmul.f32 1.0, %v859
        %v861 = vrcp.pop %v835
        %v862 = vmul.f32 1.0, %v861
        %v863 = vrcp.pop %v836
        %v864 = vmul.f32 1.0, %v863
        %v865 = vsel %vm767, %v838, %v698
        %v866 = vsel %vm768, %v840, %v701
        %v867 = vsel %vm769, %v842, %v706
        %v868 = vsel %vm770, %v844, %v709
        %v869 = vsel %vm771, %v846, %v714
        %v870 = vsel %vm772, %v848, %v717
        %v871 = vsel %vm773, %v850, %v722
        %v872 = vsel %vm774, %v852, %v725
        %v873 = vsel %vm775, %v854, %v730
        %v874 = vsel %vm776, %v856, %v733
        %v875 = vsel %vm777, %v858, %v738
        %v876 = vsel %vm778, %v860, %v741
        %v877 = vsel %vm779, %v862, %v746
        %v878 = vsel %vm780, %v864, %v749
        %879 = vst [vmem:[%s222] sm:$0xff] %v865
        %880 = vst [vmem:[%s222 + $0x20] sm:$0xff] %v866
        %881 = vst [vmem:[%s222 + $0x40] sm:$0xff] %v867
        %882 = vst [vmem:[%s222 + $0x60] sm:$0xff] %v868
        %883 = vst [vmem:[%s222 + $0x80] sm:$0xff] %v869
        %884 = vst [vmem:[%s222 + $0xa0] sm:$0xff] %v870
        %885 = vst [vmem:[%s222 + $0xc0] sm:$0xff] %v871
        %886 = vst [vmem:[%s222 + $0xe0] sm:$0xff] %v872
        %887 = vst [vmem:[%s222 + $0x100] sm:$0xff] %v873
        %888 = vst [vmem:[%s222 + $0x120] sm:$0xff] %v874
        %889 = vst [vmem:[%s222 + $0x140] sm:$0xff] %v875
        %890 = vst [vmem:[%s222 + $0x160] sm:$0xff] %v876
        %891 = vst [vmem:[%s222 + $0x180] sm:$0xff] %v877
        %892 = vst [vmem:[%s222 + $0x1a0] sm:$0xff] %v878
        %v893 = vld [vmem:[#allocation2 + $0x4] sm:$0xf]
        %v894 = vld [vmem:[#allocation2 + $0x14] sm:$0xf]
        %v895 = vld [vmem:[#allocation2 + $0x24] sm:$0xf]
        %v896 = vld [vmem:[#allocation2 + $0x34] sm:$0xf]
        %v897 = vld [vmem:[#allocation2 + $0x44] sm:$0xf]
        %v898 = vld [vmem:[#allocation2 + $0x54] sm:$0xf]
        %v899 = vld [vmem:[#allocation2 + $0x64] sm:$0xf]
        %v900 = vld [vmem:[#allocation2 + $0x74] sm:$0xf]
        %v901 = vld [vmem:[#allocation2 + $0x84] sm:$0xf]
        %v911 = vunpack.c.l.b16 %v893
        %v912 = vunpack.c.l.b16 %v894
        %v913 = vunpack.c.l.b16 %v895
        %v914 = vunpack.c.l.b16 %v896
        %v915 = vunpack.c.l.b16 %v897
        %v916 = vunpack.c.l.b16 %v898
        %v917 = vunpack.c.l.b16 %v899
        %v918 = vunpack.c.l.b16 %v900
        %v919 = vunpack.c.l.b16 %v901
        %v920 = vpack.c.b16 %v912, %v911
        %v921 = vpack.c.b16 %v914, %v913
        %v922 = vpack.c.b16 %v916, %v915
        %v923 = vpack.c.b16 %v918, %v917
        %v924 = vpack.c.b16 %v919, %v919
        %v930 = vsel %vm269, %v924, 0
        %932 = vmatprep.subr.bf16.mxu0 0
        %933 = vmatpush1.bf16.msra.mxu0 %v920
        %934 = vmatprep.subr.bf16.mxu0 0
        %935 = vmatpush1.bf16.msra.mxu0 %v921
        %936 = vmatprep.subr.bf16.mxu0 0
        %937 = vmatpush1.bf16.msra.mxu0 %v922
        %938 = vmatprep.subr.bf16.mxu0 0
        %939 = vmatpush1.bf16.msra.mxu0 %v923
        %940 = vmatprep.subr.bf16.mxu0 0
        %941 = vmatpush1.bf16.msra.mxu0 %v930
        %942 = vmatprep.subr.bf16.mxu0 0
        %943 = vmatpush1.bf16.msra.mxu0 0
        %944 = vmatprep.subr.bf16.mxu0 0
        %945 = vmatpush1.bf16.msra.mxu0 0
        %946 = vmatprep.subr.bf16.mxu0 0
        %947 = vmatpush1.bf16.msra.mxu0 0
        %948 = vmatprep.subr.bf16.mxu0 0
        %949 = vmatpush1.bf16.msra.mxu0 0
        %950 = vmatprep.subr.bf16.mxu0 0
        %951 = vmatpush1.bf16.msra.mxu0 0
        %952 = vmatprep.subr.bf16.mxu0 0
        %953 = vmatpush1.bf16.msra.mxu0 0
        %954 = vmatprep.subr.bf16.mxu0 0
        %955 = vmatpush1.bf16.msra.mxu0 0
        %956 = vmatprep.subr.bf16.mxu0 0
        %957 = vmatpush1.bf16.msra.mxu0 0
        %958 = vmatprep.subr.bf16.mxu0 0
        %959 = vmatpush1.bf16.msra.mxu0 0
        %960 = vmatprep.subr.bf16.mxu0 0
        %961 = vmatpush1.bf16.msra.mxu0 0
        %962 = vmatprep.subr.bf16.mxu0 0
        %963 = vmatpush1.bf16.msra.mxu0 0
        %964 = vmatprep.mubr.bf16.mxu0 0
        %965 = vmatmul.mubr.bf16.gmra.mrb[0].mxu0 %v640
        %v966 = vpop.f32.mrb[0].mxu0
        %v967 = vadd.f32 %v509, %v966
        %v968 = vpop.f32.mrb[0].mxu0
        %v969 = vpop.f32.mrb[0].mxu0
        %v970 = vadd.f32 %v514, %v969
        %v971 = vpop.f32.mrb[0].mxu0
        %972 = vmatprep.mubr.bf16.mxu0 0
        %973 = vmatmul.mubr.bf16.gmra.mrb[0].mxu0 %v643
        %v974 = vpop.f32.mrb[0].mxu0
        %v975 = vadd.f32 %v519, %v974
        %v976 = vpop.f32.mrb[0].mxu0
        %v977 = vpop.f32.mrb[0].mxu0
        %v978 = vadd.f32 %v524, %v977
        %v979 = vpop.f32.mrb[0].mxu0
        %980 = vmatprep.mubr.bf16.mxu0 0
        %981 = vmatmul.mubr.bf16.gmra.mrb[0].mxu0 %v646
        %v982 = vpop.f32.mrb[0].mxu0
        %v983 = vadd.f32 %v529, %v982
        %v984 = vpop.f32.mrb[0].mxu0
        %v985 = vpop.f32.mrb[0].mxu0
        %v986 = vadd.f32 %v534, %v985
        %v987 = vpop.f32.mrb[0].mxu0
        %988 = vmatprep.mubr.bf16.mxu0 0
        %989 = vmatmul.mubr.bf16.gmra.mrb[0].mxu0 %v649
        %v990 = vpop.f32.mrb[0].mxu0
        %v991 = vadd.f32 %v539, %v990
        %v992 = vpop.f32.mrb[0].mxu0
        %v993 = vpop.f32.mrb[0].mxu0
        %v994 = vadd.f32 %v544, %v993
        %v995 = vpop.f32.mrb[0].mxu0
        %996 = vmatprep.mubr.bf16.mxu0 0
        %997 = vmatmul.mubr.bf16.gmra.mrb[0].mxu0 %v652
        %v998 = vpop.f32.mrb[0].mxu0
        %v999 = vadd.f32 %v549, %v998
        %v1000 = vpop.f32.mrb[0].mxu0
        %v1001 = vpop.f32.mrb[0].mxu0
        %v1002 = vadd.f32 %v554, %v1001
        %v1003 = vpop.f32.mrb[0].mxu0
        %1004 = vmatprep.mubr.bf16.mxu0 0
        %1005 = vmatmul.mubr.bf16.gmra.mrb[0].mxu0 %v655
        %v1006 = vpop.f32.mrb[0].mxu0
        %v1007 = vadd.f32 %v559, %v1006
        %v1008 = vpop.f32.mrb[0].mxu0
        %v1009 = vpop.f32.mrb[0].mxu0
        %v1010 = vadd.f32 %v564, %v1009
        %v1011 = vpop.f32.mrb[0].mxu0
        %1012 = vmatprep.mubr.bf16.mxu0 0
        %1013 = vmatmul.mubr.bf16.gmra.mrb[0].mxu0 %v658
        %v1014 = vpop.f32.mrb[0].mxu0
        %v1015 = vadd.f32 %v569, %v1014
        %v1016 = vpop.f32.mrb[0].mxu0
        %v1017 = vpop.f32.mrb[0].mxu0
        %v1018 = vadd.f32 %v574, %v1017
        %v1019 = vpop.f32.mrb[0].mxu0
        %1020 = vdwg.mxu0
        %v1021 = vxor.u32 %v967, 2147483648
        %v1022 = vxor.u32 %v970, 2147483648
        %v1023 = vxor.u32 %v975, 2147483648
        %v1024 = vxor.u32 %v978, 2147483648
        %v1025 = vxor.u32 %v983, 2147483648
        %v1026 = vxor.u32 %v986, 2147483648
        %v1027 = vxor.u32 %v991, 2147483648
        %v1028 = vxor.u32 %v994, 2147483648
        %v1029 = vxor.u32 %v999, 2147483648
        %v1030 = vxor.u32 %v1002, 2147483648
        %v1031 = vxor.u32 %v1007, 2147483648
        %v1032 = vxor.u32 %v1010, 2147483648
        %v1033 = vxor.u32 %v1015, 2147483648
        %v1034 = vxor.u32 %v1018, 2147483648
        %v1035 = vmul.f32 %v1021, 1.442695
        %v1036 = vpow.pop %v1035
        %v1037 = vmul.f32 %v1022, 1.442695
        %v1038 = vpow.pop %v1037
        %v1039 = vmul.f32 %v1023, 1.442695
        %v1040 = vpow.pop %v1039
        %v1041 = vmul.f32 %v1024, 1.442695
        %v1042 = vpow.pop %v1041
        %v1043 = vmul.f32 %v1025, 1.442695
        %v1044 = vpow.pop %v1043
        %v1045 = vmul.f32 %v1026, 1.442695
        %v1046 = vpow.pop %v1045
        %v1047 = vmul.f32 %v1027, 1.442695
        %v1048 = vpow.pop %v1047
        %v1049 = vmul.f32 %v1028, 1.442695
        %v1050 = vpow.pop %v1049
        %v1051 = vmul.f32 %v1029, 1.442695
        %v1052 = vpow.pop %v1051
        %v1053 = vmul.f32 %v1030, 1.442695
        %v1054 = vpow.pop %v1053
        %v1055 = vmul.f32 %v1031, 1.442695
        %v1056 = vpow.pop %v1055
        %v1057 = vmul.f32 %v1032, 1.442695
        %v1058 = vpow.pop %v1057
        %v1059 = vmul.f32 %v1033, 1.442695
        %v1060 = vpow.pop %v1059
        %v1061 = vmul.f32 %v1034, 1.442695
        %v1062 = vpow.pop %v1061
        %v1063 = vadd.f32 %v1036, 1.0
        %v1064 = vadd.f32 %v1038, 1.0
        %v1065 = vadd.f32 %v1040, 1.0
        %v1066 = vadd.f32 %v1042, 1.0
        %v1067 = vadd.f32 %v1044, 1.0
        %v1068 = vadd.f32 %v1046, 1.0
        %v1069 = vadd.f32 %v1048, 1.0
        %v1070 = vadd.f32 %v1050, 1.0
        %v1071 = vadd.f32 %v1052, 1.0
        %v1072 = vadd.f32 %v1054, 1.0
        %v1073 = vadd.f32 %v1056, 1.0
        %v1074 = vadd.f32 %v1058, 1.0
        %v1075 = vadd.f32 %v1060, 1.0
        %v1076 = vadd.f32 %v1062, 1.0
        %v1077 = vrcp.pop %v1063
        %v1078 = vmul.f32 1.0, %v1077
        %v1079 = vrcp.pop %v1064
        %v1080 = vmul.f32 1.0, %v1079
        %v1081 = vrcp.pop %v1065
        %v1082 = vmul.f32 1.0, %v1081
        %v1083 = vrcp.pop %v1066
        %v1084 = vmul.f32 1.0, %v1083
        %v1085 = vrcp.pop %v1067
        %v1086 = vmul.f32 1.0, %v1085
        %v1087 = vrcp.pop %v1068
        %v1088 = vmul.f32 1.0, %v1087
        %v1089 = vrcp.pop %v1069
        %v1090 = vmul.f32 1.0, %v1089
        %v1091 = vrcp.pop %v1070
        %v1092 = vmul.f32 1.0, %v1091
        %v1093 = vrcp.pop %v1071
        %v1094 = vmul.f32 1.0, %v1093
        %v1095 = vrcp.pop %v1072
        %v1096 = vmul.f32 1.0, %v1095
        %v1097 = vrcp.pop %v1073
        %v1098 = vmul.f32 1.0, %v1097
        %v1099 = vrcp.pop %v1074
        %v1100 = vmul.f32 1.0, %v1099
        %v1101 = vrcp.pop %v1075
        %v1102 = vmul.f32 1.0, %v1101
        %v1103 = vrcp.pop %v1076
        %v1104 = vmul.f32 1.0, %v1103
        %v1105 = vsel %vm767, %v1078, %v967
        %v1106 = vsel %vm768, %v1080, %v970
        %v1107 = vsel %vm769, %v1082, %v975
        %v1108 = vsel %vm770, %v1084, %v978
        %v1109 = vsel %vm771, %v1086, %v983
        %v1110 = vsel %vm772, %v1088, %v986
        %v1111 = vsel %vm773, %v1090, %v991
        %v1112 = vsel %vm774, %v1092, %v994
        %v1113 = vsel %vm775, %v1094, %v999
        %v1114 = vsel %vm776, %v1096, %v1002
        %v1115 = vsel %vm777, %v1098, %v1007
        %v1116 = vsel %vm778, %v1100, %v1010
        %v1117 = vsel %vm779, %v1102, %v1015
        %v1118 = vsel %vm780, %v1104, %v1018
        %1119 = vst [vmem:[%s222 + $0x8] sm:$0xff] %v1105
        %1120 = vst [vmem:[%s222 + $0x28] sm:$0xff] %v1106
        %1121 = vst [vmem:[%s222 + $0x48] sm:$0xff] %v1107
        %1122 = vst [vmem:[%s222 + $0x68] sm:$0xff] %v1108
        %1123 = vst [vmem:[%s222 + $0x88] sm:$0xff] %v1109
        %1124 = vst [vmem:[%s222 + $0xa8] sm:$0xff] %v1110
        %1125 = vst [vmem:[%s222 + $0xc8] sm:$0xff] %v1111
        %1126 = vst [vmem:[%s222 + $0xe8] sm:$0xff] %v1112
        %1127 = vst [vmem:[%s222 + $0x108] sm:$0xff] %v1113
        %1128 = vst [vmem:[%s222 + $0x128] sm:$0xff] %v1114
        %1129 = vst [vmem:[%s222 + $0x148] sm:$0xff] %v1115
        %1130 = vst [vmem:[%s222 + $0x168] sm:$0xff] %v1116
        %1131 = vst [vmem:[%s222 + $0x188] sm:$0xff] %v1117
        %1132 = vst [vmem:[%s222 + $0x1a8] sm:$0xff] %v1118
        %v1133 = vld [vmem:[#allocation2 + $0x8] sm:$0xf]
        %v1134 = vld [vmem:[#allocation2 + $0x18] sm:$0xf]
        %v1135 = vld [vmem:[#allocation2 + $0x28] sm:$0xf]
        %v1136 = vld [vmem:[#allocation2 + $0x38] sm:$0xf]
        %v1137 = vld [vmem:[#allocation2 + $0x48] sm:$0xf]
        %v1138 = vld [vmem:[#allocation2 + $0x58] sm:$0xf]
        %v1139 = vld [vmem:[#allocation2 + $0x68] sm:$0xf]
        %v1140 = vld [vmem:[#allocation2 + $0x78] sm:$0xf]
        %v1141 = vld [vmem:[#allocation2 + $0x88] sm:$0xf]
        %v1151 = vunpack.c.l.b16 %v1133
        %v1152 = vunpack.c.l.b16 %v1134
        %v1153 = vunpack.c.l.b16 %v1135
        %v1154 = vunpack.c.l.b16 %v1136
        %v1155 = vunpack.c.l.b16 %v1137
        %v1156 = vunpack.c.l.b16 %v1138
        %v1157 = vunpack.c.l.b16 %v1139
        %v1158 = vunpack.c.l.b16 %v1140
        %v1159 = vunpack.c.l.b16 %v1141
        %v1160 = vpack.c.b16 %v1152, %v1151
        %v1161 = vpack.c.b16 %v1154, %v1153
        %v1162 = vpack.c.b16 %v1156, %v1155
        %v1163 = vpack.c.b16 %v1158, %v1157
        %v1164 = vpack.c.b16 %v1159, %v1159
        %v1170 = vsel %vm269, %v1164, 0
        %1172 = vmatprep.subr.bf16.mxu0 0
        %1173 = vmatpush1.bf16.msra.mxu0 %v1160
        %1174 = vmatprep.subr.bf16.mxu0 0
        %1175 = vmatpush1.bf16.msra.mxu0 %v1161
        %1176 = vmatprep.subr.bf16.mxu0 0
        %1177 = vmatpush1.bf16.msra.mxu0 %v1162
        %1178 = vmatprep.subr.bf16.mxu0 0
        %1179 = vmatpush1.bf16.msra.mxu0 %v1163
        %1180 = vmatprep.subr.bf16.mxu0 0
        %1181 = vmatpush1.bf16.msra.mxu0 %v1170
        %1182 = vmatprep.subr.bf16.mxu0 0
        %1183 = vmatpush1.bf16.msra.mxu0 0
        %1184 = vmatprep.subr.bf16.mxu0 0
        %1185 = vmatpush1.bf16.msra.mxu0 0
        %1186 = vmatprep.subr.bf16.mxu0 0
        %1187 = vmatpush1.bf16.msra.mxu0 0
        %1188 = vmatprep.subr.bf16.mxu0 0
        %1189 = vmatpush1.bf16.msra.mxu0 0
        %1190 = vmatprep.subr.bf16.mxu0 0
        %1191 = vmatpush1.bf16.msra.mxu0 0
        %1192 = vmatprep.subr.bf16.mxu0 0
        %1193 = vmatpush1.bf16.msra.mxu0 0
        %1194 = vmatprep.subr.bf16.mxu0 0
        %1195 = vmatpush1.bf16.msra.mxu0 0
        %1196 = vmatprep.subr.bf16.mxu0 0
        %1197 = vmatpush1.bf16.msra.mxu0 0
        %1198 = vmatprep.subr.bf16.mxu0 0
        %1199 = vmatpush1.bf16.msra.mxu0 0
        %1200 = vmatprep.subr.bf16.mxu0 0
        %1201 = vmatpush1.bf16.msra.mxu0 0
        %1202 = vmatprep.subr.bf16.mxu0 0
        %1203 = vmatpush1.bf16.msra.mxu0 0
        %1204 = vmatprep.mubr.bf16.mxu0 0
        %1205 = vmatmul.mubr.bf16.gmra.mrb[0].mxu0 %v640
        %v1206 = vpop.f32.mrb[0].mxu0
        %v1207 = vadd.f32 %v509, %v1206
        %v1208 = vpop.f32.mrb[0].mxu0
        %v1209 = vpop.f32.mrb[0].mxu0
        %v1210 = vadd.f32 %v514, %v1209
        %v1211 = vpop.f32.mrb[0].mxu0
        %1212 = vmatprep.mubr.bf16.mxu0 0
        %1213 = vmatmul.mubr.bf16.gmra.mrb[0].mxu0 %v643
        %v1214 = vpop.f32.mrb[0].mxu0
        %v1215 = vadd.f32 %v519, %v1214
        %v1216 = vpop.f32.mrb[0].mxu0
        %v1217 = vpop.f32.mrb[0].mxu0
        %v1218 = vadd.f32 %v524, %v1217
        %v1219 = vpop.f32.mrb[0].mxu0
        %1220 = vmatprep.mubr.bf16.mxu0 0
        %1221 = vmatmul.mubr.bf16.gmra.mrb[0].mxu0 %v646
        %v1222 = vpop.f32.mrb[0].mxu0
        %v1223 = vadd.f32 %v529, %v1222
        %v1224 = vpop.f32.mrb[0].mxu0
        %v1225 = vpop.f32.mrb[0].mxu0
        %v1226 = vadd.f32 %v534, %v1225
        %v1227 = vpop.f32.mrb[0].mxu0
        %1228 = vmatprep.mubr.bf16.mxu0 0
        %1229 = vmatmul.mubr.bf16.gmra.mrb[0].mxu0 %v649
        %v1230 = vpop.f32.mrb[0].mxu0
        %v1231 = vadd.f32 %v539, %v1230
        %v1232 = vpop.f32.mrb[0].mxu0
        %v1233 = vpop.f32.mrb[0].mxu0
        %v1234 = vadd.f32 %v544, %v1233
        %v1235 = vpop.f32.mrb[0].mxu0
        %1236 = vmatprep.mubr.bf16.mxu0 0
        %1237 = vmatmul.mubr.bf16.gmra.mrb[0].mxu0 %v652
        %v1238 = vpop.f32.mrb[0].mxu0
        %v1239 = vadd.f32 %v549, %v1238
        %v1240 = vpop.f32.mrb[0].mxu0
        %v1241 = vpop.f32.mrb[0].mxu0
        %v1242 = vadd.f32 %v554, %v1241
        %v1243 = vpop.f32.mrb[0].mxu0
        %1244 = vmatprep.mubr.bf16.mxu0 0
        %1245 = vmatmul.mubr.bf16.gmra.mrb[0].mxu0 %v655
        %v1246 = vpop.f32.mrb[0].mxu0
        %v1247 = vadd.f32 %v559, %v1246
        %v1248 = vpop.f32.mrb[0].mxu0
        %v1249 = vpop.f32.mrb[0].mxu0
        %v1250 = vadd.f32 %v564, %v1249
        %v1251 = vpop.f32.mrb[0].mxu0
        %1252 = vmatprep.mubr.bf16.mxu0 0
        %1253 = vmatmul.mubr.bf16.gmra.mrb[0].mxu0 %v658
        %v1254 = vpop.f32.mrb[0].mxu0
        %v1255 = vadd.f32 %v569, %v1254
        %v1256 = vpop.f32.mrb[0].mxu0
        %v1257 = vpop.f32.mrb[0].mxu0
        %v1258 = vadd.f32 %v574, %v1257
        %v1259 = vpop.f32.mrb[0].mxu0
        %1260 = vdwg.mxu0
        %v1261 = vxor.u32 %v1207, 2147483648
        %v1262 = vxor.u32 %v1210, 2147483648
        %v1263 = vxor.u32 %v1215, 2147483648
        %v1264 = vxor.u32 %v1218, 2147483648
        %v1265 = vxor.u32 %v1223, 2147483648
        %v1266 = vxor.u32 %v1226, 2147483648
        %v1267 = vxor.u32 %v1231, 2147483648
        %v1268 = vxor.u32 %v1234, 2147483648
        %v1269 = vxor.u32 %v1239, 2147483648
        %v1270 = vxor.u32 %v1242, 2147483648
        %v1271 = vxor.u32 %v1247, 2147483648
        %v1272 = vxor.u32 %v1250, 2147483648
        %v1273 = vxor.u32 %v1255, 2147483648
        %v1274 = vxor.u32 %v1258, 2147483648
        %v1275 = vmul.f32 %v1261, 1.442695
        %v1276 = vpow.pop %v1275
        %v1277 = vmul.f32 %v1262, 1.442695
        %v1278 = vpow.pop %v1277
        %v1279 = vmul.f32 %v1263, 1.442695
        %v1280 = vpow.pop %v1279
        %v1281 = vmul.f32 %v1264, 1.442695
        %v1282 = vpow.pop %v1281
        %v1283 = vmul.f32 %v1265, 1.442695
        %v1284 = vpow.pop %v1283
        %v1285 = vmul.f32 %v1266, 1.442695
        %v1286 = vpow.pop %v1285
        %v1287 = vmul.f32 %v1267, 1.442695
        %v1288 = vpow.pop %v1287
        %v1289 = vmul.f32 %v1268, 1.442695
        %v1290 = vpow.pop %v1289
        %v1291 = vmul.f32 %v1269, 1.442695
        %v1292 = vpow.pop %v1291
        %v1293 = vmul.f32 %v1270, 1.442695
        %v1294 = vpow.pop %v1293
        %v1295 = vmul.f32 %v1271, 1.442695
        %v1296 = vpow.pop %v1295
        %v1297 = vmul.f32 %v1272, 1.442695
        %v1298 = vpow.pop %v1297
        %v1299 = vmul.f32 %v1273, 1.442695
        %v1300 = vpow.pop %v1299
        %v1301 = vmul.f32 %v1274, 1.442695
        %v1302 = vpow.pop %v1301
        %v1303 = vadd.f32 %v1276, 1.0
        %v1304 = vadd.f32 %v1278, 1.0
        %v1305 = vadd.f32 %v1280, 1.0
        %v1306 = vadd.f32 %v1282, 1.0
        %v1307 = vadd.f32 %v1284, 1.0
        %v1308 = vadd.f32 %v1286, 1.0
        %v1309 = vadd.f32 %v1288, 1.0
        %v1310 = vadd.f32 %v1290, 1.0
        %v1311 = vadd.f32 %v1292, 1.0
        %v1312 = vadd.f32 %v1294, 1.0
        %v1313 = vadd.f32 %v1296, 1.0
        %v1314 = vadd.f32 %v1298, 1.0
        %v1315 = vadd.f32 %v1300, 1.0
        %v1316 = vadd.f32 %v1302, 1.0
        %v1317 = vrcp.pop %v1303
        %v1318 = vmul.f32 1.0, %v1317
        %v1319 = vrcp.pop %v1304
        %v1320 = vmul.f32 1.0, %v1319
        %v1321 = vrcp.pop %v1305
        %v1322 = vmul.f32 1.0, %v1321
        %v1323 = vrcp.pop %v1306
        %v1324 = vmul.f32 1.0, %v1323
        %v1325 = vrcp.pop %v1307
        %v1326 = vmul.f32 1.0, %v1325
        %v1327 = vrcp.pop %v1308
        %v1328 = vmul.f32 1.0, %v1327
        %v1329 = vrcp.pop %v1309
        %v1330 = vmul.f32 1.0, %v1329
        %v1331 = vrcp.pop %v1310
        %v1332 = vmul.f32 1.0, %v1331
        %v1333 = vrcp.pop %v1311
        %v1334 = vmul.f32 1.0, %v1333
        %v1335 = vrcp.pop %v1312
        %v1336 = vmul.f32 1.0, %v1335
        %v1337 = vrcp.pop %v1313
        %v1338 = vmul.f32 1.0, %v1337
        %v1339 = vrcp.pop %v1314
        %v1340 = vmul.f32 1.0, %v1339
        %v1341 = vrcp.pop %v1315
        %v1342 = vmul.f32 1.0, %v1341
        %v1343 = vrcp.pop %v1316
        %v1344 = vmul.f32 1.0, %v1343
        %v1345 = vsel %vm767, %v1318, %v1207
        %v1346 = vsel %vm768, %v1320, %v1210
        %v1347 = vsel %vm769, %v1322, %v1215
        %v1348 = vsel %vm770, %v1324, %v1218
        %v1349 = vsel %vm771, %v1326, %v1223
        %v1350 = vsel %vm772, %v1328, %v1226
        %v1351 = vsel %vm773, %v1330, %v1231
        %v1352 = vsel %vm774, %v1332, %v1234
        %v1353 = vsel %vm775, %v1334, %v1239
        %v1354 = vsel %vm776, %v1336, %v1242
        %v1355 = vsel %vm777, %v1338, %v1247
        %v1356 = vsel %vm778, %v1340, %v1250
        %v1357 = vsel %vm779, %v1342, %v1255
        %v1358 = vsel %vm780, %v1344, %v1258
        %1359 = vst [vmem:[%s222 + $0x10] sm:$0xff] %v1345
        %1360 = vst [vmem:[%s222 + $0x30] sm:$0xff] %v1346
        %1361 = vst [vmem:[%s222 + $0x50] sm:$0xff] %v1347
        %1362 = vst [vmem:[%s222 + $0x70] sm:$0xff] %v1348
        %1363 = vst [vmem:[%s222 + $0x90] sm:$0xff] %v1349
        %1364 = vst [vmem:[%s222 + $0xb0] sm:$0xff] %v1350
        %1365 = vst [vmem:[%s222 + $0xd0] sm:$0xff] %v1351
        %1366 = vst [vmem:[%s222 + $0xf0] sm:$0xff] %v1352
        %1367 = vst [vmem:[%s222 + $0x110] sm:$0xff] %v1353
        %1368 = vst [vmem:[%s222 + $0x130] sm:$0xff] %v1354
        %1369 = vst [vmem:[%s222 + $0x150] sm:$0xff] %v1355
        %1370 = vst [vmem:[%s222 + $0x170] sm:$0xff] %v1356
        %1371 = vst [vmem:[%s222 + $0x190] sm:$0xff] %v1357
        %1372 = vst [vmem:[%s222 + $0x1b0] sm:$0xff] %v1358
        %v1373 = vld [vmem:[#allocation2 + $0xc] sm:$0xf]
        %v1374 = vld [vmem:[#allocation2 + $0x1c] sm:$0xf]
        %v1375 = vld [vmem:[#allocation2 + $0x2c] sm:$0xf]
        %v1376 = vld [vmem:[#allocation2 + $0x3c] sm:$0xf]
        %v1377 = vld [vmem:[#allocation2 + $0x4c] sm:$0xf]
        %v1378 = vld [vmem:[#allocation2 + $0x5c] sm:$0xf]
        %v1379 = vld [vmem:[#allocation2 + $0x6c] sm:$0xf]
        %v1380 = vld [vmem:[#allocation2 + $0x7c] sm:$0xf]
        %v1381 = vld [vmem:[#allocation2 + $0x8c] sm:$0xf]
        %v1391 = vunpack.c.l.b16 %v1373
        %v1392 = vunpack.c.l.b16 %v1374
        %v1393 = vunpack.c.l.b16 %v1375
        %v1394 = vunpack.c.l.b16 %v1376
        %v1395 = vunpack.c.l.b16 %v1377
        %v1396 = vunpack.c.l.b16 %v1378
        %v1397 = vunpack.c.l.b16 %v1379
        %v1398 = vunpack.c.l.b16 %v1380
        %v1399 = vunpack.c.l.b16 %v1381
        %v1400 = vpack.c.b16 %v1392, %v1391
        %v1401 = vpack.c.b16 %v1394, %v1393
        %v1402 = vpack.c.b16 %v1396, %v1395
        %v1403 = vpack.c.b16 %v1398, %v1397
        %v1404 = vpack.c.b16 %v1399, %v1399
        %v1410 = vsel %vm269, %v1404, 0
        %1412 = vmatprep.subr.bf16.mxu0 0
        %1413 = vmatpush1.bf16.msra.mxu0 %v1400
        %1414 = vmatprep.subr.bf16.mxu0 0
        %1415 = vmatpush1.bf16.msra.mxu0 %v1401
        %1416 = vmatprep.subr.bf16.mxu0 0
        %1417 = vmatpush1.bf16.msra.mxu0 %v1402
        %1418 = vmatprep.subr.bf16.mxu0 0
        %1419 = vmatpush1.bf16.msra.mxu0 %v1403
        %1420 = vmatprep.subr.bf16.mxu0 0
        %1421 = vmatpush1.bf16.msra.mxu0 %v1410
        %1422 = vmatprep.subr.bf16.mxu0 0
        %1423 = vmatpush1.bf16.msra.mxu0 0
        %1424 = vmatprep.subr.bf16.mxu0 0
        %1425 = vmatpush1.bf16.msra.mxu0 0
        %1426 = vmatprep.subr.bf16.mxu0 0
        %1427 = vmatpush1.bf16.msra.mxu0 0
        %1428 = vmatprep.subr.bf16.mxu0 0
        %1429 = vmatpush1.bf16.msra.mxu0 0
        %1430 = vmatprep.subr.bf16.mxu0 0
        %1431 = vmatpush1.bf16.msra.mxu0 0
        %1432 = vmatprep.subr.bf16.mxu0 0
        %1433 = vmatpush1.bf16.msra.mxu0 0
        %1434 = vmatprep.subr.bf16.mxu0 0
        %1435 = vmatpush1.bf16.msra.mxu0 0
        %1436 = vmatprep.subr.bf16.mxu0 0
        %1437 = vmatpush1.bf16.msra.mxu0 0
        %1438 = vmatprep.subr.bf16.mxu0 0
        %1439 = vmatpush1.bf16.msra.mxu0 0
        %1440 = vmatprep.subr.bf16.mxu0 0
        %1441 = vmatpush1.bf16.msra.mxu0 0
        %1442 = vmatprep.subr.bf16.mxu0 0
        %1443 = vmatpush1.bf16.msra.mxu0 0
        %1444 = vmatprep.mubr.bf16.mxu0 0
        %1445 = vmatmul.mubr.bf16.gmra.mrb[0].mxu0 %v640
        %v1446 = vpop.f32.mrb[0].mxu0
        %v1447 = vadd.f32 %v509, %v1446
        %v1448 = vpop.f32.mrb[0].mxu0
        %v1449 = vpop.f32.mrb[0].mxu0
        %v1450 = vadd.f32 %v514, %v1449
        %v1451 = vpop.f32.mrb[0].mxu0
        %1452 = vmatprep.mubr.bf16.mxu0 0
        %1453 = vmatmul.mubr.bf16.gmra.mrb[0].mxu0 %v643
        %v1454 = vpop.f32.mrb[0].mxu0
        %v1455 = vadd.f32 %v519, %v1454
        %v1456 = vpop.f32.mrb[0].mxu0
        %v1457 = vpop.f32.mrb[0].mxu0
        %v1458 = vadd.f32 %v524, %v1457
        %v1459 = vpop.f32.mrb[0].mxu0
        %1460 = vmatprep.mubr.bf16.mxu0 0
        %1461 = vmatmul.mubr.bf16.gmra.mrb[0].mxu0 %v646
        %v1462 = vpop.f32.mrb[0].mxu0
        %v1463 = vadd.f32 %v529, %v1462
        %v1464 = vpop.f32.mrb[0].mxu0
        %v1465 = vpop.f32.mrb[0].mxu0
        %v1466 = vadd.f32 %v534, %v1465
        %v1467 = vpop.f32.mrb[0].mxu0
        %1468 = vmatprep.mubr.bf16.mxu0 0
        %1469 = vmatmul.mubr.bf16.gmra.mrb[0].mxu0 %v649
        %v1470 = vpop.f32.mrb[0].mxu0
        %v1471 = vadd.f32 %v539, %v1470
        %v1472 = vpop.f32.mrb[0].mxu0
        %v1473 = vpop.f32.mrb[0].mxu0
        %v1474 = vadd.f32 %v544, %v1473
        %v1475 = vpop.f32.mrb[0].mxu0
        %1476 = vmatprep.mubr.bf16.mxu0 0
        %1477 = vmatmul.mubr.bf16.gmra.mrb[0].mxu0 %v652
        %v1478 = vpop.f32.mrb[0].mxu0
        %v1479 = vadd.f32 %v549, %v1478
        %v1480 = vpop.f32.mrb[0].mxu0
        %v1481 = vpop.f32.mrb[0].mxu0
        %v1482 = vadd.f32 %v554, %v1481
        %v1483 = vpop.f32.mrb[0].mxu0
        %1484 = vmatprep.mubr.bf16.mxu0 0
        %1485 = vmatmul.mubr.bf16.gmra.mrb[0].mxu0 %v655
        %v1486 = vpop.f32.mrb[0].mxu0
        %v1487 = vadd.f32 %v559, %v1486
        %v1488 = vpop.f32.mrb[0].mxu0
        %v1489 = vpop.f32.mrb[0].mxu0
        %v1490 = vadd.f32 %v564, %v1489
        %v1491 = vpop.f32.mrb[0].mxu0
        %1492 = vmatprep.mubr.bf16.mxu0 0
        %1493 = vmatmul.mubr.bf16.gmra.mrb[0].mxu0 %v658
        %v1494 = vpop.f32.mrb[0].mxu0
        %v1495 = vadd.f32 %v569, %v1494
        %v1496 = vpop.f32.mrb[0].mxu0
        %v1497 = vpop.f32.mrb[0].mxu0
        %v1498 = vadd.f32 %v574, %v1497
        %v1499 = vpop.f32.mrb[0].mxu0
        %1500 = vdwg.mxu0
        %v1501 = vxor.u32 %v1447, 2147483648
        %v1502 = vxor.u32 %v1450, 2147483648
        %v1503 = vxor.u32 %v1455, 2147483648
        %v1504 = vxor.u32 %v1458, 2147483648
        %v1505 = vxor.u32 %v1463, 2147483648
        %v1506 = vxor.u32 %v1466, 2147483648
        %v1507 = vxor.u32 %v1471, 2147483648
        %v1508 = vxor.u32 %v1474, 2147483648
        %v1509 = vxor.u32 %v1479, 2147483648
        %v1510 = vxor.u32 %v1482, 2147483648
        %v1511 = vxor.u32 %v1487, 2147483648
        %v1512 = vxor.u32 %v1490, 2147483648
        %v1513 = vxor.u32 %v1495, 2147483648
        %v1514 = vxor.u32 %v1498, 2147483648
        %v1515 = vmul.f32 %v1501, 1.442695
        %v1516 = vpow.pop %v1515
        %v1517 = vmul.f32 %v1502, 1.442695
        %v1518 = vpow.pop %v1517
        %v1519 = vmul.f32 %v1503, 1.442695
        %v1520 = vpow.pop %v1519
        %v1521 = vmul.f32 %v1504, 1.442695
        %v1522 = vpow.pop %v1521
        %v1523 = vmul.f32 %v1505, 1.442695
        %v1524 = vpow.pop %v1523
        %v1525 = vmul.f32 %v1506, 1.442695
        %v1526 = vpow.pop %v1525
        %v1527 = vmul.f32 %v1507, 1.442695
        %v1528 = vpow.pop %v1527
        %v1529 = vmul.f32 %v1508, 1.442695
        %v1530 = vpow.pop %v1529
        %v1531 = vmul.f32 %v1509, 1.442695
        %v1532 = vpow.pop %v1531
        %v1533 = vmul.f32 %v1510, 1.442695
        %v1534 = vpow.pop %v1533
        %v1535 = vmul.f32 %v1511, 1.442695
        %v1536 = vpow.pop %v1535
        %v1537 = vmul.f32 %v1512, 1.442695
        %v1538 = vpow.pop %v1537
        %v1539 = vmul.f32 %v1513, 1.442695
        %v1540 = vpow.pop %v1539
        %v1541 = vmul.f32 %v1514, 1.442695
        %v1542 = vpow.pop %v1541
        %v1543 = vadd.f32 %v1516, 1.0
        %v1544 = vadd.f32 %v1518, 1.0
        %v1545 = vadd.f32 %v1520, 1.0
        %v1546 = vadd.f32 %v1522, 1.0
        %v1547 = vadd.f32 %v1524, 1.0
        %v1548 = vadd.f32 %v1526, 1.0
        %v1549 = vadd.f32 %v1528, 1.0
        %v1550 = vadd.f32 %v1530, 1.0
        %v1551 = vadd.f32 %v1532, 1.0
        %v1552 = vadd.f32 %v1534, 1.0
        %v1553 = vadd.f32 %v1536, 1.0
        %v1554 = vadd.f32 %v1538, 1.0
        %v1555 = vadd.f32 %v1540, 1.0
        %v1556 = vadd.f32 %v1542, 1.0
        %v1557 = vrcp.pop %v1543
        %v1558 = vmul.f32 1.0, %v1557
        %v1559 = vrcp.pop %v1544
        %v1560 = vmul.f32 1.0, %v1559
        %v1561 = vrcp.pop %v1545
        %v1562 = vmul.f32 1.0, %v1561
        %v1563 = vrcp.pop %v1546
        %v1564 = vmul.f32 1.0, %v1563
        %v1565 = vrcp.pop %v1547
        %v1566 = vmul.f32 1.0, %v1565
        %v1567 = vrcp.pop %v1548
        %v1568 = vmul.f32 1.0, %v1567
        %v1569 = vrcp.pop %v1549
        %v1570 = vmul.f32 1.0, %v1569
        %v1571 = vrcp.pop %v1550
        %v1572 = vmul.f32 1.0, %v1571
        %v1573 = vrcp.pop %v1551
        %v1574 = vmul.f32 1.0, %v1573
        %v1575 = vrcp.pop %v1552
        %v1576 = vmul.f32 1.0, %v1575
        %v1577 = vrcp.pop %v1553
        %v1578 = vmul.f32 1.0, %v1577
        %v1579 = vrcp.pop %v1554
        %v1580 = vmul.f32 1.0, %v1579
        %v1581 = vrcp.pop %v1555
        %v1582 = vmul.f32 1.0, %v1581
        %v1583 = vrcp.pop %v1556
        %v1584 = vmul.f32 1.0, %v1583
        %v1585 = vsel %vm767, %v1558, %v1447
        %v1586 = vsel %vm768, %v1560, %v1450
        %v1587 = vsel %vm769, %v1562, %v1455
        %v1588 = vsel %vm770, %v1564, %v1458
        %v1589 = vsel %vm771, %v1566, %v1463
        %v1590 = vsel %vm772, %v1568, %v1466
        %v1591 = vsel %vm773, %v1570, %v1471
        %v1592 = vsel %vm774, %v1572, %v1474
        %v1593 = vsel %vm775, %v1574, %v1479
        %v1594 = vsel %vm776, %v1576, %v1482
        %v1595 = vsel %vm777, %v1578, %v1487
        %v1596 = vsel %vm778, %v1580, %v1490
        %v1597 = vsel %vm779, %v1582, %v1495
        %v1598 = vsel %vm780, %v1584, %v1498
        %1599 = vst [vmem:[%s222 + $0x18] sm:$0xff] %v1585
        %1600 = vst [vmem:[%s222 + $0x38] sm:$0xff] %v1586
        %1601 = vst [vmem:[%s222 + $0x58] sm:$0xff] %v1587
        %1602 = vst [vmem:[%s222 + $0x78] sm:$0xff] %v1588
        %1603 = vst [vmem:[%s222 + $0x98] sm:$0xff] %v1589
        %1604 = vst [vmem:[%s222 + $0xb8] sm:$0xff] %v1590
        %1605 = vst [vmem:[%s222 + $0xd8] sm:$0xff] %v1591
        %1606 = vst [vmem:[%s222 + $0xf8] sm:$0xff] %v1592
        %1607 = vst [vmem:[%s222 + $0x118] sm:$0xff] %v1593
        %1608 = vst [vmem:[%s222 + $0x138] sm:$0xff] %v1594
        %1609 = vst [vmem:[%s222 + $0x158] sm:$0xff] %v1595
        %1610 = vst [vmem:[%s222 + $0x178] sm:$0xff] %v1596
        %1611 = vst [vmem:[%s222 + $0x198] sm:$0xff] %v1597
        %1612 = vst [vmem:[%s222 + $0x1b8] sm:$0xff] %v1598
        %s1613 = sand.u32 %s121, 1
        %s1614 = sand.u32 %s121, 1
        %s1615 = smul.addr %s1614, 448
        %s1616 = scalar_lea.vmem [#allocation3], %s1615
        // Predicated region
        $region37: #{stdf_forward.14} parent=35 // pred_check
          %p1617 = pneg %p131
        $region38: #{stdf_forward.14} parent=35 // pred_check_branch
          %1619 = sbr.rel (%p1617) target = $region40
        $region39: #{stdf_forward.14} parent=35 // pred_region
          %s1620 = smul.u32 4, %s15
          %s1621 = smul.addr %s1620, 8
          %s1622 = scalar_lea.vmem %s4, %s1621
          // Predicated region
          $region41: #{stdf_forward.14} parent=39 // pred_check
            _
          $region42: #{stdf_forward.14} parent=39 // pred_check_branch
            %1624 = sbr.rel (0) target = $region44
          $region43: #{stdf_forward.14} parent=39 // pred_region
            // Predicated region
            $region45: #{stdf_forward.14} parent=43 // pred_check
              _
            $region46: #{stdf_forward.14} parent=43 // pred_check_branch
              %1626 = sbr.rel (0) target = $region48
            $region47: #{stdf_forward.14} parent=43 // pred_region
              loop: start=0, step=1, limit=1
              $region49: #{stdf_forward.14} parent=47 // loop_pre_header
                _
              $region50: #{stdf_forward.14} parent=47 // loop_header
                %s1628 = sphi 0, %s1632
                %p1629 = scmp.ge.s32.totalorder %s1628, 1
                %s1633 = sphi %s1616, %s1616
                %s1634 = sphi %s1622, %s1622
              $region51: #{stdf_forward.14} parent=47 // loop_header_branch
                %1631 = sbr.rel (%p1629) target = $region55
              $region52: #{stdf_forward.14} parent=47 // loop_body
                %v1635 = vld [vmem:[%s1633] sm:$0xff]
                %1636 = vst [vmem:[%s1634] sm:$0xff] %v1635
                %v1637 = vld [vmem:[%s1633 + $0x8] sm:$0xff]
                %1638 = vst [vmem:[%s1634 + $0x8] sm:$0xff] %v1637
                %v1639 = vld [vmem:[%s1633 + $0x10] sm:$0xff]
                %1640 = vst [vmem:[%s1634 + $0x10] sm:$0xff] %v1639
                %v1641 = vld [vmem:[%s1633 + $0x18] sm:$0xff]
                %1642 = vst [vmem:[%s1634 + $0x18] sm:$0xff] %v1641
                %v1643 = vld [vmem:[%s1633 + $0x20] sm:$0xff]
                %1644 = vst [vmem:[%s1634 + $0x40] sm:$0xff] %v1643
                %v1645 = vld [vmem:[%s1633 + $0x28] sm:$0xff]
                %1646 = vst [vmem:[%s1634 + $0x48] sm:$0xff] %v1645
                %v1647 = vld [vmem:[%s1633 + $0x30] sm:$0xff]
                %1648 = vst [vmem:[%s1634 + $0x50] sm:$0xff] %v1647
                %v1649 = vld [vmem:[%s1633 + $0x38] sm:$0xff]
                %1650 = vst [vmem:[%s1634 + $0x58] sm:$0xff] %v1649
                %v1651 = vld [vmem:[%s1633 + $0x40] sm:$0xff]
                %1652 = vst [vmem:[%s1634 + $0x80] sm:$0xff] %v1651
                %v1653 = vld [vmem:[%s1633 + $0x48] sm:$0xff]
                %1654 = vst [vmem:[%s1634 + $0x88] sm:$0xff] %v1653
                %v1655 = vld [vmem:[%s1633 + $0x50] sm:$0xff]
                %1656 = vst [vmem:[%s1634 + $0x90] sm:$0xff] %v1655
                %v1657 = vld [vmem:[%s1633 + $0x58] sm:$0xff]
                %1658 = vst [vmem:[%s1634 + $0x98] sm:$0xff] %v1657
                %v1659 = vld [vmem:[%s1633 + $0x60] sm:$0xff]
                %1660 = vst [vmem:[%s1634 + $0xc0] sm:$0xff] %v1659
                %v1661 = vld [vmem:[%s1633 + $0x68] sm:$0xff]
                %1662 = vst [vmem:[%s1634 + $0xc8] sm:$0xff] %v1661
                %v1663 = vld [vmem:[%s1633 + $0x70] sm:$0xff]
                %1664 = vst [vmem:[%s1634 + $0xd0] sm:$0xff] %v1663
                %v1665 = vld [vmem:[%s1633 + $0x78] sm:$0xff]
                %1666 = vst [vmem:[%s1634 + $0xd8] sm:$0xff] %v1665
                %v1667 = vld [vmem:[%s1633 + $0x80] sm:$0xff]
                %1668 = vst [vmem:[%s1634 + $0x100] sm:$0xff] %v1667
                %v1669 = vld [vmem:[%s1633 + $0x88] sm:$0xff]
                %1670 = vst [vmem:[%s1634 + $0x108] sm:$0xff] %v1669
                %v1671 = vld [vmem:[%s1633 + $0x90] sm:$0xff]
                %1672 = vst [vmem:[%s1634 + $0x110] sm:$0xff] %v1671
                %v1673 = vld [vmem:[%s1633 + $0x98] sm:$0xff]
                %1674 = vst [vmem:[%s1634 + $0x118] sm:$0xff] %v1673
                %v1675 = vld [vmem:[%s1633 + $0xa0] sm:$0xff]
                %1676 = vst [vmem:[%s1634 + $0x140] sm:$0xff] %v1675
                %v1677 = vld [vmem:[%s1633 + $0xa8] sm:$0xff]
                %1678 = vst [vmem:[%s1634 + $0x148] sm:$0xff] %v1677
                %v1679 = vld [vmem:[%s1633 + $0xb0] sm:$0xff]
                %1680 = vst [vmem:[%s1634 + $0x150] sm:$0xff] %v1679
                %v1681 = vld [vmem:[%s1633 + $0xb8] sm:$0xff]
                %1682 = vst [vmem:[%s1634 + $0x158] sm:$0xff] %v1681
                %v1683 = vld [vmem:[%s1633 + $0xc0] sm:$0xff]
                %1684 = vst [vmem:[%s1634 + $0x180] sm:$0xff] %v1683
                %v1685 = vld [vmem:[%s1633 + $0xc8] sm:$0xff]
                %1686 = vst [vmem:[%s1634 + $0x188] sm:$0xff] %v1685
                %v1687 = vld [vmem:[%s1633 + $0xd0] sm:$0xff]
                %1688 = vst [vmem:[%s1634 + $0x190] sm:$0xff] %v1687
                %v1689 = vld [vmem:[%s1633 + $0xd8] sm:$0xff]
                %1690 = vst [vmem:[%s1634 + $0x198] sm:$0xff] %v1689
                %v1691 = vld [vmem:[%s1633 + $0xe0] sm:$0xff]
                %1692 = vst [vmem:[%s1634 + $0x1c0] sm:$0xff] %v1691
                %v1693 = vld [vmem:[%s1633 + $0xe8] sm:$0xff]
                %1694 = vst [vmem:[%s1634 + $0x1c8] sm:$0xff] %v1693
                %v1695 = vld [vmem:[%s1633 + $0xf0] sm:$0xff]
                %1696 = vst [vmem:[%s1634 + $0x1d0] sm:$0xff] %v1695
                %v1697 = vld [vmem:[%s1633 + $0xf8] sm:$0xff]
                %1698 = vst [vmem:[%s1634 + $0x1d8] sm:$0xff] %v1697
                %v1699 = vld [vmem:[%s1633 + $0x100] sm:$0xff]
                %1700 = vst [vmem:[%s1634 + $0x200] sm:$0xff] %v1699
                %v1701 = vld [vmem:[%s1633 + $0x108] sm:$0xff]
                %1702 = vst [vmem:[%s1634 + $0x208] sm:$0xff] %v1701
                %v1703 = vld [vmem:[%s1633 + $0x110] sm:$0xff]
                %1704 = vst [vmem:[%s1634 + $0x210] sm:$0xff] %v1703
                %v1705 = vld [vmem:[%s1633 + $0x118] sm:$0xff]
                %1706 = vst [vmem:[%s1634 + $0x218] sm:$0xff] %v1705
                %v1707 = vld [vmem:[%s1633 + $0x120] sm:$0xff]
                %1708 = vst [vmem:[%s1634 + $0x240] sm:$0xff] %v1707
                %v1709 = vld [vmem:[%s1633 + $0x128] sm:$0xff]
                %1710 = vst [vmem:[%s1634 + $0x248] sm:$0xff] %v1709
                %v1711 = vld [vmem:[%s1633 + $0x130] sm:$0xff]
                %1712 = vst [vmem:[%s1634 + $0x250] sm:$0xff] %v1711
                %v1713 = vld [vmem:[%s1633 + $0x138] sm:$0xff]
                %1714 = vst [vmem:[%s1634 + $0x258] sm:$0xff] %v1713
                %v1715 = vld [vmem:[%s1633 + $0x140] sm:$0xff]
                %1716 = vst [vmem:[%s1634 + $0x280] sm:$0xff] %v1715
                %v1717 = vld [vmem:[%s1633 + $0x148] sm:$0xff]
                %1718 = vst [vmem:[%s1634 + $0x288] sm:$0xff] %v1717
                %v1719 = vld [vmem:[%s1633 + $0x150] sm:$0xff]
                %1720 = vst [vmem:[%s1634 + $0x290] sm:$0xff] %v1719
                %v1721 = vld [vmem:[%s1633 + $0x158] sm:$0xff]
                %1722 = vst [vmem:[%s1634 + $0x298] sm:$0xff] %v1721
                %v1723 = vld [vmem:[%s1633 + $0x160] sm:$0xff]
                %1724 = vst [vmem:[%s1634 + $0x2c0] sm:$0xff] %v1723
                %v1725 = vld [vmem:[%s1633 + $0x168] sm:$0xff]
                %1726 = vst [vmem:[%s1634 + $0x2c8] sm:$0xff] %v1725
                %v1727 = vld [vmem:[%s1633 + $0x170] sm:$0xff]
                %1728 = vst [vmem:[%s1634 + $0x2d0] sm:$0xff] %v1727
                %v1729 = vld [vmem:[%s1633 + $0x178] sm:$0xff]
                %1730 = vst [vmem:[%s1634 + $0x2d8] sm:$0xff] %v1729
                %v1731 = vld [vmem:[%s1633 + $0x180] sm:$0xff]
                %1732 = vst [vmem:[%s1634 + $0x300] sm:$0xff] %v1731
                %v1733 = vld [vmem:[%s1633 + $0x188] sm:$0xff]
                %1734 = vst [vmem:[%s1634 + $0x308] sm:$0xff] %v1733
                %v1735 = vld [vmem:[%s1633 + $0x190] sm:$0xff]
                %1736 = vst [vmem:[%s1634 + $0x310] sm:$0xff] %v1735
                %v1737 = vld [vmem:[%s1633 + $0x198] sm:$0xff]
                %1738 = vst [vmem:[%s1634 + $0x318] sm:$0xff] %v1737
                %v1739 = vld [vmem:[%s1633 + $0x1a0] sm:$0xff]
                %1740 = vst [vmem:[%s1634 + $0x340] sm:$0xff] %v1739
                %v1741 = vld [vmem:[%s1633 + $0x1a8] sm:$0xff]
                %1742 = vst [vmem:[%s1634 + $0x348] sm:$0xff] %v1741
                %v1743 = vld [vmem:[%s1633 + $0x1b0] sm:$0xff]
                %1744 = vst [vmem:[%s1634 + $0x350] sm:$0xff] %v1743
                %v1745 = vld [vmem:[%s1633 + $0x1b8] sm:$0xff]
                %1746 = vst [vmem:[%s1634 + $0x358] sm:$0xff] %v1745
              $region53: #{stdf_forward.14} parent=47 // loop_footer
                %s1632 = sadd.s32 1, %s1628
              $region54: #{stdf_forward.14} parent=47 // loop_footer_branch
                %1627 = sbr.rel target = $region50
              $region55: #{stdf_forward.14} parent=47 // loop_exit
                _
            $region48: #{stdf_forward.14} parent=43 // pred_fallthru
              _
            // Predicated region
            $region56: #{stdf_forward.14} parent=43 // pred_check
              _
            $region57: #{stdf_forward.14} parent=43 // pred_check_branch
              %1748 = sbr.rel target = $region59
            $region58: #{stdf_forward.14} parent=43 // pred_region
              _
            $region59: #{stdf_forward.14} parent=43 // pred_fallthru
              _
          $region44: #{stdf_forward.14} parent=39 // pred_fallthru
            _
          %1749 = vnop
        $region40: #{stdf_forward.14} parent=35 // pred_fallthru
          _
      $region36: #{stdf_forward.14} parent=5 // pred_fallthru
        _
      %p1750 = scmp.le.s32.totalorder 2, %s10
      // Predicated region
      $region60: #{stdf_forward.14} parent=5 // pred_check
        %p1751 = pneg %p1750
      $region61: #{stdf_forward.14} parent=5 // pred_check_branch
        %1753 = sbr.rel (%p1751) target = $region63
      $region62: #{stdf_forward.14} parent=5 // pred_region
        %s1754 = ssub.s32 %s10, 2
        // Predicated region
        $region64: #{stdf_forward.14} parent=62 // pred_check
          %p1755 = pneg %p137
        $region65: #{stdf_forward.14} parent=62 // pred_check_branch
          %1757 = sbr.rel (%p1755) target = $region67
        $region66: #{stdf_forward.14} parent=62 // pred_region
          %s1758 = sand.u32 %s122, 1
          %s1759 = sand.u32 %s122, 1
          %s1760 = smul.addr %s1759, 448
          %s1761 = scalar_lea.vmem [#allocation3], %s1760
        $region67: #{stdf_forward.14} parent=62 // pred_fallthru
          _
      $region63: #{stdf_forward.14} parent=5 // pred_fallthru
        _
    $region6: #{stdf_forward.14} parent=1 // loop_footer
      %s14 = sadd.s32 1, %s10
    $region7: #{stdf_forward.14} parent=1 // loop_footer_branch
      %9 = sbr.rel target = $region3
    $region8: #{stdf_forward.14} parent=1 // loop_exit
      _

// kernel: stdf_forward.15
$region0: #{stdf_forward.15}
  #allocation0 [shape = 'u32[]', space=smem, size = 0x4, offset = 0x4, fixed_abs, tag = 'smem constant byte address 0x4 - core index']
  #allocation1 [shape = 'u32[144,128]{1,0:T(1,128)}', space=vmem, size = 0x12000, scoped, tag = 'internal scratch']
  #allocation2 [shape = 'bf16[40,512]{1,0:T(8,128)(2,1)}', space=vmem, size = 0xa000, scoped, tag = 'scratch operand']
  %s0 = inlined_call_operand.vmem [shape: bf16[36,640], index: 0, kind: input, shape index: {}, may-alias: {0,1}]
  %s1 = inlined_call_operand.vmem [shape: bf16[36,640], index: 1, kind: input, shape index: {}, may-alias: {0,1}]
  %s2 = inlined_call_operand.vmem [shape: bf16[8,40], index: 2, kind: input, shape index: {}]
  %s3 = inlined_call_operand.vmem [shape: f32[8,1], index: 3, kind: input, shape index: {}]
  %s4 = inlined_call_operand.vmem [shape: f32[8,512], index: 4, kind: output, shape index: {}]
  %s5 = sld [smem:[#allocation0]]
  $region90: #{stdf_forward.15} parent=0
    _
  %s7 = ssub.s32 1, %s5
  %s8 = scalar_select 0, %s7, %s5
  $region1: #{stdf_forward.15} parent=0
    #allocation3 [shape = 'u8[40960]{0}', space=vmem, size = 0xa000, scoped, tag = 'input window, operand 0, single buffered']
    #allocation4 [shape = 'u8[10240]{0}', space=vmem, size = 0x2800, scoped, tag = 'input window, operand 1, single buffered']
    // Predicated region
    $region2: #{stdf_forward.15} parent=1 // pred_check
      _
    $region3: #{stdf_forward.15} parent=1 // pred_check_branch
      %10 = sbr.rel (0) target = $region5
    $region4: #{stdf_forward.15} parent=1 // pred_region
      // Predicated region
      $region6: #{stdf_forward.15} parent=4 // pred_check
        _
      $region7: #{stdf_forward.15} parent=4 // pred_check_branch
        %12 = sbr.rel (0) target = $region9
      $region8: #{stdf_forward.15} parent=4 // pred_region
        // Predicated region
        $region10: #{stdf_forward.15} parent=8 // pred_check
          _
        $region11: #{stdf_forward.15} parent=8 // pred_check_branch
          %14 = sbr.rel (0) target = $region13
        $region12: #{stdf_forward.15} parent=8 // pred_region
          loop: start=0, step=1, limit=1
          $region14: #{stdf_forward.15} parent=12 // loop_pre_header
            _
          $region15: #{stdf_forward.15} parent=12 // loop_header
            %s16 = sphi 0, %s20
            %p17 = scmp.ge.s32.totalorder %s16, 1
            %s21 = sphi %s0, %s0
            %s22 = sphi [#allocation3], [#allocation3]
          $region16: #{stdf_forward.15} parent=12 // loop_header_branch
            %19 = sbr.rel (%p17) target = $region20
          $region17: #{stdf_forward.15} parent=12 // loop_body
            %v23 = vld [vmem:[%s21] sm:$0xff]
            %24 = vst [vmem:[%s22] sm:$0xff] %v23
            %v25 = vld [vmem:[%s21 + $0x8] sm:$0xff]
            %26 = vst [vmem:[%s22 + $0x8] sm:$0xff] %v25
            %v27 = vld [vmem:[%s21 + $0x14] sm:$0xff]
            %28 = vst [vmem:[%s22 + $0x10] sm:$0xff] %v27
            %v29 = vld [vmem:[%s21 + $0x1c] sm:$0xff]
            %30 = vst [vmem:[%s22 + $0x18] sm:$0xff] %v29
            %v31 = vld [vmem:[%s21 + $0x28] sm:$0xff]
            %32 = vst [vmem:[%s22 + $0x20] sm:$0xff] %v31
            %v33 = vld [vmem:[%s21 + $0x30] sm:$0xff]
            %34 = vst [vmem:[%s22 + $0x28] sm:$0xff] %v33
            %v35 = vld [vmem:[%s21 + $0x3c] sm:$0xff]
            %36 = vst [vmem:[%s22 + $0x30] sm:$0xff] %v35
            %v37 = vld [vmem:[%s21 + $0x44] sm:$0xff]
            %38 = vst [vmem:[%s22 + $0x38] sm:$0xff] %v37
            %v39 = vld [vmem:[%s21 + $0x50] sm:$0xff]
            %40 = vst [vmem:[%s22 + $0x40] sm:$0xff] %v39
            %v41 = vld [vmem:[%s21 + $0x58] sm:$0xff]
            %42 = vst [vmem:[%s22 + $0x48] sm:$0xff] %v41
          $region18: #{stdf_forward.15} parent=12 // loop_footer
            %s20 = sadd.s32 1, %s16
          $region19: #{stdf_forward.15} parent=12 // loop_footer_branch
            %15 = sbr.rel target = $region15
          $region20: #{stdf_forward.15} parent=12 // loop_exit
            _
        $region13: #{stdf_forward.15} parent=8 // pred_fallthru
          _
        // Predicated region
        $region21: #{stdf_forward.15} parent=8 // pred_check
          _
        $region22: #{stdf_forward.15} parent=8 // pred_check_branch
          %44 = sbr.rel target = $region24
        $region23: #{stdf_forward.15} parent=8 // pred_region
          _
        $region24: #{stdf_forward.15} parent=8 // pred_fallthru
          _
      $region9: #{stdf_forward.15} parent=4 // pred_fallthru
        _
      %45 = vnop
    $region5: #{stdf_forward.15} parent=1 // pred_fallthru
      _
    // Predicated region
    $region25: #{stdf_forward.15} parent=1 // pred_check
      _
    $region26: #{stdf_forward.15} parent=1 // pred_check_branch
      %47 = sbr.rel (0) target = $region28
    $region27: #{stdf_forward.15} parent=1 // pred_region
      %s48 = sadd.s32 0, 1
      %s49 = smul.u32 %s48, 4
      %s50 = smul.addr %s49, 4
      %s51 = scalar_lea.vmem %s1, %s50
      // Predicated region
      $region29: #{stdf_forward.15} parent=27 // pred_check
        _
      $region30: #{stdf_forward.15} parent=27 // pred_check_branch
        %53 = sbr.rel (0) target = $region32
      $region31: #{stdf_forward.15} parent=27 // pred_region
        // Predicated region
        $region33: #{stdf_forward.15} parent=31 // pred_check
          _
        $region34: #{stdf_forward.15} parent=31 // pred_check_branch
          %55 = sbr.rel target = $region36
        $region35: #{stdf_forward.15} parent=31 // pred_region
          // Predicated region
          $region48: #{stdf_forward.15} parent=35 // pred_check
            _
          $region49: #{stdf_forward.15} parent=35 // pred_check_branch
            %78 = sbr.rel (0) target = $region51
          $region50: #{stdf_forward.15} parent=35 // pred_region
            loop: start=0, step=1, limit=1
            $region52: #{stdf_forward.15} parent=50 // loop_pre_header
              _
            $region53: #{stdf_forward.15} parent=50 // loop_header
              %s80 = sphi 0, %s84
              %p81 = scmp.ge.s32.totalorder %s80, 1
              %s85 = sphi %s51, %s51
              %s86 = sphi [#allocation4], [#allocation4]
            $region54: #{stdf_forward.15} parent=50 // loop_header_branch
              %83 = sbr.rel (%p81) target = $region58
            $region55: #{stdf_forward.15} parent=50 // loop_body
              _
            $region56: #{stdf_forward.15} parent=50 // loop_footer
              %s84 = sadd.s32 1, %s80
            $region57: #{stdf_forward.15} parent=50 // loop_footer_branch
              %79 = sbr.rel target = $region53
            $region58: #{stdf_forward.15} parent=50 // loop_exit
              _
            loop: start=0, step=1, limit=1
            $region59: #{stdf_forward.15} parent=50 // loop_pre_header
              _
            $region60: #{stdf_forward.15} parent=50 // loop_header
              %s89 = sphi 0, %s93
              %p90 = scmp.ge.s32.totalorder %s89, 1
              %s94 = sphi %s51, %s51
              %s95 = sphi [#allocation4], [#allocation4]
            $region61: #{stdf_forward.15} parent=50 // loop_header_branch
              %92 = sbr.rel (%p90) target = $region65
            $region62: #{stdf_forward.15} parent=50 // loop_body
              %v96 = vld [vmem:[%s94] sm:$0xf]
              %97 = vst [vmem:[%s95] sm:$0xf] %v96
              %v98 = vld [vmem:[%s94 + $0x14] sm:$0xf]
              %99 = vst [vmem:[%s95 + $0x4] sm:$0xf] %v98
              %v100 = vld [vmem:[%s94 + $0x28] sm:$0xf]
              %101 = vst [vmem:[%s95 + $0x8] sm:$0xf] %v100
              %v102 = vld [vmem:[%s94 + $0x3c] sm:$0xf]
              %103 = vst [vmem:[%s95 + $0xc] sm:$0xf] %v102
              %v104 = vld [vmem:[%s94 + $0x50] sm:$0xf]
              %105 = vst [vmem:[%s95 + $0x10] sm:$0xf] %v104
            $region63: #{stdf_forward.15} parent=50 // loop_footer
              %s93 = sadd.s32 1, %s89
            $region64: #{stdf_forward.15} parent=50 // loop_footer_branch
              %88 = sbr.rel target = $region60
            $region65: #{stdf_forward.15} parent=50 // loop_exit
              _
          $region51: #{stdf_forward.15} parent=35 // pred_fallthru
            _
        $region36: #{stdf_forward.15} parent=31 // pred_fallthru
          _
        // Predicated region
        $region37: #{stdf_forward.15} parent=31 // pred_check
          _
        $region38: #{stdf_forward.15} parent=31 // pred_check_branch
          %57 = sbr.rel (0) target = $region40
        $region39: #{stdf_forward.15} parent=31 // pred_region
          loop: start=0, step=1, limit=1
          $region41: #{stdf_forward.15} parent=39 // loop_pre_header
            _
          $region42: #{stdf_forward.15} parent=39 // loop_header
            %s60 = sphi 0, %s64
            %p61 = scmp.ge.s32.totalorder %s60, 1
            %s65 = sphi %s51, %s51
            %s66 = sphi [#allocation4], [#allocation4]
          $region43: #{stdf_forward.15} parent=39 // loop_header_branch
            %63 = sbr.rel (%p61) target = $region47
          $region44: #{stdf_forward.15} parent=39 // loop_body
            %v67 = vld [vmem:[%s65] sm:$0xf]
            %68 = vst [vmem:[%s66] sm:$0xf] %v67
            %v69 = vld [vmem:[%s65 + $0x14] sm:$0xf]
            %70 = vst [vmem:[%s66 + $0x4] sm:$0xf] %v69
            %v71 = vld [vmem:[%s65 + $0x28] sm:$0xf]
            %72 = vst [vmem:[%s66 + $0x8] sm:$0xf] %v71
            %v73 = vld [vmem:[%s65 + $0x3c] sm:$0xf]
            %74 = vst [vmem:[%s66 + $0xc] sm:$0xf] %v73
            %v75 = vld [vmem:[%s65 + $0x50] sm:$0xf]
            %76 = vst [vmem:[%s66 + $0x10] sm:$0xf] %v75
          $region45: #{stdf_forward.15} parent=39 // loop_footer
            %s64 = sadd.s32 1, %s60
          $region46: #{stdf_forward.15} parent=39 // loop_footer_branch
            %59 = sbr.rel target = $region42
          $region47: #{stdf_forward.15} parent=39 // loop_exit
            _
        $region40: #{stdf_forward.15} parent=31 // pred_fallthru
          _
      $region32: #{stdf_forward.15} parent=27 // pred_fallthru
        _
      %106 = vnop
    $region28: #{stdf_forward.15} parent=1 // pred_fallthru
      _
    // Predicated region
    $region66: #{stdf_forward.15} parent=1 // pred_check
      _
    $region67: #{stdf_forward.15} parent=1 // pred_check_branch
      %108 = sbr.rel (0) target = $region69
    $region68: #{stdf_forward.15} parent=1 // pred_region
      _
    $region69: #{stdf_forward.15} parent=1 // pred_fallthru
      _
    // Predicated region
    $region70: #{stdf_forward.15} parent=1 // pred_check
      _
    $region71: #{stdf_forward.15} parent=1 // pred_check_branch
      %110 = sbr.rel (0) target = $region73
    $region72: #{stdf_forward.15} parent=1 // pred_region
      _
    $region73: #{stdf_forward.15} parent=1 // pred_fallthru
      _
    // Predicated region
    $region74: #{stdf_forward.15} parent=1 // pred_check
      _
    $region75: #{stdf_forward.15} parent=1 // pred_check_branch
      %112 = sbr.rel (0) target = $region77
    $region76: #{stdf_forward.15} parent=1 // pred_region
      _
    $region77: #{stdf_forward.15} parent=1 // pred_fallthru
      _
    // Predicated region
    $region78: #{stdf_forward.15} parent=1 // pred_check
      _
    $region79: #{stdf_forward.15} parent=1 // pred_check_branch
      %114 = sbr.rel (0) target = $region81
    $region80: #{stdf_forward.15} parent=1 // pred_region
      _
    $region81: #{stdf_forward.15} parent=1 // pred_fallthru
      _
    %s115 = sadd.s32 0, 1
    %s116 = smul.u32 %s115, 4
    %v118 = vld [vmem:[#allocation3] sm:$0xff]
    %v119 = vld [vmem:[#allocation3 + $0x8] sm:$0xff]
    %v120 = vld [vmem:[#allocation3 + $0x10] sm:$0xff]
    %v121 = vld [vmem:[#allocation3 + $0x18] sm:$0xff]
    %v122 = vld [vmem:[#allocation3 + $0x20] sm:$0xff]
    %v123 = vld [vmem:[#allocation3 + $0x28] sm:$0xff]
    %v124 = vld [vmem:[#allocation3 + $0x30] sm:$0xff]
    %v125 = vld [vmem:[#allocation3 + $0x38] sm:$0xff]
    %v126 = vld [vmem:[#allocation3 + $0x40] sm:$0x33]
    %v127 = vld [vmem:[#allocation3 + $0x48] sm:$0x33]
    %128 = vst [vmem:[#allocation2] sm:$0xff] %v118
    %129 = vst [vmem:[#allocation2 + $0x8] sm:$0xff] %v119
    %130 = vst [vmem:[#allocation2 + $0x10] sm:$0xff] %v120
    %131 = vst [vmem:[#allocation2 + $0x18] sm:$0xff] %v121
    %132 = vst [vmem:[#allocation2 + $0x20] sm:$0xff] %v122
    %133 = vst [vmem:[#allocation2 + $0x28] sm:$0xff] %v123
    %134 = vst [vmem:[#allocation2 + $0x30] sm:$0xff] %v124
    %135 = vst [vmem:[#allocation2 + $0x38] sm:$0xff] %v125
    %136 = vst [vmem:[#allocation2 + $0x40] sm:$0x33] %v126
    %137 = vst [vmem:[#allocation2 + $0x48] sm:$0x33] %v127
    %138 = vst [vmem:[#allocation2 + $0x40] sm:$0xcc] 0
    %139 = vst [vmem:[#allocation2 + $0x48] sm:$0xcc] 0
    %v140 = vld [vmem:[%s2] sm:$0xf]
    %v141 = vld [vmem:[%s3] sm:$0xff]
    %v142 = vld [vmem:[#allocation2] sm:$0xff]
    %v143 = vld [vmem:[#allocation2 + $0x8] sm:$0xff]
    %v144 = vld [vmem:[#allocation2 + $0x10] sm:$0xff]
    %v145 = vld [vmem:[#allocation2 + $0x18] sm:$0xff]
    %v146 = vld [vmem:[#allocation2 + $0x20] sm:$0xff]
    %v147 = vld [vmem:[#allocation2 + $0x28] sm:$0xff]
    %v148 = vld [vmem:[#allocation2 + $0x30] sm:$0xff]
    %v149 = vld [vmem:[#allocation2 + $0x38] sm:$0xff]
    %v150 = vld [vmem:[#allocation2 + $0x40] sm:$0xff]
    %v151 = vld [vmem:[#allocation2 + $0x48] sm:$0xff]
    %153 = vset.pattern.permute.xlu0 0
    %154 = vperm.xlu0 %153, %v141
    %v155 = vpop.permute.xlu0 %154
    %v167 = vunpack.c.l.b16 %v142
    %v168 = vunpack.c.h.b16 %v142
    %v169 = vunpack.c.l.b16 %v143
    %v170 = vunpack.c.h.b16 %v143
    %v171 = vunpack.c.l.b16 %v144
    %v172 = vunpack.c.h.b16 %v144
    %v173 = vunpack.c.l.b16 %v145
    %v174 = vunpack.c.h.b16 %v145
    %v175 = vunpack.c.l.b16 %v146
    %v176 = vunpack.c.h.b16 %v146
    %v177 = vunpack.c.l.b16 %v147
    %v178 = vunpack.c.h.b16 %v147
    %v179 = vunpack.c.l.b16 %v148
    %v180 = vunpack.c.h.b16 %v148
    %v181 = vunpack.c.l.b16 %v149
    %v182 = vunpack.c.h.b16 %v149
    %v183 = vunpack.c.l.b16 %v150
    %v184 = vunpack.c.h.b16 %v150
    %v185 = vunpack.c.l.b16 %v151
    %v186 = vunpack.c.h.b16 %v151
    %v187 = vpack.c.b16 %v171, %v167
    %v188 = vpack.c.b16 %v172, %v168
    %v189 = vpack.c.b16 %v173, %v169
    %v190 = vpack.c.b16 %v174, %v170
    %v191 = vpack.c.b16 %v179, %v175
    %v192 = vpack.c.b16 %v180, %v176
    %v193 = vpack.c.b16 %v181, %v177
    %v194 = vpack.c.b16 %v182, %v178
    %v195 = vpack.c.b16 %v183, %v183
    %v196 = vpack.c.b16 %v184, %v184
    %v197 = vpack.c.b16 %v185, %v185
    %v198 = vpack.c.b16 %v186, %v186
    %vm207 = vcmask 326656
    %v209 = vsel %vm207, %v140, 0
    %vm211 = vcmask 1043456
    %v213 = vsel %vm211, %v195, 0
    %v216 = vsel %vm211, %v196, 0
    %v219 = vsel %vm211, %v197, 0
    %v222 = vsel %vm211, %v198, 0
    %224 = vmatprep.subr.bf16.mxu0 %v188
    %225 = vmatpush1.bf16.msra.mxu0 %v187
    %226 = vmatprep.subr.bf16.mxu0 %v192
    %227 = vmatpush1.bf16.msra.mxu0 %v191
    %228 = vmatprep.subr.bf16.mxu0 %v216
    %229 = vmatpush1.bf16.msra.mxu0 %v213
    %230 = vmatprep.subr.bf16.mxu0 0
    %231 = vmatpush1.bf16.msra.mxu0 0
    %232 = vmatprep.subr.bf16.mxu0 0
    %233 = vmatpush1.bf16.msra.mxu0 0
    %234 = vmatprep.subr.bf16.mxu0 0
    %235 = vmatpush1.bf16.msra.mxu0 0
    %236 = vmatprep.subr.bf16.mxu0 0
    %237 = vmatpush1.bf16.msra.mxu0 0
    %238 = vmatprep.subr.bf16.mxu0 0
    %239 = vmatpush1.bf16.msra.mxu0 0
    %240 = vmatprep.subr.bf16.mxu0 0
    %241 = vmatpush1.bf16.msra.mxu0 0
    %242 = vmatprep.subr.bf16.mxu0 0
    %243 = vmatpush1.bf16.msra.mxu0 0
    %244 = vmatprep.subr.bf16.mxu0 0
    %245 = vmatpush1.bf16.msra.mxu0 0
    %246 = vmatprep.subr.bf16.mxu0 0
    %247 = vmatpush1.bf16.msra.mxu0 0
    %248 = vmatprep.subr.bf16.mxu0 0
    %249 = vmatpush1.bf16.msra.mxu0 0
    %250 = vmatprep.subr.bf16.mxu0 0
    %251 = vmatpush1.bf16.msra.mxu0 0
    %252 = vmatprep.subr.bf16.mxu0 0
    %253 = vmatpush1.bf16.msra.mxu0 0
    %254 = vmatprep.subr.bf16.mxu0 0
    %255 = vmatpush1.bf16.msra.mxu0 0
    %256 = vmatprep.mubr.bf16.mxu0 0
    %257 = vmatmul.mubr.bf16.gmra.mrb[0].mxu0 %v209
    %v258 = vpop.f32.mrb[0].mxu0
    %v259 = vadd.f32 %v155, %v258
    %v260 = vpop.f32.mrb[0].mxu0
    %v261 = vadd.f32 %v155, %v260
    %v262 = vpop.f32.mrb[0].mxu0
    %v263 = vpop.f32.mrb[0].mxu0
    %264 = vdwg.mxu0
    %265 = vmatprep.subr.bf16.mxu0 %v190
    %266 = vmatpush1.bf16.msra.mxu0 %v189
    %267 = vmatprep.subr.bf16.mxu0 %v194
    %268 = vmatpush1.bf16.msra.mxu0 %v193
    %269 = vmatprep.subr.bf16.mxu0 %v222
    %270 = vmatpush1.bf16.msra.mxu0 %v219
    %271 = vmatprep.subr.bf16.mxu0 0
    %272 = vmatpush1.bf16.msra.mxu0 0
    %273 = vmatprep.subr.bf16.mxu0 0
    %274 = vmatpush1.bf16.msra.mxu0 0
    %275 = vmatprep.subr.bf16.mxu0 0
    %276 = vmatpush1.bf16.msra.mxu0 0
    %277 = vmatprep.subr.bf16.mxu0 0
    %278 = vmatpush1.bf16.msra.mxu0 0
    %279 = vmatprep.subr.bf16.mxu0 0
    %280 = vmatpush1.bf16.msra.mxu0 0
    %281 = vmatprep.subr.bf16.mxu0 0
    %282 = vmatpush1.bf16.msra.mxu0 0
    %283 = vmatprep.subr.bf16.mxu0 0
    %284 = vmatpush1.bf16.msra.mxu0 0
    %285 = vmatprep.subr.bf16.mxu0 0
    %286 = vmatpush1.bf16.msra.mxu0 0
    %287 = vmatprep.subr.bf16.mxu0 0
    %288 = vmatpush1.bf16.msra.mxu0 0
    %289 = vmatprep.subr.bf16.mxu0 0
    %290 = vmatpush1.bf16.msra.mxu0 0
    %291 = vmatprep.subr.bf16.mxu0 0
    %292 = vmatpush1.bf16.msra.mxu0 0
    %293 = vmatprep.subr.bf16.mxu0 0
    %294 = vmatpush1.bf16.msra.mxu0 0
    %295 = vmatprep.subr.bf16.mxu0 0
    %296 = vmatpush1.bf16.msra.mxu0 0
    %297 = vmatprep.mubr.bf16.mxu0 0
    %298 = vmatmul.mubr.bf16.gmra.mrb[0].mxu0 %v209
    %v299 = vpop.f32.mrb[0].mxu0
    %v300 = vadd.f32 %v155, %v299
    %v301 = vpop.f32.mrb[0].mxu0
    %v302 = vadd.f32 %v155, %v301
    %v303 = vpop.f32.mrb[0].mxu0
    %v304 = vpop.f32.mrb[0].mxu0
    %305 = vdwg.mxu0
    %v306 = vmax.f32 %v259, 0.0
    %v307 = vmax.f32 %v261, 0.0
    %v308 = vmax.f32 %v300, 0.0
    %v309 = vmax.f32 %v302, 0.0
    %310 = vst [vmem:[%s4] sm:$0xff] %v306
    %311 = vst [vmem:[%s4 + $0x8] sm:$0xff] %v307
    %312 = vst [vmem:[%s4 + $0x10] sm:$0xff] %v308
    %313 = vst [vmem:[%s4 + $0x18] sm:$0xff] %v309
    // Predicated region
    $region82: #{stdf_forward.15} parent=1 // pred_check
      _
    $region83: #{stdf_forward.15} parent=1 // pred_check_branch
      %315 = sbr.rel (0) target = $region85
    $region84: #{stdf_forward.15} parent=1 // pred_region
      _
    $region85: #{stdf_forward.15} parent=1 // pred_fallthru
      _
    // Predicated region
    $region86: #{stdf_forward.15} parent=1 // pred_check
      _
    $region87: #{stdf_forward.15} parent=1 // pred_check_branch
      %317 = sbr.rel (0) target = $region89
    $region88: #{stdf_forward.15} parent=1 // pred_region
      _
    $region89: #{stdf_forward.15} parent=1 // pred_fallthru
      _

</llo_original>
